<compile_context>
chip_gen: v7x
topology: tpu7x:2x2x1
jax: 0.10.0
libtpu: 0.0.40
codegen_flags: <defaults>
</compile_context>

<pallas_src>
import math

import numpy as np
import jax
import jax.numpy as jnp
from jax.experimental import pallas as pl
from jax.experimental.pallas import tpu as pltpu

# ----------------------------------------------------------------------------
# Fixed (small) model configuration — banded weights are built for these shapes.
# ----------------------------------------------------------------------------
IMG_H, IMG_W, CIN = 32, 32, 3
C1, C2 = 16, 32                 # backbone conv channels
HF, WF = IMG_H // 2, IMG_W // 2  # feature map after stride-2 conv2
H2 = IMG_H // 2                  # even/odd row-plane height (== HF)
NUM_CLASSES = 10
NUM_ANCHORS = 3
ANCHOR_SIZES = (4.0, 8.0, 16.0)
TOPK = 16                        # proposals kept per image
POOL = 2                         # ROI pool output resolution
HID = 64                         # ROI box-head hidden width
RPN_PER = 16                     # per-position RPN head lanes (3 obj + 12 box + 1 pad)
K1 = IMG_W * CIN                 # conv1 matmul K             (96)
L1 = IMG_W * C1                  # conv1 output lane width    (512)
LF = WF * C2                     # feature lane width         (512)
LR = WF * RPN_PER                # RPN raw output lane width  (256)
LCLS = 128                       # padded classifier lanes
LROI = 128                       # ROI head lane width (POOL*POOL*C2 == 128)
BBOX_XFORM_CLIP = math.log(1000.0 / 16.0)


# ----------------------------------------------------------------------------
# Pallas kernels
# ----------------------------------------------------------------------------
def _backbone_rpn_kernel(xe_ref, xo_ref, w1_ref, b1_ref, w2_ref, b2_ref,
                         wc_ref, bc_ref, wr_ref, br_ref, wh_ref, bh_ref,
                         feat_ref, logits_ref, rpn_ref):
    """Per-image fused backbone (conv1, conv2 s2, GAP+cls) + RPN (conv + head).

    Activations use the (rows, W*C) layout; the width window / stride / pad are
    folded into the banded weights, so each conv is 3 contiguous-row matmuls
    per output row-parity.  All intermediates stay in VMEM / vregs.
    """
    dot = lambda a, b: jnp.dot(a, b, preferred_element_type=jnp.float32)

    xe = xe_ref[0]                                       # (H2, K1) even image rows
    xo = xo_ref[0]                                       # (H2, K1) odd image rows
    z1 = jnp.zeros((1, K1), jnp.bfloat16)

    # conv1 (3x3, stride 1, pad 1) — outputs split by row parity.
    #   padded-row planes:  even rows 0,2,..,32 = [0, xo];  odd rows 1,..,33 = [xe, 0]
    pe_lo = jnp.concatenate([z1, xo[:H2 - 1]], axis=0)   # padded even rows 0..2H2-2
    po_hi = jnp.concatenate([xe[1:], z1], axis=0)        # padded odd rows 3..2H2+1
    f1e = dot(pe_lo, w1_ref[0]) + dot(xe, w1_ref[1]) + dot(xo, w1_ref[2])
    f1o = dot(xe, w1_ref[0]) + dot(xo, w1_ref[1]) + dot(po_hi, w1_ref[2])
    f1e = jnp.maximum(f1e + b1_ref[...], 0.0).astype(jnp.bfloat16)   # (H2, L1)
    f1o = jnp.maximum(f1o + b1_ref[...], 0.0).astype(jnp.bfloat16)

    # conv2 (3x3, stride 2, pad 1): output row i uses f1 rows 2i-1, 2i, 2i+1.
    z2 = jnp.zeros((1, L1), jnp.bfloat16)
    f1o_up = jnp.concatenate([z2, f1o[:H2 - 1]], axis=0)             # f1 rows -1,1,..
    feat = dot(f1o_up, w2_ref[0]) + dot(f1e, w2_ref[1]) + dot(f1o, w2_ref[2])
    feat = jnp.maximum(feat + b2_ref[...], 0.0)                      # (HF, LF) f32
    feat_bf = feat.astype(jnp.bfloat16)
    feat_ref[0] = feat_bf

    # Global-average-pool + image classifier (1/(HF*WF) pre-folded into wc).
    colsum = jnp.sum(feat, axis=0, keepdims=True).astype(jnp.bfloat16)   # (1, LF)
    logits_ref[0] = dot(colsum, wc_ref[...]) + bc_ref[...]

    # RPN: 3x3 conv + ReLU fused with the concatenated obj/box 1x1 head
    # (block-diagonal weights).  The hidden activation never leaves VMEM.
    z3 = jnp.zeros((1, LF), jnp.bfloat16)
    f_up = jnp.concatenate([z3, feat_bf[:HF - 1]], axis=0)
    f_dn = jnp.concatenate([feat_bf[1:], z3], axis=0)
    hid = dot(f_up, wr_ref[0]) + dot(feat_bf, wr_ref[1]) + dot(f_dn, wr_ref[2])
    hid = jnp.maximum(hid + br_ref[...], 0.0).astype(jnp.bfloat16)
    rpn_ref[0] = (dot(hid, wh_ref[...]) + bh_ref[...]).astype(jnp.bfloat16)


def _roi_head_kernel(x_ref, w1_ref, b1_ref, w2_ref, b2_ref, w3_ref, b3_ref, o_ref):
    """Fused ROI box head: fc1 -> ReLU -> fc2 -> ReLU -> [cls | reg]."""
    dot = lambda a, b: jnp.dot(a, b, preferred_element_type=jnp.float32)
    h = jnp.maximum(dot(x_ref[...], w1_ref[...]) + b1_ref[...], 0.0).astype(jnp.bfloat16)
    h = jnp.maximum(dot(h, w2_ref[...]) + b2_ref[...], 0.0).astype(jnp.bfloat16)
    o_ref[...] = dot(h, w3_ref[...]) + b3_ref[...]


# ----------------------------------------------------------------------------
# Parameters — banded / fused / padded ONCE at init time (numpy, off hot path)
# ----------------------------------------------------------------------------
def _conv_band(w, w_in_len, stride, w_out_len):
    """(Cout, Cin, 3, 3) torch-layout conv weight -> 3 banded tap matrices of
    shape (w_in_len*Cin, w_out_len*Cout).  The width window, stride and width
    zero-padding are all folded into the band so the kernel handles only the
    three height taps (di = 0, 1, 2)."""
    cout, cin, kh, kw = w.shape
    band = np.zeros((kh, w_in_len * cin, w_out_len * cout), np.float32)
    for di in range(kh):
        for j in range(w_out_len):
            for dj in range(kw):
                wi = stride * j + dj - 1
                if 0 <= wi < w_in_len:
                    band[di, wi * cin:(wi + 1) * cin,
                         j * cout:(j + 1) * cout] = w[:, :, di, dj].T
    return band


def init_params(key):
    keys = jax.random.split(key, 10)

    def w(k, shape, scale=0.05):
        return np.asarray(jax.random.normal(k, shape, jnp.float32)) * scale

    conv1_w = w(keys[0], (C1, CIN, 3, 3))
    conv2_w = w(keys[1], (C2, C1, 3, 3))
    cls_w = w(keys[2], (C2, NUM_CLASSES))
    rpn_conv_w = w(keys[3], (C2, C2, 3, 3))
    rpn_obj_w = w(keys[4], (C2, NUM_ANCHORS))
    rpn_box_w = w(keys[5], (C2, 4 * NUM_ANCHORS))
    fc1_w = w(keys[6], (C2 * POOL * POOL, HID))
    fc2_w = w(keys[7], (HID, HID))
    box_cls_w = w(keys[8], (HID, NUM_CLASSES))
    box_reg_w = w(keys[9], (HID, 4 * NUM_CLASSES))

    w1 = _conv_band(conv1_w, IMG_W, 1, IMG_W)           # (3, K1, L1)
    w2 = _conv_band(conv2_w, IMG_W, 2, WF)              # (3, L1, LF)
    wr = _conv_band(rpn_conv_w, WF, 1, WF)              # (3, LF, LF)

    # GAP + classifier folded into a single (LF, 128) matmul: weight tiled over
    # the W positions and pre-scaled by 1/(HF*WF).
    wcls = np.zeros((LF, LCLS), np.float32)
    for j in range(WF):
        wcls[j * C2:(j + 1) * C2, :NUM_CLASSES] = cls_w / float(HF * WF)

    # RPN obj(3) + box(12) heads fused and expanded block-diagonally over W.
    head_w = np.concatenate([rpn_obj_w, rpn_box_w], axis=1)          # (C2, 15)
    wh = np.zeros((LF, LR), np.float32)
    for j in range(WF):
        wh[j * C2:(j + 1) * C2, j * RPN_PER:j * RPN_PER + head_w.shape[1]] = head_w

    def pad_sq(a):
        out = np.zeros((LROI, LROI), np.float32)
        out[:a.shape[0], :a.shape[1]] = a
        return out

    box_head_w = np.concatenate([box_cls_w, box_reg_w], axis=1)      # (HID, 50)

    bf = lambda a: jnp.asarray(a, jnp.bfloat16)
    zb = lambda n: jnp.zeros((1, n), jnp.float32)        # all biases are zero-init

    return {
        'w1': bf(w1), 'b1': zb(L1),
        'w2': bf(w2), 'b2': zb(LF),
        'wcls': bf(wcls), 'bcls': zb(LCLS),
        'wr': bf(wr), 'br': zb(LF),
        'wh': bf(wh), 'bh': zb(LR),
        'fc1_w': bf(pad_sq(fc1_w)), 'fc1_b': zb(LROI),
        'fc2_w': bf(pad_sq(fc2_w)), 'fc2_b': zb(LROI),
        'box_head_w': bf(pad_sq(box_head_w)), 'box_head_b': zb(LROI),
    }


# ----------------------------------------------------------------------------
# transform + backbone + RPN head (one Pallas kernel per image)
# ----------------------------------------------------------------------------
def backbone_rpn(params, images):
    N = images.shape[0]
    # GeneralizedRCNNTransform stand-in: global normalization, NCHW -> (H, W*C).
    x = (images - images.mean()) / (images.std() + 1e-5)
    x = jnp.transpose(x, (0, 2, 3, 1)).reshape(N, IMG_H, K1).astype(jnp.bfloat16)
    xe, xo = x[:, 0::2, :], x[:, 1::2, :]                # row-parity planes (tiny)

    feat, logits, rpn_raw = pl.pallas_call(
        _backbone_rpn_kernel,
        out_shape=(jax.ShapeDtypeStruct((N, HF, LF), jnp.bfloat16),
                   jax.ShapeDtypeStruct((N, 1, LCLS), jnp.float32),
                   jax.ShapeDtypeStruct((N, HF, LR), jnp.bfloat16)),
        grid=(N,),
        in_specs=[
            pl.BlockSpec((1, H2, K1), lambda n: (n, 0, 0)),
            pl.BlockSpec((1, H2, K1), lambda n: (n, 0, 0)),
            pl.BlockSpec((3, K1, L1), lambda n: (0, 0, 0)),
            pl.BlockSpec((1, L1), lambda n: (0, 0)),
            pl.BlockSpec((3, L1, LF), lambda n: (0, 0, 0)),
            pl.BlockSpec((1, LF), lambda n: (0, 0)),
            pl.BlockSpec((LF, LCLS), lambda n: (0, 0)),
            pl.BlockSpec((1, LCLS), lambda n: (0, 0)),
            pl.BlockSpec((3, LF, LF), lambda n: (0, 0, 0)),
            pl.BlockSpec((1, LF), lambda n: (0, 0)),
            pl.BlockSpec((LF, LR), lambda n: (0, 0)),
            pl.BlockSpec((1, LR), lambda n: (0, 0)),
        ],
        out_specs=(
            pl.BlockSpec((1, HF, LF), lambda n: (n, 0, 0)),
            pl.BlockSpec((1, 1, LCLS), lambda n: (n, 0, 0)),
            pl.BlockSpec((1, HF, LR), lambda n: (n, 0, 0)),
        ),
        compiler_params=pltpu.CompilerParams(
            dimension_semantics=("parallel",),          # batch=2 -> both v7x TCs
            vmem_limit_bytes=32 * 1024 * 1024),
    )(xe, xo, params['w1'], params['b1'], params['w2'], params['b2'],
      params['wcls'], params['bcls'], params['wr'], params['br'],
      params['wh'], params['bh'])

    return feat, logits[:, 0, :NUM_CLASSES], rpn_raw


# ----------------------------------------------------------------------------
# RPN post-processing (XLA: anchor decode + top-k proposal selection)
# ----------------------------------------------------------------------------
def make_anchors(Hf, Wf, stride_h, stride_w):
    ys = (jnp.arange(Hf, dtype=jnp.float32) + 0.5) * stride_h
    xs = (jnp.arange(Wf, dtype=jnp.float32) + 0.5) * stride_w
    cy, cx = jnp.meshgrid(ys, xs, indexing='ij')
    half = jnp.array(ANCHOR_SIZES, jnp.float32) / 2.0
    x1 = cx[..., None] - half
    y1 = cy[..., None] - half
    x2 = cx[..., None] + half
    y2 = cy[..., None] + half
    return jnp.stack([x1, y1, x2, y2], axis=-1).reshape(-1, 4)


def decode_boxes(anchors, deltas):
    wa = anchors[..., 2] - anchors[..., 0]
    ha = anchors[..., 3] - anchors[..., 1]
    cxa = anchors[..., 0] + 0.5 * wa
    cya = anchors[..., 1] + 0.5 * ha
    dx, dy, dw, dh = deltas[..., 0], deltas[..., 1], deltas[..., 2], deltas[..., 3]
    cx = dx * wa + cxa
    cy = dy * ha + cya
    w = jnp.exp(jnp.clip(dw, -BBOX_XFORM_CLIP, BBOX_XFORM_CLIP)) * wa
    h = jnp.exp(jnp.clip(dh, -BBOX_XFORM_CLIP, BBOX_XFORM_CLIP)) * ha
    return jnp.stack([cx - 0.5 * w, cy - 0.5 * h, cx + 0.5 * w, cy + 0.5 * h], axis=-1)


def _clip_boxes(boxes, image_size):
    H_img, W_img = image_size
    return jnp.stack([
        jnp.clip(boxes[..., 0], 0.0, float(W_img)),
        jnp.clip(boxes[..., 1], 0.0, float(H_img)),
        jnp.clip(boxes[..., 2], 0.0, float(W_img)),
        jnp.clip(boxes[..., 3], 0.0, float(H_img)),
    ], axis=-1)


def rpn_postprocess(rpn_raw, image_size):
    N = rpn_raw.shape[0]
    r = rpn_raw.reshape(N, HF, WF, RPN_PER).astype(jnp.float32)
    obj = r[..., :NUM_ANCHORS].reshape(N, HF * WF * NUM_ANCHORS)
    deltas = r[..., NUM_ANCHORS:NUM_ANCHORS + 4 * NUM_ANCHORS].reshape(
        N, HF * WF * NUM_ANCHORS, 4)
    anchors = make_anchors(HF, WF, image_size[0] / HF, image_size[1] / WF)
    proposals = _clip_boxes(decode_boxes(anchors[None], deltas), image_size)
    # TODO(synk): full RPN applies NMS to proposals; plain top-k is used here.
    scores, idx = jax.lax.top_k(obj, TOPK)
    top_props = jnp.take_along_axis(proposals, idx[..., None], axis=1)   # (N, K, 4)
    return top_props, jax.nn.sigmoid(scores)


# ----------------------------------------------------------------------------
# ROI heads
# ----------------------------------------------------------------------------
def roi_pool(features, rois, stride_h, stride_w, pool=POOL):
    # features: (N, Hf, Wf, C) NHWC; rois: (N, K, 4) in image coords.
    # TODO(synk): nearest-neighbour sampling stands in for RoIAlign; the
    # data-dependent gather is kept in XLA.
    N, Hf, Wf, C = features.shape

    def one_img(feat, boxes):
        def one_box(box):
            x1, x2 = box[0] / stride_w, box[2] / stride_w
            y1, y2 = box[1] / stride_h, box[3] / stride_h
            xs = x1 + (jnp.arange(pool, dtype=jnp.float32) + 0.5) * (x2 - x1) / pool
            ys = y1 + (jnp.arange(pool, dtype=jnp.float32) + 0.5) * (y2 - y1) / pool
            xi = jnp.clip(jnp.floor(xs).astype(jnp.int32), 0, Wf - 1)
            yi = jnp.clip(jnp.floor(ys).astype(jnp.int32), 0, Hf - 1)
            samp = feat[yi[:, None], xi[None, :], :]               # (pool, pool, C)
            return samp.reshape(-1)
        return jax.vmap(one_box)(boxes)
    return jax.vmap(one_img)(features, rois)                       # (N, K, pool*pool*C)


def roi_heads(params, feats, proposals, image_size):
    N = feats.shape[0]
    feats_nhwc = feats.reshape(N, HF, WF, C2)
    stride_h = image_size[0] / HF
    stride_w = image_size[1] / WF
    pooled = roi_pool(feats_nhwc, proposals, stride_h, stride_w, POOL)  # (N, K, 128)

    M = N * TOPK                                   # 32 rows, already a multiple of 8
    # pooled is exactly 128-wide (POOL*POOL*C2) -> no hot-path zero padding needed.
    # TODO(synk): torchvision flattens pooled features channel-first (C, y, x);
    # the synthetic fc1 weights here use (y, x, C) order, consistent in-script.
    x = pooled.reshape(M, POOL * POOL * C2).astype(jnp.bfloat16)

    out = pl.pallas_call(
        _roi_head_kernel,
        out_shape=jax.ShapeDtypeStruct((M, LROI), jnp.float32),
        grid=(1,),
        in_specs=[
            pl.BlockSpec((M, LROI), lambda i: (0, 0)),
            pl.BlockSpec((LROI, LROI), lambda i: (0, 0)),
            pl.BlockSpec((1, LROI), lambda i: (0, 0)),
            pl.BlockSpec((LROI, LROI), lambda i: (0, 0)),
            pl.BlockSpec((1, LROI), lambda i: (0, 0)),
            pl.BlockSpec((LROI, LROI), lambda i: (0, 0)),
            pl.BlockSpec((1, LROI), lambda i: (0, 0)),
        ],
        out_specs=pl.BlockSpec((M, LROI), lambda i: (0, 0)),
    )(x, params['fc1_w'], params['fc1_b'], params['fc2_w'], params['fc2_b'],
      params['box_head_w'], params['box_head_b'])

    cls = out[:, :NUM_CLASSES].reshape(N, TOPK, NUM_CLASSES)
    reg = out[:, NUM_CLASSES:5 * NUM_CLASSES].reshape(N, TOPK, NUM_CLASSES, 4)
    probs = jax.nn.softmax(cls, axis=-1)
    labels = jnp.argmax(probs, axis=-1)                            # (N, K)
    scores = jnp.max(probs, axis=-1)                               # (N, K)
    onehot = jax.nn.one_hot(labels, NUM_CLASSES, dtype=reg.dtype)
    sel_reg = jnp.einsum('nkc,nkcd->nkd', onehot, reg)             # (N, K, 4)
    boxes = _clip_boxes(decode_boxes(proposals, sel_reg), image_size)
    # TODO(synk): per-class NMS / score thresholding of detections not implemented.
    return boxes, scores, labels


# ----------------------------------------------------------------------------
# GeneralizedRCNN.forward (eval-mode path): returns (detections, logits)
# ----------------------------------------------------------------------------
def generalized_rcnn_forward(params, images, targets=None):
    original_image_sizes = [(images.shape[-2], images.shape[-1])] * images.shape[0]
    feats, logits, rpn_raw = backbone_rpn(params, images)
    image_size = original_image_sizes[0]
    proposals, proposal_scores = rpn_postprocess(rpn_raw, image_size)
    boxes, scores, labels = roi_heads(params, feats, proposals, image_size)
    detections = [
        {'boxes': boxes[i], 'scores': scores[i], 'labels': labels[i]}
        for i in range(images.shape[0])
    ]
    # eval mode: eager_outputs returns detections; losses stay empty.
    return detections, logits


if __name__ == "__main__":
    key = jax.random.PRNGKey(0)
    pkey, ikey = jax.random.split(key)
    params = init_params(pkey)
    images = jax.random.uniform(ikey, (2, CIN, IMG_H, IMG_W), dtype=jnp.float32)

    forward = jax.jit(generalized_rcnn_forward)
    detections, logits = forward(params, images)

    jax.block_until_ready(logits)
    for det in detections:
        jax.block_until_ready(det['boxes'])
        jax.block_until_ready(det['scores'])
        jax.block_until_ready(det['labels'])

    assert logits.shape == (2, NUM_CLASSES)
    assert detections[0]['boxes'].shape == (TOPK, 4)
    print("KERNEL_OK")
</pallas_src>

<mosaic_0001>
module attributes {stable_mosaic.version = 11 : i64} {
  func.func @_backbone_rpn_kernel(%arg0: i32, %arg1: memref<1x16x96xbf16, #tpu.memory_space<vmem>>, %arg2: memref<1x16x96xbf16, #tpu.memory_space<vmem>>, %arg3: memref<3x96x512xbf16, #tpu.memory_space<vmem>>, %arg4: memref<1x512xf32, #tpu.memory_space<vmem>>, %arg5: memref<3x512x512xbf16, #tpu.memory_space<vmem>>, %arg6: memref<1x512xf32, #tpu.memory_space<vmem>>, %arg7: memref<512x128xbf16, #tpu.memory_space<vmem>>, %arg8: memref<1x128xf32, #tpu.memory_space<vmem>>, %arg9: memref<3x512x512xbf16, #tpu.memory_space<vmem>>, %arg10: memref<1x512xf32, #tpu.memory_space<vmem>>, %arg11: memref<512x256xbf16, #tpu.memory_space<vmem>>, %arg12: memref<1x256xf32, #tpu.memory_space<vmem>>, %arg13: memref<1x16x512xbf16, #tpu.memory_space<vmem>>, %arg14: memref<1x1x128xf32, #tpu.memory_space<vmem>>, %arg15: memref<1x16x256xbf16, #tpu.memory_space<vmem>>) attributes {dimension_semantics = [#tpu.dimension_semantics<parallel>], iteration_bounds = array<i64: 2>, scalar_prefetch = 0 : i64, scratch_operands = 0 : i64, tpu.core_type = #tpu.core_type<tc>, window_params = [{transform_indices = @transform_0, window_bounds = array<i64: 1, 16, 96>}, {transform_indices = @transform_1, window_bounds = array<i64: 1, 16, 96>}, {pipeline_mode = #tpu.pipeline_mode<synchronous>, transform_indices = @transform_2, window_bounds = array<i64: 3, 96, 512>}, {pipeline_mode = #tpu.pipeline_mode<synchronous>, transform_indices = @transform_3, window_bounds = array<i64: 1, 512>}, {pipeline_mode = #tpu.pipeline_mode<synchronous>, transform_indices = @transform_4, window_bounds = array<i64: 3, 512, 512>}, {pipeline_mode = #tpu.pipeline_mode<synchronous>, transform_indices = @transform_5, window_bounds = array<i64: 1, 512>}, {pipeline_mode = #tpu.pipeline_mode<synchronous>, transform_indices = @transform_6, window_bounds = array<i64: 512, 128>}, {pipeline_mode = #tpu.pipeline_mode<synchronous>, transform_indices = @transform_7, window_bounds = array<i64: 1, 128>}, {pipeline_mode = #tpu.pipeline_mode<synchronous>, transform_indices = @transform_8, window_bounds = array<i64: 3, 512, 512>}, {pipeline_mode = #tpu.pipeline_mode<synchronous>, transform_indices = @transform_9, window_bounds = array<i64: 1, 512>}, {pipeline_mode = #tpu.pipeline_mode<synchronous>, transform_indices = @transform_10, window_bounds = array<i64: 512, 256>}, {pipeline_mode = #tpu.pipeline_mode<synchronous>, transform_indices = @transform_11, window_bounds = array<i64: 1, 256>}, {transform_indices = @transform_12, window_bounds = array<i64: 1, 16, 512>}, {transform_indices = @transform_13, window_bounds = array<i64: 1, 1, 128>}, {transform_indices = @transform_14, window_bounds = array<i64: 1, 16, 256>}]} {
    %c0 = arith.constant 0 : index
    %c0_0 = arith.constant 0 : index
    %c0_1 = arith.constant 0 : index
    %0 = vector.load %arg1[%c0, %c0_0, %c0_1] : memref<1x16x96xbf16, #tpu.memory_space<vmem>>, vector<1x16x96xbf16>
    %1 = vector.shape_cast %0 : vector<1x16x96xbf16> to vector<16x96xbf16>
    %c0_2 = arith.constant 0 : index
    %c0_3 = arith.constant 0 : index
    %c0_4 = arith.constant 0 : index
    %2 = vector.load %arg2[%c0_2, %c0_3, %c0_4] : memref<1x16x96xbf16, #tpu.memory_space<vmem>>, vector<1x16x96xbf16>
    %3 = vector.shape_cast %2 : vector<1x16x96xbf16> to vector<16x96xbf16>
    %cst = arith.constant 0.000000e+00 : bf16
    %4 = vector.broadcast %cst : bf16 to vector<1x96xbf16>
    %5 = vector.extract_strided_slice %3 {offsets = [0, 0], sizes = [15, 96], strides = [1, 1]} : vector<16x96xbf16> to vector<15x96xbf16>
    %6 = tpu.concatenate %4, %5 in 0 : vector<1x96xbf16>, vector<15x96xbf16> -> vector<16x96xbf16>
    %7 = vector.extract_strided_slice %1 {offsets = [1, 0], sizes = [15, 96], strides = [1, 1]} : vector<16x96xbf16> to vector<15x96xbf16>
    %8 = tpu.concatenate %7, %4 in 0 : vector<15x96xbf16>, vector<1x96xbf16> -> vector<16x96xbf16>
    %c0_5 = arith.constant 0 : index
    %c0_6 = arith.constant 0 : index
    %c0_7 = arith.constant 0 : index
    %9 = vector.load %arg3[%c0_5, %c0_6, %c0_7] : memref<3x96x512xbf16, #tpu.memory_space<vmem>>, vector<1x96x512xbf16>
    %10 = vector.shape_cast %9 : vector<1x96x512xbf16> to vector<96x512xbf16>
    %cst_8 = arith.constant dense<0.000000e+00> : vector<16x512xf32>
    %11 = tpu.matmul %6, %10, %cst_8 {dimension_numbers = #tpu.dot_dimension_numbers<[1], [0], [0], [1], [0, 0, 1, 1], [], []>} : vector<16x96xbf16>, vector<96x512xbf16>, vector<16x512xf32> -> vector<16x512xf32>
    %c1 = arith.constant 1 : index
    %c0_9 = arith.constant 0 : index
    %c0_10 = arith.constant 0 : index
    %12 = vector.load %arg3[%c1, %c0_9, %c0_10] : memref<3x96x512xbf16, #tpu.memory_space<vmem>>, vector<1x96x512xbf16>
    %13 = vector.shape_cast %12 : vector<1x96x512xbf16> to vector<96x512xbf16>
    %cst_11 = arith.constant dense<0.000000e+00> : vector<16x512xf32>
    %14 = tpu.matmul %1, %13, %cst_11 {dimension_numbers = #tpu.dot_dimension_numbers<[1], [0], [0], [1], [0, 0, 1, 1], [], []>} : vector<16x96xbf16>, vector<96x512xbf16>, vector<16x512xf32> -> vector<16x512xf32>
    %15 = arith.addf %11, %14 : vector<16x512xf32>
    %c2 = arith.constant 2 : index
    %c0_12 = arith.constant 0 : index
    %c0_13 = arith.constant 0 : index
    %16 = vector.load %arg3[%c2, %c0_12, %c0_13] : memref<3x96x512xbf16, #tpu.memory_space<vmem>>, vector<1x96x512xbf16>
    %17 = vector.shape_cast %16 : vector<1x96x512xbf16> to vector<96x512xbf16>
    %cst_14 = arith.constant dense<0.000000e+00> : vector<16x512xf32>
    %18 = tpu.matmul %3, %17, %cst_14 {dimension_numbers = #tpu.dot_dimension_numbers<[1], [0], [0], [1], [0, 0, 1, 1], [], []>} : vector<16x96xbf16>, vector<96x512xbf16>, vector<16x512xf32> -> vector<16x512xf32>
    %19 = arith.addf %15, %18 : vector<16x512xf32>
    %c0_15 = arith.constant 0 : index
    %c0_16 = arith.constant 0 : index
    %c0_17 = arith.constant 0 : index
    %20 = vector.load %arg3[%c0_15, %c0_16, %c0_17] : memref<3x96x512xbf16, #tpu.memory_space<vmem>>, vector<1x96x512xbf16>
    %21 = vector.shape_cast %20 : vector<1x96x512xbf16> to vector<96x512xbf16>
    %cst_18 = arith.constant dense<0.000000e+00> : vector<16x512xf32>
    %22 = tpu.matmul %1, %21, %cst_18 {dimension_numbers = #tpu.dot_dimension_numbers<[1], [0], [0], [1], [0, 0, 1, 1], [], []>} : vector<16x96xbf16>, vector<96x512xbf16>, vector<16x512xf32> -> vector<16x512xf32>
    %c1_19 = arith.constant 1 : index
    %c0_20 = arith.constant 0 : index
    %c0_21 = arith.constant 0 : index
    %23 = vector.load %arg3[%c1_19, %c0_20, %c0_21] : memref<3x96x512xbf16, #tpu.memory_space<vmem>>, vector<1x96x512xbf16>
    %24 = vector.shape_cast %23 : vector<1x96x512xbf16> to vector<96x512xbf16>
    %cst_22 = arith.constant dense<0.000000e+00> : vector<16x512xf32>
    %25 = tpu.matmul %3, %24, %cst_22 {dimension_numbers = #tpu.dot_dimension_numbers<[1], [0], [0], [1], [0, 0, 1, 1], [], []>} : vector<16x96xbf16>, vector<96x512xbf16>, vector<16x512xf32> -> vector<16x512xf32>
    %26 = arith.addf %22, %25 : vector<16x512xf32>
    %c2_23 = arith.constant 2 : index
    %c0_24 = arith.constant 0 : index
    %c0_25 = arith.constant 0 : index
    %27 = vector.load %arg3[%c2_23, %c0_24, %c0_25] : memref<3x96x512xbf16, #tpu.memory_space<vmem>>, vector<1x96x512xbf16>
    %28 = vector.shape_cast %27 : vector<1x96x512xbf16> to vector<96x512xbf16>
    %cst_26 = arith.constant dense<0.000000e+00> : vector<16x512xf32>
    %29 = tpu.matmul %8, %28, %cst_26 {dimension_numbers = #tpu.dot_dimension_numbers<[1], [0], [0], [1], [0, 0, 1, 1], [], []>} : vector<16x96xbf16>, vector<96x512xbf16>, vector<16x512xf32> -> vector<16x512xf32>
    %30 = arith.addf %26, %29 : vector<16x512xf32>
    %c0_27 = arith.constant 0 : index
    %c0_28 = arith.constant 0 : index
    %31 = vector.load %arg4[%c0_27, %c0_28] : memref<1x512xf32, #tpu.memory_space<vmem>>, vector<1x512xf32>
    %32 = vector.broadcast %31 : vector<1x512xf32> to vector<16x512xf32>
    %33 = arith.addf %19, %32 : vector<16x512xf32>
    %cst_29 = arith.constant 0.000000e+00 : f32
    %34 = vector.broadcast %cst_29 : f32 to vector<16x512xf32>
    %35 = arith.maximumf %33, %34 : vector<16x512xf32>
    %36 = arith.truncf %35 : vector<16x512xf32> to vector<16x512xbf16>
    %c0_30 = arith.constant 0 : index
    %c0_31 = arith.constant 0 : index
    %37 = vector.load %arg4[%c0_30, %c0_31] : memref<1x512xf32, #tpu.memory_space<vmem>>, vector<1x512xf32>
    %38 = vector.broadcast %37 : vector<1x512xf32> to vector<16x512xf32>
    %39 = arith.addf %30, %38 : vector<16x512xf32>
    %cst_32 = arith.constant 0.000000e+00 : f32
    %40 = vector.broadcast %cst_32 : f32 to vector<16x512xf32>
    %41 = arith.maximumf %39, %40 : vector<16x512xf32>
    %42 = arith.truncf %41 : vector<16x512xf32> to vector<16x512xbf16>
    %cst_33 = arith.constant 0.000000e+00 : bf16
    %43 = vector.broadcast %cst_33 : bf16 to vector<1x512xbf16>
    %44 = vector.extract_strided_slice %42 {offsets = [0, 0], sizes = [15, 512], strides = [1, 1]} : vector<16x512xbf16> to vector<15x512xbf16>
    %45 = tpu.concatenate %43, %44 in 0 : vector<1x512xbf16>, vector<15x512xbf16> -> vector<16x512xbf16>
    %c0_34 = arith.constant 0 : index
    %c0_35 = arith.constant 0 : index
    %c0_36 = arith.constant 0 : index
    %46 = vector.load %arg5[%c0_34, %c0_35, %c0_36] : memref<3x512x512xbf16, #tpu.memory_space<vmem>>, vector<1x512x512xbf16>
    %47 = vector.shape_cast %46 : vector<1x512x512xbf16> to vector<512x512xbf16>
    %cst_37 = arith.constant dense<0.000000e+00> : vector<16x512xf32>
    %48 = tpu.matmul %45, %47, %cst_37 {dimension_numbers = #tpu.dot_dimension_numbers<[1], [0], [0], [1], [0, 0, 1, 1], [], []>} : vector<16x512xbf16>, vector<512x512xbf16>, vector<16x512xf32> -> vector<16x512xf32>
    %c1_38 = arith.constant 1 : index
    %c0_39 = arith.constant 0 : index
    %c0_40 = arith.constant 0 : index
    %49 = vector.load %arg5[%c1_38, %c0_39, %c0_40] : memref<3x512x512xbf16, #tpu.memory_space<vmem>>, vector<1x512x512xbf16>
    %50 = vector.shape_cast %49 : vector<1x512x512xbf16> to vector<512x512xbf16>
    %cst_41 = arith.constant dense<0.000000e+00> : vector<16x512xf32>
    %51 = tpu.matmul %36, %50, %cst_41 {dimension_numbers = #tpu.dot_dimension_numbers<[1], [0], [0], [1], [0, 0, 1, 1], [], []>} : vector<16x512xbf16>, vector<512x512xbf16>, vector<16x512xf32> -> vector<16x512xf32>
    %52 = arith.addf %48, %51 : vector<16x512xf32>
    %c2_42 = arith.constant 2 : index
    %c0_43 = arith.constant 0 : index
    %c0_44 = arith.constant 0 : index
    %53 = vector.load %arg5[%c2_42, %c0_43, %c0_44] : memref<3x512x512xbf16, #tpu.memory_space<vmem>>, vector<1x512x512xbf16>
    %54 = vector.shape_cast %53 : vector<1x512x512xbf16> to vector<512x512xbf16>
    %cst_45 = arith.constant dense<0.000000e+00> : vector<16x512xf32>
    %55 = tpu.matmul %42, %54, %cst_45 {dimension_numbers = #tpu.dot_dimension_numbers<[1], [0], [0], [1], [0, 0, 1, 1], [], []>} : vector<16x512xbf16>, vector<512x512xbf16>, vector<16x512xf32> -> vector<16x512xf32>
    %56 = arith.addf %52, %55 : vector<16x512xf32>
    %c0_46 = arith.constant 0 : index
    %c0_47 = arith.constant 0 : index
    %57 = vector.load %arg6[%c0_46, %c0_47] : memref<1x512xf32, #tpu.memory_space<vmem>>, vector<1x512xf32>
    %58 = vector.broadcast %57 : vector<1x512xf32> to vector<16x512xf32>
    %59 = arith.addf %56, %58 : vector<16x512xf32>
    %cst_48 = arith.constant 0.000000e+00 : f32
    %60 = vector.broadcast %cst_48 : f32 to vector<16x512xf32>
    %61 = arith.maximumf %59, %60 : vector<16x512xf32>
    %62 = arith.truncf %61 : vector<16x512xf32> to vector<16x512xbf16>
    %c0_49 = arith.constant 0 : index
    %c0_50 = arith.constant 0 : index
    %c0_51 = arith.constant 0 : index
    %63 = vector.load %arg13[%c0_49, %c0_50, %c0_51] : memref<1x16x512xbf16, #tpu.memory_space<vmem>>, vector<1x16x512xbf16>
    %64 = vector.shape_cast %63 : vector<1x16x512xbf16> to vector<16x512xbf16>
    %65 = vector.shape_cast %62 : vector<16x512xbf16> to vector<1x16x512xbf16>
    tpu.vector_store %arg13[%c0_49, %c0_50, %c0_51], %65 {strides = array<i32>} : memref<1x16x512xbf16, #tpu.memory_space<vmem>>, vector<1x16x512xbf16>,
    %cst_52 = arith.constant dense<0.000000e+00> : vector<512xf32>
    %66 = vector.multi_reduction <add>, %61, %cst_52 [0] : vector<16x512xf32> to vector<512xf32>
    %67 = vector.shape_cast %66 : vector<512xf32> to vector<1x512xf32>
    %68 = arith.truncf %67 : vector<1x512xf32> to vector<1x512xbf16>
    %c0_53 = arith.constant 0 : index
    %c0_54 = arith.constant 0 : index
    %69 = vector.load %arg7[%c0_53, %c0_54] : memref<512x128xbf16, #tpu.memory_space<vmem>>, vector<512x128xbf16>
    %cst_55 = arith.constant dense<0.000000e+00> : vector<1x128xf32>
    %70 = tpu.matmul %68, %69, %cst_55 {dimension_numbers = #tpu.dot_dimension_numbers<[1], [0], [0], [1], [0, 0, 1, 1], [], []>} : vector<1x512xbf16>, vector<512x128xbf16>, vector<1x128xf32> -> vector<1x128xf32>
    %c0_56 = arith.constant 0 : index
    %c0_57 = arith.constant 0 : index
    %71 = vector.load %arg8[%c0_56, %c0_57] : memref<1x128xf32, #tpu.memory_space<vmem>>, vector<1x128xf32>
    %72 = arith.addf %70, %71 : vector<1x128xf32>
    %c0_58 = arith.constant 0 : index
    %c0_59 = arith.constant 0 : index
    %c0_60 = arith.constant 0 : index
    %73 = vector.load %arg14[%c0_58, %c0_59, %c0_60] : memref<1x1x128xf32, #tpu.memory_space<vmem>>, vector<1x1x128xf32>
    %74 = vector.shape_cast %73 : vector<1x1x128xf32> to vector<1x128xf32>
    %75 = vector.shape_cast %72 : vector<1x128xf32> to vector<1x1x128xf32>
    tpu.vector_store %arg14[%c0_58, %c0_59, %c0_60], %75 {strides = array<i32>} : memref<1x1x128xf32, #tpu.memory_space<vmem>>, vector<1x1x128xf32>,
    %cst_61 = arith.constant 0.000000e+00 : bf16
    %76 = vector.broadcast %cst_61 : bf16 to vector<1x512xbf16>
    %77 = vector.extract_strided_slice %62 {offsets = [0, 0], sizes = [15, 512], strides = [1, 1]} : vector<16x512xbf16> to vector<15x512xbf16>
    %78 = tpu.concatenate %76, %77 in 0 : vector<1x512xbf16>, vector<15x512xbf16> -> vector<16x512xbf16>
    %79 = vector.extract_strided_slice %62 {offsets = [1, 0], sizes = [15, 512], strides = [1, 1]} : vector<16x512xbf16> to vector<15x512xbf16>
    %80 = tpu.concatenate %79, %76 in 0 : vector<15x512xbf16>, vector<1x512xbf16> -> vector<16x512xbf16>
    %c0_62 = arith.constant 0 : index
    %c0_63 = arith.constant 0 : index
    %c0_64 = arith.constant 0 : index
    %81 = vector.load %arg9[%c0_62, %c0_63, %c0_64] : memref<3x512x512xbf16, #tpu.memory_space<vmem>>, vector<1x512x512xbf16>
    %82 = vector.shape_cast %81 : vector<1x512x512xbf16> to vector<512x512xbf16>
    %cst_65 = arith.constant dense<0.000000e+00> : vector<16x512xf32>
    %83 = tpu.matmul %78, %82, %cst_65 {dimension_numbers = #tpu.dot_dimension_numbers<[1], [0], [0], [1], [0, 0, 1, 1], [], []>} : vector<16x512xbf16>, vector<512x512xbf16>, vector<16x512xf32> -> vector<16x512xf32>
    %c1_66 = arith.constant 1 : index
    %c0_67 = arith.constant 0 : index
    %c0_68 = arith.constant 0 : index
    %84 = vector.load %arg9[%c1_66, %c0_67, %c0_68] : memref<3x512x512xbf16, #tpu.memory_space<vmem>>, vector<1x512x512xbf16>
    %85 = vector.shape_cast %84 : vector<1x512x512xbf16> to vector<512x512xbf16>
    %cst_69 = arith.constant dense<0.000000e+00> : vector<16x512xf32>
    %86 = tpu.matmul %62, %85, %cst_69 {dimension_numbers = #tpu.dot_dimension_numbers<[1], [0], [0], [1], [0, 0, 1, 1], [], []>} : vector<16x512xbf16>, vector<512x512xbf16>, vector<16x512xf32> -> vector<16x512xf32>
    %87 = arith.addf %83, %86 : vector<16x512xf32>
    %c2_70 = arith.constant 2 : index
    %c0_71 = arith.constant 0 : index
    %c0_72 = arith.constant 0 : index
    %88 = vector.load %arg9[%c2_70, %c0_71, %c0_72] : memref<3x512x512xbf16, #tpu.memory_space<vmem>>, vector<1x512x512xbf16>
    %89 = vector.shape_cast %88 : vector<1x512x512xbf16> to vector<512x512xbf16>
    %cst_73 = arith.constant dense<0.000000e+00> : vector<16x512xf32>
    %90 = tpu.matmul %80, %89, %cst_73 {dimension_numbers = #tpu.dot_dimension_numbers<[1], [0], [0], [1], [0, 0, 1, 1], [], []>} : vector<16x512xbf16>, vector<512x512xbf16>, vector<16x512xf32> -> vector<16x512xf32>
    %91 = arith.addf %87, %90 : vector<16x512xf32>
    %c0_74 = arith.constant 0 : index
    %c0_75 = arith.constant 0 : index
    %92 = vector.load %arg10[%c0_74, %c0_75] : memref<1x512xf32, #tpu.memory_space<vmem>>, vector<1x512xf32>
    %93 = vector.broadcast %92 : vector<1x512xf32> to vector<16x512xf32>
    %94 = arith.addf %91, %93 : vector<16x512xf32>
    %cst_76 = arith.constant 0.000000e+00 : f32
    %95 = vector.broadcast %cst_76 : f32 to vector<16x512xf32>
    %96 = arith.maximumf %94, %95 : vector<16x512xf32>
    %97 = arith.truncf %96 : vector<16x512xf32> to vector<16x512xbf16>
    %c0_77 = arith.constant 0 : index
    %c0_78 = arith.constant 0 : index
    %98 = vector.load %arg11[%c0_77, %c0_78] : memref<512x256xbf16, #tpu.memory_space<vmem>>, vector<512x256xbf16>
    %cst_79 = arith.constant dense<0.000000e+00> : vector<16x256xf32>
    %99 = tpu.matmul %97, %98, %cst_79 {dimension_numbers = #tpu.dot_dimension_numbers<[1], [0], [0], [1], [0, 0, 1, 1], [], []>} : vector<16x512xbf16>, vector<512x256xbf16>, vector<16x256xf32> -> vector<16x256xf32>
    %c0_80 = arith.constant 0 : index
    %c0_81 = arith.constant 0 : index
    %100 = vector.load %arg12[%c0_80, %c0_81] : memref<1x256xf32, #tpu.memory_space<vmem>>, vector<1x256xf32>
    %101 = vector.broadcast %100 : vector<1x256xf32> to vector<16x256xf32>
    %102 = arith.addf %99, %101 : vector<16x256xf32>
    %103 = arith.truncf %102 : vector<16x256xf32> to vector<16x256xbf16>
    %c0_82 = arith.constant 0 : index
    %c0_83 = arith.constant 0 : index
    %c0_84 = arith.constant 0 : index
    %104 = vector.load %arg15[%c0_82, %c0_83, %c0_84] : memref<1x16x256xbf16, #tpu.memory_space<vmem>>, vector<1x16x256xbf16>
    %105 = vector.shape_cast %104 : vector<1x16x256xbf16> to vector<16x256xbf16>
    %106 = vector.shape_cast %103 : vector<16x256xbf16> to vector<1x16x256xbf16>
    tpu.vector_store %arg15[%c0_82, %c0_83, %c0_84], %106 {strides = array<i32>} : memref<1x16x256xbf16, #tpu.memory_space<vmem>>, vector<1x16x256xbf16>,
    return
  }
  func.func @transform_0(%arg0: i32) -> (i32, i32, i32) {
    %c0_i32 = arith.constant 0 : i32
    %c0_i32_0 = arith.constant 0 : i32
    %c0_i32_1 = arith.constant 0 : i32
    return %arg0, %c0_i32, %c0_i32_0 : i32, i32, i32
  }
  func.func @transform_1(%arg0: i32) -> (i32, i32, i32) {
    %c0_i32 = arith.constant 0 : i32
    %c0_i32_0 = arith.constant 0 : i32
    %c0_i32_1 = arith.constant 0 : i32
    return %arg0, %c0_i32, %c0_i32_0 : i32, i32, i32
  }
  func.func @transform_2(%arg0: i32) -> (i32, i32, i32) {
    %c0_i32 = arith.constant 0 : i32
    %c0_i32_0 = arith.constant 0 : i32
    %c0_i32_1 = arith.constant 0 : i32
    %c0_i32_2 = arith.constant 0 : i32
    return %c0_i32, %c0_i32_0, %c0_i32_1 : i32, i32, i32
  }
  func.func @transform_3(%arg0: i32) -> (i32, i32) {
    %c0_i32 = arith.constant 0 : i32
    %c0_i32_0 = arith.constant 0 : i32
    %c0_i32_1 = arith.constant 0 : i32
    return %c0_i32, %c0_i32_0 : i32, i32
  }
  func.func @transform_4(%arg0: i32) -> (i32, i32, i32) {
    %c0_i32 = arith.constant 0 : i32
    %c0_i32_0 = arith.constant 0 : i32
    %c0_i32_1 = arith.constant 0 : i32
    %c0_i32_2 = arith.constant 0 : i32
    return %c0_i32, %c0_i32_0, %c0_i32_1 : i32, i32, i32
  }
  func.func @transform_5(%arg0: i32) -> (i32, i32) {
    %c0_i32 = arith.constant 0 : i32
    %c0_i32_0 = arith.constant 0 : i32
    %c0_i32_1 = arith.constant 0 : i32
    return %c0_i32, %c0_i32_0 : i32, i32
  }
  func.func @transform_6(%arg0: i32) -> (i32, i32) {
    %c0_i32 = arith.constant 0 : i32
    %c0_i32_0 = arith.constant 0 : i32
    %c0_i32_1 = arith.constant 0 : i32
    return %c0_i32, %c0_i32_0 : i32, i32
  }
  func.func @transform_7(%arg0: i32) -> (i32, i32) {
    %c0_i32 = arith.constant 0 : i32
    %c0_i32_0 = arith.constant 0 : i32
    %c0_i32_1 = arith.constant 0 : i32
    return %c0_i32, %c0_i32_0 : i32, i32
  }
  func.func @transform_8(%arg0: i32) -> (i32, i32, i32) {
    %c0_i32 = arith.constant 0 : i32
    %c0_i32_0 = arith.constant 0 : i32
    %c0_i32_1 = arith.constant 0 : i32
    %c0_i32_2 = arith.constant 0 : i32
    return %c0_i32, %c0_i32_0, %c0_i32_1 : i32, i32, i32
  }
  func.func @transform_9(%arg0: i32) -> (i32, i32) {
    %c0_i32 = arith.constant 0 : i32
    %c0_i32_0 = arith.constant 0 : i32
    %c0_i32_1 = arith.constant 0 : i32
    return %c0_i32, %c0_i32_0 : i32, i32
  }
  func.func @transform_10(%arg0: i32) -> (i32, i32) {
    %c0_i32 = arith.constant 0 : i32
    %c0_i32_0 = arith.constant 0 : i32
    %c0_i32_1 = arith.constant 0 : i32
    return %c0_i32, %c0_i32_0 : i32, i32
  }
  func.func @transform_11(%arg0: i32) -> (i32, i32) {
    %c0_i32 = arith.constant 0 : i32
    %c0_i32_0 = arith.constant 0 : i32
    %c0_i32_1 = arith.constant 0 : i32
    return %c0_i32, %c0_i32_0 : i32, i32
  }
  func.func @transform_12(%arg0: i32) -> (i32, i32, i32) {
    %c0_i32 = arith.constant 0 : i32
    %c0_i32_0 = arith.constant 0 : i32
    %c0_i32_1 = arith.constant 0 : i32
    return %arg0, %c0_i32, %c0_i32_0 : i32, i32, i32
  }
  func.func @transform_13(%arg0: i32) -> (i32, i32, i32) {
    %c0_i32 = arith.constant 0 : i32
    %c0_i32_0 = arith.constant 0 : i32
    %c0_i32_1 = arith.constant 0 : i32
    return %arg0, %c0_i32, %c0_i32_0 : i32, i32, i32
  }
  func.func @transform_14(%arg0: i32) -> (i32, i32, i32) {
    %c0_i32 = arith.constant 0 : i32
    %c0_i32_0 = arith.constant 0 : i32
    %c0_i32_1 = arith.constant 0 : i32
    return %arg0, %c0_i32, %c0_i32_0 : i32, i32, i32
  }
}

module attributes {stable_mosaic.version = 11 : i64} {
  func.func @_roi_head_kernel(%arg0: i32, %arg1: memref<32x128xbf16, #tpu.memory_space<vmem>>, %arg2: memref<128x128xbf16, #tpu.memory_space<vmem>>, %arg3: memref<1x128xf32, #tpu.memory_space<vmem>>, %arg4: memref<128x128xbf16, #tpu.memory_space<vmem>>, %arg5: memref<1x128xf32, #tpu.memory_space<vmem>>, %arg6: memref<128x128xbf16, #tpu.memory_space<vmem>>, %arg7: memref<1x128xf32, #tpu.memory_space<vmem>>, %arg8: memref<32x128xf32, #tpu.memory_space<vmem>>) attributes {dimension_semantics = [#tpu.dimension_semantics<arbitrary>], iteration_bounds = array<i64: 1>, scalar_prefetch = 0 : i64, scratch_operands = 0 : i64, tpu.core_type = #tpu.core_type<tc>, window_params = [{pipeline_mode = #tpu.pipeline_mode<synchronous>, transform_indices = @transform_0, window_bounds = array<i64: 32, 128>}, {pipeline_mode = #tpu.pipeline_mode<synchronous>, transform_indices = @transform_1, window_bounds = array<i64: 128, 128>}, {pipeline_mode = #tpu.pipeline_mode<synchronous>, transform_indices = @transform_2, window_bounds = array<i64: 1, 128>}, {pipeline_mode = #tpu.pipeline_mode<synchronous>, transform_indices = @transform_3, window_bounds = array<i64: 128, 128>}, {pipeline_mode = #tpu.pipeline_mode<synchronous>, transform_indices = @transform_4, window_bounds = array<i64: 1, 128>}, {pipeline_mode = #tpu.pipeline_mode<synchronous>, transform_indices = @transform_5, window_bounds = array<i64: 128, 128>}, {pipeline_mode = #tpu.pipeline_mode<synchronous>, transform_indices = @transform_6, window_bounds = array<i64: 1, 128>}, {pipeline_mode = #tpu.pipeline_mode<synchronous>, transform_indices = @transform_7, window_bounds = array<i64: 32, 128>}]} {
    %c0 = arith.constant 0 : index
    %c0_0 = arith.constant 0 : index
    %0 = vector.load %arg1[%c0, %c0_0] : memref<32x128xbf16, #tpu.memory_space<vmem>>, vector<32x128xbf16>
    %c0_1 = arith.constant 0 : index
    %c0_2 = arith.constant 0 : index
    %1 = vector.load %arg2[%c0_1, %c0_2] : memref<128x128xbf16, #tpu.memory_space<vmem>>, vector<128x128xbf16>
    %cst = arith.constant dense<0.000000e+00> : vector<32x128xf32>
    %2 = tpu.matmul %0, %1, %cst {dimension_numbers = #tpu.dot_dimension_numbers<[1], [0], [0], [1], [0, 0, 1, 1], [], []>} : vector<32x128xbf16>, vector<128x128xbf16>, vector<32x128xf32> -> vector<32x128xf32>
    %c0_3 = arith.constant 0 : index
    %c0_4 = arith.constant 0 : index
    %3 = vector.load %arg3[%c0_3, %c0_4] : memref<1x128xf32, #tpu.memory_space<vmem>>, vector<1x128xf32>
    %4 = vector.broadcast %3 : vector<1x128xf32> to vector<32x128xf32>
    %5 = arith.addf %2, %4 : vector<32x128xf32>
    %cst_5 = arith.constant 0.000000e+00 : f32
    %6 = vector.broadcast %cst_5 : f32 to vector<32x128xf32>
    %7 = arith.maximumf %5, %6 : vector<32x128xf32>
    %8 = arith.truncf %7 : vector<32x128xf32> to vector<32x128xbf16>
    %c0_6 = arith.constant 0 : index
    %c0_7 = arith.constant 0 : index
    %9 = vector.load %arg4[%c0_6, %c0_7] : memref<128x128xbf16, #tpu.memory_space<vmem>>, vector<128x128xbf16>
    %cst_8 = arith.constant dense<0.000000e+00> : vector<32x128xf32>
    %10 = tpu.matmul %8, %9, %cst_8 {dimension_numbers = #tpu.dot_dimension_numbers<[1], [0], [0], [1], [0, 0, 1, 1], [], []>} : vector<32x128xbf16>, vector<128x128xbf16>, vector<32x128xf32> -> vector<32x128xf32>
    %c0_9 = arith.constant 0 : index
    %c0_10 = arith.constant 0 : index
    %11 = vector.load %arg5[%c0_9, %c0_10] : memref<1x128xf32, #tpu.memory_space<vmem>>, vector<1x128xf32>
    %12 = vector.broadcast %11 : vector<1x128xf32> to vector<32x128xf32>
    %13 = arith.addf %10, %12 : vector<32x128xf32>
    %cst_11 = arith.constant 0.000000e+00 : f32
    %14 = vector.broadcast %cst_11 : f32 to vector<32x128xf32>
    %15 = arith.maximumf %13, %14 : vector<32x128xf32>
    %16 = arith.truncf %15 : vector<32x128xf32> to vector<32x128xbf16>
    %c0_12 = arith.constant 0 : index
    %c0_13 = arith.constant 0 : index
    %17 = vector.load %arg6[%c0_12, %c0_13] : memref<128x128xbf16, #tpu.memory_space<vmem>>, vector<128x128xbf16>
    %cst_14 = arith.constant dense<0.000000e+00> : vector<32x128xf32>
    %18 = tpu.matmul %16, %17, %cst_14 {dimension_numbers = #tpu.dot_dimension_numbers<[1], [0], [0], [1], [0, 0, 1, 1], [], []>} : vector<32x128xbf16>, vector<128x128xbf16>, vector<32x128xf32> -> vector<32x128xf32>
    %c0_15 = arith.constant 0 : index
    %c0_16 = arith.constant 0 : index
    %19 = vector.load %arg7[%c0_15, %c0_16] : memref<1x128xf32, #tpu.memory_space<vmem>>, vector<1x128xf32>
    %20 = vector.broadcast %19 : vector<1x128xf32> to vector<32x128xf32>
    %21 = arith.addf %18, %20 : vector<32x128xf32>
    %c0_17 = arith.constant 0 : index
    %c0_18 = arith.constant 0 : index
    %22 = vector.load %arg8[%c0_17, %c0_18] : memref<32x128xf32, #tpu.memory_space<vmem>>, vector<32x128xf32>
    tpu.vector_store %arg8[%c0_17, %c0_18], %21 {strides = array<i32>} : memref<32x128xf32, #tpu.memory_space<vmem>>, vector<32x128xf32>,
    return
  }
  func.func @transform_0(%arg0: i32) -> (i32, i32) {
    %c0_i32 = arith.constant 0 : i32
    %c0_i32_0 = arith.constant 0 : i32
    %c0_i32_1 = arith.constant 0 : i32
    return %c0_i32, %c0_i32_0 : i32, i32
  }
  func.func @transform_1(%arg0: i32) -> (i32, i32) {
    %c0_i32 = arith.constant 0 : i32
    %c0_i32_0 = arith.constant 0 : i32
    %c0_i32_1 = arith.constant 0 : i32
    return %c0_i32, %c0_i32_0 : i32, i32
  }
  func.func @transform_2(%arg0: i32) -> (i32, i32) {
    %c0_i32 = arith.constant 0 : i32
    %c0_i32_0 = arith.constant 0 : i32
    %c0_i32_1 = arith.constant 0 : i32
    return %c0_i32, %c0_i32_0 : i32, i32
  }
  func.func @transform_3(%arg0: i32) -> (i32, i32) {
    %c0_i32 = arith.constant 0 : i32
    %c0_i32_0 = arith.constant 0 : i32
    %c0_i32_1 = arith.constant 0 : i32
    return %c0_i32, %c0_i32_0 : i32, i32
  }
  func.func @transform_4(%arg0: i32) -> (i32, i32) {
    %c0_i32 = arith.constant 0 : i32
    %c0_i32_0 = arith.constant 0 : i32
    %c0_i32_1 = arith.constant 0 : i32
    return %c0_i32, %c0_i32_0 : i32, i32
  }
  func.func @transform_5(%arg0: i32) -> (i32, i32) {
    %c0_i32 = arith.constant 0 : i32
    %c0_i32_0 = arith.constant 0 : i32
    %c0_i32_1 = arith.constant 0 : i32
    return %c0_i32, %c0_i32_0 : i32, i32
  }
  func.func @transform_6(%arg0: i32) -> (i32, i32) {
    %c0_i32 = arith.constant 0 : i32
    %c0_i32_0 = arith.constant 0 : i32
    %c0_i32_1 = arith.constant 0 : i32
    return %c0_i32, %c0_i32_0 : i32, i32
  }
  func.func @transform_7(%arg0: i32) -> (i32, i32) {
    %c0_i32 = arith.constant 0 : i32
    %c0_i32_0 = arith.constant 0 : i32
    %c0_i32_1 = arith.constant 0 : i32
    return %c0_i32, %c0_i32_0 : i32, i32
  }
}

</mosaic_0001>

<llo_original>
// kernel: generalized_rcnn_forward.2
$region0: #{generalized_rcnn_forward.2}
  #allocation0 [shape = 'u32[]', space=smem, size = 0x4, offset = 0x4, fixed_abs, tag = 'smem constant byte address 0x4 - core index']
  #allocation1 [shape = 'u32[144,128]{1,0:T(1,128)}', space=vmem, size = 0x12000, scoped, tag = 'internal scratch']
  %s0 = inlined_call_operand.vmem [shape: bf16[2,16,96], index: 0, kind: input, shape index: {}]
  %s1 = inlined_call_operand.vmem [shape: bf16[2,16,96], index: 1, kind: input, shape index: {}]
  %s2 = inlined_call_operand.hbm [shape: bf16[3,96,512], index: 2, kind: input, shape index: {}]
  %s3 = inlined_call_operand.hbm [shape: f32[1,512], index: 3, kind: input, shape index: {}]
  %s4 = inlined_call_operand.hbm [shape: bf16[3,512,512], index: 4, kind: input, shape index: {}]
  %s5 = inlined_call_operand.hbm [shape: f32[1,512], index: 5, kind: input, shape index: {}]
  %s6 = inlined_call_operand.hbm [shape: bf16[512,128], index: 6, kind: input, shape index: {}]
  %s7 = inlined_call_operand.hbm [shape: f32[1,128], index: 7, kind: input, shape index: {}]
  %s8 = inlined_call_operand.hbm [shape: bf16[3,512,512], index: 8, kind: input, shape index: {}]
  %s9 = inlined_call_operand.hbm [shape: f32[1,512], index: 9, kind: input, shape index: {}]
  %s10 = inlined_call_operand.hbm [shape: bf16[512,256], index: 10, kind: input, shape index: {}]
  %s11 = inlined_call_operand.hbm [shape: f32[1,256], index: 11, kind: input, shape index: {}]
  %s12 = inlined_call_operand.vmem [shape: bf16[2,16,512], index: 12, kind: output, shape index: {0}]
  %s13 = inlined_call_operand.hbm [shape: f32[2,1,128], index: 13, kind: output, shape index: {1}]
  %s14 = inlined_call_operand.vmem [shape: bf16[2,16,256], index: 14, kind: output, shape index: {2}]
  %15 = xla_tuple %s12, %s13, %s14
  %s16 = sld [smem:[#allocation0]]
  $region137: #{generalized_rcnn_forward.2} parent=0
    _
  %s18 = ssub.s32 1, %s16
  %s19 = scalar_select 0, %s18, %s16
  $region1: #{generalized_rcnn_forward.2} parent=0
    #allocation2 [shape = 'u8[294912]{0}', space=vmem, size = 0x48000, scoped, tag = 'input window, operand 2, single buffered']
    #allocation3 [shape = 's32[2]{0}', space=sflag, size = 0x8, scoped, tag = 'scoped memory for generalized_rcnn_forward.2']
    #allocation4 [shape = 's32[2]{0}', space=sflag, size = 0x8, scoped, tag = 'scoped memory for generalized_rcnn_forward.2']
    #allocation5 [shape = 'u8[2048]{0}', space=vmem, size = 0x800, scoped, tag = 'input window, operand 3, single buffered']
    #allocation6 [shape = 's32[1]{0}', space=sflag, size = 0x4, scoped, tag = 'scoped memory for generalized_rcnn_forward.2']
    #allocation7 [shape = 'u8[1572864]{0}', space=vmem, size = 0x180000, scoped, tag = 'input window, operand 4, single buffered']
    #allocation8 [shape = 'u8[2048]{0}', space=vmem, size = 0x800, scoped, tag = 'input window, operand 5, single buffered']
    #allocation9 [shape = 's32[1]{0}', space=sflag, size = 0x4, scoped, tag = 'scoped memory for generalized_rcnn_forward.2']
    #allocation10 [shape = 'u8[131072]{0}', space=vmem, size = 0x20000, scoped, tag = 'input window, operand 6, single buffered']
    #allocation11 [shape = 'u8[512]{0}', space=vmem, size = 0x400, scoped, tag = 'input window, operand 7, single buffered']
    #allocation12 [shape = 's32[1]{0}', space=sflag, size = 0x4, scoped, tag = 'scoped memory for generalized_rcnn_forward.2']
    #allocation13 [shape = 'u8[1572864]{0}', space=vmem, size = 0x180000, scoped, tag = 'input window, operand 8, single buffered']
    #allocation14 [shape = 'u8[2048]{0}', space=vmem, size = 0x800, scoped, tag = 'input window, operand 9, single buffered']
    #allocation15 [shape = 's32[1]{0}', space=sflag, size = 0x4, scoped, tag = 'scoped memory for generalized_rcnn_forward.2']
    #allocation16 [shape = 'u8[262144]{0}', space=vmem, size = 0x40000, scoped, tag = 'input window, operand 10, single buffered']
    #allocation17 [shape = 'u8[1024]{0}', space=vmem, size = 0x400, scoped, tag = 'input window, operand 11, single buffered']
    #allocation18 [shape = 's32[1]{0}', space=sflag, size = 0x4, scoped, tag = 'scoped memory for generalized_rcnn_forward.2']
    #allocation19 [shape = 'u8[1024]{0}', space=vmem, size = 0x400, scoped, tag = 'output window, operand 1']
    %20 = vsyncpa [#allocation3], 0
    %21 = vsyncpa [#allocation6], 0
    %22 = vsyncpa [#allocation9], 0
    %23 = vsyncpa [#allocation12], 0
    %24 = vsyncpa [#allocation15], 0
    %25 = vsyncpa [#allocation18], 0
    %26 = vsyncpa [#allocation4], 0
    %s27 = scalar_lea.sflag [#allocation4], 1
    %28 = vsyncpa %s27, 0
    loop: start=0, step=1, limit=4
    $region2: #{generalized_rcnn_forward.2} parent=1 // loop_pre_header
      _
    $region3: #{generalized_rcnn_forward.2} parent=1 // loop_header
      %s30 = sphi 0, %s34
      %p31 = scmp.ge.s32.totalorder %s30, 4
      %s40 = sphi 0, %s42
      %s43 = sphi 0, %s40
      %s44 = sphi 0, %s43
      %s60 = sphi 0, %s44
      %s66 = sphi 0, %s68
      %s69 = sphi 0, %s66
      %s70 = sphi 0, %s69
      %s86 = sphi 0, %s70
      %s90 = sphi 0, %s90
      %s92 = sphi 0, %s90
      %s93 = sphi 0, %s92
      %s107 = sphi 0, %s93
      %s111 = sphi 0, %s111
      %s113 = sphi 0, %s111
      %s114 = sphi 0, %s113
      %s128 = sphi 0, %s114
      %s132 = sphi 0, %s132
      %s134 = sphi 0, %s132
      %s135 = sphi 0, %s134
      %s149 = sphi 0, %s135
      %s153 = sphi 0, %s153
      %s155 = sphi 0, %s153
      %s156 = sphi 0, %s155
      %s170 = sphi 0, %s156
      %s174 = sphi 0, %s174
      %s176 = sphi 0, %s174
      %s177 = sphi 0, %s176
      %s191 = sphi 0, %s177
      %s195 = sphi 0, %s195
      %s197 = sphi 0, %s195
      %s198 = sphi 0, %s197
      %s212 = sphi 0, %s198
      %s216 = sphi 0, %s216
      %s218 = sphi 0, %s216
      %s219 = sphi 0, %s218
      %s233 = sphi 0, %s219
      %s237 = sphi 0, %s237
      %s239 = sphi 0, %s237
      %s240 = sphi 0, %s239
      %s254 = sphi 0, %s240
      %s258 = sphi 0, %s258
      %s260 = sphi 0, %s258
      %s261 = sphi 0, %s260
      %s275 = sphi 0, %s261
      %s279 = sphi 0, %s279
      %s281 = sphi 0, %s279
      %s282 = sphi 0, %s281
      %s296 = sphi 0, %s282
      %s302 = sphi 0, %s304
      %s305 = sphi 0, %s302
      %s306 = sphi 0, %s305
      %s322 = sphi 0, %s306
      %s328 = sphi 0, %s330
      %s331 = sphi 0, %s328
      %s332 = sphi 0, %s331
      %s348 = sphi 0, %s332
      %s354 = sphi 0, %s356
      %s357 = sphi 0, %s354
      %s358 = sphi 0, %s357
      %s374 = sphi 0, %s358
    $region4: #{generalized_rcnn_forward.2} parent=1 // loop_header_branch
      %33 = sbr.rel (%p31) target = $region8
    $region5: #{generalized_rcnn_forward.2} parent=1 // loop_body
      %s35 = ssub.s32 %s30, 1
      %s36 = ssub.s32 %s30, 2
      %s37 = sadd.s32 %s30, 1
      %s38 = ssub.s32 %s30, %s37
      %p39 = scmp.eq.s32.totalorder %s38, 0
      %s41 = sadd.s32 %s40, 1
      %s42 = scalar_select %p39, %s40, %s41
      %p45 = pneg %p39
      %p46 = scmp.eq.s32.totalorder %s30, 1
      %p47 = por %p45, %p46
      %p48 = scmp.ne.s32.totalorder %s40, %s43
      %p49 = scmp.eq.s32.totalorder %s30, 0
      %p50 = por %p48, %p49
      %p51 = scmp.ne.s32.totalorder %s40, %s43
      %p52 = scmp.eq.s32.totalorder %s35, 1
      %p53 = por %p51, %p52
      %p54 = scmp.ne.s32.totalorder %s43, %s44
      %p55 = scmp.eq.s32.totalorder %s35, 0
      %p56 = por %p54, %p55
      %p57 = scmp.ne.s32.totalorder %s43, %s44
      %p58 = scmp.eq.s32.totalorder %s36, 1
      %p59 = por %p57, %p58
      %p61 = scmp.ne.s32.totalorder %s44, %s60
      %p62 = scmp.eq.s32.totalorder %s36, 0
      %p63 = por %p61, %p62
      %s64 = ssub.s32 %s30, %s37
      %p65 = scmp.eq.s32.totalorder %s64, 0
      %s67 = sadd.s32 %s66, 1
      %s68 = scalar_select %p65, %s66, %s67
      %p71 = pneg %p65
      %p72 = scmp.eq.s32.totalorder %s30, 1
      %p73 = por %p71, %p72
      %p74 = scmp.ne.s32.totalorder %s66, %s69
      %p75 = scmp.eq.s32.totalorder %s30, 0
      %p76 = por %p74, %p75
      %p77 = scmp.ne.s32.totalorder %s66, %s69
      %p78 = scmp.eq.s32.totalorder %s35, 1
      %p79 = por %p77, %p78
      %p80 = scmp.ne.s32.totalorder %s69, %s70
      %p81 = scmp.eq.s32.totalorder %s35, 0
      %p82 = por %p80, %p81
      %p83 = scmp.ne.s32.totalorder %s69, %s70
      %p84 = scmp.eq.s32.totalorder %s36, 1
      %p85 = por %p83, %p84
      %p87 = scmp.ne.s32.totalorder %s70, %s86
      %p88 = scmp.eq.s32.totalorder %s36, 0
      %p89 = por %p87, %p88
      %s91 = sadd.s32 %s90, 1
      %p94 = scmp.eq.s32.totalorder %s30, 1
      %p95 = scmp.ne.s32.totalorder %s90, %s92
      %p96 = scmp.eq.s32.totalorder %s30, 0
      %p97 = por %p95, %p96
      %p98 = scmp.ne.s32.totalorder %s90, %s92
      %p99 = scmp.eq.s32.totalorder %s35, 1
      %p100 = por %p98, %p99
      %p101 = scmp.ne.s32.totalorder %s92, %s93
      %p102 = scmp.eq.s32.totalorder %s35, 0
      %p103 = por %p101, %p102
      %p104 = scmp.ne.s32.totalorder %s92, %s93
      %p105 = scmp.eq.s32.totalorder %s36, 1
      %p106 = por %p104, %p105
      %p108 = scmp.ne.s32.totalorder %s93, %s107
      %p109 = scmp.eq.s32.totalorder %s36, 0
      %p110 = por %p108, %p109
      %s112 = sadd.s32 %s111, 1
      %p115 = scmp.eq.s32.totalorder %s30, 1
      %p116 = scmp.ne.s32.totalorder %s111, %s113
      %p117 = scmp.eq.s32.totalorder %s30, 0
      %p118 = por %p116, %p117
      %p119 = scmp.ne.s32.totalorder %s111, %s113
      %p120 = scmp.eq.s32.totalorder %s35, 1
      %p121 = por %p119, %p120
      %p122 = scmp.ne.s32.totalorder %s113, %s114
      %p123 = scmp.eq.s32.totalorder %s35, 0
      %p124 = por %p122, %p123
      %p125 = scmp.ne.s32.totalorder %s113, %s114
      %p126 = scmp.eq.s32.totalorder %s36, 1
      %p127 = por %p125, %p126
      %p129 = scmp.ne.s32.totalorder %s114, %s128
      %p130 = scmp.eq.s32.totalorder %s36, 0
      %p131 = por %p129, %p130
      %s133 = sadd.s32 %s132, 1
      %p136 = scmp.eq.s32.totalorder %s30, 1
      %p137 = scmp.ne.s32.totalorder %s132, %s134
      %p138 = scmp.eq.s32.totalorder %s30, 0
      %p139 = por %p137, %p138
      %p140 = scmp.ne.s32.totalorder %s132, %s134
      %p141 = scmp.eq.s32.totalorder %s35, 1
      %p142 = por %p140, %p141
      %p143 = scmp.ne.s32.totalorder %s134, %s135
      %p144 = scmp.eq.s32.totalorder %s35, 0
      %p145 = por %p143, %p144
      %p146 = scmp.ne.s32.totalorder %s134, %s135
      %p147 = scmp.eq.s32.totalorder %s36, 1
      %p148 = por %p146, %p147
      %p150 = scmp.ne.s32.totalorder %s135, %s149
      %p151 = scmp.eq.s32.totalorder %s36, 0
      %p152 = por %p150, %p151
      %s154 = sadd.s32 %s153, 1
      %p157 = scmp.eq.s32.totalorder %s30, 1
      %p158 = scmp.ne.s32.totalorder %s153, %s155
      %p159 = scmp.eq.s32.totalorder %s30, 0
      %p160 = por %p158, %p159
      %p161 = scmp.ne.s32.totalorder %s153, %s155
      %p162 = scmp.eq.s32.totalorder %s35, 1
      %p163 = por %p161, %p162
      %p164 = scmp.ne.s32.totalorder %s155, %s156
      %p165 = scmp.eq.s32.totalorder %s35, 0
      %p166 = por %p164, %p165
      %p167 = scmp.ne.s32.totalorder %s155, %s156
      %p168 = scmp.eq.s32.totalorder %s36, 1
      %p169 = por %p167, %p168
      %p171 = scmp.ne.s32.totalorder %s156, %s170
      %p172 = scmp.eq.s32.totalorder %s36, 0
      %p173 = por %p171, %p172
      %s175 = sadd.s32 %s174, 1
      %p178 = scmp.eq.s32.totalorder %s30, 1
      %p179 = scmp.ne.s32.totalorder %s174, %s176
      %p180 = scmp.eq.s32.totalorder %s30, 0
      %p181 = por %p179, %p180
      %p182 = scmp.ne.s32.totalorder %s174, %s176
      %p183 = scmp.eq.s32.totalorder %s35, 1
      %p184 = por %p182, %p183
      %p185 = scmp.ne.s32.totalorder %s176, %s177
      %p186 = scmp.eq.s32.totalorder %s35, 0
      %p187 = por %p185, %p186
      %p188 = scmp.ne.s32.totalorder %s176, %s177
      %p189 = scmp.eq.s32.totalorder %s36, 1
      %p190 = por %p188, %p189
      %p192 = scmp.ne.s32.totalorder %s177, %s191
      %p193 = scmp.eq.s32.totalorder %s36, 0
      %p194 = por %p192, %p193
      %s196 = sadd.s32 %s195, 1
      %p199 = scmp.eq.s32.totalorder %s30, 1
      %p200 = scmp.ne.s32.totalorder %s195, %s197
      %p201 = scmp.eq.s32.totalorder %s30, 0
      %p202 = por %p200, %p201
      %p203 = scmp.ne.s32.totalorder %s195, %s197
      %p204 = scmp.eq.s32.totalorder %s35, 1
      %p205 = por %p203, %p204
      %p206 = scmp.ne.s32.totalorder %s197, %s198
      %p207 = scmp.eq.s32.totalorder %s35, 0
      %p208 = por %p206, %p207
      %p209 = scmp.ne.s32.totalorder %s197, %s198
      %p210 = scmp.eq.s32.totalorder %s36, 1
      %p211 = por %p209, %p210
      %p213 = scmp.ne.s32.totalorder %s198, %s212
      %p214 = scmp.eq.s32.totalorder %s36, 0
      %p215 = por %p213, %p214
      %s217 = sadd.s32 %s216, 1
      %p220 = scmp.eq.s32.totalorder %s30, 1
      %p221 = scmp.ne.s32.totalorder %s216, %s218
      %p222 = scmp.eq.s32.totalorder %s30, 0
      %p223 = por %p221, %p222
      %p224 = scmp.ne.s32.totalorder %s216, %s218
      %p225 = scmp.eq.s32.totalorder %s35, 1
      %p226 = por %p224, %p225
      %p227 = scmp.ne.s32.totalorder %s218, %s219
      %p228 = scmp.eq.s32.totalorder %s35, 0
      %p229 = por %p227, %p228
      %p230 = scmp.ne.s32.totalorder %s218, %s219
      %p231 = scmp.eq.s32.totalorder %s36, 1
      %p232 = por %p230, %p231
      %p234 = scmp.ne.s32.totalorder %s219, %s233
      %p235 = scmp.eq.s32.totalorder %s36, 0
      %p236 = por %p234, %p235
      %s238 = sadd.s32 %s237, 1
      %p241 = scmp.eq.s32.totalorder %s30, 1
      %p242 = scmp.ne.s32.totalorder %s237, %s239
      %p243 = scmp.eq.s32.totalorder %s30, 0
      %p244 = por %p242, %p243
      %p245 = scmp.ne.s32.totalorder %s237, %s239
      %p246 = scmp.eq.s32.totalorder %s35, 1
      %p247 = por %p245, %p246
      %p248 = scmp.ne.s32.totalorder %s239, %s240
      %p249 = scmp.eq.s32.totalorder %s35, 0
      %p250 = por %p248, %p249
      %p251 = scmp.ne.s32.totalorder %s239, %s240
      %p252 = scmp.eq.s32.totalorder %s36, 1
      %p253 = por %p251, %p252
      %p255 = scmp.ne.s32.totalorder %s240, %s254
      %p256 = scmp.eq.s32.totalorder %s36, 0
      %p257 = por %p255, %p256
      %s259 = sadd.s32 %s258, 1
      %p262 = scmp.eq.s32.totalorder %s30, 1
      %p263 = scmp.ne.s32.totalorder %s258, %s260
      %p264 = scmp.eq.s32.totalorder %s30, 0
      %p265 = por %p263, %p264
      %p266 = scmp.ne.s32.totalorder %s258, %s260
      %p267 = scmp.eq.s32.totalorder %s35, 1
      %p268 = por %p266, %p267
      %p269 = scmp.ne.s32.totalorder %s260, %s261
      %p270 = scmp.eq.s32.totalorder %s35, 0
      %p271 = por %p269, %p270
      %p272 = scmp.ne.s32.totalorder %s260, %s261
      %p273 = scmp.eq.s32.totalorder %s36, 1
      %p274 = por %p272, %p273
      %p276 = scmp.ne.s32.totalorder %s261, %s275
      %p277 = scmp.eq.s32.totalorder %s36, 0
      %p278 = por %p276, %p277
      %s280 = sadd.s32 %s279, 1
      %p283 = scmp.eq.s32.totalorder %s30, 1
      %p284 = scmp.ne.s32.totalorder %s279, %s281
      %p285 = scmp.eq.s32.totalorder %s30, 0
      %p286 = por %p284, %p285
      %p287 = scmp.ne.s32.totalorder %s279, %s281
      %p288 = scmp.eq.s32.totalorder %s35, 1
      %p289 = por %p287, %p288
      %p290 = scmp.ne.s32.totalorder %s281, %s282
      %p291 = scmp.eq.s32.totalorder %s35, 0
      %p292 = por %p290, %p291
      %p293 = scmp.ne.s32.totalorder %s281, %s282
      %p294 = scmp.eq.s32.totalorder %s36, 1
      %p295 = por %p293, %p294
      %p297 = scmp.ne.s32.totalorder %s282, %s296
      %p298 = scmp.eq.s32.totalorder %s36, 0
      %p299 = por %p297, %p298
      %s300 = ssub.s32 %s30, %s37
      %p301 = scmp.eq.s32.totalorder %s300, 0
      %s303 = sadd.s32 %s302, 1
      %s304 = scalar_select %p301, %s302, %s303
      %p307 = pneg %p301
      %p308 = scmp.eq.s32.totalorder %s30, 1
      %p309 = por %p307, %p308
      %p310 = scmp.ne.s32.totalorder %s302, %s305
      %p311 = scmp.eq.s32.totalorder %s30, 0
      %p312 = por %p310, %p311
      %p313 = scmp.ne.s32.totalorder %s302, %s305
      %p314 = scmp.eq.s32.totalorder %s35, 1
      %p315 = por %p313, %p314
      %p316 = scmp.ne.s32.totalorder %s305, %s306
      %p317 = scmp.eq.s32.totalorder %s35, 0
      %p318 = por %p316, %p317
      %p319 = scmp.ne.s32.totalorder %s305, %s306
      %p320 = scmp.eq.s32.totalorder %s36, 1
      %p321 = por %p319, %p320
      %p323 = scmp.ne.s32.totalorder %s306, %s322
      %p324 = scmp.eq.s32.totalorder %s36, 0
      %p325 = por %p323, %p324
      %s326 = ssub.s32 %s30, %s37
      %p327 = scmp.eq.s32.totalorder %s326, 0
      %s329 = sadd.s32 %s328, 1
      %s330 = scalar_select %p327, %s328, %s329
      %p333 = pneg %p327
      %p334 = scmp.eq.s32.totalorder %s30, 1
      %p335 = por %p333, %p334
      %p336 = scmp.ne.s32.totalorder %s328, %s331
      %p337 = scmp.eq.s32.totalorder %s30, 0
      %p338 = por %p336, %p337
      %p339 = scmp.ne.s32.totalorder %s328, %s331
      %p340 = scmp.eq.s32.totalorder %s35, 1
      %p341 = por %p339, %p340
      %p342 = scmp.ne.s32.totalorder %s331, %s332
      %p343 = scmp.eq.s32.totalorder %s35, 0
      %p344 = por %p342, %p343
      %p345 = scmp.ne.s32.totalorder %s331, %s332
      %p346 = scmp.eq.s32.totalorder %s36, 1
      %p347 = por %p345, %p346
      %p349 = scmp.ne.s32.totalorder %s332, %s348
      %p350 = scmp.eq.s32.totalorder %s36, 0
      %p351 = por %p349, %p350
      %s352 = ssub.s32 %s30, %s37
      %p353 = scmp.eq.s32.totalorder %s352, 0
      %s355 = sadd.s32 %s354, 1
      %s356 = scalar_select %p353, %s354, %s355
      %p359 = pneg %p353
      %p360 = scmp.eq.s32.totalorder %s30, 1
      %p361 = por %p359, %p360
      %p362 = scmp.ne.s32.totalorder %s354, %s357
      %p363 = scmp.eq.s32.totalorder %s30, 0
      %p364 = por %p362, %p363
      %p365 = scmp.ne.s32.totalorder %s354, %s357
      %p366 = scmp.eq.s32.totalorder %s35, 1
      %p367 = por %p365, %p366
      %p368 = scmp.ne.s32.totalorder %s357, %s358
      %p369 = scmp.eq.s32.totalorder %s35, 0
      %p370 = por %p368, %p369
      %p371 = scmp.ne.s32.totalorder %s357, %s358
      %p372 = scmp.eq.s32.totalorder %s36, 1
      %p373 = por %p371, %p372
      %p375 = scmp.ne.s32.totalorder %s358, %s374
      %p376 = scmp.eq.s32.totalorder %s36, 0
      %p377 = por %p375, %p376
      %p378 = scmp.le.s32.totalorder 1, %s30
      %p379 = scmp.lt.s32.totalorder %s30, 3
      %p380 = pnand %p378, %p379
      %p381 = pneg %p380
      // Predicated region
      $region9: #{generalized_rcnn_forward.2} parent=5 // pred_check
        _
      $region10: #{generalized_rcnn_forward.2} parent=5 // pred_check_branch
        %383 = sbr.rel (%p380) target = $region12
      $region11: #{generalized_rcnn_forward.2} parent=5 // pred_region
        %s384 = ssub.s32 %s30, 1
        // Predicated region
        $region13: #{generalized_rcnn_forward.2} parent=11 // pred_check
          %p385 = pneg %p103
        $region14: #{generalized_rcnn_forward.2} parent=11 // pred_check_branch
          %387 = sbr.rel (%p385) target = $region16
        $region15: #{generalized_rcnn_forward.2} parent=11 // pred_region
          %s389 = ssub.s32 9216, 9216
          %390 = vsyncadd [#allocation3], %s389
          %s391 = sshll.u32 [#allocation2], 4
          %s392 = int_to_ptr.vmem [resolvable:$true] %s391
          %397 = dma.hbm_to_vmem [thread:$0]  %s2, 9216, %s392, [#allocation3], 256, 256, 16
        $region16: #{generalized_rcnn_forward.2} parent=11 // pred_fallthru
          _
        // Predicated region
        $region17: #{generalized_rcnn_forward.2} parent=11 // pred_check
          %p398 = pneg %p124
        $region18: #{generalized_rcnn_forward.2} parent=11 // pred_check_branch
          %400 = sbr.rel (%p398) target = $region20
        $region19: #{generalized_rcnn_forward.2} parent=11 // pred_region
          %s402 = ssub.s32 64, 64
          %403 = vsyncadd [#allocation6], %s402
          %s405 = sshll.u32 [#allocation5], 4
          %s406 = int_to_ptr.vmem [resolvable:$true] %s405
          %408 = dma.hbm_to_vmem [thread:$0]  %s3, 64, %s406, [#allocation6]
        $region20: #{generalized_rcnn_forward.2} parent=11 // pred_fallthru
          _
        // Predicated region
        $region21: #{generalized_rcnn_forward.2} parent=11 // pred_check
          %p409 = pneg %p145
        $region22: #{generalized_rcnn_forward.2} parent=11 // pred_check_branch
          %411 = sbr.rel (%p409) target = $region24
        $region23: #{generalized_rcnn_forward.2} parent=11 // pred_region
          %s413 = ssub.s32 49152, 49152
          %414 = vsyncadd [#allocation6], %s413
          %s415 = sshll.u32 [#allocation7], 4
          %s416 = int_to_ptr.vmem [resolvable:$true] %s415
          %421 = dma.hbm_to_vmem [thread:$0]  %s4, 49152, %s416, [#allocation6], 256, 256, 16
        $region24: #{generalized_rcnn_forward.2} parent=11 // pred_fallthru
          _
        // Predicated region
        $region25: #{generalized_rcnn_forward.2} parent=11 // pred_check
          %p422 = pneg %p166
        $region26: #{generalized_rcnn_forward.2} parent=11 // pred_check_branch
          %424 = sbr.rel (%p422) target = $region28
        $region27: #{generalized_rcnn_forward.2} parent=11 // pred_region
          %s426 = ssub.s32 64, 64
          %427 = vsyncadd [#allocation9], %s426
          %s429 = sshll.u32 [#allocation8], 4
          %s430 = int_to_ptr.vmem [resolvable:$true] %s429
          %432 = dma.hbm_to_vmem [thread:$0]  %s5, 64, %s430, [#allocation9]
        $region28: #{generalized_rcnn_forward.2} parent=11 // pred_fallthru
          _
        // Predicated region
        $region29: #{generalized_rcnn_forward.2} parent=11 // pred_check
          %p433 = pneg %p187
        $region30: #{generalized_rcnn_forward.2} parent=11 // pred_check_branch
          %435 = sbr.rel (%p433) target = $region32
        $region31: #{generalized_rcnn_forward.2} parent=11 // pred_region
          %s437 = ssub.s32 4096, 4096
          %438 = vsyncadd [#allocation9], %s437
          %s439 = sshll.u32 [#allocation10], 4
          %s440 = int_to_ptr.vmem [resolvable:$true] %s439
          %445 = dma.hbm_to_vmem [thread:$0]  %s6, 4096, %s440, [#allocation9], 64, 64, 4
        $region32: #{generalized_rcnn_forward.2} parent=11 // pred_fallthru
          _
        // Predicated region
        $region33: #{generalized_rcnn_forward.2} parent=11 // pred_check
          %p446 = pneg %p208
        $region34: #{generalized_rcnn_forward.2} parent=11 // pred_check_branch
          %448 = sbr.rel (%p446) target = $region36
        $region35: #{generalized_rcnn_forward.2} parent=11 // pred_region
          %s450 = ssub.s32 16, 16
          %451 = vsyncadd [#allocation12], %s450
          %s453 = sshll.u32 [#allocation11], 4
          %s454 = int_to_ptr.vmem [resolvable:$true] %s453
          %456 = dma.hbm_to_vmem [thread:$0]  %s7, 16, %s454, [#allocation12]
        $region36: #{generalized_rcnn_forward.2} parent=11 // pred_fallthru
          _
        // Predicated region
        $region37: #{generalized_rcnn_forward.2} parent=11 // pred_check
          %p457 = pneg %p229
        $region38: #{generalized_rcnn_forward.2} parent=11 // pred_check_branch
          %459 = sbr.rel (%p457) target = $region40
        $region39: #{generalized_rcnn_forward.2} parent=11 // pred_region
          %s461 = ssub.s32 49152, 49152
          %462 = vsyncadd [#allocation12], %s461
          %s463 = sshll.u32 [#allocation13], 4
          %s464 = int_to_ptr.vmem [resolvable:$true] %s463
          %469 = dma.hbm_to_vmem [thread:$0]  %s8, 49152, %s464, [#allocation12], 256, 256, 16
        $region40: #{generalized_rcnn_forward.2} parent=11 // pred_fallthru
          _
        // Predicated region
        $region41: #{generalized_rcnn_forward.2} parent=11 // pred_check
          %p470 = pneg %p250
        $region42: #{generalized_rcnn_forward.2} parent=11 // pred_check_branch
          %472 = sbr.rel (%p470) target = $region44
        $region43: #{generalized_rcnn_forward.2} parent=11 // pred_region
          %s474 = ssub.s32 64, 64
          %475 = vsyncadd [#allocation15], %s474
          %s477 = sshll.u32 [#allocation14], 4
          %s478 = int_to_ptr.vmem [resolvable:$true] %s477
          %480 = dma.hbm_to_vmem [thread:$0]  %s9, 64, %s478, [#allocation15]
        $region44: #{generalized_rcnn_forward.2} parent=11 // pred_fallthru
          _
        // Predicated region
        $region45: #{generalized_rcnn_forward.2} parent=11 // pred_check
          %p481 = pneg %p271
        $region46: #{generalized_rcnn_forward.2} parent=11 // pred_check_branch
          %483 = sbr.rel (%p481) target = $region48
        $region47: #{generalized_rcnn_forward.2} parent=11 // pred_region
          %s485 = ssub.s32 8192, 8192
          %486 = vsyncadd [#allocation15], %s485
          %s487 = sshll.u32 [#allocation16], 4
          %s488 = int_to_ptr.vmem [resolvable:$true] %s487
          %493 = dma.hbm_to_vmem [thread:$0]  %s10, 8192, %s488, [#allocation15], 128, 128, 8
        $region48: #{generalized_rcnn_forward.2} parent=11 // pred_fallthru
          _
        // Predicated region
        $region49: #{generalized_rcnn_forward.2} parent=11 // pred_check
          %p494 = pneg %p292
        $region50: #{generalized_rcnn_forward.2} parent=11 // pred_check_branch
          %496 = sbr.rel (%p494) target = $region52
        $region51: #{generalized_rcnn_forward.2} parent=11 // pred_region
          %s498 = ssub.s32 32, 32
          %499 = vsyncadd [#allocation18], %s498
          %s501 = sshll.u32 [#allocation17], 4
          %s502 = int_to_ptr.vmem [resolvable:$true] %s501
          %504 = dma.hbm_to_vmem [thread:$0]  %s11, 32, %s502, [#allocation18]
        $region52: #{generalized_rcnn_forward.2} parent=11 // pred_fallthru
          _
      $region12: #{generalized_rcnn_forward.2} parent=5 // pred_fallthru
        _
      %p505 = scmp.lt.s32.totalorder %s30, 2
      // Predicated region
      $region53: #{generalized_rcnn_forward.2} parent=5 // pred_check
        %p506 = pneg %p505
      $region54: #{generalized_rcnn_forward.2} parent=5 // pred_check_branch
        %508 = sbr.rel (%p506) target = $region56
      $region55: #{generalized_rcnn_forward.2} parent=5 // pred_region
        // Predicated region
        $region57: #{generalized_rcnn_forward.2} parent=55 // pred_check
          %p509 = pneg %p50
        $region58: #{generalized_rcnn_forward.2} parent=55 // pred_check_branch
          %511 = sbr.rel (%p509) target = $region60
        $region59: #{generalized_rcnn_forward.2} parent=55 // pred_region
          %p512 = scmp.lt.s32.totalorder %s30, 1
          %s513 = scalar_select %p512, %s30, 1
          %s514 = smul.addr %s513, 2
          %s515 = smul.addr %s514, 4
          %s516 = scalar_lea.vmem %s0, %s515
        $region60: #{generalized_rcnn_forward.2} parent=55 // pred_fallthru
          _
        // Predicated region
        $region61: #{generalized_rcnn_forward.2} parent=55 // pred_check
          %p517 = pneg %p76
        $region62: #{generalized_rcnn_forward.2} parent=55 // pred_check_branch
          %519 = sbr.rel (%p517) target = $region64
        $region63: #{generalized_rcnn_forward.2} parent=55 // pred_region
          %p520 = scmp.lt.s32.totalorder %s30, 1
          %s521 = scalar_select %p520, %s30, 1
          %s522 = smul.addr %s521, 2
          %s523 = smul.addr %s522, 4
          %s524 = scalar_lea.vmem %s1, %s523
        $region64: #{generalized_rcnn_forward.2} parent=55 // pred_fallthru
          _
      $region56: #{generalized_rcnn_forward.2} parent=5 // pred_fallthru
        _
      %p525 = scmp.le.s32.totalorder 1, %s30
      %p526 = scmp.lt.s32.totalorder %s30, 3
      %p527 = pnand %p525, %p526
      %p528 = pneg %p527
      // Predicated region
      $region65: #{generalized_rcnn_forward.2} parent=5 // pred_check
        _
      $region66: #{generalized_rcnn_forward.2} parent=5 // pred_check_branch
        %530 = sbr.rel (%p527) target = $region68
      $region67: #{generalized_rcnn_forward.2} parent=5 // pred_region
        %s531 = ssub.s32 %s30, 1
        // Predicated region
        $region69: #{generalized_rcnn_forward.2} parent=67 // pred_check
          %p532 = pneg %p103
        $region70: #{generalized_rcnn_forward.2} parent=67 // pred_check_branch
          %534 = sbr.rel (%p532) target = $region72
        $region71: #{generalized_rcnn_forward.2} parent=67 // pred_region
          %535 = dma.done [#allocation3], 9216
        $region72: #{generalized_rcnn_forward.2} parent=67 // pred_fallthru
          _
        // Predicated region
        $region73: #{generalized_rcnn_forward.2} parent=67 // pred_check
          %p536 = pneg %p124
        $region74: #{generalized_rcnn_forward.2} parent=67 // pred_check_branch
          %538 = sbr.rel (%p536) target = $region76
        $region75: #{generalized_rcnn_forward.2} parent=67 // pred_region
          %539 = dma.done [#allocation6], 64
        $region76: #{generalized_rcnn_forward.2} parent=67 // pred_fallthru
          _
        // Predicated region
        $region77: #{generalized_rcnn_forward.2} parent=67 // pred_check
          %p540 = pneg %p145
        $region78: #{generalized_rcnn_forward.2} parent=67 // pred_check_branch
          %542 = sbr.rel (%p540) target = $region80
        $region79: #{generalized_rcnn_forward.2} parent=67 // pred_region
          %543 = dma.done [#allocation6], 49152
        $region80: #{generalized_rcnn_forward.2} parent=67 // pred_fallthru
          _
        // Predicated region
        $region81: #{generalized_rcnn_forward.2} parent=67 // pred_check
          %p544 = pneg %p166
        $region82: #{generalized_rcnn_forward.2} parent=67 // pred_check_branch
          %546 = sbr.rel (%p544) target = $region84
        $region83: #{generalized_rcnn_forward.2} parent=67 // pred_region
          %547 = dma.done [#allocation9], 64
        $region84: #{generalized_rcnn_forward.2} parent=67 // pred_fallthru
          _
        // Predicated region
        $region85: #{generalized_rcnn_forward.2} parent=67 // pred_check
          %p548 = pneg %p187
        $region86: #{generalized_rcnn_forward.2} parent=67 // pred_check_branch
          %550 = sbr.rel (%p548) target = $region88
        $region87: #{generalized_rcnn_forward.2} parent=67 // pred_region
          %551 = dma.done [#allocation9], 4096
        $region88: #{generalized_rcnn_forward.2} parent=67 // pred_fallthru
          _
        // Predicated region
        $region89: #{generalized_rcnn_forward.2} parent=67 // pred_check
          %p552 = pneg %p208
        $region90: #{generalized_rcnn_forward.2} parent=67 // pred_check_branch
          %554 = sbr.rel (%p552) target = $region92
        $region91: #{generalized_rcnn_forward.2} parent=67 // pred_region
          %555 = dma.done [#allocation12], 16
        $region92: #{generalized_rcnn_forward.2} parent=67 // pred_fallthru
          _
        // Predicated region
        $region93: #{generalized_rcnn_forward.2} parent=67 // pred_check
          %p556 = pneg %p229
        $region94: #{generalized_rcnn_forward.2} parent=67 // pred_check_branch
          %558 = sbr.rel (%p556) target = $region96
        $region95: #{generalized_rcnn_forward.2} parent=67 // pred_region
          %559 = dma.done [#allocation12], 49152
        $region96: #{generalized_rcnn_forward.2} parent=67 // pred_fallthru
          _
        // Predicated region
        $region97: #{generalized_rcnn_forward.2} parent=67 // pred_check
          %p560 = pneg %p250
        $region98: #{generalized_rcnn_forward.2} parent=67 // pred_check_branch
          %562 = sbr.rel (%p560) target = $region100
        $region99: #{generalized_rcnn_forward.2} parent=67 // pred_region
          %563 = dma.done [#allocation15], 64
        $region100: #{generalized_rcnn_forward.2} parent=67 // pred_fallthru
          _
        // Predicated region
        $region101: #{generalized_rcnn_forward.2} parent=67 // pred_check
          %p564 = pneg %p271
        $region102: #{generalized_rcnn_forward.2} parent=67 // pred_check_branch
          %566 = sbr.rel (%p564) target = $region104
        $region103: #{generalized_rcnn_forward.2} parent=67 // pred_region
          %567 = dma.done [#allocation15], 8192
        $region104: #{generalized_rcnn_forward.2} parent=67 // pred_fallthru
          _
        // Predicated region
        $region105: #{generalized_rcnn_forward.2} parent=67 // pred_check
          %p568 = pneg %p292
        $region106: #{generalized_rcnn_forward.2} parent=67 // pred_check_branch
          %570 = sbr.rel (%p568) target = $region108
        $region107: #{generalized_rcnn_forward.2} parent=67 // pred_region
          %571 = dma.done [#allocation18], 32
        $region108: #{generalized_rcnn_forward.2} parent=67 // pred_fallthru
          _
        %p572 = scmp.lt.s32.totalorder %s35, 1
        %s573 = scalar_select %p572, %s35, 1
        %s574 = smul.addr %s573, 2
        %s575 = smul.addr %s574, 4
        %s576 = scalar_lea.vmem %s0, %s575
        %p577 = pneg %p56
        %p578 = pneg %p53
        %p579 = scmp.lt.s32.totalorder %s35, 1
        %s580 = scalar_select %p579, %s35, 1
        %s581 = smul.addr %s580, 2
        %s582 = smul.addr %s581, 4
        %s583 = scalar_lea.vmem %s1, %s582
        %p584 = pneg %p82
        %p585 = pneg %p79
        %p586 = pneg %p103
        %p587 = pneg %p100
        %p588 = pneg %p124
        %p589 = pneg %p121
        %p590 = pneg %p145
        %p591 = pneg %p142
        %p592 = pneg %p166
        %p593 = pneg %p163
        %p594 = pneg %p187
        %p595 = pneg %p184
        %p596 = pneg %p208
        %p597 = pneg %p205
        %p598 = pneg %p229
        %p599 = pneg %p226
        %p600 = pneg %p250
        %p601 = pneg %p247
        %p602 = pneg %p271
        %p603 = pneg %p268
        %p604 = pneg %p292
        %p605 = pneg %p289
        %p606 = pneg %p318
        %p607 = pneg %p315
        %p608 = scmp.lt.s32.totalorder %s35, 1
        %s609 = scalar_select %p608, %s35, 1
        %s610 = smul.addr %s609, 8
        %s611 = smul.addr %s610, 4
        %s612 = scalar_lea.vmem %s12, %s611
        %p613 = pneg %p344
        %p614 = pneg %p341
        %s615 = sand.u32 %s331, 1
        %s616 = scalar_lea.sflag [#allocation4], %s615
        %s617 = sand.u32 %s331, 1
        %s618 = scalar_lea.vmem [#allocation19], %s617
        %p619 = pneg %p370
        %p620 = pneg %p367
        %p621 = scmp.lt.s32.totalorder %s35, 1
        %s622 = scalar_select %p621, %s35, 1
        %s623 = smul.addr %s622, 4
        %s624 = smul.addr %s623, 4
        %s625 = scalar_lea.vmem %s14, %s624
        %p626 = scmp.lt.s32.totalorder %s35, 1
        %s627 = scalar_select %p626, %s35, 1
        %s628 = smul.addr %s627, 2
        %s629 = smul.addr %s628, 4
        %s630 = scalar_lea.vmem %s0, %s629
        %p631 = scmp.lt.s32.totalorder %s35, 1
        %s632 = scalar_select %p631, %s35, 1
        %s633 = smul.addr %s632, 2
        %s634 = smul.addr %s633, 4
        %s635 = scalar_lea.vmem %s1, %s634
        %p636 = scmp.lt.s32.totalorder %s35, 1
        %s637 = scalar_select %p636, %s35, 1
        %s638 = smul.addr %s637, 8
        %s639 = smul.addr %s638, 4
        %s640 = scalar_lea.vmem %s12, %s639
        %p641 = scmp.lt.s32.totalorder %s35, 1
        %s642 = scalar_select %p641, %s35, 1
        %s643 = smul.addr %s642, 4
        %s644 = smul.addr %s643, 4
        %s645 = scalar_lea.vmem %s14, %s644
        %v647 = vld [vmem:[%s630] sm:$0xf]
        %v648 = vld [vmem:[%s630 + $0x4] sm:$0xf]
        %v649 = vld [vmem:[%s635] sm:$0xf]
        %v650 = vld [vmem:[%s635 + $0x4] sm:$0xf]
        %v653 = vunpack.c.l.b16 %v649
        %v654 = vunpack.c.l.b16 %v650
        %v655 = vpack.c.b16 %v654, %v653
        %v657 = vshrl.u32 %v655, 16
        %v659 = vrot.slane %v657, 7
        %v660 = vshll.u32 %v655, 16
        %v662 = vor.u32 %v659, %v660
        %vm664 = vcmask 1040384
        %vm665 = vsmask.f32 256
        %vm666 = vmand %vm664, %vm665
        %v667 = vsel %vm666, 0, %v662
        %v670 = vunpack.c.l.b16 %v647
        %v671 = vunpack.c.l.b16 %v648
        %v672 = vpack.c.b16 %v671, %v670
        %v674 = vshrl.u32 %v672, 16
        %v676 = vshll.u32 %v672, 16
        %v678 = vrot.slane %v676, 1
        %v679 = vor.u32 %v674, %v678
        %vm681 = vcmask 1047552
        %vm682 = vsmask.f32 7424
        %vm683 = vmand %vm681, %vm682
        %v684 = vsel %vm683, %v679, 0
        %v685 = vld [vmem:[#allocation2] sm:$0xff]
        %v686 = vld [vmem:[#allocation2 + $0x8] sm:$0xff]
        %v687 = vld [vmem:[#allocation2 + $0x10] sm:$0xff]
        %v688 = vld [vmem:[#allocation2 + $0x18] sm:$0xff]
        %v689 = vld [vmem:[#allocation2 + $0x20] sm:$0xff]
        %v690 = vld [vmem:[#allocation2 + $0x28] sm:$0xff]
        %v691 = vld [vmem:[#allocation2 + $0x30] sm:$0xff]
        %v692 = vld [vmem:[#allocation2 + $0x38] sm:$0xff]
        %v693 = vld [vmem:[#allocation2 + $0x40] sm:$0xff]
        %v694 = vld [vmem:[#allocation2 + $0x48] sm:$0xff]
        %v695 = vld [vmem:[#allocation2 + $0x50] sm:$0xff]
        %v696 = vld [vmem:[#allocation2 + $0x58] sm:$0xff]
        %v697 = vld [vmem:[#allocation2 + $0x60] sm:$0xff]
        %v698 = vld [vmem:[#allocation2 + $0x68] sm:$0xff]
        %v699 = vld [vmem:[#allocation2 + $0x70] sm:$0xff]
        %v700 = vld [vmem:[#allocation2 + $0x78] sm:$0xff]
        %v701 = vld [vmem:[#allocation2 + $0x80] sm:$0xff]
        %v702 = vld [vmem:[#allocation2 + $0x88] sm:$0xff]
        %v703 = vld [vmem:[#allocation2 + $0x90] sm:$0xff]
        %v704 = vld [vmem:[#allocation2 + $0x98] sm:$0xff]
        %v705 = vld [vmem:[#allocation2 + $0xa0] sm:$0xff]
        %v706 = vld [vmem:[#allocation2 + $0xa8] sm:$0xff]
        %v707 = vld [vmem:[#allocation2 + $0xb0] sm:$0xff]
        %v708 = vld [vmem:[#allocation2 + $0xb8] sm:$0xff]
        %s709 = scalar_lea.vmem [#allocation2], 192
        %v710 = vld [vmem:[%s709] sm:$0xff]
        %v711 = vld [vmem:[%s709 + $0x8] sm:$0xff]
        %v712 = vld [vmem:[%s709 + $0x10] sm:$0xff]
        %v713 = vld [vmem:[%s709 + $0x18] sm:$0xff]
        %v714 = vld [vmem:[%s709 + $0x20] sm:$0xff]
        %v715 = vld [vmem:[%s709 + $0x28] sm:$0xff]
        %v716 = vld [vmem:[%s709 + $0x30] sm:$0xff]
        %v717 = vld [vmem:[%s709 + $0x38] sm:$0xff]
        %v718 = vld [vmem:[%s709 + $0x40] sm:$0xff]
        %v719 = vld [vmem:[%s709 + $0x48] sm:$0xff]
        %v720 = vld [vmem:[%s709 + $0x50] sm:$0xff]
        %v721 = vld [vmem:[%s709 + $0x58] sm:$0xff]
        %v722 = vld [vmem:[%s709 + $0x60] sm:$0xff]
        %v723 = vld [vmem:[%s709 + $0x68] sm:$0xff]
        %v724 = vld [vmem:[%s709 + $0x70] sm:$0xff]
        %v725 = vld [vmem:[%s709 + $0x78] sm:$0xff]
        %v726 = vld [vmem:[%s709 + $0x80] sm:$0xff]
        %v727 = vld [vmem:[%s709 + $0x88] sm:$0xff]
        %v728 = vld [vmem:[%s709 + $0x90] sm:$0xff]
        %v729 = vld [vmem:[%s709 + $0x98] sm:$0xff]
        %v730 = vld [vmem:[%s709 + $0xa0] sm:$0xff]
        %v731 = vld [vmem:[%s709 + $0xa8] sm:$0xff]
        %v732 = vld [vmem:[%s709 + $0xb0] sm:$0xff]
        %v733 = vld [vmem:[%s709 + $0xb8] sm:$0xff]
        %v758 = vunpack.c.l.b16 %v710
        %v759 = vunpack.c.h.b16 %v710
        %v760 = vunpack.c.l.b16 %v711
        %v761 = vunpack.c.h.b16 %v711
        %v762 = vunpack.c.l.b16 %v712
        %v763 = vunpack.c.h.b16 %v712
        %v764 = vunpack.c.l.b16 %v713
        %v765 = vunpack.c.h.b16 %v713
        %v766 = vunpack.c.l.b16 %v714
        %v767 = vunpack.c.h.b16 %v714
        %v768 = vunpack.c.l.b16 %v715
        %v769 = vunpack.c.h.b16 %v715
        %v770 = vunpack.c.l.b16 %v716
        %v771 = vunpack.c.h.b16 %v716
        %v772 = vunpack.c.l.b16 %v717
        %v773 = vunpack.c.h.b16 %v717
        %v774 = vunpack.c.l.b16 %v718
        %v775 = vunpack.c.h.b16 %v718
        %v776 = vunpack.c.l.b16 %v719
        %v777 = vunpack.c.h.b16 %v719
        %v778 = vunpack.c.l.b16 %v720
        %v779 = vunpack.c.h.b16 %v720
        %v780 = vunpack.c.l.b16 %v721
        %v781 = vunpack.c.h.b16 %v721
        %v782 = vunpack.c.l.b16 %v722
        %v783 = vunpack.c.h.b16 %v722
        %v784 = vunpack.c.l.b16 %v723
        %v785 = vunpack.c.h.b16 %v723
        %v786 = vunpack.c.l.b16 %v724
        %v787 = vunpack.c.h.b16 %v724
        %v788 = vunpack.c.l.b16 %v725
        %v789 = vunpack.c.h.b16 %v725
        %v790 = vunpack.c.l.b16 %v726
        %v791 = vunpack.c.h.b16 %v726
        %v792 = vunpack.c.l.b16 %v727
        %v793 = vunpack.c.h.b16 %v727
        %v794 = vunpack.c.l.b16 %v728
        %v795 = vunpack.c.h.b16 %v728
        %v796 = vunpack.c.l.b16 %v729
        %v797 = vunpack.c.h.b16 %v729
        %v798 = vunpack.c.l.b16 %v730
        %v799 = vunpack.c.h.b16 %v730
        %v800 = vunpack.c.l.b16 %v731
        %v801 = vunpack.c.h.b16 %v731
        %v802 = vunpack.c.l.b16 %v732
        %v803 = vunpack.c.h.b16 %v732
        %v804 = vunpack.c.l.b16 %v733
        %v805 = vunpack.c.h.b16 %v733
        %v806 = vpack.c.b16 %v762, %v758
        %v807 = vpack.c.b16 %v763, %v759
        %v808 = vpack.c.b16 %v764, %v760
        %v809 = vpack.c.b16 %v765, %v761
        %v810 = vpack.c.b16 %v770, %v766
        %v811 = vpack.c.b16 %v771, %v767
        %v812 = vpack.c.b16 %v772, %v768
        %v813 = vpack.c.b16 %v773, %v769
        %v814 = vpack.c.b16 %v778, %v774
        %v815 = vpack.c.b16 %v779, %v775
        %v816 = vpack.c.b16 %v780, %v776
        %v817 = vpack.c.b16 %v781, %v777
        %v818 = vpack.c.b16 %v786, %v782
        %v819 = vpack.c.b16 %v787, %v783
        %v820 = vpack.c.b16 %v788, %v784
        %v821 = vpack.c.b16 %v789, %v785
        %v822 = vpack.c.b16 %v794, %v790
        %v823 = vpack.c.b16 %v795, %v791
        %v824 = vpack.c.b16 %v796, %v792
        %v825 = vpack.c.b16 %v797, %v793
        %v826 = vpack.c.b16 %v802, %v798
        %v827 = vpack.c.b16 %v803, %v799
        %v828 = vpack.c.b16 %v804, %v800
        %v829 = vpack.c.b16 %v805, %v801
        %vm854 = vcmask 785408
        %v855 = vsel %vm854, %v672, 0
        %857 = vmatprep.subr.bf16.mxu0 %v807
        %858 = vmatpush1.bf16.msra.mxu0 %v806
        %859 = vmatprep.subr.bf16.mxu0 %v811
        %860 = vmatpush1.bf16.msra.mxu0 %v810
        %861 = vmatprep.subr.bf16.mxu0 %v815
        %862 = vmatpush1.bf16.msra.mxu0 %v814
        %863 = vmatprep.subr.bf16.mxu0 %v819
        %864 = vmatpush1.bf16.msra.mxu0 %v818
        %865 = vmatprep.subr.bf16.mxu0 %v823
        %866 = vmatpush1.bf16.msra.mxu0 %v822
        %867 = vmatprep.subr.bf16.mxu0 %v827
        %868 = vmatpush1.bf16.msra.mxu0 %v826
        %869 = vmatprep.subr.bf16.mxu0 0
        %870 = vmatpush1.bf16.msra.mxu0 0
        %871 = vmatprep.subr.bf16.mxu0 0
        %872 = vmatpush1.bf16.msra.mxu0 0
        %873 = vmatprep.subr.bf16.mxu0 0
        %874 = vmatpush1.bf16.msra.mxu0 0
        %875 = vmatprep.subr.bf16.mxu0 0
        %876 = vmatpush1.bf16.msra.mxu0 0
        %877 = vmatprep.subr.bf16.mxu0 0
        %878 = vmatpush1.bf16.msra.mxu0 0
        %879 = vmatprep.subr.bf16.mxu0 0
        %880 = vmatpush1.bf16.msra.mxu0 0
        %881 = vmatprep.subr.bf16.mxu0 0
        %882 = vmatpush1.bf16.msra.mxu0 0
        %883 = vmatprep.subr.bf16.mxu0 0
        %884 = vmatpush1.bf16.msra.mxu0 0
        %885 = vmatprep.subr.bf16.mxu0 0
        %886 = vmatpush1.bf16.msra.mxu0 0
        %887 = vmatprep.subr.bf16.mxu0 0
        %888 = vmatpush1.bf16.msra.mxu0 0
        %889 = vmatprep.mubr.bf16.mxu0 0
        %890 = vmatmul.mubr.bf16.gmra.mrb[0].mxu0 %v855
        %v891 = vpop.f32.mrb[0].mxu0
        %v892 = vadd.f32 0.0, %v891
        %v893 = vpop.f32.mrb[0].mxu0
        %v894 = vadd.f32 0.0, %v893
        %v895 = vpop.f32.mrb[0].mxu0
        %v896 = vadd.f32 0.0, %v895
        %v897 = vpop.f32.mrb[0].mxu0
        %v898 = vadd.f32 0.0, %v897
        %899 = vdwg.mxu0
        %900 = vmatprep.subr.bf16.mxu0 %v809
        %901 = vmatpush1.bf16.msra.mxu0 %v808
        %902 = vmatprep.subr.bf16.mxu0 %v813
        %903 = vmatpush1.bf16.msra.mxu0 %v812
        %904 = vmatprep.subr.bf16.mxu0 %v817
        %905 = vmatpush1.bf16.msra.mxu0 %v816
        %906 = vmatprep.subr.bf16.mxu0 %v821
        %907 = vmatpush1.bf16.msra.mxu0 %v820
        %908 = vmatprep.subr.bf16.mxu0 %v825
        %909 = vmatpush1.bf16.msra.mxu0 %v824
        %910 = vmatprep.subr.bf16.mxu0 %v829
        %911 = vmatpush1.bf16.msra.mxu0 %v828
        %912 = vmatprep.subr.bf16.mxu0 0
        %913 = vmatpush1.bf16.msra.mxu0 0
        %914 = vmatprep.subr.bf16.mxu0 0
        %915 = vmatpush1.bf16.msra.mxu0 0
        %916 = vmatprep.subr.bf16.mxu0 0
        %917 = vmatpush1.bf16.msra.mxu0 0
        %918 = vmatprep.subr.bf16.mxu0 0
        %919 = vmatpush1.bf16.msra.mxu0 0
        %920 = vmatprep.subr.bf16.mxu0 0
        %921 = vmatpush1.bf16.msra.mxu0 0
        %922 = vmatprep.subr.bf16.mxu0 0
        %923 = vmatpush1.bf16.msra.mxu0 0
        %924 = vmatprep.subr.bf16.mxu0 0
        %925 = vmatpush1.bf16.msra.mxu0 0
        %926 = vmatprep.subr.bf16.mxu0 0
        %927 = vmatpush1.bf16.msra.mxu0 0
        %928 = vmatprep.subr.bf16.mxu0 0
        %929 = vmatpush1.bf16.msra.mxu0 0
        %930 = vmatprep.subr.bf16.mxu0 0
        %931 = vmatpush1.bf16.msra.mxu0 0
        %932 = vmatprep.mubr.bf16.mxu0 0
        %933 = vmatmul.mubr.bf16.gmra.mrb[0].mxu0 %v855
        %v934 = vpop.f32.mrb[0].mxu0
        %v935 = vadd.f32 0.0, %v934
        %v936 = vpop.f32.mrb[0].mxu0
        %v937 = vadd.f32 0.0, %v936
        %v938 = vpop.f32.mrb[0].mxu0
        %v939 = vadd.f32 0.0, %v938
        %v940 = vpop.f32.mrb[0].mxu0
        %v941 = vadd.f32 0.0, %v940
        %942 = vdwg.mxu0
        %v967 = vunpack.c.l.b16 %v685
        %v968 = vunpack.c.h.b16 %v685
        %v969 = vunpack.c.l.b16 %v686
        %v970 = vunpack.c.h.b16 %v686
        %v971 = vunpack.c.l.b16 %v687
        %v972 = vunpack.c.h.b16 %v687
        %v973 = vunpack.c.l.b16 %v688
        %v974 = vunpack.c.h.b16 %v688
        %v975 = vunpack.c.l.b16 %v689
        %v976 = vunpack.c.h.b16 %v689
        %v977 = vunpack.c.l.b16 %v690
        %v978 = vunpack.c.h.b16 %v690
        %v979 = vunpack.c.l.b16 %v691
        %v980 = vunpack.c.h.b16 %v691
        %v981 = vunpack.c.l.b16 %v692
        %v982 = vunpack.c.h.b16 %v692
        %v983 = vunpack.c.l.b16 %v693
        %v984 = vunpack.c.h.b16 %v693
        %v985 = vunpack.c.l.b16 %v694
        %v986 = vunpack.c.h.b16 %v694
        %v987 = vunpack.c.l.b16 %v695
        %v988 = vunpack.c.h.b16 %v695
        %v989 = vunpack.c.l.b16 %v696
        %v990 = vunpack.c.h.b16 %v696
        %v991 = vunpack.c.l.b16 %v697
        %v992 = vunpack.c.h.b16 %v697
        %v993 = vunpack.c.l.b16 %v698
        %v994 = vunpack.c.h.b16 %v698
        %v995 = vunpack.c.l.b16 %v699
        %v996 = vunpack.c.h.b16 %v699
        %v997 = vunpack.c.l.b16 %v700
        %v998 = vunpack.c.h.b16 %v700
        %v999 = vunpack.c.l.b16 %v701
        %v1000 = vunpack.c.h.b16 %v701
        %v1001 = vunpack.c.l.b16 %v702
        %v1002 = vunpack.c.h.b16 %v702
        %v1003 = vunpack.c.l.b16 %v703
        %v1004 = vunpack.c.h.b16 %v703
        %v1005 = vunpack.c.l.b16 %v704
        %v1006 = vunpack.c.h.b16 %v704
        %v1007 = vunpack.c.l.b16 %v705
        %v1008 = vunpack.c.h.b16 %v705
        %v1009 = vunpack.c.l.b16 %v706
        %v1010 = vunpack.c.h.b16 %v706
        %v1011 = vunpack.c.l.b16 %v707
        %v1012 = vunpack.c.h.b16 %v707
        %v1013 = vunpack.c.l.b16 %v708
        %v1014 = vunpack.c.h.b16 %v708
        %v1015 = vpack.c.b16 %v971, %v967
        %v1016 = vpack.c.b16 %v972, %v968
        %v1017 = vpack.c.b16 %v973, %v969
        %v1018 = vpack.c.b16 %v974, %v970
        %v1019 = vpack.c.b16 %v979, %v975
        %v1020 = vpack.c.b16 %v980, %v976
        %v1021 = vpack.c.b16 %v981, %v977
        %v1022 = vpack.c.b16 %v982, %v978
        %v1023 = vpack.c.b16 %v987, %v983
        %v1024 = vpack.c.b16 %v988, %v984
        %v1025 = vpack.c.b16 %v989, %v985
        %v1026 = vpack.c.b16 %v990, %v986
        %v1027 = vpack.c.b16 %v995, %v991
        %v1028 = vpack.c.b16 %v996, %v992
        %v1029 = vpack.c.b16 %v997, %v993
        %v1030 = vpack.c.b16 %v998, %v994
        %v1031 = vpack.c.b16 %v1003, %v999
        %v1032 = vpack.c.b16 %v1004, %v1000
        %v1033 = vpack.c.b16 %v1005, %v1001
        %v1034 = vpack.c.b16 %v1006, %v1002
        %v1035 = vpack.c.b16 %v1011, %v1007
        %v1036 = vpack.c.b16 %v1012, %v1008
        %v1037 = vpack.c.b16 %v1013, %v1009
        %v1038 = vpack.c.b16 %v1014, %v1010
        %v1064 = vsel %vm854, %v667, 0
        %1066 = vmatprep.subr.bf16.mxu0 %v1016
        %1067 = vmatpush1.bf16.msra.mxu0 %v1015
        %1068 = vmatprep.subr.bf16.mxu0 %v1020
        %1069 = vmatpush1.bf16.msra.mxu0 %v1019
        %1070 = vmatprep.subr.bf16.mxu0 %v1024
        %1071 = vmatpush1.bf16.msra.mxu0 %v1023
        %1072 = vmatprep.subr.bf16.mxu0 %v1028
        %1073 = vmatpush1.bf16.msra.mxu0 %v1027
        %1074 = vmatprep.subr.bf16.mxu0 %v1032
        %1075 = vmatpush1.bf16.msra.mxu0 %v1031
        %1076 = vmatprep.subr.bf16.mxu0 %v1036
        %1077 = vmatpush1.bf16.msra.mxu0 %v1035
        %1078 = vmatprep.subr.bf16.mxu0 0
        %1079 = vmatpush1.bf16.msra.mxu0 0
        %1080 = vmatprep.subr.bf16.mxu0 0
        %1081 = vmatpush1.bf16.msra.mxu0 0
        %1082 = vmatprep.subr.bf16.mxu0 0
        %1083 = vmatpush1.bf16.msra.mxu0 0
        %1084 = vmatprep.subr.bf16.mxu0 0
        %1085 = vmatpush1.bf16.msra.mxu0 0
        %1086 = vmatprep.subr.bf16.mxu0 0
        %1087 = vmatpush1.bf16.msra.mxu0 0
        %1088 = vmatprep.subr.bf16.mxu0 0
        %1089 = vmatpush1.bf16.msra.mxu0 0
        %1090 = vmatprep.subr.bf16.mxu0 0
        %1091 = vmatpush1.bf16.msra.mxu0 0
        %1092 = vmatprep.subr.bf16.mxu0 0
        %1093 = vmatpush1.bf16.msra.mxu0 0
        %1094 = vmatprep.subr.bf16.mxu0 0
        %1095 = vmatpush1.bf16.msra.mxu0 0
        %1096 = vmatprep.subr.bf16.mxu0 0
        %1097 = vmatpush1.bf16.msra.mxu0 0
        %1098 = vmatprep.mubr.bf16.mxu0 0
        %1099 = vmatmul.mubr.bf16.gmra.mrb[0].mxu0 %v1064
        %v1100 = vpop.f32.mrb[0].mxu0
        %v1101 = vadd.f32 %v892, %v1100
        %v1102 = vpop.f32.mrb[0].mxu0
        %v1103 = vadd.f32 %v894, %v1102
        %v1104 = vpop.f32.mrb[0].mxu0
        %v1105 = vadd.f32 %v896, %v1104
        %v1106 = vpop.f32.mrb[0].mxu0
        %v1107 = vadd.f32 %v898, %v1106
        %1108 = vdwg.mxu0
        %1109 = vmatprep.subr.bf16.mxu0 %v1018
        %1110 = vmatpush1.bf16.msra.mxu0 %v1017
        %1111 = vmatprep.subr.bf16.mxu0 %v1022
        %1112 = vmatpush1.bf16.msra.mxu0 %v1021
        %1113 = vmatprep.subr.bf16.mxu0 %v1026
        %1114 = vmatpush1.bf16.msra.mxu0 %v1025
        %1115 = vmatprep.subr.bf16.mxu0 %v1030
        %1116 = vmatpush1.bf16.msra.mxu0 %v1029
        %1117 = vmatprep.subr.bf16.mxu0 %v1034
        %1118 = vmatpush1.bf16.msra.mxu0 %v1033
        %1119 = vmatprep.subr.bf16.mxu0 %v1038
        %1120 = vmatpush1.bf16.msra.mxu0 %v1037
        %1121 = vmatprep.subr.bf16.mxu0 0
        %1122 = vmatpush1.bf16.msra.mxu0 0
        %1123 = vmatprep.subr.bf16.mxu0 0
        %1124 = vmatpush1.bf16.msra.mxu0 0
        %1125 = vmatprep.subr.bf16.mxu0 0
        %1126 = vmatpush1.bf16.msra.mxu0 0
        %1127 = vmatprep.subr.bf16.mxu0 0
        %1128 = vmatpush1.bf16.msra.mxu0 0
        %1129 = vmatprep.subr.bf16.mxu0 0
        %1130 = vmatpush1.bf16.msra.mxu0 0
        %1131 = vmatprep.subr.bf16.mxu0 0
        %1132 = vmatpush1.bf16.msra.mxu0 0
        %1133 = vmatprep.subr.bf16.mxu0 0
        %1134 = vmatpush1.bf16.msra.mxu0 0
        %1135 = vmatprep.subr.bf16.mxu0 0
        %1136 = vmatpush1.bf16.msra.mxu0 0
        %1137 = vmatprep.subr.bf16.mxu0 0
        %1138 = vmatpush1.bf16.msra.mxu0 0
        %1139 = vmatprep.subr.bf16.mxu0 0
        %1140 = vmatpush1.bf16.msra.mxu0 0
        %1141 = vmatprep.mubr.bf16.mxu0 0
        %1142 = vmatmul.mubr.bf16.gmra.mrb[0].mxu0 %v1064
        %v1143 = vpop.f32.mrb[0].mxu0
        %v1144 = vadd.f32 %v935, %v1143
        %v1145 = vpop.f32.mrb[0].mxu0
        %v1146 = vadd.f32 %v937, %v1145
        %v1147 = vpop.f32.mrb[0].mxu0
        %v1148 = vadd.f32 %v939, %v1147
        %v1149 = vpop.f32.mrb[0].mxu0
        %v1150 = vadd.f32 %v941, %v1149
        %1151 = vdwg.mxu0
        %s1152 = scalar_lea.vmem [#allocation2], 384
        %v1153 = vld [vmem:[%s1152] sm:$0xff]
        %v1154 = vld [vmem:[%s1152 + $0x8] sm:$0xff]
        %v1155 = vld [vmem:[%s1152 + $0x10] sm:$0xff]
        %v1156 = vld [vmem:[%s1152 + $0x18] sm:$0xff]
        %v1157 = vld [vmem:[%s1152 + $0x20] sm:$0xff]
        %v1158 = vld [vmem:[%s1152 + $0x28] sm:$0xff]
        %v1159 = vld [vmem:[%s1152 + $0x30] sm:$0xff]
        %v1160 = vld [vmem:[%s1152 + $0x38] sm:$0xff]
        %v1161 = vld [vmem:[%s1152 + $0x40] sm:$0xff]
        %v1162 = vld [vmem:[%s1152 + $0x48] sm:$0xff]
        %v1163 = vld [vmem:[%s1152 + $0x50] sm:$0xff]
        %v1164 = vld [vmem:[%s1152 + $0x58] sm:$0xff]
        %v1165 = vld [vmem:[%s1152 + $0x60] sm:$0xff]
        %v1166 = vld [vmem:[%s1152 + $0x68] sm:$0xff]
        %v1167 = vld [vmem:[%s1152 + $0x70] sm:$0xff]
        %v1168 = vld [vmem:[%s1152 + $0x78] sm:$0xff]
        %v1169 = vld [vmem:[%s1152 + $0x80] sm:$0xff]
        %v1170 = vld [vmem:[%s1152 + $0x88] sm:$0xff]
        %v1171 = vld [vmem:[%s1152 + $0x90] sm:$0xff]
        %v1172 = vld [vmem:[%s1152 + $0x98] sm:$0xff]
        %v1173 = vld [vmem:[%s1152 + $0xa0] sm:$0xff]
        %v1174 = vld [vmem:[%s1152 + $0xa8] sm:$0xff]
        %v1175 = vld [vmem:[%s1152 + $0xb0] sm:$0xff]
        %v1176 = vld [vmem:[%s1152 + $0xb8] sm:$0xff]
        %v1201 = vunpack.c.l.b16 %v1153
        %v1202 = vunpack.c.h.b16 %v1153
        %v1203 = vunpack.c.l.b16 %v1154
        %v1204 = vunpack.c.h.b16 %v1154
        %v1205 = vunpack.c.l.b16 %v1155
        %v1206 = vunpack.c.h.b16 %v1155
        %v1207 = vunpack.c.l.b16 %v1156
        %v1208 = vunpack.c.h.b16 %v1156
        %v1209 = vunpack.c.l.b16 %v1157
        %v1210 = vunpack.c.h.b16 %v1157
        %v1211 = vunpack.c.l.b16 %v1158
        %v1212 = vunpack.c.h.b16 %v1158
        %v1213 = vunpack.c.l.b16 %v1159
        %v1214 = vunpack.c.h.b16 %v1159
        %v1215 = vunpack.c.l.b16 %v1160
        %v1216 = vunpack.c.h.b16 %v1160
        %v1217 = vunpack.c.l.b16 %v1161
        %v1218 = vunpack.c.h.b16 %v1161
        %v1219 = vunpack.c.l.b16 %v1162
        %v1220 = vunpack.c.h.b16 %v1162
        %v1221 = vunpack.c.l.b16 %v1163
        %v1222 = vunpack.c.h.b16 %v1163
        %v1223 = vunpack.c.l.b16 %v1164
        %v1224 = vunpack.c.h.b16 %v1164
        %v1225 = vunpack.c.l.b16 %v1165
        %v1226 = vunpack.c.h.b16 %v1165
        %v1227 = vunpack.c.l.b16 %v1166
        %v1228 = vunpack.c.h.b16 %v1166
        %v1229 = vunpack.c.l.b16 %v1167
        %v1230 = vunpack.c.h.b16 %v1167
        %v1231 = vunpack.c.l.b16 %v1168
        %v1232 = vunpack.c.h.b16 %v1168
        %v1233 = vunpack.c.l.b16 %v1169
        %v1234 = vunpack.c.h.b16 %v1169
        %v1235 = vunpack.c.l.b16 %v1170
        %v1236 = vunpack.c.h.b16 %v1170
        %v1237 = vunpack.c.l.b16 %v1171
        %v1238 = vunpack.c.h.b16 %v1171
        %v1239 = vunpack.c.l.b16 %v1172
        %v1240 = vunpack.c.h.b16 %v1172
        %v1241 = vunpack.c.l.b16 %v1173
        %v1242 = vunpack.c.h.b16 %v1173
        %v1243 = vunpack.c.l.b16 %v1174
        %v1244 = vunpack.c.h.b16 %v1174
        %v1245 = vunpack.c.l.b16 %v1175
        %v1246 = vunpack.c.h.b16 %v1175
        %v1247 = vunpack.c.l.b16 %v1176
        %v1248 = vunpack.c.h.b16 %v1176
        %v1249 = vpack.c.b16 %v1205, %v1201
        %v1250 = vpack.c.b16 %v1206, %v1202
        %v1251 = vpack.c.b16 %v1207, %v1203
        %v1252 = vpack.c.b16 %v1208, %v1204
        %v1253 = vpack.c.b16 %v1213, %v1209
        %v1254 = vpack.c.b16 %v1214, %v1210
        %v1255 = vpack.c.b16 %v1215, %v1211
        %v1256 = vpack.c.b16 %v1216, %v1212
        %v1257 = vpack.c.b16 %v1221, %v1217
        %v1258 = vpack.c.b16 %v1222, %v1218
        %v1259 = vpack.c.b16 %v1223, %v1219
        %v1260 = vpack.c.b16 %v1224, %v1220
        %v1261 = vpack.c.b16 %v1229, %v1225
        %v1262 = vpack.c.b16 %v1230, %v1226
        %v1263 = vpack.c.b16 %v1231, %v1227
        %v1264 = vpack.c.b16 %v1232, %v1228
        %v1265 = vpack.c.b16 %v1237, %v1233
        %v1266 = vpack.c.b16 %v1238, %v1234
        %v1267 = vpack.c.b16 %v1239, %v1235
        %v1268 = vpack.c.b16 %v1240, %v1236
        %v1269 = vpack.c.b16 %v1245, %v1241
        %v1270 = vpack.c.b16 %v1246, %v1242
        %v1271 = vpack.c.b16 %v1247, %v1243
        %v1272 = vpack.c.b16 %v1248, %v1244
        %v1297 = vsel %vm854, %v655, 0
        %1299 = vmatprep.subr.bf16.mxu0 %v1250
        %1300 = vmatpush1.bf16.msra.mxu0 %v1249
        %1301 = vmatprep.subr.bf16.mxu0 %v1254
        %1302 = vmatpush1.bf16.msra.mxu0 %v1253
        %1303 = vmatprep.subr.bf16.mxu0 %v1258
        %1304 = vmatpush1.bf16.msra.mxu0 %v1257
        %1305 = vmatprep.subr.bf16.mxu0 %v1262
        %1306 = vmatpush1.bf16.msra.mxu0 %v1261
        %1307 = vmatprep.subr.bf16.mxu0 %v1266
        %1308 = vmatpush1.bf16.msra.mxu0 %v1265
        %1309 = vmatprep.subr.bf16.mxu0 %v1270
        %1310 = vmatpush1.bf16.msra.mxu0 %v1269
        %1311 = vmatprep.subr.bf16.mxu0 0
        %1312 = vmatpush1.bf16.msra.mxu0 0
        %1313 = vmatprep.subr.bf16.mxu0 0
        %1314 = vmatpush1.bf16.msra.mxu0 0
        %1315 = vmatprep.subr.bf16.mxu0 0
        %1316 = vmatpush1.bf16.msra.mxu0 0
        %1317 = vmatprep.subr.bf16.mxu0 0
        %1318 = vmatpush1.bf16.msra.mxu0 0
        %1319 = vmatprep.subr.bf16.mxu0 0
        %1320 = vmatpush1.bf16.msra.mxu0 0
        %1321 = vmatprep.subr.bf16.mxu0 0
        %1322 = vmatpush1.bf16.msra.mxu0 0
        %1323 = vmatprep.subr.bf16.mxu0 0
        %1324 = vmatpush1.bf16.msra.mxu0 0
        %1325 = vmatprep.subr.bf16.mxu0 0
        %1326 = vmatpush1.bf16.msra.mxu0 0
        %1327 = vmatprep.subr.bf16.mxu0 0
        %1328 = vmatpush1.bf16.msra.mxu0 0
        %1329 = vmatprep.subr.bf16.mxu0 0
        %1330 = vmatpush1.bf16.msra.mxu0 0
        %1331 = vmatprep.mubr.bf16.mxu0 0
        %1332 = vmatmul.mubr.bf16.gmra.mrb[0].mxu0 %v1297
        %v1333 = vpop.f32.mrb[0].mxu0
        %v1334 = vadd.f32 0.0, %v1333
        %v1335 = vpop.f32.mrb[0].mxu0
        %v1336 = vadd.f32 0.0, %v1335
        %v1337 = vpop.f32.mrb[0].mxu0
        %v1338 = vadd.f32 0.0, %v1337
        %v1339 = vpop.f32.mrb[0].mxu0
        %v1340 = vadd.f32 0.0, %v1339
        %1341 = vdwg.mxu0
        %1342 = vmatprep.subr.bf16.mxu0 %v1252
        %1343 = vmatpush1.bf16.msra.mxu0 %v1251
        %1344 = vmatprep.subr.bf16.mxu0 %v1256
        %1345 = vmatpush1.bf16.msra.mxu0 %v1255
        %1346 = vmatprep.subr.bf16.mxu0 %v1260
        %1347 = vmatpush1.bf16.msra.mxu0 %v1259
        %1348 = vmatprep.subr.bf16.mxu0 %v1264
        %1349 = vmatpush1.bf16.msra.mxu0 %v1263
        %1350 = vmatprep.subr.bf16.mxu0 %v1268
        %1351 = vmatpush1.bf16.msra.mxu0 %v1267
        %1352 = vmatprep.subr.bf16.mxu0 %v1272
        %1353 = vmatpush1.bf16.msra.mxu0 %v1271
        %1354 = vmatprep.subr.bf16.mxu0 0
        %1355 = vmatpush1.bf16.msra.mxu0 0
        %1356 = vmatprep.subr.bf16.mxu0 0
        %1357 = vmatpush1.bf16.msra.mxu0 0
        %1358 = vmatprep.subr.bf16.mxu0 0
        %1359 = vmatpush1.bf16.msra.mxu0 0
        %1360 = vmatprep.subr.bf16.mxu0 0
        %1361 = vmatpush1.bf16.msra.mxu0 0
        %1362 = vmatprep.subr.bf16.mxu0 0
        %1363 = vmatpush1.bf16.msra.mxu0 0
        %1364 = vmatprep.subr.bf16.mxu0 0
        %1365 = vmatpush1.bf16.msra.mxu0 0
        %1366 = vmatprep.subr.bf16.mxu0 0
        %1367 = vmatpush1.bf16.msra.mxu0 0
        %1368 = vmatprep.subr.bf16.mxu0 0
        %1369 = vmatpush1.bf16.msra.mxu0 0
        %1370 = vmatprep.subr.bf16.mxu0 0
        %1371 = vmatpush1.bf16.msra.mxu0 0
        %1372 = vmatprep.subr.bf16.mxu0 0
        %1373 = vmatpush1.bf16.msra.mxu0 0
        %1374 = vmatprep.mubr.bf16.mxu0 0
        %1375 = vmatmul.mubr.bf16.gmra.mrb[0].mxu0 %v1297
        %v1376 = vpop.f32.mrb[0].mxu0
        %v1377 = vadd.f32 0.0, %v1376
        %v1378 = vpop.f32.mrb[0].mxu0
        %v1379 = vadd.f32 0.0, %v1378
        %v1380 = vpop.f32.mrb[0].mxu0
        %v1381 = vadd.f32 0.0, %v1380
        %v1382 = vpop.f32.mrb[0].mxu0
        %v1383 = vadd.f32 0.0, %v1382
        %1384 = vdwg.mxu0
        %v1385 = vadd.f32 %v1101, %v1334
        %v1386 = vadd.f32 %v1103, %v1336
        %v1387 = vadd.f32 %v1144, %v1377
        %v1388 = vadd.f32 %v1146, %v1379
        %v1389 = vadd.f32 %v1105, %v1338
        %v1390 = vadd.f32 %v1107, %v1340
        %v1391 = vadd.f32 %v1148, %v1381
        %v1392 = vadd.f32 %v1150, %v1383
        %1393 = vmatprep.subr.bf16.mxu0 %v807
        %1394 = vmatpush1.bf16.msra.mxu0 %v806
        %1395 = vmatprep.subr.bf16.mxu0 %v811
        %1396 = vmatpush1.bf16.msra.mxu0 %v810
        %1397 = vmatprep.subr.bf16.mxu0 %v815
        %1398 = vmatpush1.bf16.msra.mxu0 %v814
        %1399 = vmatprep.subr.bf16.mxu0 %v819
        %1400 = vmatpush1.bf16.msra.mxu0 %v818
        %1401 = vmatprep.subr.bf16.mxu0 %v823
        %1402 = vmatpush1.bf16.msra.mxu0 %v822
        %1403 = vmatprep.subr.bf16.mxu0 %v827
        %1404 = vmatpush1.bf16.msra.mxu0 %v826
        %1405 = vmatprep.subr.bf16.mxu0 0
        %1406 = vmatpush1.bf16.msra.mxu0 0
        %1407 = vmatprep.subr.bf16.mxu0 0
        %1408 = vmatpush1.bf16.msra.mxu0 0
        %1409 = vmatprep.subr.bf16.mxu0 0
        %1410 = vmatpush1.bf16.msra.mxu0 0
        %1411 = vmatprep.subr.bf16.mxu0 0
        %1412 = vmatpush1.bf16.msra.mxu0 0
        %1413 = vmatprep.subr.bf16.mxu0 0
        %1414 = vmatpush1.bf16.msra.mxu0 0
        %1415 = vmatprep.subr.bf16.mxu0 0
        %1416 = vmatpush1.bf16.msra.mxu0 0
        %1417 = vmatprep.subr.bf16.mxu0 0
        %1418 = vmatpush1.bf16.msra.mxu0 0
        %1419 = vmatprep.subr.bf16.mxu0 0
        %1420 = vmatpush1.bf16.msra.mxu0 0
        %1421 = vmatprep.subr.bf16.mxu0 0
        %1422 = vmatpush1.bf16.msra.mxu0 0
        %1423 = vmatprep.subr.bf16.mxu0 0
        %1424 = vmatpush1.bf16.msra.mxu0 0
        %1425 = vmatprep.mubr.bf16.mxu0 0
        %1426 = vmatmul.mubr.bf16.gmra.mrb[0].mxu0 %v1297
        %v1427 = vpop.f32.mrb[0].mxu0
        %v1428 = vadd.f32 0.0, %v1427
        %v1429 = vpop.f32.mrb[0].mxu0
        %v1430 = vadd.f32 0.0, %v1429
        %v1431 = vpop.f32.mrb[0].mxu0
        %v1432 = vadd.f32 0.0, %v1431
        %v1433 = vpop.f32.mrb[0].mxu0
        %v1434 = vadd.f32 0.0, %v1433
        %1435 = vdwg.mxu0
        %1436 = vmatprep.subr.bf16.mxu0 %v809
        %1437 = vmatpush1.bf16.msra.mxu0 %v808
        %1438 = vmatprep.subr.bf16.mxu0 %v813
        %1439 = vmatpush1.bf16.msra.mxu0 %v812
        %1440 = vmatprep.subr.bf16.mxu0 %v817
        %1441 = vmatpush1.bf16.msra.mxu0 %v816
        %1442 = vmatprep.subr.bf16.mxu0 %v821
        %1443 = vmatpush1.bf16.msra.mxu0 %v820
        %1444 = vmatprep.subr.bf16.mxu0 %v825
        %1445 = vmatpush1.bf16.msra.mxu0 %v824
        %1446 = vmatprep.subr.bf16.mxu0 %v829
        %1447 = vmatpush1.bf16.msra.mxu0 %v828
        %1448 = vmatprep.subr.bf16.mxu0 0
        %1449 = vmatpush1.bf16.msra.mxu0 0
        %1450 = vmatprep.subr.bf16.mxu0 0
        %1451 = vmatpush1.bf16.msra.mxu0 0
        %1452 = vmatprep.subr.bf16.mxu0 0
        %1453 = vmatpush1.bf16.msra.mxu0 0
        %1454 = vmatprep.subr.bf16.mxu0 0
        %1455 = vmatpush1.bf16.msra.mxu0 0
        %1456 = vmatprep.subr.bf16.mxu0 0
        %1457 = vmatpush1.bf16.msra.mxu0 0
        %1458 = vmatprep.subr.bf16.mxu0 0
        %1459 = vmatpush1.bf16.msra.mxu0 0
        %1460 = vmatprep.subr.bf16.mxu0 0
        %1461 = vmatpush1.bf16.msra.mxu0 0
        %1462 = vmatprep.subr.bf16.mxu0 0
        %1463 = vmatpush1.bf16.msra.mxu0 0
        %1464 = vmatprep.subr.bf16.mxu0 0
        %1465 = vmatpush1.bf16.msra.mxu0 0
        %1466 = vmatprep.subr.bf16.mxu0 0
        %1467 = vmatpush1.bf16.msra.mxu0 0
        %1468 = vmatprep.mubr.bf16.mxu0 0
        %1469 = vmatmul.mubr.bf16.gmra.mrb[0].mxu0 %v1297
        %v1470 = vpop.f32.mrb[0].mxu0
        %v1471 = vadd.f32 0.0, %v1470
        %v1472 = vpop.f32.mrb[0].mxu0
        %v1473 = vadd.f32 0.0, %v1472
        %v1474 = vpop.f32.mrb[0].mxu0
        %v1475 = vadd.f32 0.0, %v1474
        %v1476 = vpop.f32.mrb[0].mxu0
        %v1477 = vadd.f32 0.0, %v1476
        %1478 = vdwg.mxu0
        %1479 = vmatprep.subr.bf16.mxu0 %v1016
        %1480 = vmatpush1.bf16.msra.mxu0 %v1015
        %1481 = vmatprep.subr.bf16.mxu0 %v1020
        %1482 = vmatpush1.bf16.msra.mxu0 %v1019
        %1483 = vmatprep.subr.bf16.mxu0 %v1024
        %1484 = vmatpush1.bf16.msra.mxu0 %v1023
        %1485 = vmatprep.subr.bf16.mxu0 %v1028
        %1486 = vmatpush1.bf16.msra.mxu0 %v1027
        %1487 = vmatprep.subr.bf16.mxu0 %v1032
        %1488 = vmatpush1.bf16.msra.mxu0 %v1031
        %1489 = vmatprep.subr.bf16.mxu0 %v1036
        %1490 = vmatpush1.bf16.msra.mxu0 %v1035
        %1491 = vmatprep.subr.bf16.mxu0 0
        %1492 = vmatpush1.bf16.msra.mxu0 0
        %1493 = vmatprep.subr.bf16.mxu0 0
        %1494 = vmatpush1.bf16.msra.mxu0 0
        %1495 = vmatprep.subr.bf16.mxu0 0
        %1496 = vmatpush1.bf16.msra.mxu0 0
        %1497 = vmatprep.subr.bf16.mxu0 0
        %1498 = vmatpush1.bf16.msra.mxu0 0
        %1499 = vmatprep.subr.bf16.mxu0 0
        %1500 = vmatpush1.bf16.msra.mxu0 0
        %1501 = vmatprep.subr.bf16.mxu0 0
        %1502 = vmatpush1.bf16.msra.mxu0 0
        %1503 = vmatprep.subr.bf16.mxu0 0
        %1504 = vmatpush1.bf16.msra.mxu0 0
        %1505 = vmatprep.subr.bf16.mxu0 0
        %1506 = vmatpush1.bf16.msra.mxu0 0
        %1507 = vmatprep.subr.bf16.mxu0 0
        %1508 = vmatpush1.bf16.msra.mxu0 0
        %1509 = vmatprep.subr.bf16.mxu0 0
        %1510 = vmatpush1.bf16.msra.mxu0 0
        %1511 = vmatprep.mubr.bf16.mxu0 0
        %1512 = vmatmul.mubr.bf16.gmra.mrb[0].mxu0 %v855
        %v1513 = vpop.f32.mrb[0].mxu0
        %v1514 = vadd.f32 %v1428, %v1513
        %v1515 = vpop.f32.mrb[0].mxu0
        %v1516 = vadd.f32 %v1430, %v1515
        %v1517 = vpop.f32.mrb[0].mxu0
        %v1518 = vadd.f32 %v1432, %v1517
        %v1519 = vpop.f32.mrb[0].mxu0
        %v1520 = vadd.f32 %v1434, %v1519
        %1521 = vdwg.mxu0
        %1522 = vmatprep.subr.bf16.mxu0 %v1018
        %1523 = vmatpush1.bf16.msra.mxu0 %v1017
        %1524 = vmatprep.subr.bf16.mxu0 %v1022
        %1525 = vmatpush1.bf16.msra.mxu0 %v1021
        %1526 = vmatprep.subr.bf16.mxu0 %v1026
        %1527 = vmatpush1.bf16.msra.mxu0 %v1025
        %1528 = vmatprep.subr.bf16.mxu0 %v1030
        %1529 = vmatpush1.bf16.msra.mxu0 %v1029
        %1530 = vmatprep.subr.bf16.mxu0 %v1034
        %1531 = vmatpush1.bf16.msra.mxu0 %v1033
        %1532 = vmatprep.subr.bf16.mxu0 %v1038
        %1533 = vmatpush1.bf16.msra.mxu0 %v1037
        %1534 = vmatprep.subr.bf16.mxu0 0
        %1535 = vmatpush1.bf16.msra.mxu0 0
        %1536 = vmatprep.subr.bf16.mxu0 0
        %1537 = vmatpush1.bf16.msra.mxu0 0
        %1538 = vmatprep.subr.bf16.mxu0 0
        %1539 = vmatpush1.bf16.msra.mxu0 0
        %1540 = vmatprep.subr.bf16.mxu0 0
        %1541 = vmatpush1.bf16.msra.mxu0 0
        %1542 = vmatprep.subr.bf16.mxu0 0
        %1543 = vmatpush1.bf16.msra.mxu0 0
        %1544 = vmatprep.subr.bf16.mxu0 0
        %1545 = vmatpush1.bf16.msra.mxu0 0
        %1546 = vmatprep.subr.bf16.mxu0 0
        %1547 = vmatpush1.bf16.msra.mxu0 0
        %1548 = vmatprep.subr.bf16.mxu0 0
        %1549 = vmatpush1.bf16.msra.mxu0 0
        %1550 = vmatprep.subr.bf16.mxu0 0
        %1551 = vmatpush1.bf16.msra.mxu0 0
        %1552 = vmatprep.subr.bf16.mxu0 0
        %1553 = vmatpush1.bf16.msra.mxu0 0
        %1554 = vmatprep.mubr.bf16.mxu0 0
        %1555 = vmatmul.mubr.bf16.gmra.mrb[0].mxu0 %v855
        %v1556 = vpop.f32.mrb[0].mxu0
        %v1557 = vadd.f32 %v1471, %v1556
        %v1558 = vpop.f32.mrb[0].mxu0
        %v1559 = vadd.f32 %v1473, %v1558
        %v1560 = vpop.f32.mrb[0].mxu0
        %v1561 = vadd.f32 %v1475, %v1560
        %v1562 = vpop.f32.mrb[0].mxu0
        %v1563 = vadd.f32 %v1477, %v1562
        %1564 = vdwg.mxu0
        %v1566 = vsel %vm854, %v684, 0
        %1568 = vmatprep.subr.bf16.mxu0 %v1250
        %1569 = vmatpush1.bf16.msra.mxu0 %v1249
        %1570 = vmatprep.subr.bf16.mxu0 %v1254
        %1571 = vmatpush1.bf16.msra.mxu0 %v1253
        %1572 = vmatprep.subr.bf16.mxu0 %v1258
        %1573 = vmatpush1.bf16.msra.mxu0 %v1257
        %1574 = vmatprep.subr.bf16.mxu0 %v1262
        %1575 = vmatpush1.bf16.msra.mxu0 %v1261
        %1576 = vmatprep.subr.bf16.mxu0 %v1266
        %1577 = vmatpush1.bf16.msra.mxu0 %v1265
        %1578 = vmatprep.subr.bf16.mxu0 %v1270
        %1579 = vmatpush1.bf16.msra.mxu0 %v1269
        %1580 = vmatprep.subr.bf16.mxu0 0
        %1581 = vmatpush1.bf16.msra.mxu0 0
        %1582 = vmatprep.subr.bf16.mxu0 0
        %1583 = vmatpush1.bf16.msra.mxu0 0
        %1584 = vmatprep.subr.bf16.mxu0 0
        %1585 = vmatpush1.bf16.msra.mxu0 0
        %1586 = vmatprep.subr.bf16.mxu0 0
        %1587 = vmatpush1.bf16.msra.mxu0 0
        %1588 = vmatprep.subr.bf16.mxu0 0
        %1589 = vmatpush1.bf16.msra.mxu0 0
        %1590 = vmatprep.subr.bf16.mxu0 0
        %1591 = vmatpush1.bf16.msra.mxu0 0
        %1592 = vmatprep.subr.bf16.mxu0 0
        %1593 = vmatpush1.bf16.msra.mxu0 0
        %1594 = vmatprep.subr.bf16.mxu0 0
        %1595 = vmatpush1.bf16.msra.mxu0 0
        %1596 = vmatprep.subr.bf16.mxu0 0
        %1597 = vmatpush1.bf16.msra.mxu0 0
        %1598 = vmatprep.subr.bf16.mxu0 0
        %1599 = vmatpush1.bf16.msra.mxu0 0
        %1600 = vmatprep.mubr.bf16.mxu0 0
        %1601 = vmatmul.mubr.bf16.gmra.mrb[0].mxu0 %v1566
        %v1602 = vpop.f32.mrb[0].mxu0
        %v1603 = vadd.f32 0.0, %v1602
        %v1604 = vpop.f32.mrb[0].mxu0
        %v1605 = vadd.f32 0.0, %v1604
        %v1606 = vpop.f32.mrb[0].mxu0
        %v1607 = vadd.f32 0.0, %v1606
        %v1608 = vpop.f32.mrb[0].mxu0
        %v1609 = vadd.f32 0.0, %v1608
        %1610 = vdwg.mxu0
        %1611 = vmatprep.subr.bf16.mxu0 %v1252
        %1612 = vmatpush1.bf16.msra.mxu0 %v1251
        %1613 = vmatprep.subr.bf16.mxu0 %v1256
        %1614 = vmatpush1.bf16.msra.mxu0 %v1255
        %1615 = vmatprep.subr.bf16.mxu0 %v1260
        %1616 = vmatpush1.bf16.msra.mxu0 %v1259
        %1617 = vmatprep.subr.bf16.mxu0 %v1264
        %1618 = vmatpush1.bf16.msra.mxu0 %v1263
        %1619 = vmatprep.subr.bf16.mxu0 %v1268
        %1620 = vmatpush1.bf16.msra.mxu0 %v1267
        %1621 = vmatprep.subr.bf16.mxu0 %v1272
        %1622 = vmatpush1.bf16.msra.mxu0 %v1271
        %1623 = vmatprep.subr.bf16.mxu0 0
        %1624 = vmatpush1.bf16.msra.mxu0 0
        %1625 = vmatprep.subr.bf16.mxu0 0
        %1626 = vmatpush1.bf16.msra.mxu0 0
        %1627 = vmatprep.subr.bf16.mxu0 0
        %1628 = vmatpush1.bf16.msra.mxu0 0
        %1629 = vmatprep.subr.bf16.mxu0 0
        %1630 = vmatpush1.bf16.msra.mxu0 0
        %1631 = vmatprep.subr.bf16.mxu0 0
        %1632 = vmatpush1.bf16.msra.mxu0 0
        %1633 = vmatprep.subr.bf16.mxu0 0
        %1634 = vmatpush1.bf16.msra.mxu0 0
        %1635 = vmatprep.subr.bf16.mxu0 0
        %1636 = vmatpush1.bf16.msra.mxu0 0
        %1637 = vmatprep.subr.bf16.mxu0 0
        %1638 = vmatpush1.bf16.msra.mxu0 0
        %1639 = vmatprep.subr.bf16.mxu0 0
        %1640 = vmatpush1.bf16.msra.mxu0 0
        %1641 = vmatprep.subr.bf16.mxu0 0
        %1642 = vmatpush1.bf16.msra.mxu0 0
        %1643 = vmatprep.mubr.bf16.mxu0 0
        %1644 = vmatmul.mubr.bf16.gmra.mrb[0].mxu0 %v1566
        %v1645 = vpop.f32.mrb[0].mxu0
        %v1646 = vadd.f32 0.0, %v1645
        %v1647 = vpop.f32.mrb[0].mxu0
        %v1648 = vadd.f32 0.0, %v1647
        %v1649 = vpop.f32.mrb[0].mxu0
        %v1650 = vadd.f32 0.0, %v1649
        %v1651 = vpop.f32.mrb[0].mxu0
        %v1652 = vadd.f32 0.0, %v1651
        %1653 = vdwg.mxu0
        %v1654 = vadd.f32 %v1514, %v1603
        %v1655 = vadd.f32 %v1516, %v1605
        %v1656 = vadd.f32 %v1557, %v1646
        %v1657 = vadd.f32 %v1559, %v1648
        %v1658 = vadd.f32 %v1518, %v1607
        %v1659 = vadd.f32 %v1520, %v1609
        %v1660 = vadd.f32 %v1561, %v1650
        %v1661 = vadd.f32 %v1563, %v1652
        %v1662 = vld [vmem:[#allocation5] sm:$0xf]
        %v1664 = vlaneseq
        %v1665 = vshrl.u32 %v1664, 7
        %v1666 = vsub.s32 0, %v1665
        %v1667 = vrot.slane %v1662, %v1666
        %v1668 = vlaneseq
        %v1669 = vshrl.u32 %v1668, 7
        %v1670 = vsub.s32 1, %v1669
        %v1671 = vrot.slane %v1662, %v1670
        %v1672 = vlaneseq
        %v1673 = vshrl.u32 %v1672, 7
        %v1674 = vsub.s32 2, %v1673
        %v1675 = vrot.slane %v1662, %v1674
        %v1676 = vlaneseq
        %v1677 = vshrl.u32 %v1676, 7
        %v1678 = vsub.s32 3, %v1677
        %v1679 = vrot.slane %v1662, %v1678
        %v1684 = vadd.f32 %v1385, %v1667
        %v1685 = vadd.f32 %v1386, %v1671
        %v1686 = vadd.f32 %v1387, %v1675
        %v1687 = vadd.f32 %v1388, %v1679
        %v1688 = vadd.f32 %v1389, %v1667
        %v1689 = vadd.f32 %v1390, %v1671
        %v1690 = vadd.f32 %v1391, %v1675
        %v1691 = vadd.f32 %v1392, %v1679
        %v1692 = vmax.f32 %v1684, 0.0
        %v1693 = vmax.f32 %v1685, 0.0
        %v1694 = vmax.f32 %v1686, 0.0
        %v1695 = vmax.f32 %v1687, 0.0
        %v1696 = vmax.f32 %v1688, 0.0
        %v1697 = vmax.f32 %v1689, 0.0
        %v1698 = vmax.f32 %v1690, 0.0
        %v1699 = vmax.f32 %v1691, 0.0
        %v1700 = vpack.c.bf16 %v1696, %v1692
        %v1701 = vpack.c.bf16 %v1697, %v1693
        %v1702 = vpack.c.bf16 %v1698, %v1694
        %v1703 = vpack.c.bf16 %v1699, %v1695
        %v1704 = vadd.f32 %v1654, %v1667
        %v1705 = vadd.f32 %v1655, %v1671
        %v1706 = vadd.f32 %v1656, %v1675
        %v1707 = vadd.f32 %v1657, %v1679
        %v1708 = vadd.f32 %v1658, %v1667
        %v1709 = vadd.f32 %v1659, %v1671
        %v1710 = vadd.f32 %v1660, %v1675
        %v1711 = vadd.f32 %v1661, %v1679
        %v1712 = vmax.f32 %v1704, 0.0
        %v1713 = vmax.f32 %v1705, 0.0
        %v1714 = vmax.f32 %v1706, 0.0
        %v1715 = vmax.f32 %v1707, 0.0
        %v1716 = vmax.f32 %v1708, 0.0
        %v1717 = vmax.f32 %v1709, 0.0
        %v1718 = vmax.f32 %v1710, 0.0
        %v1719 = vmax.f32 %v1711, 0.0
        %v1720 = vpack.c.bf16 %v1716, %v1712
        %v1721 = vpack.c.bf16 %v1717, %v1713
        %v1722 = vpack.c.bf16 %v1718, %v1714
        %v1723 = vpack.c.bf16 %v1719, %v1715
        %v1725 = vshrl.u32 %v1720, 16
        %v1727 = vrot.slane %v1725, 7
        %v1728 = vshll.u32 %v1720, 16
        %v1730 = vor.u32 %v1727, %v1728
        %v1732 = vshrl.u32 %v1721, 16
        %v1734 = vrot.slane %v1732, 7
        %v1735 = vshll.u32 %v1721, 16
        %v1737 = vor.u32 %v1734, %v1735
        %v1739 = vshrl.u32 %v1722, 16
        %v1741 = vrot.slane %v1739, 7
        %v1742 = vshll.u32 %v1722, 16
        %v1744 = vor.u32 %v1741, %v1742
        %v1746 = vshrl.u32 %v1723, 16
        %v1748 = vrot.slane %v1746, 7
        %v1749 = vshll.u32 %v1723, 16
        %v1751 = vor.u32 %v1748, %v1749
        %v1756 = vsel %vm666, 0, %v1730
        %v1757 = vsel %vm666, 0, %v1737
        %v1758 = vsel %vm666, 0, %v1744
        %v1759 = vsel %vm666, 0, %v1751
        %v1760 = vld [vmem:[#allocation7] sm:$0xff]
        %v1761 = vld [vmem:[#allocation7 + $0x8] sm:$0xff]
        %v1762 = vld [vmem:[#allocation7 + $0x10] sm:$0xff]
        %v1763 = vld [vmem:[#allocation7 + $0x18] sm:$0xff]
        %v1764 = vld [vmem:[#allocation7 + $0x20] sm:$0xff]
        %v1765 = vld [vmem:[#allocation7 + $0x28] sm:$0xff]
        %v1766 = vld [vmem:[#allocation7 + $0x30] sm:$0xff]
        %v1767 = vld [vmem:[#allocation7 + $0x38] sm:$0xff]
        %v1768 = vld [vmem:[#allocation7 + $0x40] sm:$0xff]
        %v1769 = vld [vmem:[#allocation7 + $0x48] sm:$0xff]
        %v1770 = vld [vmem:[#allocation7 + $0x50] sm:$0xff]
        %v1771 = vld [vmem:[#allocation7 + $0x58] sm:$0xff]
        %v1772 = vld [vmem:[#allocation7 + $0x60] sm:$0xff]
        %v1773 = vld [vmem:[#allocation7 + $0x68] sm:$0xff]
        %v1774 = vld [vmem:[#allocation7 + $0x70] sm:$0xff]
        %v1775 = vld [vmem:[#allocation7 + $0x78] sm:$0xff]
        %v1776 = vld [vmem:[#allocation7 + $0x80] sm:$0xff]
        %v1777 = vld [vmem:[#allocation7 + $0x88] sm:$0xff]
        %v1778 = vld [vmem:[#allocation7 + $0x90] sm:$0xff]
        %v1779 = vld [vmem:[#allocation7 + $0x98] sm:$0xff]
        %v1780 = vld [vmem:[#allocation7 + $0xa0] sm:$0xff]
        %v1781 = vld [vmem:[#allocation7 + $0xa8] sm:$0xff]
        %v1782 = vld [vmem:[#allocation7 + $0xb0] sm:$0xff]
        %v1783 = vld [vmem:[#allocation7 + $0xb8] sm:$0xff]
        %v1784 = vld [vmem:[#allocation7 + $0xc0] sm:$0xff]
        %v1785 = vld [vmem:[#allocation7 + $0xc8] sm:$0xff]
        %v1786 = vld [vmem:[#allocation7 + $0xd0] sm:$0xff]
        %v1787 = vld [vmem:[#allocation7 + $0xd8] sm:$0xff]
        %v1788 = vld [vmem:[#allocation7 + $0xe0] sm:$0xff]
        %v1789 = vld [vmem:[#allocation7 + $0xe8] sm:$0xff]
        %v1790 = vld [vmem:[#allocation7 + $0xf0] sm:$0xff]
        %v1791 = vld [vmem:[#allocation7 + $0xf8] sm:$0xff]
        %v1792 = vld [vmem:[#allocation7 + $0x100] sm:$0xff]
        %v1793 = vld [vmem:[#allocation7 + $0x108] sm:$0xff]
        %v1794 = vld [vmem:[#allocation7 + $0x110] sm:$0xff]
        %v1795 = vld [vmem:[#allocation7 + $0x118] sm:$0xff]
        %v1796 = vld [vmem:[#allocation7 + $0x120] sm:$0xff]
        %v1797 = vld [vmem:[#allocation7 + $0x128] sm:$0xff]
        %v1798 = vld [vmem:[#allocation7 + $0x130] sm:$0xff]
        %v1799 = vld [vmem:[#allocation7 + $0x138] sm:$0xff]
        %v1800 = vld [vmem:[#allocation7 + $0x140] sm:$0xff]
        %v1801 = vld [vmem:[#allocation7 + $0x148] sm:$0xff]
        %v1802 = vld [vmem:[#allocation7 + $0x150] sm:$0xff]
        %v1803 = vld [vmem:[#allocation7 + $0x158] sm:$0xff]
        %v1804 = vld [vmem:[#allocation7 + $0x160] sm:$0xff]
        %v1805 = vld [vmem:[#allocation7 + $0x168] sm:$0xff]
        %v1806 = vld [vmem:[#allocation7 + $0x170] sm:$0xff]
        %v1807 = vld [vmem:[#allocation7 + $0x178] sm:$0xff]
        %v1808 = vld [vmem:[#allocation7 + $0x180] sm:$0xff]
        %v1809 = vld [vmem:[#allocation7 + $0x188] sm:$0xff]
        %v1810 = vld [vmem:[#allocation7 + $0x190] sm:$0xff]
        %v1811 = vld [vmem:[#allocation7 + $0x198] sm:$0xff]
        %v1812 = vld [vmem:[#allocation7 + $0x1a0] sm:$0xff]
        %v1813 = vld [vmem:[#allocation7 + $0x1a8] sm:$0xff]
        %v1814 = vld [vmem:[#allocation7 + $0x1b0] sm:$0xff]
        %v1815 = vld [vmem:[#allocation7 + $0x1b8] sm:$0xff]
        %v1816 = vld [vmem:[#allocation7 + $0x1c0] sm:$0xff]
        %v1817 = vld [vmem:[#allocation7 + $0x1c8] sm:$0xff]
        %v1818 = vld [vmem:[#allocation7 + $0x1d0] sm:$0xff]
        %v1819 = vld [vmem:[#allocation7 + $0x1d8] sm:$0xff]
        %v1820 = vld [vmem:[#allocation7 + $0x1e0] sm:$0xff]
        %v1821 = vld [vmem:[#allocation7 + $0x1e8] sm:$0xff]
        %v1822 = vld [vmem:[#allocation7 + $0x1f0] sm:$0xff]
        %v1823 = vld [vmem:[#allocation7 + $0x1f8] sm:$0xff]
        %v1824 = vld [vmem:[#allocation7 + $0x200] sm:$0xff]
        %v1825 = vld [vmem:[#allocation7 + $0x208] sm:$0xff]
        %v1826 = vld [vmem:[#allocation7 + $0x210] sm:$0xff]
        %v1827 = vld [vmem:[#allocation7 + $0x218] sm:$0xff]
        %v1828 = vld [vmem:[#allocation7 + $0x220] sm:$0xff]
        %v1829 = vld [vmem:[#allocation7 + $0x228] sm:$0xff]
        %v1830 = vld [vmem:[#allocation7 + $0x230] sm:$0xff]
        %v1831 = vld [vmem:[#allocation7 + $0x238] sm:$0xff]
        %v1832 = vld [vmem:[#allocation7 + $0x240] sm:$0xff]
        %v1833 = vld [vmem:[#allocation7 + $0x248] sm:$0xff]
        %v1834 = vld [vmem:[#allocation7 + $0x250] sm:$0xff]
        %v1835 = vld [vmem:[#allocation7 + $0x258] sm:$0xff]
        %v1836 = vld [vmem:[#allocation7 + $0x260] sm:$0xff]
        %v1837 = vld [vmem:[#allocation7 + $0x268] sm:$0xff]
        %v1838 = vld [vmem:[#allocation7 + $0x270] sm:$0xff]
        %v1839 = vld [vmem:[#allocation7 + $0x278] sm:$0xff]
        %v1840 = vld [vmem:[#allocation7 + $0x280] sm:$0xff]
        %v1841 = vld [vmem:[#allocation7 + $0x288] sm:$0xff]
        %v1842 = vld [vmem:[#allocation7 + $0x290] sm:$0xff]
        %v1843 = vld [vmem:[#allocation7 + $0x298] sm:$0xff]
        %v1844 = vld [vmem:[#allocation7 + $0x2a0] sm:$0xff]
        %v1845 = vld [vmem:[#allocation7 + $0x2a8] sm:$0xff]
        %v1846 = vld [vmem:[#allocation7 + $0x2b0] sm:$0xff]
        %v1847 = vld [vmem:[#allocation7 + $0x2b8] sm:$0xff]
        %v1848 = vld [vmem:[#allocation7 + $0x2c0] sm:$0xff]
        %v1849 = vld [vmem:[#allocation7 + $0x2c8] sm:$0xff]
        %v1850 = vld [vmem:[#allocation7 + $0x2d0] sm:$0xff]
        %v1851 = vld [vmem:[#allocation7 + $0x2d8] sm:$0xff]
        %v1852 = vld [vmem:[#allocation7 + $0x2e0] sm:$0xff]
        %v1853 = vld [vmem:[#allocation7 + $0x2e8] sm:$0xff]
        %v1854 = vld [vmem:[#allocation7 + $0x2f0] sm:$0xff]
        %v1855 = vld [vmem:[#allocation7 + $0x2f8] sm:$0xff]
        %v1856 = vld [vmem:[#allocation7 + $0x300] sm:$0xff]
        %v1857 = vld [vmem:[#allocation7 + $0x308] sm:$0xff]
        %v1858 = vld [vmem:[#allocation7 + $0x310] sm:$0xff]
        %v1859 = vld [vmem:[#allocation7 + $0x318] sm:$0xff]
        %v1860 = vld [vmem:[#allocation7 + $0x320] sm:$0xff]
        %v1861 = vld [vmem:[#allocation7 + $0x328] sm:$0xff]
        %v1862 = vld [vmem:[#allocation7 + $0x330] sm:$0xff]
        %v1863 = vld [vmem:[#allocation7 + $0x338] sm:$0xff]
        %v1864 = vld [vmem:[#allocation7 + $0x340] sm:$0xff]
        %v1865 = vld [vmem:[#allocation7 + $0x348] sm:$0xff]
        %v1866 = vld [vmem:[#allocation7 + $0x350] sm:$0xff]
        %v1867 = vld [vmem:[#allocation7 + $0x358] sm:$0xff]
        %v1868 = vld [vmem:[#allocation7 + $0x360] sm:$0xff]
        %v1869 = vld [vmem:[#allocation7 + $0x368] sm:$0xff]
        %v1870 = vld [vmem:[#allocation7 + $0x370] sm:$0xff]
        %v1871 = vld [vmem:[#allocation7 + $0x378] sm:$0xff]
        %v1872 = vld [vmem:[#allocation7 + $0x380] sm:$0xff]
        %v1873 = vld [vmem:[#allocation7 + $0x388] sm:$0xff]
        %v1874 = vld [vmem:[#allocation7 + $0x390] sm:$0xff]
        %v1875 = vld [vmem:[#allocation7 + $0x398] sm:$0xff]
        %v1876 = vld [vmem:[#allocation7 + $0x3a0] sm:$0xff]
        %v1877 = vld [vmem:[#allocation7 + $0x3a8] sm:$0xff]
        %v1878 = vld [vmem:[#allocation7 + $0x3b0] sm:$0xff]
        %v1879 = vld [vmem:[#allocation7 + $0x3b8] sm:$0xff]
        %v1880 = vld [vmem:[#allocation7 + $0x3c0] sm:$0xff]
        %v1881 = vld [vmem:[#allocation7 + $0x3c8] sm:$0xff]
        %v1882 = vld [vmem:[#allocation7 + $0x3d0] sm:$0xff]
        %v1883 = vld [vmem:[#allocation7 + $0x3d8] sm:$0xff]
        %v1884 = vld [vmem:[#allocation7 + $0x3e0] sm:$0xff]
        %v1885 = vld [vmem:[#allocation7 + $0x3e8] sm:$0xff]
        %v1886 = vld [vmem:[#allocation7 + $0x3f0] sm:$0xff]
        %v1887 = vld [vmem:[#allocation7 + $0x3f8] sm:$0xff]
        %s1888 = scalar_lea.vmem [#allocation7], 1024
        %v1889 = vld [vmem:[%s1888] sm:$0xff]
        %v1890 = vld [vmem:[%s1888 + $0x8] sm:$0xff]
        %v1891 = vld [vmem:[%s1888 + $0x10] sm:$0xff]
        %v1892 = vld [vmem:[%s1888 + $0x18] sm:$0xff]
        %v1893 = vld [vmem:[%s1888 + $0x20] sm:$0xff]
        %v1894 = vld [vmem:[%s1888 + $0x28] sm:$0xff]
        %v1895 = vld [vmem:[%s1888 + $0x30] sm:$0xff]
        %v1896 = vld [vmem:[%s1888 + $0x38] sm:$0xff]
        %v1897 = vld [vmem:[%s1888 + $0x40] sm:$0xff]
        %v1898 = vld [vmem:[%s1888 + $0x48] sm:$0xff]
        %v1899 = vld [vmem:[%s1888 + $0x50] sm:$0xff]
        %v1900 = vld [vmem:[%s1888 + $0x58] sm:$0xff]
        %v1901 = vld [vmem:[%s1888 + $0x60] sm:$0xff]
        %v1902 = vld [vmem:[%s1888 + $0x68] sm:$0xff]
        %v1903 = vld [vmem:[%s1888 + $0x70] sm:$0xff]
        %v1904 = vld [vmem:[%s1888 + $0x78] sm:$0xff]
        %v1905 = vld [vmem:[%s1888 + $0x80] sm:$0xff]
        %v1906 = vld [vmem:[%s1888 + $0x88] sm:$0xff]
        %v1907 = vld [vmem:[%s1888 + $0x90] sm:$0xff]
        %v1908 = vld [vmem:[%s1888 + $0x98] sm:$0xff]
        %v1909 = vld [vmem:[%s1888 + $0xa0] sm:$0xff]
        %v1910 = vld [vmem:[%s1888 + $0xa8] sm:$0xff]
        %v1911 = vld [vmem:[%s1888 + $0xb0] sm:$0xff]
        %v1912 = vld [vmem:[%s1888 + $0xb8] sm:$0xff]
        %v1913 = vld [vmem:[%s1888 + $0xc0] sm:$0xff]
        %v1914 = vld [vmem:[%s1888 + $0xc8] sm:$0xff]
        %v1915 = vld [vmem:[%s1888 + $0xd0] sm:$0xff]
        %v1916 = vld [vmem:[%s1888 + $0xd8] sm:$0xff]
        %v1917 = vld [vmem:[%s1888 + $0xe0] sm:$0xff]
        %v1918 = vld [vmem:[%s1888 + $0xe8] sm:$0xff]
        %v1919 = vld [vmem:[%s1888 + $0xf0] sm:$0xff]
        %v1920 = vld [vmem:[%s1888 + $0xf8] sm:$0xff]
        %v1921 = vld [vmem:[%s1888 + $0x100] sm:$0xff]
        %v1922 = vld [vmem:[%s1888 + $0x108] sm:$0xff]
        %v1923 = vld [vmem:[%s1888 + $0x110] sm:$0xff]
        %v1924 = vld [vmem:[%s1888 + $0x118] sm:$0xff]
        %v1925 = vld [vmem:[%s1888 + $0x120] sm:$0xff]
        %v1926 = vld [vmem:[%s1888 + $0x128] sm:$0xff]
        %v1927 = vld [vmem:[%s1888 + $0x130] sm:$0xff]
        %v1928 = vld [vmem:[%s1888 + $0x138] sm:$0xff]
        %v1929 = vld [vmem:[%s1888 + $0x140] sm:$0xff]
        %v1930 = vld [vmem:[%s1888 + $0x148] sm:$0xff]
        %v1931 = vld [vmem:[%s1888 + $0x150] sm:$0xff]
        %v1932 = vld [vmem:[%s1888 + $0x158] sm:$0xff]
        %v1933 = vld [vmem:[%s1888 + $0x160] sm:$0xff]
        %v1934 = vld [vmem:[%s1888 + $0x168] sm:$0xff]
        %v1935 = vld [vmem:[%s1888 + $0x170] sm:$0xff]
        %v1936 = vld [vmem:[%s1888 + $0x178] sm:$0xff]
        %v1937 = vld [vmem:[%s1888 + $0x180] sm:$0xff]
        %v1938 = vld [vmem:[%s1888 + $0x188] sm:$0xff]
        %v1939 = vld [vmem:[%s1888 + $0x190] sm:$0xff]
        %v1940 = vld [vmem:[%s1888 + $0x198] sm:$0xff]
        %v1941 = vld [vmem:[%s1888 + $0x1a0] sm:$0xff]
        %v1942 = vld [vmem:[%s1888 + $0x1a8] sm:$0xff]
        %v1943 = vld [vmem:[%s1888 + $0x1b0] sm:$0xff]
        %v1944 = vld [vmem:[%s1888 + $0x1b8] sm:$0xff]
        %v1945 = vld [vmem:[%s1888 + $0x1c0] sm:$0xff]
        %v1946 = vld [vmem:[%s1888 + $0x1c8] sm:$0xff]
        %v1947 = vld [vmem:[%s1888 + $0x1d0] sm:$0xff]
        %v1948 = vld [vmem:[%s1888 + $0x1d8] sm:$0xff]
        %v1949 = vld [vmem:[%s1888 + $0x1e0] sm:$0xff]
        %v1950 = vld [vmem:[%s1888 + $0x1e8] sm:$0xff]
        %v1951 = vld [vmem:[%s1888 + $0x1f0] sm:$0xff]
        %v1952 = vld [vmem:[%s1888 + $0x1f8] sm:$0xff]
        %v1953 = vld [vmem:[%s1888 + $0x200] sm:$0xff]
        %v1954 = vld [vmem:[%s1888 + $0x208] sm:$0xff]
        %v1955 = vld [vmem:[%s1888 + $0x210] sm:$0xff]
        %v1956 = vld [vmem:[%s1888 + $0x218] sm:$0xff]
        %v1957 = vld [vmem:[%s1888 + $0x220] sm:$0xff]
        %v1958 = vld [vmem:[%s1888 + $0x228] sm:$0xff]
        %v1959 = vld [vmem:[%s1888 + $0x230] sm:$0xff]
        %v1960 = vld [vmem:[%s1888 + $0x238] sm:$0xff]
        %v1961 = vld [vmem:[%s1888 + $0x240] sm:$0xff]
        %v1962 = vld [vmem:[%s1888 + $0x248] sm:$0xff]
        %v1963 = vld [vmem:[%s1888 + $0x250] sm:$0xff]
        %v1964 = vld [vmem:[%s1888 + $0x258] sm:$0xff]
        %v1965 = vld [vmem:[%s1888 + $0x260] sm:$0xff]
        %v1966 = vld [vmem:[%s1888 + $0x268] sm:$0xff]
        %v1967 = vld [vmem:[%s1888 + $0x270] sm:$0xff]
        %v1968 = vld [vmem:[%s1888 + $0x278] sm:$0xff]
        %v1969 = vld [vmem:[%s1888 + $0x280] sm:$0xff]
        %v1970 = vld [vmem:[%s1888 + $0x288] sm:$0xff]
        %v1971 = vld [vmem:[%s1888 + $0x290] sm:$0xff]
        %v1972 = vld [vmem:[%s1888 + $0x298] sm:$0xff]
        %v1973 = vld [vmem:[%s1888 + $0x2a0] sm:$0xff]
        %v1974 = vld [vmem:[%s1888 + $0x2a8] sm:$0xff]
        %v1975 = vld [vmem:[%s1888 + $0x2b0] sm:$0xff]
        %v1976 = vld [vmem:[%s1888 + $0x2b8] sm:$0xff]
        %v1977 = vld [vmem:[%s1888 + $0x2c0] sm:$0xff]
        %v1978 = vld [vmem:[%s1888 + $0x2c8] sm:$0xff]
        %v1979 = vld [vmem:[%s1888 + $0x2d0] sm:$0xff]
        %v1980 = vld [vmem:[%s1888 + $0x2d8] sm:$0xff]
        %v1981 = vld [vmem:[%s1888 + $0x2e0] sm:$0xff]
        %v1982 = vld [vmem:[%s1888 + $0x2e8] sm:$0xff]
        %v1983 = vld [vmem:[%s1888 + $0x2f0] sm:$0xff]
        %v1984 = vld [vmem:[%s1888 + $0x2f8] sm:$0xff]
        %v1985 = vld [vmem:[%s1888 + $0x300] sm:$0xff]
        %v1986 = vld [vmem:[%s1888 + $0x308] sm:$0xff]
        %v1987 = vld [vmem:[%s1888 + $0x310] sm:$0xff]
        %v1988 = vld [vmem:[%s1888 + $0x318] sm:$0xff]
        %v1989 = vld [vmem:[%s1888 + $0x320] sm:$0xff]
        %v1990 = vld [vmem:[%s1888 + $0x328] sm:$0xff]
        %v1991 = vld [vmem:[%s1888 + $0x330] sm:$0xff]
        %v1992 = vld [vmem:[%s1888 + $0x338] sm:$0xff]
        %v1993 = vld [vmem:[%s1888 + $0x340] sm:$0xff]
        %v1994 = vld [vmem:[%s1888 + $0x348] sm:$0xff]
        %v1995 = vld [vmem:[%s1888 + $0x350] sm:$0xff]
        %v1996 = vld [vmem:[%s1888 + $0x358] sm:$0xff]
        %v1997 = vld [vmem:[%s1888 + $0x360] sm:$0xff]
        %v1998 = vld [vmem:[%s1888 + $0x368] sm:$0xff]
        %v1999 = vld [vmem:[%s1888 + $0x370] sm:$0xff]
        %v2000 = vld [vmem:[%s1888 + $0x378] sm:$0xff]
        %v2001 = vld [vmem:[%s1888 + $0x380] sm:$0xff]
        %v2002 = vld [vmem:[%s1888 + $0x388] sm:$0xff]
        %v2003 = vld [vmem:[%s1888 + $0x390] sm:$0xff]
        %v2004 = vld [vmem:[%s1888 + $0x398] sm:$0xff]
        %v2005 = vld [vmem:[%s1888 + $0x3a0] sm:$0xff]
        %v2006 = vld [vmem:[%s1888 + $0x3a8] sm:$0xff]
        %v2007 = vld [vmem:[%s1888 + $0x3b0] sm:$0xff]
        %v2008 = vld [vmem:[%s1888 + $0x3b8] sm:$0xff]
        %v2009 = vld [vmem:[%s1888 + $0x3c0] sm:$0xff]
        %v2010 = vld [vmem:[%s1888 + $0x3c8] sm:$0xff]
        %v2011 = vld [vmem:[%s1888 + $0x3d0] sm:$0xff]
        %v2012 = vld [vmem:[%s1888 + $0x3d8] sm:$0xff]
        %v2013 = vld [vmem:[%s1888 + $0x3e0] sm:$0xff]
        %v2014 = vld [vmem:[%s1888 + $0x3e8] sm:$0xff]
        %v2015 = vld [vmem:[%s1888 + $0x3f0] sm:$0xff]
        %v2016 = vld [vmem:[%s1888 + $0x3f8] sm:$0xff]
        %v2145 = vunpack.c.l.b16 %v1889
        %v2146 = vunpack.c.h.b16 %v1889
        %v2147 = vunpack.c.l.b16 %v1890
        %v2148 = vunpack.c.h.b16 %v1890
        %v2149 = vunpack.c.l.b16 %v1891
        %v2150 = vunpack.c.h.b16 %v1891
        %v2151 = vunpack.c.l.b16 %v1892
        %v2152 = vunpack.c.h.b16 %v1892
        %v2153 = vunpack.c.l.b16 %v1893
        %v2154 = vunpack.c.h.b16 %v1893
        %v2155 = vunpack.c.l.b16 %v1894
        %v2156 = vunpack.c.h.b16 %v1894
        %v2157 = vunpack.c.l.b16 %v1895
        %v2158 = vunpack.c.h.b16 %v1895
        %v2159 = vunpack.c.l.b16 %v1896
        %v2160 = vunpack.c.h.b16 %v1896
        %v2161 = vunpack.c.l.b16 %v1897
        %v2162 = vunpack.c.h.b16 %v1897
        %v2163 = vunpack.c.l.b16 %v1898
        %v2164 = vunpack.c.h.b16 %v1898
        %v2165 = vunpack.c.l.b16 %v1899
        %v2166 = vunpack.c.h.b16 %v1899
        %v2167 = vunpack.c.l.b16 %v1900
        %v2168 = vunpack.c.h.b16 %v1900
        %v2169 = vunpack.c.l.b16 %v1901
        %v2170 = vunpack.c.h.b16 %v1901
        %v2171 = vunpack.c.l.b16 %v1902
        %v2172 = vunpack.c.h.b16 %v1902
        %v2173 = vunpack.c.l.b16 %v1903
        %v2174 = vunpack.c.h.b16 %v1903
        %v2175 = vunpack.c.l.b16 %v1904
        %v2176 = vunpack.c.h.b16 %v1904
        %v2177 = vunpack.c.l.b16 %v1905
        %v2178 = vunpack.c.h.b16 %v1905
        %v2179 = vunpack.c.l.b16 %v1906
        %v2180 = vunpack.c.h.b16 %v1906
        %v2181 = vunpack.c.l.b16 %v1907
        %v2182 = vunpack.c.h.b16 %v1907
        %v2183 = vunpack.c.l.b16 %v1908
        %v2184 = vunpack.c.h.b16 %v1908
        %v2185 = vunpack.c.l.b16 %v1909
        %v2186 = vunpack.c.h.b16 %v1909
        %v2187 = vunpack.c.l.b16 %v1910
        %v2188 = vunpack.c.h.b16 %v1910
        %v2189 = vunpack.c.l.b16 %v1911
        %v2190 = vunpack.c.h.b16 %v1911
        %v2191 = vunpack.c.l.b16 %v1912
        %v2192 = vunpack.c.h.b16 %v1912
        %v2193 = vunpack.c.l.b16 %v1913
        %v2194 = vunpack.c.h.b16 %v1913
        %v2195 = vunpack.c.l.b16 %v1914
        %v2196 = vunpack.c.h.b16 %v1914
        %v2197 = vunpack.c.l.b16 %v1915
        %v2198 = vunpack.c.h.b16 %v1915
        %v2199 = vunpack.c.l.b16 %v1916
        %v2200 = vunpack.c.h.b16 %v1916
        %v2201 = vunpack.c.l.b16 %v1917
        %v2202 = vunpack.c.h.b16 %v1917
        %v2203 = vunpack.c.l.b16 %v1918
        %v2204 = vunpack.c.h.b16 %v1918
        %v2205 = vunpack.c.l.b16 %v1919
        %v2206 = vunpack.c.h.b16 %v1919
        %v2207 = vunpack.c.l.b16 %v1920
        %v2208 = vunpack.c.h.b16 %v1920
        %v2209 = vunpack.c.l.b16 %v1921
        %v2210 = vunpack.c.h.b16 %v1921
        %v2211 = vunpack.c.l.b16 %v1922
        %v2212 = vunpack.c.h.b16 %v1922
        %v2213 = vunpack.c.l.b16 %v1923
        %v2214 = vunpack.c.h.b16 %v1923
        %v2215 = vunpack.c.l.b16 %v1924
        %v2216 = vunpack.c.h.b16 %v1924
        %v2217 = vunpack.c.l.b16 %v1925
        %v2218 = vunpack.c.h.b16 %v1925
        %v2219 = vunpack.c.l.b16 %v1926
        %v2220 = vunpack.c.h.b16 %v1926
        %v2221 = vunpack.c.l.b16 %v1927
        %v2222 = vunpack.c.h.b16 %v1927
        %v2223 = vunpack.c.l.b16 %v1928
        %v2224 = vunpack.c.h.b16 %v1928
        %v2225 = vunpack.c.l.b16 %v1929
        %v2226 = vunpack.c.h.b16 %v1929
        %v2227 = vunpack.c.l.b16 %v1930
        %v2228 = vunpack.c.h.b16 %v1930
        %v2229 = vunpack.c.l.b16 %v1931
        %v2230 = vunpack.c.h.b16 %v1931
        %v2231 = vunpack.c.l.b16 %v1932
        %v2232 = vunpack.c.h.b16 %v1932
        %v2233 = vunpack.c.l.b16 %v1933
        %v2234 = vunpack.c.h.b16 %v1933
        %v2235 = vunpack.c.l.b16 %v1934
        %v2236 = vunpack.c.h.b16 %v1934
        %v2237 = vunpack.c.l.b16 %v1935
        %v2238 = vunpack.c.h.b16 %v1935
        %v2239 = vunpack.c.l.b16 %v1936
        %v2240 = vunpack.c.h.b16 %v1936
        %v2241 = vunpack.c.l.b16 %v1937
        %v2242 = vunpack.c.h.b16 %v1937
        %v2243 = vunpack.c.l.b16 %v1938
        %v2244 = vunpack.c.h.b16 %v1938
        %v2245 = vunpack.c.l.b16 %v1939
        %v2246 = vunpack.c.h.b16 %v1939
        %v2247 = vunpack.c.l.b16 %v1940
        %v2248 = vunpack.c.h.b16 %v1940
        %v2249 = vunpack.c.l.b16 %v1941
        %v2250 = vunpack.c.h.b16 %v1941
        %v2251 = vunpack.c.l.b16 %v1942
        %v2252 = vunpack.c.h.b16 %v1942
        %v2253 = vunpack.c.l.b16 %v1943
        %v2254 = vunpack.c.h.b16 %v1943
        %v2255 = vunpack.c.l.b16 %v1944
        %v2256 = vunpack.c.h.b16 %v1944
        %v2257 = vunpack.c.l.b16 %v1945
        %v2258 = vunpack.c.h.b16 %v1945
        %v2259 = vunpack.c.l.b16 %v1946
        %v2260 = vunpack.c.h.b16 %v1946
        %v2261 = vunpack.c.l.b16 %v1947
        %v2262 = vunpack.c.h.b16 %v1947
        %v2263 = vunpack.c.l.b16 %v1948
        %v2264 = vunpack.c.h.b16 %v1948
        %v2265 = vunpack.c.l.b16 %v1949
        %v2266 = vunpack.c.h.b16 %v1949
        %v2267 = vunpack.c.l.b16 %v1950
        %v2268 = vunpack.c.h.b16 %v1950
        %v2269 = vunpack.c.l.b16 %v1951
        %v2270 = vunpack.c.h.b16 %v1951
        %v2271 = vunpack.c.l.b16 %v1952
        %v2272 = vunpack.c.h.b16 %v1952
        %v2273 = vunpack.c.l.b16 %v1953
        %v2274 = vunpack.c.h.b16 %v1953
        %v2275 = vunpack.c.l.b16 %v1954
        %v2276 = vunpack.c.h.b16 %v1954
        %v2277 = vunpack.c.l.b16 %v1955
        %v2278 = vunpack.c.h.b16 %v1955
        %v2279 = vunpack.c.l.b16 %v1956
        %v2280 = vunpack.c.h.b16 %v1956
        %v2281 = vunpack.c.l.b16 %v1957
        %v2282 = vunpack.c.h.b16 %v1957
        %v2283 = vunpack.c.l.b16 %v1958
        %v2284 = vunpack.c.h.b16 %v1958
        %v2285 = vunpack.c.l.b16 %v1959
        %v2286 = vunpack.c.h.b16 %v1959
        %v2287 = vunpack.c.l.b16 %v1960
        %v2288 = vunpack.c.h.b16 %v1960
        %v2289 = vunpack.c.l.b16 %v1961
        %v2290 = vunpack.c.h.b16 %v1961
        %v2291 = vunpack.c.l.b16 %v1962
        %v2292 = vunpack.c.h.b16 %v1962
        %v2293 = vunpack.c.l.b16 %v1963
        %v2294 = vunpack.c.h.b16 %v1963
        %v2295 = vunpack.c.l.b16 %v1964
        %v2296 = vunpack.c.h.b16 %v1964
        %v2297 = vunpack.c.l.b16 %v1965
        %v2298 = vunpack.c.h.b16 %v1965
        %v2299 = vunpack.c.l.b16 %v1966
        %v2300 = vunpack.c.h.b16 %v1966
        %v2301 = vunpack.c.l.b16 %v1967
        %v2302 = vunpack.c.h.b16 %v1967
        %v2303 = vunpack.c.l.b16 %v1968
        %v2304 = vunpack.c.h.b16 %v1968
        %v2305 = vunpack.c.l.b16 %v1969
        %v2306 = vunpack.c.h.b16 %v1969
        %v2307 = vunpack.c.l.b16 %v1970
        %v2308 = vunpack.c.h.b16 %v1970
        %v2309 = vunpack.c.l.b16 %v1971
        %v2310 = vunpack.c.h.b16 %v1971
        %v2311 = vunpack.c.l.b16 %v1972
        %v2312 = vunpack.c.h.b16 %v1972
        %v2313 = vunpack.c.l.b16 %v1973
        %v2314 = vunpack.c.h.b16 %v1973
        %v2315 = vunpack.c.l.b16 %v1974
        %v2316 = vunpack.c.h.b16 %v1974
        %v2317 = vunpack.c.l.b16 %v1975
        %v2318 = vunpack.c.h.b16 %v1975
        %v2319 = vunpack.c.l.b16 %v1976
        %v2320 = vunpack.c.h.b16 %v1976
        %v2321 = vunpack.c.l.b16 %v1977
        %v2322 = vunpack.c.h.b16 %v1977
        %v2323 = vunpack.c.l.b16 %v1978
        %v2324 = vunpack.c.h.b16 %v1978
        %v2325 = vunpack.c.l.b16 %v1979
        %v2326 = vunpack.c.h.b16 %v1979
        %v2327 = vunpack.c.l.b16 %v1980
        %v2328 = vunpack.c.h.b16 %v1980
        %v2329 = vunpack.c.l.b16 %v1981
        %v2330 = vunpack.c.h.b16 %v1981
        %v2331 = vunpack.c.l.b16 %v1982
        %v2332 = vunpack.c.h.b16 %v1982
        %v2333 = vunpack.c.l.b16 %v1983
        %v2334 = vunpack.c.h.b16 %v1983
        %v2335 = vunpack.c.l.b16 %v1984
        %v2336 = vunpack.c.h.b16 %v1984
        %v2337 = vunpack.c.l.b16 %v1985
        %v2338 = vunpack.c.h.b16 %v1985
        %v2339 = vunpack.c.l.b16 %v1986
        %v2340 = vunpack.c.h.b16 %v1986
        %v2341 = vunpack.c.l.b16 %v1987
        %v2342 = vunpack.c.h.b16 %v1987
        %v2343 = vunpack.c.l.b16 %v1988
        %v2344 = vunpack.c.h.b16 %v1988
        %v2345 = vunpack.c.l.b16 %v1989
        %v2346 = vunpack.c.h.b16 %v1989
        %v2347 = vunpack.c.l.b16 %v1990
        %v2348 = vunpack.c.h.b16 %v1990
        %v2349 = vunpack.c.l.b16 %v1991
        %v2350 = vunpack.c.h.b16 %v1991
        %v2351 = vunpack.c.l.b16 %v1992
        %v2352 = vunpack.c.h.b16 %v1992
        %v2353 = vunpack.c.l.b16 %v1993
        %v2354 = vunpack.c.h.b16 %v1993
        %v2355 = vunpack.c.l.b16 %v1994
        %v2356 = vunpack.c.h.b16 %v1994
        %v2357 = vunpack.c.l.b16 %v1995
        %v2358 = vunpack.c.h.b16 %v1995
        %v2359 = vunpack.c.l.b16 %v1996
        %v2360 = vunpack.c.h.b16 %v1996
        %v2361 = vunpack.c.l.b16 %v1997
        %v2362 = vunpack.c.h.b16 %v1997
        %v2363 = vunpack.c.l.b16 %v1998
        %v2364 = vunpack.c.h.b16 %v1998
        %v2365 = vunpack.c.l.b16 %v1999
        %v2366 = vunpack.c.h.b16 %v1999
        %v2367 = vunpack.c.l.b16 %v2000
        %v2368 = vunpack.c.h.b16 %v2000
        %v2369 = vunpack.c.l.b16 %v2001
        %v2370 = vunpack.c.h.b16 %v2001
        %v2371 = vunpack.c.l.b16 %v2002
        %v2372 = vunpack.c.h.b16 %v2002
        %v2373 = vunpack.c.l.b16 %v2003
        %v2374 = vunpack.c.h.b16 %v2003
        %v2375 = vunpack.c.l.b16 %v2004
        %v2376 = vunpack.c.h.b16 %v2004
        %v2377 = vunpack.c.l.b16 %v2005
        %v2378 = vunpack.c.h.b16 %v2005
        %v2379 = vunpack.c.l.b16 %v2006
        %v2380 = vunpack.c.h.b16 %v2006
        %v2381 = vunpack.c.l.b16 %v2007
        %v2382 = vunpack.c.h.b16 %v2007
        %v2383 = vunpack.c.l.b16 %v2008
        %v2384 = vunpack.c.h.b16 %v2008
        %v2385 = vunpack.c.l.b16 %v2009
        %v2386 = vunpack.c.h.b16 %v2009
        %v2387 = vunpack.c.l.b16 %v2010
        %v2388 = vunpack.c.h.b16 %v2010
        %v2389 = vunpack.c.l.b16 %v2011
        %v2390 = vunpack.c.h.b16 %v2011
        %v2391 = vunpack.c.l.b16 %v2012
        %v2392 = vunpack.c.h.b16 %v2012
        %v2393 = vunpack.c.l.b16 %v2013
        %v2394 = vunpack.c.h.b16 %v2013
        %v2395 = vunpack.c.l.b16 %v2014
        %v2396 = vunpack.c.h.b16 %v2014
        %v2397 = vunpack.c.l.b16 %v2015
        %v2398 = vunpack.c.h.b16 %v2015
        %v2399 = vunpack.c.l.b16 %v2016
        %v2400 = vunpack.c.h.b16 %v2016
        %v2401 = vpack.c.b16 %v2149, %v2145
        %v2402 = vpack.c.b16 %v2150, %v2146
        %v2403 = vpack.c.b16 %v2151, %v2147
        %v2404 = vpack.c.b16 %v2152, %v2148
        %v2405 = vpack.c.b16 %v2157, %v2153
        %v2406 = vpack.c.b16 %v2158, %v2154
        %v2407 = vpack.c.b16 %v2159, %v2155
        %v2408 = vpack.c.b16 %v2160, %v2156
        %v2409 = vpack.c.b16 %v2165, %v2161
        %v2410 = vpack.c.b16 %v2166, %v2162
        %v2411 = vpack.c.b16 %v2167, %v2163
        %v2412 = vpack.c.b16 %v2168, %v2164
        %v2413 = vpack.c.b16 %v2173, %v2169
        %v2414 = vpack.c.b16 %v2174, %v2170
        %v2415 = vpack.c.b16 %v2175, %v2171
        %v2416 = vpack.c.b16 %v2176, %v2172
        %v2417 = vpack.c.b16 %v2181, %v2177
        %v2418 = vpack.c.b16 %v2182, %v2178
        %v2419 = vpack.c.b16 %v2183, %v2179
        %v2420 = vpack.c.b16 %v2184, %v2180
        %v2421 = vpack.c.b16 %v2189, %v2185
        %v2422 = vpack.c.b16 %v2190, %v2186
        %v2423 = vpack.c.b16 %v2191, %v2187
        %v2424 = vpack.c.b16 %v2192, %v2188
        %v2425 = vpack.c.b16 %v2197, %v2193
        %v2426 = vpack.c.b16 %v2198, %v2194
        %v2427 = vpack.c.b16 %v2199, %v2195
        %v2428 = vpack.c.b16 %v2200, %v2196
        %v2429 = vpack.c.b16 %v2205, %v2201
        %v2430 = vpack.c.b16 %v2206, %v2202
        %v2431 = vpack.c.b16 %v2207, %v2203
        %v2432 = vpack.c.b16 %v2208, %v2204
        %v2433 = vpack.c.b16 %v2213, %v2209
        %v2434 = vpack.c.b16 %v2214, %v2210
        %v2435 = vpack.c.b16 %v2215, %v2211
        %v2436 = vpack.c.b16 %v2216, %v2212
        %v2437 = vpack.c.b16 %v2221, %v2217
        %v2438 = vpack.c.b16 %v2222, %v2218
        %v2439 = vpack.c.b16 %v2223, %v2219
        %v2440 = vpack.c.b16 %v2224, %v2220
        %v2441 = vpack.c.b16 %v2229, %v2225
        %v2442 = vpack.c.b16 %v2230, %v2226
        %v2443 = vpack.c.b16 %v2231, %v2227
        %v2444 = vpack.c.b16 %v2232, %v2228
        %v2445 = vpack.c.b16 %v2237, %v2233
        %v2446 = vpack.c.b16 %v2238, %v2234
        %v2447 = vpack.c.b16 %v2239, %v2235
        %v2448 = vpack.c.b16 %v2240, %v2236
        %v2449 = vpack.c.b16 %v2245, %v2241
        %v2450 = vpack.c.b16 %v2246, %v2242
        %v2451 = vpack.c.b16 %v2247, %v2243
        %v2452 = vpack.c.b16 %v2248, %v2244
        %v2453 = vpack.c.b16 %v2253, %v2249
        %v2454 = vpack.c.b16 %v2254, %v2250
        %v2455 = vpack.c.b16 %v2255, %v2251
        %v2456 = vpack.c.b16 %v2256, %v2252
        %v2457 = vpack.c.b16 %v2261, %v2257
        %v2458 = vpack.c.b16 %v2262, %v2258
        %v2459 = vpack.c.b16 %v2263, %v2259
        %v2460 = vpack.c.b16 %v2264, %v2260
        %v2461 = vpack.c.b16 %v2269, %v2265
        %v2462 = vpack.c.b16 %v2270, %v2266
        %v2463 = vpack.c.b16 %v2271, %v2267
        %v2464 = vpack.c.b16 %v2272, %v2268
        %v2465 = vpack.c.b16 %v2277, %v2273
        %v2466 = vpack.c.b16 %v2278, %v2274
        %v2467 = vpack.c.b16 %v2279, %v2275
        %v2468 = vpack.c.b16 %v2280, %v2276
        %v2469 = vpack.c.b16 %v2285, %v2281
        %v2470 = vpack.c.b16 %v2286, %v2282
        %v2471 = vpack.c.b16 %v2287, %v2283
        %v2472 = vpack.c.b16 %v2288, %v2284
        %v2473 = vpack.c.b16 %v2293, %v2289
        %v2474 = vpack.c.b16 %v2294, %v2290
        %v2475 = vpack.c.b16 %v2295, %v2291
        %v2476 = vpack.c.b16 %v2296, %v2292
        %v2477 = vpack.c.b16 %v2301, %v2297
        %v2478 = vpack.c.b16 %v2302, %v2298
        %v2479 = vpack.c.b16 %v2303, %v2299
        %v2480 = vpack.c.b16 %v2304, %v2300
        %v2481 = vpack.c.b16 %v2309, %v2305
        %v2482 = vpack.c.b16 %v2310, %v2306
        %v2483 = vpack.c.b16 %v2311, %v2307
        %v2484 = vpack.c.b16 %v2312, %v2308
        %v2485 = vpack.c.b16 %v2317, %v2313
        %v2486 = vpack.c.b16 %v2318, %v2314
        %v2487 = vpack.c.b16 %v2319, %v2315
        %v2488 = vpack.c.b16 %v2320, %v2316
        %v2489 = vpack.c.b16 %v2325, %v2321
        %v2490 = vpack.c.b16 %v2326, %v2322
        %v2491 = vpack.c.b16 %v2327, %v2323
        %v2492 = vpack.c.b16 %v2328, %v2324
        %v2493 = vpack.c.b16 %v2333, %v2329
        %v2494 = vpack.c.b16 %v2334, %v2330
        %v2495 = vpack.c.b16 %v2335, %v2331
        %v2496 = vpack.c.b16 %v2336, %v2332
        %v2497 = vpack.c.b16 %v2341, %v2337
        %v2498 = vpack.c.b16 %v2342, %v2338
        %v2499 = vpack.c.b16 %v2343, %v2339
        %v2500 = vpack.c.b16 %v2344, %v2340
        %v2501 = vpack.c.b16 %v2349, %v2345
        %v2502 = vpack.c.b16 %v2350, %v2346
        %v2503 = vpack.c.b16 %v2351, %v2347
        %v2504 = vpack.c.b16 %v2352, %v2348
        %v2505 = vpack.c.b16 %v2357, %v2353
        %v2506 = vpack.c.b16 %v2358, %v2354
        %v2507 = vpack.c.b16 %v2359, %v2355
        %v2508 = vpack.c.b16 %v2360, %v2356
        %v2509 = vpack.c.b16 %v2365, %v2361
        %v2510 = vpack.c.b16 %v2366, %v2362
        %v2511 = vpack.c.b16 %v2367, %v2363
        %v2512 = vpack.c.b16 %v2368, %v2364
        %v2513 = vpack.c.b16 %v2373, %v2369
        %v2514 = vpack.c.b16 %v2374, %v2370
        %v2515 = vpack.c.b16 %v2375, %v2371
        %v2516 = vpack.c.b16 %v2376, %v2372
        %v2517 = vpack.c.b16 %v2381, %v2377
        %v2518 = vpack.c.b16 %v2382, %v2378
        %v2519 = vpack.c.b16 %v2383, %v2379
        %v2520 = vpack.c.b16 %v2384, %v2380
        %v2521 = vpack.c.b16 %v2389, %v2385
        %v2522 = vpack.c.b16 %v2390, %v2386
        %v2523 = vpack.c.b16 %v2391, %v2387
        %v2524 = vpack.c.b16 %v2392, %v2388
        %v2525 = vpack.c.b16 %v2397, %v2393
        %v2526 = vpack.c.b16 %v2398, %v2394
        %v2527 = vpack.c.b16 %v2399, %v2395
        %v2528 = vpack.c.b16 %v2400, %v2396
        %2657 = vmatprep.subr.bf16.mxu0 %v2402
        %2658 = vmatpush1.bf16.msra.mxu0 %v2401
        %2659 = vmatprep.subr.bf16.mxu0 %v2406
        %2660 = vmatpush1.bf16.msra.mxu0 %v2405
        %2661 = vmatprep.subr.bf16.mxu0 %v2410
        %2662 = vmatpush1.bf16.msra.mxu0 %v2409
        %2663 = vmatprep.subr.bf16.mxu0 %v2414
        %2664 = vmatpush1.bf16.msra.mxu0 %v2413
        %2665 = vmatprep.subr.bf16.mxu0 %v2418
        %2666 = vmatpush1.bf16.msra.mxu0 %v2417
        %2667 = vmatprep.subr.bf16.mxu0 %v2422
        %2668 = vmatpush1.bf16.msra.mxu0 %v2421
        %2669 = vmatprep.subr.bf16.mxu0 %v2426
        %2670 = vmatpush1.bf16.msra.mxu0 %v2425
        %2671 = vmatprep.subr.bf16.mxu0 %v2430
        %2672 = vmatpush1.bf16.msra.mxu0 %v2429
        %2673 = vmatprep.subr.bf16.mxu0 %v2434
        %2674 = vmatpush1.bf16.msra.mxu0 %v2433
        %2675 = vmatprep.subr.bf16.mxu0 %v2438
        %2676 = vmatpush1.bf16.msra.mxu0 %v2437
        %2677 = vmatprep.subr.bf16.mxu0 %v2442
        %2678 = vmatpush1.bf16.msra.mxu0 %v2441
        %2679 = vmatprep.subr.bf16.mxu0 %v2446
        %2680 = vmatpush1.bf16.msra.mxu0 %v2445
        %2681 = vmatprep.subr.bf16.mxu0 %v2450
        %2682 = vmatpush1.bf16.msra.mxu0 %v2449
        %2683 = vmatprep.subr.bf16.mxu0 %v2454
        %2684 = vmatpush1.bf16.msra.mxu0 %v2453
        %2685 = vmatprep.subr.bf16.mxu0 %v2458
        %2686 = vmatpush1.bf16.msra.mxu0 %v2457
        %2687 = vmatprep.subr.bf16.mxu0 %v2462
        %2688 = vmatpush1.bf16.msra.mxu0 %v2461
        %2689 = vmatprep.mubr.bf16.mxu0 %v1701
        %2690 = vmatmul.mubr.bf16.gmra.mrb[0].mxu0 %v1700
        %v2691 = vpop.f32.mrb[0].mxu0
        %v2692 = vadd.f32 0.0, %v2691
        %v2693 = vpop.f32.mrb[0].mxu0
        %v2694 = vadd.f32 0.0, %v2693
        %v2695 = vpop.f32.mrb[0].mxu0
        %v2696 = vadd.f32 0.0, %v2695
        %v2697 = vpop.f32.mrb[0].mxu0
        %v2698 = vadd.f32 0.0, %v2697
        %2699 = vdwg.mxu0
        %2700 = vmatprep.subr.bf16.mxu0 %v2466
        %2701 = vmatpush1.bf16.msra.mxu0 %v2465
        %2702 = vmatprep.subr.bf16.mxu0 %v2470
        %2703 = vmatpush1.bf16.msra.mxu0 %v2469
        %2704 = vmatprep.subr.bf16.mxu0 %v2474
        %2705 = vmatpush1.bf16.msra.mxu0 %v2473
        %2706 = vmatprep.subr.bf16.mxu0 %v2478
        %2707 = vmatpush1.bf16.msra.mxu0 %v2477
        %2708 = vmatprep.subr.bf16.mxu0 %v2482
        %2709 = vmatpush1.bf16.msra.mxu0 %v2481
        %2710 = vmatprep.subr.bf16.mxu0 %v2486
        %2711 = vmatpush1.bf16.msra.mxu0 %v2485
        %2712 = vmatprep.subr.bf16.mxu0 %v2490
        %2713 = vmatpush1.bf16.msra.mxu0 %v2489
        %2714 = vmatprep.subr.bf16.mxu0 %v2494
        %2715 = vmatpush1.bf16.msra.mxu0 %v2493
        %2716 = vmatprep.subr.bf16.mxu0 %v2498
        %2717 = vmatpush1.bf16.msra.mxu0 %v2497
        %2718 = vmatprep.subr.bf16.mxu0 %v2502
        %2719 = vmatpush1.bf16.msra.mxu0 %v2501
        %2720 = vmatprep.subr.bf16.mxu0 %v2506
        %2721 = vmatpush1.bf16.msra.mxu0 %v2505
        %2722 = vmatprep.subr.bf16.mxu0 %v2510
        %2723 = vmatpush1.bf16.msra.mxu0 %v2509
        %2724 = vmatprep.subr.bf16.mxu0 %v2514
        %2725 = vmatpush1.bf16.msra.mxu0 %v2513
        %2726 = vmatprep.subr.bf16.mxu0 %v2518
        %2727 = vmatpush1.bf16.msra.mxu0 %v2517
        %2728 = vmatprep.subr.bf16.mxu0 %v2522
        %2729 = vmatpush1.bf16.msra.mxu0 %v2521
        %2730 = vmatprep.subr.bf16.mxu0 %v2526
        %2731 = vmatpush1.bf16.msra.mxu0 %v2525
        %2732 = vmatprep.mubr.bf16.mxu0 %v1703
        %2733 = vmatmul.mubr.bf16.gmra.mrb[0].mxu0 %v1702
        %v2734 = vpop.f32.mrb[0].mxu0
        %v2735 = vadd.f32 %v2692, %v2734
        %v2736 = vpop.f32.mrb[0].mxu0
        %v2737 = vadd.f32 %v2694, %v2736
        %v2738 = vpop.f32.mrb[0].mxu0
        %v2739 = vadd.f32 %v2696, %v2738
        %v2740 = vpop.f32.mrb[0].mxu0
        %v2741 = vadd.f32 %v2698, %v2740
        %2742 = vdwg.mxu0
        %2743 = vmatprep.subr.bf16.mxu0 %v2404
        %2744 = vmatpush1.bf16.msra.mxu0 %v2403
        %2745 = vmatprep.subr.bf16.mxu0 %v2408
        %2746 = vmatpush1.bf16.msra.mxu0 %v2407
        %2747 = vmatprep.subr.bf16.mxu0 %v2412
        %2748 = vmatpush1.bf16.msra.mxu0 %v2411
        %2749 = vmatprep.subr.bf16.mxu0 %v2416
        %2750 = vmatpush1.bf16.msra.mxu0 %v2415
        %2751 = vmatprep.subr.bf16.mxu0 %v2420
        %2752 = vmatpush1.bf16.msra.mxu0 %v2419
        %2753 = vmatprep.subr.bf16.mxu0 %v2424
        %2754 = vmatpush1.bf16.msra.mxu0 %v2423
        %2755 = vmatprep.subr.bf16.mxu0 %v2428
        %2756 = vmatpush1.bf16.msra.mxu0 %v2427
        %2757 = vmatprep.subr.bf16.mxu0 %v2432
        %2758 = vmatpush1.bf16.msra.mxu0 %v2431
        %2759 = vmatprep.subr.bf16.mxu0 %v2436
        %2760 = vmatpush1.bf16.msra.mxu0 %v2435
        %2761 = vmatprep.subr.bf16.mxu0 %v2440
        %2762 = vmatpush1.bf16.msra.mxu0 %v2439
        %2763 = vmatprep.subr.bf16.mxu0 %v2444
        %2764 = vmatpush1.bf16.msra.mxu0 %v2443
        %2765 = vmatprep.subr.bf16.mxu0 %v2448
        %2766 = vmatpush1.bf16.msra.mxu0 %v2447
        %2767 = vmatprep.subr.bf16.mxu0 %v2452
        %2768 = vmatpush1.bf16.msra.mxu0 %v2451
        %2769 = vmatprep.subr.bf16.mxu0 %v2456
        %2770 = vmatpush1.bf16.msra.mxu0 %v2455
        %2771 = vmatprep.subr.bf16.mxu0 %v2460
        %2772 = vmatpush1.bf16.msra.mxu0 %v2459
        %2773 = vmatprep.subr.bf16.mxu0 %v2464
        %2774 = vmatpush1.bf16.msra.mxu0 %v2463
        %2775 = vmatprep.mubr.bf16.mxu0 %v1701
        %2776 = vmatmul.mubr.bf16.gmra.mrb[0].mxu0 %v1700
        %v2777 = vpop.f32.mrb[0].mxu0
        %v2778 = vadd.f32 0.0, %v2777
        %v2779 = vpop.f32.mrb[0].mxu0
        %v2780 = vadd.f32 0.0, %v2779
        %v2781 = vpop.f32.mrb[0].mxu0
        %v2782 = vadd.f32 0.0, %v2781
        %v2783 = vpop.f32.mrb[0].mxu0
        %v2784 = vadd.f32 0.0, %v2783
        %2785 = vdwg.mxu0
        %2786 = vmatprep.subr.bf16.mxu0 %v2468
        %2787 = vmatpush1.bf16.msra.mxu0 %v2467
        %2788 = vmatprep.subr.bf16.mxu0 %v2472
        %2789 = vmatpush1.bf16.msra.mxu0 %v2471
        %2790 = vmatprep.subr.bf16.mxu0 %v2476
        %2791 = vmatpush1.bf16.msra.mxu0 %v2475
        %2792 = vmatprep.subr.bf16.mxu0 %v2480
        %2793 = vmatpush1.bf16.msra.mxu0 %v2479
        %2794 = vmatprep.subr.bf16.mxu0 %v2484
        %2795 = vmatpush1.bf16.msra.mxu0 %v2483
        %2796 = vmatprep.subr.bf16.mxu0 %v2488
        %2797 = vmatpush1.bf16.msra.mxu0 %v2487
        %2798 = vmatprep.subr.bf16.mxu0 %v2492
        %2799 = vmatpush1.bf16.msra.mxu0 %v2491
        %2800 = vmatprep.subr.bf16.mxu0 %v2496
        %2801 = vmatpush1.bf16.msra.mxu0 %v2495
        %2802 = vmatprep.subr.bf16.mxu0 %v2500
        %2803 = vmatpush1.bf16.msra.mxu0 %v2499
        %2804 = vmatprep.subr.bf16.mxu0 %v2504
        %2805 = vmatpush1.bf16.msra.mxu0 %v2503
        %2806 = vmatprep.subr.bf16.mxu0 %v2508
        %2807 = vmatpush1.bf16.msra.mxu0 %v2507
        %2808 = vmatprep.subr.bf16.mxu0 %v2512
        %2809 = vmatpush1.bf16.msra.mxu0 %v2511
        %2810 = vmatprep.subr.bf16.mxu0 %v2516
        %2811 = vmatpush1.bf16.msra.mxu0 %v2515
        %2812 = vmatprep.subr.bf16.mxu0 %v2520
        %2813 = vmatpush1.bf16.msra.mxu0 %v2519
        %2814 = vmatprep.subr.bf16.mxu0 %v2524
        %2815 = vmatpush1.bf16.msra.mxu0 %v2523
        %2816 = vmatprep.subr.bf16.mxu0 %v2528
        %2817 = vmatpush1.bf16.msra.mxu0 %v2527
        %2818 = vmatprep.mubr.bf16.mxu0 %v1703
        %2819 = vmatmul.mubr.bf16.gmra.mrb[0].mxu0 %v1702
        %v2820 = vpop.f32.mrb[0].mxu0
        %v2821 = vadd.f32 %v2778, %v2820
        %v2822 = vpop.f32.mrb[0].mxu0
        %v2823 = vadd.f32 %v2780, %v2822
        %v2824 = vpop.f32.mrb[0].mxu0
        %v2825 = vadd.f32 %v2782, %v2824
        %v2826 = vpop.f32.mrb[0].mxu0
        %v2827 = vadd.f32 %v2784, %v2826
        %2828 = vdwg.mxu0
        %v2957 = vunpack.c.l.b16 %v1760
        %v2958 = vunpack.c.h.b16 %v1760
        %v2959 = vunpack.c.l.b16 %v1761
        %v2960 = vunpack.c.h.b16 %v1761
        %v2961 = vunpack.c.l.b16 %v1762
        %v2962 = vunpack.c.h.b16 %v1762
        %v2963 = vunpack.c.l.b16 %v1763
        %v2964 = vunpack.c.h.b16 %v1763
        %v2965 = vunpack.c.l.b16 %v1764
        %v2966 = vunpack.c.h.b16 %v1764
        %v2967 = vunpack.c.l.b16 %v1765
        %v2968 = vunpack.c.h.b16 %v1765
        %v2969 = vunpack.c.l.b16 %v1766
        %v2970 = vunpack.c.h.b16 %v1766
        %v2971 = vunpack.c.l.b16 %v1767
        %v2972 = vunpack.c.h.b16 %v1767
        %v2973 = vunpack.c.l.b16 %v1768
        %v2974 = vunpack.c.h.b16 %v1768
        %v2975 = vunpack.c.l.b16 %v1769
        %v2976 = vunpack.c.h.b16 %v1769
        %v2977 = vunpack.c.l.b16 %v1770
        %v2978 = vunpack.c.h.b16 %v1770
        %v2979 = vunpack.c.l.b16 %v1771
        %v2980 = vunpack.c.h.b16 %v1771
        %v2981 = vunpack.c.l.b16 %v1772
        %v2982 = vunpack.c.h.b16 %v1772
        %v2983 = vunpack.c.l.b16 %v1773
        %v2984 = vunpack.c.h.b16 %v1773
        %v2985 = vunpack.c.l.b16 %v1774
        %v2986 = vunpack.c.h.b16 %v1774
        %v2987 = vunpack.c.l.b16 %v1775
        %v2988 = vunpack.c.h.b16 %v1775
        %v2989 = vunpack.c.l.b16 %v1776
        %v2990 = vunpack.c.h.b16 %v1776
        %v2991 = vunpack.c.l.b16 %v1777
        %v2992 = vunpack.c.h.b16 %v1777
        %v2993 = vunpack.c.l.b16 %v1778
        %v2994 = vunpack.c.h.b16 %v1778
        %v2995 = vunpack.c.l.b16 %v1779
        %v2996 = vunpack.c.h.b16 %v1779
        %v2997 = vunpack.c.l.b16 %v1780
        %v2998 = vunpack.c.h.b16 %v1780
        %v2999 = vunpack.c.l.b16 %v1781
        %v3000 = vunpack.c.h.b16 %v1781
        %v3001 = vunpack.c.l.b16 %v1782
        %v3002 = vunpack.c.h.b16 %v1782
        %v3003 = vunpack.c.l.b16 %v1783
        %v3004 = vunpack.c.h.b16 %v1783
        %v3005 = vunpack.c.l.b16 %v1784
        %v3006 = vunpack.c.h.b16 %v1784
        %v3007 = vunpack.c.l.b16 %v1785
        %v3008 = vunpack.c.h.b16 %v1785
        %v3009 = vunpack.c.l.b16 %v1786
        %v3010 = vunpack.c.h.b16 %v1786
        %v3011 = vunpack.c.l.b16 %v1787
        %v3012 = vunpack.c.h.b16 %v1787
        %v3013 = vunpack.c.l.b16 %v1788
        %v3014 = vunpack.c.h.b16 %v1788
        %v3015 = vunpack.c.l.b16 %v1789
        %v3016 = vunpack.c.h.b16 %v1789
        %v3017 = vunpack.c.l.b16 %v1790
        %v3018 = vunpack.c.h.b16 %v1790
        %v3019 = vunpack.c.l.b16 %v1791
        %v3020 = vunpack.c.h.b16 %v1791
        %v3021 = vunpack.c.l.b16 %v1792
        %v3022 = vunpack.c.h.b16 %v1792
        %v3023 = vunpack.c.l.b16 %v1793
        %v3024 = vunpack.c.h.b16 %v1793
        %v3025 = vunpack.c.l.b16 %v1794
        %v3026 = vunpack.c.h.b16 %v1794
        %v3027 = vunpack.c.l.b16 %v1795
        %v3028 = vunpack.c.h.b16 %v1795
        %v3029 = vunpack.c.l.b16 %v1796
        %v3030 = vunpack.c.h.b16 %v1796
        %v3031 = vunpack.c.l.b16 %v1797
        %v3032 = vunpack.c.h.b16 %v1797
        %v3033 = vunpack.c.l.b16 %v1798
        %v3034 = vunpack.c.h.b16 %v1798
        %v3035 = vunpack.c.l.b16 %v1799
        %v3036 = vunpack.c.h.b16 %v1799
        %v3037 = vunpack.c.l.b16 %v1800
        %v3038 = vunpack.c.h.b16 %v1800
        %v3039 = vunpack.c.l.b16 %v1801
        %v3040 = vunpack.c.h.b16 %v1801
        %v3041 = vunpack.c.l.b16 %v1802
        %v3042 = vunpack.c.h.b16 %v1802
        %v3043 = vunpack.c.l.b16 %v1803
        %v3044 = vunpack.c.h.b16 %v1803
        %v3045 = vunpack.c.l.b16 %v1804
        %v3046 = vunpack.c.h.b16 %v1804
        %v3047 = vunpack.c.l.b16 %v1805
        %v3048 = vunpack.c.h.b16 %v1805
        %v3049 = vunpack.c.l.b16 %v1806
        %v3050 = vunpack.c.h.b16 %v1806
        %v3051 = vunpack.c.l.b16 %v1807
        %v3052 = vunpack.c.h.b16 %v1807
        %v3053 = vunpack.c.l.b16 %v1808
        %v3054 = vunpack.c.h.b16 %v1808
        %v3055 = vunpack.c.l.b16 %v1809
        %v3056 = vunpack.c.h.b16 %v1809
        %v3057 = vunpack.c.l.b16 %v1810
        %v3058 = vunpack.c.h.b16 %v1810
        %v3059 = vunpack.c.l.b16 %v1811
        %v3060 = vunpack.c.h.b16 %v1811
        %v3061 = vunpack.c.l.b16 %v1812
        %v3062 = vunpack.c.h.b16 %v1812
        %v3063 = vunpack.c.l.b16 %v1813
        %v3064 = vunpack.c.h.b16 %v1813
        %v3065 = vunpack.c.l.b16 %v1814
        %v3066 = vunpack.c.h.b16 %v1814
        %v3067 = vunpack.c.l.b16 %v1815
        %v3068 = vunpack.c.h.b16 %v1815
        %v3069 = vunpack.c.l.b16 %v1816
        %v3070 = vunpack.c.h.b16 %v1816
        %v3071 = vunpack.c.l.b16 %v1817
        %v3072 = vunpack.c.h.b16 %v1817
        %v3073 = vunpack.c.l.b16 %v1818
        %v3074 = vunpack.c.h.b16 %v1818
        %v3075 = vunpack.c.l.b16 %v1819
        %v3076 = vunpack.c.h.b16 %v1819
        %v3077 = vunpack.c.l.b16 %v1820
        %v3078 = vunpack.c.h.b16 %v1820
        %v3079 = vunpack.c.l.b16 %v1821
        %v3080 = vunpack.c.h.b16 %v1821
        %v3081 = vunpack.c.l.b16 %v1822
        %v3082 = vunpack.c.h.b16 %v1822
        %v3083 = vunpack.c.l.b16 %v1823
        %v3084 = vunpack.c.h.b16 %v1823
        %v3085 = vunpack.c.l.b16 %v1824
        %v3086 = vunpack.c.h.b16 %v1824
        %v3087 = vunpack.c.l.b16 %v1825
        %v3088 = vunpack.c.h.b16 %v1825
        %v3089 = vunpack.c.l.b16 %v1826
        %v3090 = vunpack.c.h.b16 %v1826
        %v3091 = vunpack.c.l.b16 %v1827
        %v3092 = vunpack.c.h.b16 %v1827
        %v3093 = vunpack.c.l.b16 %v1828
        %v3094 = vunpack.c.h.b16 %v1828
        %v3095 = vunpack.c.l.b16 %v1829
        %v3096 = vunpack.c.h.b16 %v1829
        %v3097 = vunpack.c.l.b16 %v1830
        %v3098 = vunpack.c.h.b16 %v1830
        %v3099 = vunpack.c.l.b16 %v1831
        %v3100 = vunpack.c.h.b16 %v1831
        %v3101 = vunpack.c.l.b16 %v1832
        %v3102 = vunpack.c.h.b16 %v1832
        %v3103 = vunpack.c.l.b16 %v1833
        %v3104 = vunpack.c.h.b16 %v1833
        %v3105 = vunpack.c.l.b16 %v1834
        %v3106 = vunpack.c.h.b16 %v1834
        %v3107 = vunpack.c.l.b16 %v1835
        %v3108 = vunpack.c.h.b16 %v1835
        %v3109 = vunpack.c.l.b16 %v1836
        %v3110 = vunpack.c.h.b16 %v1836
        %v3111 = vunpack.c.l.b16 %v1837
        %v3112 = vunpack.c.h.b16 %v1837
        %v3113 = vunpack.c.l.b16 %v1838
        %v3114 = vunpack.c.h.b16 %v1838
        %v3115 = vunpack.c.l.b16 %v1839
        %v3116 = vunpack.c.h.b16 %v1839
        %v3117 = vunpack.c.l.b16 %v1840
        %v3118 = vunpack.c.h.b16 %v1840
        %v3119 = vunpack.c.l.b16 %v1841
        %v3120 = vunpack.c.h.b16 %v1841
        %v3121 = vunpack.c.l.b16 %v1842
        %v3122 = vunpack.c.h.b16 %v1842
        %v3123 = vunpack.c.l.b16 %v1843
        %v3124 = vunpack.c.h.b16 %v1843
        %v3125 = vunpack.c.l.b16 %v1844
        %v3126 = vunpack.c.h.b16 %v1844
        %v3127 = vunpack.c.l.b16 %v1845
        %v3128 = vunpack.c.h.b16 %v1845
        %v3129 = vunpack.c.l.b16 %v1846
        %v3130 = vunpack.c.h.b16 %v1846
        %v3131 = vunpack.c.l.b16 %v1847
        %v3132 = vunpack.c.h.b16 %v1847
        %v3133 = vunpack.c.l.b16 %v1848
        %v3134 = vunpack.c.h.b16 %v1848
        %v3135 = vunpack.c.l.b16 %v1849
        %v3136 = vunpack.c.h.b16 %v1849
        %v3137 = vunpack.c.l.b16 %v1850
        %v3138 = vunpack.c.h.b16 %v1850
        %v3139 = vunpack.c.l.b16 %v1851
        %v3140 = vunpack.c.h.b16 %v1851
        %v3141 = vunpack.c.l.b16 %v1852
        %v3142 = vunpack.c.h.b16 %v1852
        %v3143 = vunpack.c.l.b16 %v1853
        %v3144 = vunpack.c.h.b16 %v1853
        %v3145 = vunpack.c.l.b16 %v1854
        %v3146 = vunpack.c.h.b16 %v1854
        %v3147 = vunpack.c.l.b16 %v1855
        %v3148 = vunpack.c.h.b16 %v1855
        %v3149 = vunpack.c.l.b16 %v1856
        %v3150 = vunpack.c.h.b16 %v1856
        %v3151 = vunpack.c.l.b16 %v1857
        %v3152 = vunpack.c.h.b16 %v1857
        %v3153 = vunpack.c.l.b16 %v1858
        %v3154 = vunpack.c.h.b16 %v1858
        %v3155 = vunpack.c.l.b16 %v1859
        %v3156 = vunpack.c.h.b16 %v1859
        %v3157 = vunpack.c.l.b16 %v1860
        %v3158 = vunpack.c.h.b16 %v1860
        %v3159 = vunpack.c.l.b16 %v1861
        %v3160 = vunpack.c.h.b16 %v1861
        %v3161 = vunpack.c.l.b16 %v1862
        %v3162 = vunpack.c.h.b16 %v1862
        %v3163 = vunpack.c.l.b16 %v1863
        %v3164 = vunpack.c.h.b16 %v1863
        %v3165 = vunpack.c.l.b16 %v1864
        %v3166 = vunpack.c.h.b16 %v1864
        %v3167 = vunpack.c.l.b16 %v1865
        %v3168 = vunpack.c.h.b16 %v1865
        %v3169 = vunpack.c.l.b16 %v1866
        %v3170 = vunpack.c.h.b16 %v1866
        %v3171 = vunpack.c.l.b16 %v1867
        %v3172 = vunpack.c.h.b16 %v1867
        %v3173 = vunpack.c.l.b16 %v1868
        %v3174 = vunpack.c.h.b16 %v1868
        %v3175 = vunpack.c.l.b16 %v1869
        %v3176 = vunpack.c.h.b16 %v1869
        %v3177 = vunpack.c.l.b16 %v1870
        %v3178 = vunpack.c.h.b16 %v1870
        %v3179 = vunpack.c.l.b16 %v1871
        %v3180 = vunpack.c.h.b16 %v1871
        %v3181 = vunpack.c.l.b16 %v1872
        %v3182 = vunpack.c.h.b16 %v1872
        %v3183 = vunpack.c.l.b16 %v1873
        %v3184 = vunpack.c.h.b16 %v1873
        %v3185 = vunpack.c.l.b16 %v1874
        %v3186 = vunpack.c.h.b16 %v1874
        %v3187 = vunpack.c.l.b16 %v1875
        %v3188 = vunpack.c.h.b16 %v1875
        %v3189 = vunpack.c.l.b16 %v1876
        %v3190 = vunpack.c.h.b16 %v1876
        %v3191 = vunpack.c.l.b16 %v1877
        %v3192 = vunpack.c.h.b16 %v1877
        %v3193 = vunpack.c.l.b16 %v1878
        %v3194 = vunpack.c.h.b16 %v1878
        %v3195 = vunpack.c.l.b16 %v1879
        %v3196 = vunpack.c.h.b16 %v1879
        %v3197 = vunpack.c.l.b16 %v1880
        %v3198 = vunpack.c.h.b16 %v1880
        %v3199 = vunpack.c.l.b16 %v1881
        %v3200 = vunpack.c.h.b16 %v1881
        %v3201 = vunpack.c.l.b16 %v1882
        %v3202 = vunpack.c.h.b16 %v1882
        %v3203 = vunpack.c.l.b16 %v1883
        %v3204 = vunpack.c.h.b16 %v1883
        %v3205 = vunpack.c.l.b16 %v1884
        %v3206 = vunpack.c.h.b16 %v1884
        %v3207 = vunpack.c.l.b16 %v1885
        %v3208 = vunpack.c.h.b16 %v1885
        %v3209 = vunpack.c.l.b16 %v1886
        %v3210 = vunpack.c.h.b16 %v1886
        %v3211 = vunpack.c.l.b16 %v1887
        %v3212 = vunpack.c.h.b16 %v1887
        %v3213 = vpack.c.b16 %v2961, %v2957
        %v3214 = vpack.c.b16 %v2962, %v2958
        %v3215 = vpack.c.b16 %v2963, %v2959
        %v3216 = vpack.c.b16 %v2964, %v2960
        %v3217 = vpack.c.b16 %v2969, %v2965
        %v3218 = vpack.c.b16 %v2970, %v2966
        %v3219 = vpack.c.b16 %v2971, %v2967
        %v3220 = vpack.c.b16 %v2972, %v2968
        %v3221 = vpack.c.b16 %v2977, %v2973
        %v3222 = vpack.c.b16 %v2978, %v2974
        %v3223 = vpack.c.b16 %v2979, %v2975
        %v3224 = vpack.c.b16 %v2980, %v2976
        %v3225 = vpack.c.b16 %v2985, %v2981
        %v3226 = vpack.c.b16 %v2986, %v2982
        %v3227 = vpack.c.b16 %v2987, %v2983
        %v3228 = vpack.c.b16 %v2988, %v2984
        %v3229 = vpack.c.b16 %v2993, %v2989
        %v3230 = vpack.c.b16 %v2994, %v2990
        %v3231 = vpack.c.b16 %v2995, %v2991
        %v3232 = vpack.c.b16 %v2996, %v2992
        %v3233 = vpack.c.b16 %v3001, %v2997
        %v3234 = vpack.c.b16 %v3002, %v2998
        %v3235 = vpack.c.b16 %v3003, %v2999
        %v3236 = vpack.c.b16 %v3004, %v3000
        %v3237 = vpack.c.b16 %v3009, %v3005
        %v3238 = vpack.c.b16 %v3010, %v3006
        %v3239 = vpack.c.b16 %v3011, %v3007
        %v3240 = vpack.c.b16 %v3012, %v3008
        %v3241 = vpack.c.b16 %v3017, %v3013
        %v3242 = vpack.c.b16 %v3018, %v3014
        %v3243 = vpack.c.b16 %v3019, %v3015
        %v3244 = vpack.c.b16 %v3020, %v3016
        %v3245 = vpack.c.b16 %v3025, %v3021
        %v3246 = vpack.c.b16 %v3026, %v3022
        %v3247 = vpack.c.b16 %v3027, %v3023
        %v3248 = vpack.c.b16 %v3028, %v3024
        %v3249 = vpack.c.b16 %v3033, %v3029
        %v3250 = vpack.c.b16 %v3034, %v3030
        %v3251 = vpack.c.b16 %v3035, %v3031
        %v3252 = vpack.c.b16 %v3036, %v3032
        %v3253 = vpack.c.b16 %v3041, %v3037
        %v3254 = vpack.c.b16 %v3042, %v3038
        %v3255 = vpack.c.b16 %v3043, %v3039
        %v3256 = vpack.c.b16 %v3044, %v3040
        %v3257 = vpack.c.b16 %v3049, %v3045
        %v3258 = vpack.c.b16 %v3050, %v3046
        %v3259 = vpack.c.b16 %v3051, %v3047
        %v3260 = vpack.c.b16 %v3052, %v3048
        %v3261 = vpack.c.b16 %v3057, %v3053
        %v3262 = vpack.c.b16 %v3058, %v3054
        %v3263 = vpack.c.b16 %v3059, %v3055
        %v3264 = vpack.c.b16 %v3060, %v3056
        %v3265 = vpack.c.b16 %v3065, %v3061
        %v3266 = vpack.c.b16 %v3066, %v3062
        %v3267 = vpack.c.b16 %v3067, %v3063
        %v3268 = vpack.c.b16 %v3068, %v3064
        %v3269 = vpack.c.b16 %v3073, %v3069
        %v3270 = vpack.c.b16 %v3074, %v3070
        %v3271 = vpack.c.b16 %v3075, %v3071
        %v3272 = vpack.c.b16 %v3076, %v3072
        %v3273 = vpack.c.b16 %v3081, %v3077
        %v3274 = vpack.c.b16 %v3082, %v3078
        %v3275 = vpack.c.b16 %v3083, %v3079
        %v3276 = vpack.c.b16 %v3084, %v3080
        %v3277 = vpack.c.b16 %v3089, %v3085
        %v3278 = vpack.c.b16 %v3090, %v3086
        %v3279 = vpack.c.b16 %v3091, %v3087
        %v3280 = vpack.c.b16 %v3092, %v3088
        %v3281 = vpack.c.b16 %v3097, %v3093
        %v3282 = vpack.c.b16 %v3098, %v3094
        %v3283 = vpack.c.b16 %v3099, %v3095
        %v3284 = vpack.c.b16 %v3100, %v3096
        %v3285 = vpack.c.b16 %v3105, %v3101
        %v3286 = vpack.c.b16 %v3106, %v3102
        %v3287 = vpack.c.b16 %v3107, %v3103
        %v3288 = vpack.c.b16 %v3108, %v3104
        %v3289 = vpack.c.b16 %v3113, %v3109
        %v3290 = vpack.c.b16 %v3114, %v3110
        %v3291 = vpack.c.b16 %v3115, %v3111
        %v3292 = vpack.c.b16 %v3116, %v3112
        %v3293 = vpack.c.b16 %v3121, %v3117
        %v3294 = vpack.c.b16 %v3122, %v3118
        %v3295 = vpack.c.b16 %v3123, %v3119
        %v3296 = vpack.c.b16 %v3124, %v3120
        %v3297 = vpack.c.b16 %v3129, %v3125
        %v3298 = vpack.c.b16 %v3130, %v3126
        %v3299 = vpack.c.b16 %v3131, %v3127
        %v3300 = vpack.c.b16 %v3132, %v3128
        %v3301 = vpack.c.b16 %v3137, %v3133
        %v3302 = vpack.c.b16 %v3138, %v3134
        %v3303 = vpack.c.b16 %v3139, %v3135
        %v3304 = vpack.c.b16 %v3140, %v3136
        %v3305 = vpack.c.b16 %v3145, %v3141
        %v3306 = vpack.c.b16 %v3146, %v3142
        %v3307 = vpack.c.b16 %v3147, %v3143
        %v3308 = vpack.c.b16 %v3148, %v3144
        %v3309 = vpack.c.b16 %v3153, %v3149
        %v3310 = vpack.c.b16 %v3154, %v3150
        %v3311 = vpack.c.b16 %v3155, %v3151
        %v3312 = vpack.c.b16 %v3156, %v3152
        %v3313 = vpack.c.b16 %v3161, %v3157
        %v3314 = vpack.c.b16 %v3162, %v3158
        %v3315 = vpack.c.b16 %v3163, %v3159
        %v3316 = vpack.c.b16 %v3164, %v3160
        %v3317 = vpack.c.b16 %v3169, %v3165
        %v3318 = vpack.c.b16 %v3170, %v3166
        %v3319 = vpack.c.b16 %v3171, %v3167
        %v3320 = vpack.c.b16 %v3172, %v3168
        %v3321 = vpack.c.b16 %v3177, %v3173
        %v3322 = vpack.c.b16 %v3178, %v3174
        %v3323 = vpack.c.b16 %v3179, %v3175
        %v3324 = vpack.c.b16 %v3180, %v3176
        %v3325 = vpack.c.b16 %v3185, %v3181
        %v3326 = vpack.c.b16 %v3186, %v3182
        %v3327 = vpack.c.b16 %v3187, %v3183
        %v3328 = vpack.c.b16 %v3188, %v3184
        %v3329 = vpack.c.b16 %v3193, %v3189
        %v3330 = vpack.c.b16 %v3194, %v3190
        %v3331 = vpack.c.b16 %v3195, %v3191
        %v3332 = vpack.c.b16 %v3196, %v3192
        %v3333 = vpack.c.b16 %v3201, %v3197
        %v3334 = vpack.c.b16 %v3202, %v3198
        %v3335 = vpack.c.b16 %v3203, %v3199
        %v3336 = vpack.c.b16 %v3204, %v3200
        %v3337 = vpack.c.b16 %v3209, %v3205
        %v3338 = vpack.c.b16 %v3210, %v3206
        %v3339 = vpack.c.b16 %v3211, %v3207
        %v3340 = vpack.c.b16 %v3212, %v3208
        %3469 = vmatprep.subr.bf16.mxu0 %v3214
        %3470 = vmatpush1.bf16.msra.mxu0 %v3213
        %3471 = vmatprep.subr.bf16.mxu0 %v3218
        %3472 = vmatpush1.bf16.msra.mxu0 %v3217
        %3473 = vmatprep.subr.bf16.mxu0 %v3222
        %3474 = vmatpush1.bf16.msra.mxu0 %v3221
        %3475 = vmatprep.subr.bf16.mxu0 %v3226
        %3476 = vmatpush1.bf16.msra.mxu0 %v3225
        %3477 = vmatprep.subr.bf16.mxu0 %v3230
        %3478 = vmatpush1.bf16.msra.mxu0 %v3229
        %3479 = vmatprep.subr.bf16.mxu0 %v3234
        %3480 = vmatpush1.bf16.msra.mxu0 %v3233
        %3481 = vmatprep.subr.bf16.mxu0 %v3238
        %3482 = vmatpush1.bf16.msra.mxu0 %v3237
        %3483 = vmatprep.subr.bf16.mxu0 %v3242
        %3484 = vmatpush1.bf16.msra.mxu0 %v3241
        %3485 = vmatprep.subr.bf16.mxu0 %v3246
        %3486 = vmatpush1.bf16.msra.mxu0 %v3245
        %3487 = vmatprep.subr.bf16.mxu0 %v3250
        %3488 = vmatpush1.bf16.msra.mxu0 %v3249
        %3489 = vmatprep.subr.bf16.mxu0 %v3254
        %3490 = vmatpush1.bf16.msra.mxu0 %v3253
        %3491 = vmatprep.subr.bf16.mxu0 %v3258
        %3492 = vmatpush1.bf16.msra.mxu0 %v3257
        %3493 = vmatprep.subr.bf16.mxu0 %v3262
        %3494 = vmatpush1.bf16.msra.mxu0 %v3261
        %3495 = vmatprep.subr.bf16.mxu0 %v3266
        %3496 = vmatpush1.bf16.msra.mxu0 %v3265
        %3497 = vmatprep.subr.bf16.mxu0 %v3270
        %3498 = vmatpush1.bf16.msra.mxu0 %v3269
        %3499 = vmatprep.subr.bf16.mxu0 %v3274
        %3500 = vmatpush1.bf16.msra.mxu0 %v3273
        %3501 = vmatprep.mubr.bf16.mxu0 %v1757
        %3502 = vmatmul.mubr.bf16.gmra.mrb[0].mxu0 %v1756
        %v3503 = vpop.f32.mrb[0].mxu0
        %v3504 = vadd.f32 %v2735, %v3503
        %v3505 = vpop.f32.mrb[0].mxu0
        %v3506 = vadd.f32 %v2737, %v3505
        %v3507 = vpop.f32.mrb[0].mxu0
        %v3508 = vadd.f32 %v2739, %v3507
        %v3509 = vpop.f32.mrb[0].mxu0
        %v3510 = vadd.f32 %v2741, %v3509
        %3511 = vdwg.mxu0
        %3512 = vmatprep.subr.bf16.mxu0 %v3278
        %3513 = vmatpush1.bf16.msra.mxu0 %v3277
        %3514 = vmatprep.subr.bf16.mxu0 %v3282
        %3515 = vmatpush1.bf16.msra.mxu0 %v3281
        %3516 = vmatprep.subr.bf16.mxu0 %v3286
        %3517 = vmatpush1.bf16.msra.mxu0 %v3285
        %3518 = vmatprep.subr.bf16.mxu0 %v3290
        %3519 = vmatpush1.bf16.msra.mxu0 %v3289
        %3520 = vmatprep.subr.bf16.mxu0 %v3294
        %3521 = vmatpush1.bf16.msra.mxu0 %v3293
        %3522 = vmatprep.subr.bf16.mxu0 %v3298
        %3523 = vmatpush1.bf16.msra.mxu0 %v3297
        %3524 = vmatprep.subr.bf16.mxu0 %v3302
        %3525 = vmatpush1.bf16.msra.mxu0 %v3301
        %3526 = vmatprep.subr.bf16.mxu0 %v3306
        %3527 = vmatpush1.bf16.msra.mxu0 %v3305
        %3528 = vmatprep.subr.bf16.mxu0 %v3310
        %3529 = vmatpush1.bf16.msra.mxu0 %v3309
        %3530 = vmatprep.subr.bf16.mxu0 %v3314
        %3531 = vmatpush1.bf16.msra.mxu0 %v3313
        %3532 = vmatprep.subr.bf16.mxu0 %v3318
        %3533 = vmatpush1.bf16.msra.mxu0 %v3317
        %3534 = vmatprep.subr.bf16.mxu0 %v3322
        %3535 = vmatpush1.bf16.msra.mxu0 %v3321
        %3536 = vmatprep.subr.bf16.mxu0 %v3326
        %3537 = vmatpush1.bf16.msra.mxu0 %v3325
        %3538 = vmatprep.subr.bf16.mxu0 %v3330
        %3539 = vmatpush1.bf16.msra.mxu0 %v3329
        %3540 = vmatprep.subr.bf16.mxu0 %v3334
        %3541 = vmatpush1.bf16.msra.mxu0 %v3333
        %3542 = vmatprep.subr.bf16.mxu0 %v3338
        %3543 = vmatpush1.bf16.msra.mxu0 %v3337
        %3544 = vmatprep.mubr.bf16.mxu0 %v1759
        %3545 = vmatmul.mubr.bf16.gmra.mrb[0].mxu0 %v1758
        %v3546 = vpop.f32.mrb[0].mxu0
        %v3547 = vadd.f32 %v3504, %v3546
        %v3548 = vpop.f32.mrb[0].mxu0
        %v3549 = vadd.f32 %v3506, %v3548
        %v3550 = vpop.f32.mrb[0].mxu0
        %v3551 = vadd.f32 %v3508, %v3550
        %v3552 = vpop.f32.mrb[0].mxu0
        %v3553 = vadd.f32 %v3510, %v3552
        %3554 = vdwg.mxu0
        %3555 = vmatprep.subr.bf16.mxu0 %v3216
        %3556 = vmatpush1.bf16.msra.mxu0 %v3215
        %3557 = vmatprep.subr.bf16.mxu0 %v3220
        %3558 = vmatpush1.bf16.msra.mxu0 %v3219
        %3559 = vmatprep.subr.bf16.mxu0 %v3224
        %3560 = vmatpush1.bf16.msra.mxu0 %v3223
        %3561 = vmatprep.subr.bf16.mxu0 %v3228
        %3562 = vmatpush1.bf16.msra.mxu0 %v3227
        %3563 = vmatprep.subr.bf16.mxu0 %v3232
        %3564 = vmatpush1.bf16.msra.mxu0 %v3231
        %3565 = vmatprep.subr.bf16.mxu0 %v3236
        %3566 = vmatpush1.bf16.msra.mxu0 %v3235
        %3567 = vmatprep.subr.bf16.mxu0 %v3240
        %3568 = vmatpush1.bf16.msra.mxu0 %v3239
        %3569 = vmatprep.subr.bf16.mxu0 %v3244
        %3570 = vmatpush1.bf16.msra.mxu0 %v3243
        %3571 = vmatprep.subr.bf16.mxu0 %v3248
        %3572 = vmatpush1.bf16.msra.mxu0 %v3247
        %3573 = vmatprep.subr.bf16.mxu0 %v3252
        %3574 = vmatpush1.bf16.msra.mxu0 %v3251
        %3575 = vmatprep.subr.bf16.mxu0 %v3256
        %3576 = vmatpush1.bf16.msra.mxu0 %v3255
        %3577 = vmatprep.subr.bf16.mxu0 %v3260
        %3578 = vmatpush1.bf16.msra.mxu0 %v3259
        %3579 = vmatprep.subr.bf16.mxu0 %v3264
        %3580 = vmatpush1.bf16.msra.mxu0 %v3263
        %3581 = vmatprep.subr.bf16.mxu0 %v3268
        %3582 = vmatpush1.bf16.msra.mxu0 %v3267
        %3583 = vmatprep.subr.bf16.mxu0 %v3272
        %3584 = vmatpush1.bf16.msra.mxu0 %v3271
        %3585 = vmatprep.subr.bf16.mxu0 %v3276
        %3586 = vmatpush1.bf16.msra.mxu0 %v3275
        %3587 = vmatprep.mubr.bf16.mxu0 %v1757
        %3588 = vmatmul.mubr.bf16.gmra.mrb[0].mxu0 %v1756
        %v3589 = vpop.f32.mrb[0].mxu0
        %v3590 = vadd.f32 %v2821, %v3589
        %v3591 = vpop.f32.mrb[0].mxu0
        %v3592 = vadd.f32 %v2823, %v3591
        %v3593 = vpop.f32.mrb[0].mxu0
        %v3594 = vadd.f32 %v2825, %v3593
        %v3595 = vpop.f32.mrb[0].mxu0
        %v3596 = vadd.f32 %v2827, %v3595
        %3597 = vdwg.mxu0
        %3598 = vmatprep.subr.bf16.mxu0 %v3280
        %3599 = vmatpush1.bf16.msra.mxu0 %v3279
        %3600 = vmatprep.subr.bf16.mxu0 %v3284
        %3601 = vmatpush1.bf16.msra.mxu0 %v3283
        %3602 = vmatprep.subr.bf16.mxu0 %v3288
        %3603 = vmatpush1.bf16.msra.mxu0 %v3287
        %3604 = vmatprep.subr.bf16.mxu0 %v3292
        %3605 = vmatpush1.bf16.msra.mxu0 %v3291
        %3606 = vmatprep.subr.bf16.mxu0 %v3296
        %3607 = vmatpush1.bf16.msra.mxu0 %v3295
        %3608 = vmatprep.subr.bf16.mxu0 %v3300
        %3609 = vmatpush1.bf16.msra.mxu0 %v3299
        %3610 = vmatprep.subr.bf16.mxu0 %v3304
        %3611 = vmatpush1.bf16.msra.mxu0 %v3303
        %3612 = vmatprep.subr.bf16.mxu0 %v3308
        %3613 = vmatpush1.bf16.msra.mxu0 %v3307
        %3614 = vmatprep.subr.bf16.mxu0 %v3312
        %3615 = vmatpush1.bf16.msra.mxu0 %v3311
        %3616 = vmatprep.subr.bf16.mxu0 %v3316
        %3617 = vmatpush1.bf16.msra.mxu0 %v3315
        %3618 = vmatprep.subr.bf16.mxu0 %v3320
        %3619 = vmatpush1.bf16.msra.mxu0 %v3319
        %3620 = vmatprep.subr.bf16.mxu0 %v3324
        %3621 = vmatpush1.bf16.msra.mxu0 %v3323
        %3622 = vmatprep.subr.bf16.mxu0 %v3328
        %3623 = vmatpush1.bf16.msra.mxu0 %v3327
        %3624 = vmatprep.subr.bf16.mxu0 %v3332
        %3625 = vmatpush1.bf16.msra.mxu0 %v3331
        %3626 = vmatprep.subr.bf16.mxu0 %v3336
        %3627 = vmatpush1.bf16.msra.mxu0 %v3335
        %3628 = vmatprep.subr.bf16.mxu0 %v3340
        %3629 = vmatpush1.bf16.msra.mxu0 %v3339
        %3630 = vmatprep.mubr.bf16.mxu0 %v1759
        %3631 = vmatmul.mubr.bf16.gmra.mrb[0].mxu0 %v1758
        %v3632 = vpop.f32.mrb[0].mxu0
        %v3633 = vadd.f32 %v3590, %v3632
        %v3634 = vpop.f32.mrb[0].mxu0
        %v3635 = vadd.f32 %v3592, %v3634
        %v3636 = vpop.f32.mrb[0].mxu0
        %v3637 = vadd.f32 %v3594, %v3636
        %v3638 = vpop.f32.mrb[0].mxu0
        %v3639 = vadd.f32 %v3596, %v3638
        %3640 = vdwg.mxu0
        %s3641 = scalar_lea.vmem [#allocation7], 2048
        %v3642 = vld [vmem:[%s3641] sm:$0xff]
        %v3643 = vld [vmem:[%s3641 + $0x8] sm:$0xff]
        %v3644 = vld [vmem:[%s3641 + $0x10] sm:$0xff]
        %v3645 = vld [vmem:[%s3641 + $0x18] sm:$0xff]
        %v3646 = vld [vmem:[%s3641 + $0x20] sm:$0xff]
        %v3647 = vld [vmem:[%s3641 + $0x28] sm:$0xff]
        %v3648 = vld [vmem:[%s3641 + $0x30] sm:$0xff]
        %v3649 = vld [vmem:[%s3641 + $0x38] sm:$0xff]
        %v3650 = vld [vmem:[%s3641 + $0x40] sm:$0xff]
        %v3651 = vld [vmem:[%s3641 + $0x48] sm:$0xff]
        %v3652 = vld [vmem:[%s3641 + $0x50] sm:$0xff]
        %v3653 = vld [vmem:[%s3641 + $0x58] sm:$0xff]
        %v3654 = vld [vmem:[%s3641 + $0x60] sm:$0xff]
        %v3655 = vld [vmem:[%s3641 + $0x68] sm:$0xff]
        %v3656 = vld [vmem:[%s3641 + $0x70] sm:$0xff]
        %v3657 = vld [vmem:[%s3641 + $0x78] sm:$0xff]
        %v3658 = vld [vmem:[%s3641 + $0x80] sm:$0xff]
        %v3659 = vld [vmem:[%s3641 + $0x88] sm:$0xff]
        %v3660 = vld [vmem:[%s3641 + $0x90] sm:$0xff]
        %v3661 = vld [vmem:[%s3641 + $0x98] sm:$0xff]
        %v3662 = vld [vmem:[%s3641 + $0xa0] sm:$0xff]
        %v3663 = vld [vmem:[%s3641 + $0xa8] sm:$0xff]
        %v3664 = vld [vmem:[%s3641 + $0xb0] sm:$0xff]
        %v3665 = vld [vmem:[%s3641 + $0xb8] sm:$0xff]
        %v3666 = vld [vmem:[%s3641 + $0xc0] sm:$0xff]
        %v3667 = vld [vmem:[%s3641 + $0xc8] sm:$0xff]
        %v3668 = vld [vmem:[%s3641 + $0xd0] sm:$0xff]
        %v3669 = vld [vmem:[%s3641 + $0xd8] sm:$0xff]
        %v3670 = vld [vmem:[%s3641 + $0xe0] sm:$0xff]
        %v3671 = vld [vmem:[%s3641 + $0xe8] sm:$0xff]
        %v3672 = vld [vmem:[%s3641 + $0xf0] sm:$0xff]
        %v3673 = vld [vmem:[%s3641 + $0xf8] sm:$0xff]
        %v3674 = vld [vmem:[%s3641 + $0x100] sm:$0xff]
        %v3675 = vld [vmem:[%s3641 + $0x108] sm:$0xff]
        %v3676 = vld [vmem:[%s3641 + $0x110] sm:$0xff]
        %v3677 = vld [vmem:[%s3641 + $0x118] sm:$0xff]
        %v3678 = vld [vmem:[%s3641 + $0x120] sm:$0xff]
        %v3679 = vld [vmem:[%s3641 + $0x128] sm:$0xff]
        %v3680 = vld [vmem:[%s3641 + $0x130] sm:$0xff]
        %v3681 = vld [vmem:[%s3641 + $0x138] sm:$0xff]
        %v3682 = vld [vmem:[%s3641 + $0x140] sm:$0xff]
        %v3683 = vld [vmem:[%s3641 + $0x148] sm:$0xff]
        %v3684 = vld [vmem:[%s3641 + $0x150] sm:$0xff]
        %v3685 = vld [vmem:[%s3641 + $0x158] sm:$0xff]
        %v3686 = vld [vmem:[%s3641 + $0x160] sm:$0xff]
        %v3687 = vld [vmem:[%s3641 + $0x168] sm:$0xff]
        %v3688 = vld [vmem:[%s3641 + $0x170] sm:$0xff]
        %v3689 = vld [vmem:[%s3641 + $0x178] sm:$0xff]
        %v3690 = vld [vmem:[%s3641 + $0x180] sm:$0xff]
        %v3691 = vld [vmem:[%s3641 + $0x188] sm:$0xff]
        %v3692 = vld [vmem:[%s3641 + $0x190] sm:$0xff]
        %v3693 = vld [vmem:[%s3641 + $0x198] sm:$0xff]
        %v3694 = vld [vmem:[%s3641 + $0x1a0] sm:$0xff]
        %v3695 = vld [vmem:[%s3641 + $0x1a8] sm:$0xff]
        %v3696 = vld [vmem:[%s3641 + $0x1b0] sm:$0xff]
        %v3697 = vld [vmem:[%s3641 + $0x1b8] sm:$0xff]
        %v3698 = vld [vmem:[%s3641 + $0x1c0] sm:$0xff]
        %v3699 = vld [vmem:[%s3641 + $0x1c8] sm:$0xff]
        %v3700 = vld [vmem:[%s3641 + $0x1d0] sm:$0xff]
        %v3701 = vld [vmem:[%s3641 + $0x1d8] sm:$0xff]
        %v3702 = vld [vmem:[%s3641 + $0x1e0] sm:$0xff]
        %v3703 = vld [vmem:[%s3641 + $0x1e8] sm:$0xff]
        %v3704 = vld [vmem:[%s3641 + $0x1f0] sm:$0xff]
        %v3705 = vld [vmem:[%s3641 + $0x1f8] sm:$0xff]
        %v3706 = vld [vmem:[%s3641 + $0x200] sm:$0xff]
        %v3707 = vld [vmem:[%s3641 + $0x208] sm:$0xff]
        %v3708 = vld [vmem:[%s3641 + $0x210] sm:$0xff]
        %v3709 = vld [vmem:[%s3641 + $0x218] sm:$0xff]
        %v3710 = vld [vmem:[%s3641 + $0x220] sm:$0xff]
        %v3711 = vld [vmem:[%s3641 + $0x228] sm:$0xff]
        %v3712 = vld [vmem:[%s3641 + $0x230] sm:$0xff]
        %v3713 = vld [vmem:[%s3641 + $0x238] sm:$0xff]
        %v3714 = vld [vmem:[%s3641 + $0x240] sm:$0xff]
        %v3715 = vld [vmem:[%s3641 + $0x248] sm:$0xff]
        %v3716 = vld [vmem:[%s3641 + $0x250] sm:$0xff]
        %v3717 = vld [vmem:[%s3641 + $0x258] sm:$0xff]
        %v3718 = vld [vmem:[%s3641 + $0x260] sm:$0xff]
        %v3719 = vld [vmem:[%s3641 + $0x268] sm:$0xff]
        %v3720 = vld [vmem:[%s3641 + $0x270] sm:$0xff]
        %v3721 = vld [vmem:[%s3641 + $0x278] sm:$0xff]
        %v3722 = vld [vmem:[%s3641 + $0x280] sm:$0xff]
        %v3723 = vld [vmem:[%s3641 + $0x288] sm:$0xff]
        %v3724 = vld [vmem:[%s3641 + $0x290] sm:$0xff]
        %v3725 = vld [vmem:[%s3641 + $0x298] sm:$0xff]
        %v3726 = vld [vmem:[%s3641 + $0x2a0] sm:$0xff]
        %v3727 = vld [vmem:[%s3641 + $0x2a8] sm:$0xff]
        %v3728 = vld [vmem:[%s3641 + $0x2b0] sm:$0xff]
        %v3729 = vld [vmem:[%s3641 + $0x2b8] sm:$0xff]
        %v3730 = vld [vmem:[%s3641 + $0x2c0] sm:$0xff]
        %v3731 = vld [vmem:[%s3641 + $0x2c8] sm:$0xff]
        %v3732 = vld [vmem:[%s3641 + $0x2d0] sm:$0xff]
        %v3733 = vld [vmem:[%s3641 + $0x2d8] sm:$0xff]
        %v3734 = vld [vmem:[%s3641 + $0x2e0] sm:$0xff]
        %v3735 = vld [vmem:[%s3641 + $0x2e8] sm:$0xff]
        %v3736 = vld [vmem:[%s3641 + $0x2f0] sm:$0xff]
        %v3737 = vld [vmem:[%s3641 + $0x2f8] sm:$0xff]
        %v3738 = vld [vmem:[%s3641 + $0x300] sm:$0xff]
        %v3739 = vld [vmem:[%s3641 + $0x308] sm:$0xff]
        %v3740 = vld [vmem:[%s3641 + $0x310] sm:$0xff]
        %v3741 = vld [vmem:[%s3641 + $0x318] sm:$0xff]
        %v3742 = vld [vmem:[%s3641 + $0x320] sm:$0xff]
        %v3743 = vld [vmem:[%s3641 + $0x328] sm:$0xff]
        %v3744 = vld [vmem:[%s3641 + $0x330] sm:$0xff]
        %v3745 = vld [vmem:[%s3641 + $0x338] sm:$0xff]
        %v3746 = vld [vmem:[%s3641 + $0x340] sm:$0xff]
        %v3747 = vld [vmem:[%s3641 + $0x348] sm:$0xff]
        %v3748 = vld [vmem:[%s3641 + $0x350] sm:$0xff]
        %v3749 = vld [vmem:[%s3641 + $0x358] sm:$0xff]
        %v3750 = vld [vmem:[%s3641 + $0x360] sm:$0xff]
        %v3751 = vld [vmem:[%s3641 + $0x368] sm:$0xff]
        %v3752 = vld [vmem:[%s3641 + $0x370] sm:$0xff]
        %v3753 = vld [vmem:[%s3641 + $0x378] sm:$0xff]
        %v3754 = vld [vmem:[%s3641 + $0x380] sm:$0xff]
        %v3755 = vld [vmem:[%s3641 + $0x388] sm:$0xff]
        %v3756 = vld [vmem:[%s3641 + $0x390] sm:$0xff]
        %v3757 = vld [vmem:[%s3641 + $0x398] sm:$0xff]
        %v3758 = vld [vmem:[%s3641 + $0x3a0] sm:$0xff]
        %v3759 = vld [vmem:[%s3641 + $0x3a8] sm:$0xff]
        %v3760 = vld [vmem:[%s3641 + $0x3b0] sm:$0xff]
        %v3761 = vld [vmem:[%s3641 + $0x3b8] sm:$0xff]
        %v3762 = vld [vmem:[%s3641 + $0x3c0] sm:$0xff]
        %v3763 = vld [vmem:[%s3641 + $0x3c8] sm:$0xff]
        %v3764 = vld [vmem:[%s3641 + $0x3d0] sm:$0xff]
        %v3765 = vld [vmem:[%s3641 + $0x3d8] sm:$0xff]
        %v3766 = vld [vmem:[%s3641 + $0x3e0] sm:$0xff]
        %v3767 = vld [vmem:[%s3641 + $0x3e8] sm:$0xff]
        %v3768 = vld [vmem:[%s3641 + $0x3f0] sm:$0xff]
        %v3769 = vld [vmem:[%s3641 + $0x3f8] sm:$0xff]
        %v3898 = vunpack.c.l.b16 %v3642
        %v3899 = vunpack.c.h.b16 %v3642
        %v3900 = vunpack.c.l.b16 %v3643
        %v3901 = vunpack.c.h.b16 %v3643
        %v3902 = vunpack.c.l.b16 %v3644
        %v3903 = vunpack.c.h.b16 %v3644
        %v3904 = vunpack.c.l.b16 %v3645
        %v3905 = vunpack.c.h.b16 %v3645
        %v3906 = vunpack.c.l.b16 %v3646
        %v3907 = vunpack.c.h.b16 %v3646
        %v3908 = vunpack.c.l.b16 %v3647
        %v3909 = vunpack.c.h.b16 %v3647
        %v3910 = vunpack.c.l.b16 %v3648
        %v3911 = vunpack.c.h.b16 %v3648
        %v3912 = vunpack.c.l.b16 %v3649
        %v3913 = vunpack.c.h.b16 %v3649
        %v3914 = vunpack.c.l.b16 %v3650
        %v3915 = vunpack.c.h.b16 %v3650
        %v3916 = vunpack.c.l.b16 %v3651
        %v3917 = vunpack.c.h.b16 %v3651
        %v3918 = vunpack.c.l.b16 %v3652
        %v3919 = vunpack.c.h.b16 %v3652
        %v3920 = vunpack.c.l.b16 %v3653
        %v3921 = vunpack.c.h.b16 %v3653
        %v3922 = vunpack.c.l.b16 %v3654
        %v3923 = vunpack.c.h.b16 %v3654
        %v3924 = vunpack.c.l.b16 %v3655
        %v3925 = vunpack.c.h.b16 %v3655
        %v3926 = vunpack.c.l.b16 %v3656
        %v3927 = vunpack.c.h.b16 %v3656
        %v3928 = vunpack.c.l.b16 %v3657
        %v3929 = vunpack.c.h.b16 %v3657
        %v3930 = vunpack.c.l.b16 %v3658
        %v3931 = vunpack.c.h.b16 %v3658
        %v3932 = vunpack.c.l.b16 %v3659
        %v3933 = vunpack.c.h.b16 %v3659
        %v3934 = vunpack.c.l.b16 %v3660
        %v3935 = vunpack.c.h.b16 %v3660
        %v3936 = vunpack.c.l.b16 %v3661
        %v3937 = vunpack.c.h.b16 %v3661
        %v3938 = vunpack.c.l.b16 %v3662
        %v3939 = vunpack.c.h.b16 %v3662
        %v3940 = vunpack.c.l.b16 %v3663
        %v3941 = vunpack.c.h.b16 %v3663
        %v3942 = vunpack.c.l.b16 %v3664
        %v3943 = vunpack.c.h.b16 %v3664
        %v3944 = vunpack.c.l.b16 %v3665
        %v3945 = vunpack.c.h.b16 %v3665
        %v3946 = vunpack.c.l.b16 %v3666
        %v3947 = vunpack.c.h.b16 %v3666
        %v3948 = vunpack.c.l.b16 %v3667
        %v3949 = vunpack.c.h.b16 %v3667
        %v3950 = vunpack.c.l.b16 %v3668
        %v3951 = vunpack.c.h.b16 %v3668
        %v3952 = vunpack.c.l.b16 %v3669
        %v3953 = vunpack.c.h.b16 %v3669
        %v3954 = vunpack.c.l.b16 %v3670
        %v3955 = vunpack.c.h.b16 %v3670
        %v3956 = vunpack.c.l.b16 %v3671
        %v3957 = vunpack.c.h.b16 %v3671
        %v3958 = vunpack.c.l.b16 %v3672
        %v3959 = vunpack.c.h.b16 %v3672
        %v3960 = vunpack.c.l.b16 %v3673
        %v3961 = vunpack.c.h.b16 %v3673
        %v3962 = vunpack.c.l.b16 %v3674
        %v3963 = vunpack.c.h.b16 %v3674
        %v3964 = vunpack.c.l.b16 %v3675
        %v3965 = vunpack.c.h.b16 %v3675
        %v3966 = vunpack.c.l.b16 %v3676
        %v3967 = vunpack.c.h.b16 %v3676
        %v3968 = vunpack.c.l.b16 %v3677
        %v3969 = vunpack.c.h.b16 %v3677
        %v3970 = vunpack.c.l.b16 %v3678
        %v3971 = vunpack.c.h.b16 %v3678
        %v3972 = vunpack.c.l.b16 %v3679
        %v3973 = vunpack.c.h.b16 %v3679
        %v3974 = vunpack.c.l.b16 %v3680
        %v3975 = vunpack.c.h.b16 %v3680
        %v3976 = vunpack.c.l.b16 %v3681
        %v3977 = vunpack.c.h.b16 %v3681
        %v3978 = vunpack.c.l.b16 %v3682
        %v3979 = vunpack.c.h.b16 %v3682
        %v3980 = vunpack.c.l.b16 %v3683
        %v3981 = vunpack.c.h.b16 %v3683
        %v3982 = vunpack.c.l.b16 %v3684
        %v3983 = vunpack.c.h.b16 %v3684
        %v3984 = vunpack.c.l.b16 %v3685
        %v3985 = vunpack.c.h.b16 %v3685
        %v3986 = vunpack.c.l.b16 %v3686
        %v3987 = vunpack.c.h.b16 %v3686
        %v3988 = vunpack.c.l.b16 %v3687
        %v3989 = vunpack.c.h.b16 %v3687
        %v3990 = vunpack.c.l.b16 %v3688
        %v3991 = vunpack.c.h.b16 %v3688
        %v3992 = vunpack.c.l.b16 %v3689
        %v3993 = vunpack.c.h.b16 %v3689
        %v3994 = vunpack.c.l.b16 %v3690
        %v3995 = vunpack.c.h.b16 %v3690
        %v3996 = vunpack.c.l.b16 %v3691
        %v3997 = vunpack.c.h.b16 %v3691
        %v3998 = vunpack.c.l.b16 %v3692
        %v3999 = vunpack.c.h.b16 %v3692
        %v4000 = vunpack.c.l.b16 %v3693
        %v4001 = vunpack.c.h.b16 %v3693
        %v4002 = vunpack.c.l.b16 %v3694
        %v4003 = vunpack.c.h.b16 %v3694
        %v4004 = vunpack.c.l.b16 %v3695
        %v4005 = vunpack.c.h.b16 %v3695
        %v4006 = vunpack.c.l.b16 %v3696
        %v4007 = vunpack.c.h.b16 %v3696
        %v4008 = vunpack.c.l.b16 %v3697
        %v4009 = vunpack.c.h.b16 %v3697
        %v4010 = vunpack.c.l.b16 %v3698
        %v4011 = vunpack.c.h.b16 %v3698
        %v4012 = vunpack.c.l.b16 %v3699
        %v4013 = vunpack.c.h.b16 %v3699
        %v4014 = vunpack.c.l.b16 %v3700
        %v4015 = vunpack.c.h.b16 %v3700
        %v4016 = vunpack.c.l.b16 %v3701
        %v4017 = vunpack.c.h.b16 %v3701
        %v4018 = vunpack.c.l.b16 %v3702
        %v4019 = vunpack.c.h.b16 %v3702
        %v4020 = vunpack.c.l.b16 %v3703
        %v4021 = vunpack.c.h.b16 %v3703
        %v4022 = vunpack.c.l.b16 %v3704
        %v4023 = vunpack.c.h.b16 %v3704
        %v4024 = vunpack.c.l.b16 %v3705
        %v4025 = vunpack.c.h.b16 %v3705
        %v4026 = vunpack.c.l.b16 %v3706
        %v4027 = vunpack.c.h.b16 %v3706
        %v4028 = vunpack.c.l.b16 %v3707
        %v4029 = vunpack.c.h.b16 %v3707
        %v4030 = vunpack.c.l.b16 %v3708
        %v4031 = vunpack.c.h.b16 %v3708
        %v4032 = vunpack.c.l.b16 %v3709
        %v4033 = vunpack.c.h.b16 %v3709
        %v4034 = vunpack.c.l.b16 %v3710
        %v4035 = vunpack.c.h.b16 %v3710
        %v4036 = vunpack.c.l.b16 %v3711
        %v4037 = vunpack.c.h.b16 %v3711
        %v4038 = vunpack.c.l.b16 %v3712
        %v4039 = vunpack.c.h.b16 %v3712
        %v4040 = vunpack.c.l.b16 %v3713
        %v4041 = vunpack.c.h.b16 %v3713
        %v4042 = vunpack.c.l.b16 %v3714
        %v4043 = vunpack.c.h.b16 %v3714
        %v4044 = vunpack.c.l.b16 %v3715
        %v4045 = vunpack.c.h.b16 %v3715
        %v4046 = vunpack.c.l.b16 %v3716
        %v4047 = vunpack.c.h.b16 %v3716
        %v4048 = vunpack.c.l.b16 %v3717
        %v4049 = vunpack.c.h.b16 %v3717
        %v4050 = vunpack.c.l.b16 %v3718
        %v4051 = vunpack.c.h.b16 %v3718
        %v4052 = vunpack.c.l.b16 %v3719
        %v4053 = vunpack.c.h.b16 %v3719
        %v4054 = vunpack.c.l.b16 %v3720
        %v4055 = vunpack.c.h.b16 %v3720
        %v4056 = vunpack.c.l.b16 %v3721
        %v4057 = vunpack.c.h.b16 %v3721
        %v4058 = vunpack.c.l.b16 %v3722
        %v4059 = vunpack.c.h.b16 %v3722
        %v4060 = vunpack.c.l.b16 %v3723
        %v4061 = vunpack.c.h.b16 %v3723
        %v4062 = vunpack.c.l.b16 %v3724
        %v4063 = vunpack.c.h.b16 %v3724
        %v4064 = vunpack.c.l.b16 %v3725
        %v4065 = vunpack.c.h.b16 %v3725
        %v4066 = vunpack.c.l.b16 %v3726
        %v4067 = vunpack.c.h.b16 %v3726
        %v4068 = vunpack.c.l.b16 %v3727
        %v4069 = vunpack.c.h.b16 %v3727
        %v4070 = vunpack.c.l.b16 %v3728
        %v4071 = vunpack.c.h.b16 %v3728
        %v4072 = vunpack.c.l.b16 %v3729
        %v4073 = vunpack.c.h.b16 %v3729
        %v4074 = vunpack.c.l.b16 %v3730
        %v4075 = vunpack.c.h.b16 %v3730
        %v4076 = vunpack.c.l.b16 %v3731
        %v4077 = vunpack.c.h.b16 %v3731
        %v4078 = vunpack.c.l.b16 %v3732
        %v4079 = vunpack.c.h.b16 %v3732
        %v4080 = vunpack.c.l.b16 %v3733
        %v4081 = vunpack.c.h.b16 %v3733
        %v4082 = vunpack.c.l.b16 %v3734
        %v4083 = vunpack.c.h.b16 %v3734
        %v4084 = vunpack.c.l.b16 %v3735
        %v4085 = vunpack.c.h.b16 %v3735
        %v4086 = vunpack.c.l.b16 %v3736
        %v4087 = vunpack.c.h.b16 %v3736
        %v4088 = vunpack.c.l.b16 %v3737
        %v4089 = vunpack.c.h.b16 %v3737
        %v4090 = vunpack.c.l.b16 %v3738
        %v4091 = vunpack.c.h.b16 %v3738
        %v4092 = vunpack.c.l.b16 %v3739
        %v4093 = vunpack.c.h.b16 %v3739
        %v4094 = vunpack.c.l.b16 %v3740
        %v4095 = vunpack.c.h.b16 %v3740
        %v4096 = vunpack.c.l.b16 %v3741
        %v4097 = vunpack.c.h.b16 %v3741
        %v4098 = vunpack.c.l.b16 %v3742
        %v4099 = vunpack.c.h.b16 %v3742
        %v4100 = vunpack.c.l.b16 %v3743
        %v4101 = vunpack.c.h.b16 %v3743
        %v4102 = vunpack.c.l.b16 %v3744
        %v4103 = vunpack.c.h.b16 %v3744
        %v4104 = vunpack.c.l.b16 %v3745
        %v4105 = vunpack.c.h.b16 %v3745
        %v4106 = vunpack.c.l.b16 %v3746
        %v4107 = vunpack.c.h.b16 %v3746
        %v4108 = vunpack.c.l.b16 %v3747
        %v4109 = vunpack.c.h.b16 %v3747
        %v4110 = vunpack.c.l.b16 %v3748
        %v4111 = vunpack.c.h.b16 %v3748
        %v4112 = vunpack.c.l.b16 %v3749
        %v4113 = vunpack.c.h.b16 %v3749
        %v4114 = vunpack.c.l.b16 %v3750
        %v4115 = vunpack.c.h.b16 %v3750
        %v4116 = vunpack.c.l.b16 %v3751
        %v4117 = vunpack.c.h.b16 %v3751
        %v4118 = vunpack.c.l.b16 %v3752
        %v4119 = vunpack.c.h.b16 %v3752
        %v4120 = vunpack.c.l.b16 %v3753
        %v4121 = vunpack.c.h.b16 %v3753
        %v4122 = vunpack.c.l.b16 %v3754
        %v4123 = vunpack.c.h.b16 %v3754
        %v4124 = vunpack.c.l.b16 %v3755
        %v4125 = vunpack.c.h.b16 %v3755
        %v4126 = vunpack.c.l.b16 %v3756
        %v4127 = vunpack.c.h.b16 %v3756
        %v4128 = vunpack.c.l.b16 %v3757
        %v4129 = vunpack.c.h.b16 %v3757
        %v4130 = vunpack.c.l.b16 %v3758
        %v4131 = vunpack.c.h.b16 %v3758
        %v4132 = vunpack.c.l.b16 %v3759
        %v4133 = vunpack.c.h.b16 %v3759
        %v4134 = vunpack.c.l.b16 %v3760
        %v4135 = vunpack.c.h.b16 %v3760
        %v4136 = vunpack.c.l.b16 %v3761
        %v4137 = vunpack.c.h.b16 %v3761
        %v4138 = vunpack.c.l.b16 %v3762
        %v4139 = vunpack.c.h.b16 %v3762
        %v4140 = vunpack.c.l.b16 %v3763
        %v4141 = vunpack.c.h.b16 %v3763
        %v4142 = vunpack.c.l.b16 %v3764
        %v4143 = vunpack.c.h.b16 %v3764
        %v4144 = vunpack.c.l.b16 %v3765
        %v4145 = vunpack.c.h.b16 %v3765
        %v4146 = vunpack.c.l.b16 %v3766
        %v4147 = vunpack.c.h.b16 %v3766
        %v4148 = vunpack.c.l.b16 %v3767
        %v4149 = vunpack.c.h.b16 %v3767
        %v4150 = vunpack.c.l.b16 %v3768
        %v4151 = vunpack.c.h.b16 %v3768
        %v4152 = vunpack.c.l.b16 %v3769
        %v4153 = vunpack.c.h.b16 %v3769
        %v4154 = vpack.c.b16 %v3902, %v3898
        %v4155 = vpack.c.b16 %v3903, %v3899
        %v4156 = vpack.c.b16 %v3904, %v3900
        %v4157 = vpack.c.b16 %v3905, %v3901
        %v4158 = vpack.c.b16 %v3910, %v3906
        %v4159 = vpack.c.b16 %v3911, %v3907
        %v4160 = vpack.c.b16 %v3912, %v3908
        %v4161 = vpack.c.b16 %v3913, %v3909
        %v4162 = vpack.c.b16 %v3918, %v3914
        %v4163 = vpack.c.b16 %v3919, %v3915
        %v4164 = vpack.c.b16 %v3920, %v3916
        %v4165 = vpack.c.b16 %v3921, %v3917
        %v4166 = vpack.c.b16 %v3926, %v3922
        %v4167 = vpack.c.b16 %v3927, %v3923
        %v4168 = vpack.c.b16 %v3928, %v3924
        %v4169 = vpack.c.b16 %v3929, %v3925
        %v4170 = vpack.c.b16 %v3934, %v3930
        %v4171 = vpack.c.b16 %v3935, %v3931
        %v4172 = vpack.c.b16 %v3936, %v3932
        %v4173 = vpack.c.b16 %v3937, %v3933
        %v4174 = vpack.c.b16 %v3942, %v3938
        %v4175 = vpack.c.b16 %v3943, %v3939
        %v4176 = vpack.c.b16 %v3944, %v3940
        %v4177 = vpack.c.b16 %v3945, %v3941
        %v4178 = vpack.c.b16 %v3950, %v3946
        %v4179 = vpack.c.b16 %v3951, %v3947
        %v4180 = vpack.c.b16 %v3952, %v3948
        %v4181 = vpack.c.b16 %v3953, %v3949
        %v4182 = vpack.c.b16 %v3958, %v3954
        %v4183 = vpack.c.b16 %v3959, %v3955
        %v4184 = vpack.c.b16 %v3960, %v3956
        %v4185 = vpack.c.b16 %v3961, %v3957
        %v4186 = vpack.c.b16 %v3966, %v3962
        %v4187 = vpack.c.b16 %v3967, %v3963
        %v4188 = vpack.c.b16 %v3968, %v3964
        %v4189 = vpack.c.b16 %v3969, %v3965
        %v4190 = vpack.c.b16 %v3974, %v3970
        %v4191 = vpack.c.b16 %v3975, %v3971
        %v4192 = vpack.c.b16 %v3976, %v3972
        %v4193 = vpack.c.b16 %v3977, %v3973
        %v4194 = vpack.c.b16 %v3982, %v3978
        %v4195 = vpack.c.b16 %v3983, %v3979
        %v4196 = vpack.c.b16 %v3984, %v3980
        %v4197 = vpack.c.b16 %v3985, %v3981
        %v4198 = vpack.c.b16 %v3990, %v3986
        %v4199 = vpack.c.b16 %v3991, %v3987
        %v4200 = vpack.c.b16 %v3992, %v3988
        %v4201 = vpack.c.b16 %v3993, %v3989
        %v4202 = vpack.c.b16 %v3998, %v3994
        %v4203 = vpack.c.b16 %v3999, %v3995
        %v4204 = vpack.c.b16 %v4000, %v3996
        %v4205 = vpack.c.b16 %v4001, %v3997
        %v4206 = vpack.c.b16 %v4006, %v4002
        %v4207 = vpack.c.b16 %v4007, %v4003
        %v4208 = vpack.c.b16 %v4008, %v4004
        %v4209 = vpack.c.b16 %v4009, %v4005
        %v4210 = vpack.c.b16 %v4014, %v4010
        %v4211 = vpack.c.b16 %v4015, %v4011
        %v4212 = vpack.c.b16 %v4016, %v4012
        %v4213 = vpack.c.b16 %v4017, %v4013
        %v4214 = vpack.c.b16 %v4022, %v4018
        %v4215 = vpack.c.b16 %v4023, %v4019
        %v4216 = vpack.c.b16 %v4024, %v4020
        %v4217 = vpack.c.b16 %v4025, %v4021
        %v4218 = vpack.c.b16 %v4030, %v4026
        %v4219 = vpack.c.b16 %v4031, %v4027
        %v4220 = vpack.c.b16 %v4032, %v4028
        %v4221 = vpack.c.b16 %v4033, %v4029
        %v4222 = vpack.c.b16 %v4038, %v4034
        %v4223 = vpack.c.b16 %v4039, %v4035
        %v4224 = vpack.c.b16 %v4040, %v4036
        %v4225 = vpack.c.b16 %v4041, %v4037
        %v4226 = vpack.c.b16 %v4046, %v4042
        %v4227 = vpack.c.b16 %v4047, %v4043
        %v4228 = vpack.c.b16 %v4048, %v4044
        %v4229 = vpack.c.b16 %v4049, %v4045
        %v4230 = vpack.c.b16 %v4054, %v4050
        %v4231 = vpack.c.b16 %v4055, %v4051
        %v4232 = vpack.c.b16 %v4056, %v4052
        %v4233 = vpack.c.b16 %v4057, %v4053
        %v4234 = vpack.c.b16 %v4062, %v4058
        %v4235 = vpack.c.b16 %v4063, %v4059
        %v4236 = vpack.c.b16 %v4064, %v4060
        %v4237 = vpack.c.b16 %v4065, %v4061
        %v4238 = vpack.c.b16 %v4070, %v4066
        %v4239 = vpack.c.b16 %v4071, %v4067
        %v4240 = vpack.c.b16 %v4072, %v4068
        %v4241 = vpack.c.b16 %v4073, %v4069
        %v4242 = vpack.c.b16 %v4078, %v4074
        %v4243 = vpack.c.b16 %v4079, %v4075
        %v4244 = vpack.c.b16 %v4080, %v4076
        %v4245 = vpack.c.b16 %v4081, %v4077
        %v4246 = vpack.c.b16 %v4086, %v4082
        %v4247 = vpack.c.b16 %v4087, %v4083
        %v4248 = vpack.c.b16 %v4088, %v4084
        %v4249 = vpack.c.b16 %v4089, %v4085
        %v4250 = vpack.c.b16 %v4094, %v4090
        %v4251 = vpack.c.b16 %v4095, %v4091
        %v4252 = vpack.c.b16 %v4096, %v4092
        %v4253 = vpack.c.b16 %v4097, %v4093
        %v4254 = vpack.c.b16 %v4102, %v4098
        %v4255 = vpack.c.b16 %v4103, %v4099
        %v4256 = vpack.c.b16 %v4104, %v4100
        %v4257 = vpack.c.b16 %v4105, %v4101
        %v4258 = vpack.c.b16 %v4110, %v4106
        %v4259 = vpack.c.b16 %v4111, %v4107
        %v4260 = vpack.c.b16 %v4112, %v4108
        %v4261 = vpack.c.b16 %v4113, %v4109
        %v4262 = vpack.c.b16 %v4118, %v4114
        %v4263 = vpack.c.b16 %v4119, %v4115
        %v4264 = vpack.c.b16 %v4120, %v4116
        %v4265 = vpack.c.b16 %v4121, %v4117
        %v4266 = vpack.c.b16 %v4126, %v4122
        %v4267 = vpack.c.b16 %v4127, %v4123
        %v4268 = vpack.c.b16 %v4128, %v4124
        %v4269 = vpack.c.b16 %v4129, %v4125
        %v4270 = vpack.c.b16 %v4134, %v4130
        %v4271 = vpack.c.b16 %v4135, %v4131
        %v4272 = vpack.c.b16 %v4136, %v4132
        %v4273 = vpack.c.b16 %v4137, %v4133
        %v4274 = vpack.c.b16 %v4142, %v4138
        %v4275 = vpack.c.b16 %v4143, %v4139
        %v4276 = vpack.c.b16 %v4144, %v4140
        %v4277 = vpack.c.b16 %v4145, %v4141
        %v4278 = vpack.c.b16 %v4150, %v4146
        %v4279 = vpack.c.b16 %v4151, %v4147
        %v4280 = vpack.c.b16 %v4152, %v4148
        %v4281 = vpack.c.b16 %v4153, %v4149
        %4410 = vmatprep.subr.bf16.mxu0 %v4155
        %4411 = vmatpush1.bf16.msra.mxu0 %v4154
        %4412 = vmatprep.subr.bf16.mxu0 %v4159
        %4413 = vmatpush1.bf16.msra.mxu0 %v4158
        %4414 = vmatprep.subr.bf16.mxu0 %v4163
        %4415 = vmatpush1.bf16.msra.mxu0 %v4162
        %4416 = vmatprep.subr.bf16.mxu0 %v4167
        %4417 = vmatpush1.bf16.msra.mxu0 %v4166
        %4418 = vmatprep.subr.bf16.mxu0 %v4171
        %4419 = vmatpush1.bf16.msra.mxu0 %v4170
        %4420 = vmatprep.subr.bf16.mxu0 %v4175
        %4421 = vmatpush1.bf16.msra.mxu0 %v4174
        %4422 = vmatprep.subr.bf16.mxu0 %v4179
        %4423 = vmatpush1.bf16.msra.mxu0 %v4178
        %4424 = vmatprep.subr.bf16.mxu0 %v4183
        %4425 = vmatpush1.bf16.msra.mxu0 %v4182
        %4426 = vmatprep.subr.bf16.mxu0 %v4187
        %4427 = vmatpush1.bf16.msra.mxu0 %v4186
        %4428 = vmatprep.subr.bf16.mxu0 %v4191
        %4429 = vmatpush1.bf16.msra.mxu0 %v4190
        %4430 = vmatprep.subr.bf16.mxu0 %v4195
        %4431 = vmatpush1.bf16.msra.mxu0 %v4194
        %4432 = vmatprep.subr.bf16.mxu0 %v4199
        %4433 = vmatpush1.bf16.msra.mxu0 %v4198
        %4434 = vmatprep.subr.bf16.mxu0 %v4203
        %4435 = vmatpush1.bf16.msra.mxu0 %v4202
        %4436 = vmatprep.subr.bf16.mxu0 %v4207
        %4437 = vmatpush1.bf16.msra.mxu0 %v4206
        %4438 = vmatprep.subr.bf16.mxu0 %v4211
        %4439 = vmatpush1.bf16.msra.mxu0 %v4210
        %4440 = vmatprep.subr.bf16.mxu0 %v4215
        %4441 = vmatpush1.bf16.msra.mxu0 %v4214
        %4442 = vmatprep.mubr.bf16.mxu0 %v1721
        %4443 = vmatmul.mubr.bf16.gmra.mrb[0].mxu0 %v1720
        %v4444 = vpop.f32.mrb[0].mxu0
        %v4445 = vadd.f32 0.0, %v4444
        %v4446 = vpop.f32.mrb[0].mxu0
        %v4447 = vadd.f32 0.0, %v4446
        %v4448 = vpop.f32.mrb[0].mxu0
        %v4449 = vadd.f32 0.0, %v4448
        %v4450 = vpop.f32.mrb[0].mxu0
        %v4451 = vadd.f32 0.0, %v4450
        %4452 = vdwg.mxu0
        %4453 = vmatprep.subr.bf16.mxu0 %v4219
        %4454 = vmatpush1.bf16.msra.mxu0 %v4218
        %4455 = vmatprep.subr.bf16.mxu0 %v4223
        %4456 = vmatpush1.bf16.msra.mxu0 %v4222
        %4457 = vmatprep.subr.bf16.mxu0 %v4227
        %4458 = vmatpush1.bf16.msra.mxu0 %v4226
        %4459 = vmatprep.subr.bf16.mxu0 %v4231
        %4460 = vmatpush1.bf16.msra.mxu0 %v4230
        %4461 = vmatprep.subr.bf16.mxu0 %v4235
        %4462 = vmatpush1.bf16.msra.mxu0 %v4234
        %4463 = vmatprep.subr.bf16.mxu0 %v4239
        %4464 = vmatpush1.bf16.msra.mxu0 %v4238
        %4465 = vmatprep.subr.bf16.mxu0 %v4243
        %4466 = vmatpush1.bf16.msra.mxu0 %v4242
        %4467 = vmatprep.subr.bf16.mxu0 %v4247
        %4468 = vmatpush1.bf16.msra.mxu0 %v4246
        %4469 = vmatprep.subr.bf16.mxu0 %v4251
        %4470 = vmatpush1.bf16.msra.mxu0 %v4250
        %4471 = vmatprep.subr.bf16.mxu0 %v4255
        %4472 = vmatpush1.bf16.msra.mxu0 %v4254
        %4473 = vmatprep.subr.bf16.mxu0 %v4259
        %4474 = vmatpush1.bf16.msra.mxu0 %v4258
        %4475 = vmatprep.subr.bf16.mxu0 %v4263
        %4476 = vmatpush1.bf16.msra.mxu0 %v4262
        %4477 = vmatprep.subr.bf16.mxu0 %v4267
        %4478 = vmatpush1.bf16.msra.mxu0 %v4266
        %4479 = vmatprep.subr.bf16.mxu0 %v4271
        %4480 = vmatpush1.bf16.msra.mxu0 %v4270
        %4481 = vmatprep.subr.bf16.mxu0 %v4275
        %4482 = vmatpush1.bf16.msra.mxu0 %v4274
        %4483 = vmatprep.subr.bf16.mxu0 %v4279
        %4484 = vmatpush1.bf16.msra.mxu0 %v4278
        %4485 = vmatprep.mubr.bf16.mxu0 %v1723
        %4486 = vmatmul.mubr.bf16.gmra.mrb[0].mxu0 %v1722
        %v4487 = vpop.f32.mrb[0].mxu0
        %v4488 = vadd.f32 %v4445, %v4487
        %v4489 = vpop.f32.mrb[0].mxu0
        %v4490 = vadd.f32 %v4447, %v4489
        %v4491 = vpop.f32.mrb[0].mxu0
        %v4492 = vadd.f32 %v4449, %v4491
        %v4493 = vpop.f32.mrb[0].mxu0
        %v4494 = vadd.f32 %v4451, %v4493
        %4495 = vdwg.mxu0
        %4496 = vmatprep.subr.bf16.mxu0 %v4157
        %4497 = vmatpush1.bf16.msra.mxu0 %v4156
        %4498 = vmatprep.subr.bf16.mxu0 %v4161
        %4499 = vmatpush1.bf16.msra.mxu0 %v4160
        %4500 = vmatprep.subr.bf16.mxu0 %v4165
        %4501 = vmatpush1.bf16.msra.mxu0 %v4164
        %4502 = vmatprep.subr.bf16.mxu0 %v4169
        %4503 = vmatpush1.bf16.msra.mxu0 %v4168
        %4504 = vmatprep.subr.bf16.mxu0 %v4173
        %4505 = vmatpush1.bf16.msra.mxu0 %v4172
        %4506 = vmatprep.subr.bf16.mxu0 %v4177
        %4507 = vmatpush1.bf16.msra.mxu0 %v4176
        %4508 = vmatprep.subr.bf16.mxu0 %v4181
        %4509 = vmatpush1.bf16.msra.mxu0 %v4180
        %4510 = vmatprep.subr.bf16.mxu0 %v4185
        %4511 = vmatpush1.bf16.msra.mxu0 %v4184
        %4512 = vmatprep.subr.bf16.mxu0 %v4189
        %4513 = vmatpush1.bf16.msra.mxu0 %v4188
        %4514 = vmatprep.subr.bf16.mxu0 %v4193
        %4515 = vmatpush1.bf16.msra.mxu0 %v4192
        %4516 = vmatprep.subr.bf16.mxu0 %v4197
        %4517 = vmatpush1.bf16.msra.mxu0 %v4196
        %4518 = vmatprep.subr.bf16.mxu0 %v4201
        %4519 = vmatpush1.bf16.msra.mxu0 %v4200
        %4520 = vmatprep.subr.bf16.mxu0 %v4205
        %4521 = vmatpush1.bf16.msra.mxu0 %v4204
        %4522 = vmatprep.subr.bf16.mxu0 %v4209
        %4523 = vmatpush1.bf16.msra.mxu0 %v4208
        %4524 = vmatprep.subr.bf16.mxu0 %v4213
        %4525 = vmatpush1.bf16.msra.mxu0 %v4212
        %4526 = vmatprep.subr.bf16.mxu0 %v4217
        %4527 = vmatpush1.bf16.msra.mxu0 %v4216
        %4528 = vmatprep.mubr.bf16.mxu0 %v1721
        %4529 = vmatmul.mubr.bf16.gmra.mrb[0].mxu0 %v1720
        %v4530 = vpop.f32.mrb[0].mxu0
        %v4531 = vadd.f32 0.0, %v4530
        %v4532 = vpop.f32.mrb[0].mxu0
        %v4533 = vadd.f32 0.0, %v4532
        %v4534 = vpop.f32.mrb[0].mxu0
        %v4535 = vadd.f32 0.0, %v4534
        %v4536 = vpop.f32.mrb[0].mxu0
        %v4537 = vadd.f32 0.0, %v4536
        %4538 = vdwg.mxu0
        %4539 = vmatprep.subr.bf16.mxu0 %v4221
        %4540 = vmatpush1.bf16.msra.mxu0 %v4220
        %4541 = vmatprep.subr.bf16.mxu0 %v4225
        %4542 = vmatpush1.bf16.msra.mxu0 %v4224
        %4543 = vmatprep.subr.bf16.mxu0 %v4229
        %4544 = vmatpush1.bf16.msra.mxu0 %v4228
        %4545 = vmatprep.subr.bf16.mxu0 %v4233
        %4546 = vmatpush1.bf16.msra.mxu0 %v4232
        %4547 = vmatprep.subr.bf16.mxu0 %v4237
        %4548 = vmatpush1.bf16.msra.mxu0 %v4236
        %4549 = vmatprep.subr.bf16.mxu0 %v4241
        %4550 = vmatpush1.bf16.msra.mxu0 %v4240
        %4551 = vmatprep.subr.bf16.mxu0 %v4245
        %4552 = vmatpush1.bf16.msra.mxu0 %v4244
        %4553 = vmatprep.subr.bf16.mxu0 %v4249
        %4554 = vmatpush1.bf16.msra.mxu0 %v4248
        %4555 = vmatprep.subr.bf16.mxu0 %v4253
        %4556 = vmatpush1.bf16.msra.mxu0 %v4252
        %4557 = vmatprep.subr.bf16.mxu0 %v4257
        %4558 = vmatpush1.bf16.msra.mxu0 %v4256
        %4559 = vmatprep.subr.bf16.mxu0 %v4261
        %4560 = vmatpush1.bf16.msra.mxu0 %v4260
        %4561 = vmatprep.subr.bf16.mxu0 %v4265
        %4562 = vmatpush1.bf16.msra.mxu0 %v4264
        %4563 = vmatprep.subr.bf16.mxu0 %v4269
        %4564 = vmatpush1.bf16.msra.mxu0 %v4268
        %4565 = vmatprep.subr.bf16.mxu0 %v4273
        %4566 = vmatpush1.bf16.msra.mxu0 %v4272
        %4567 = vmatprep.subr.bf16.mxu0 %v4277
        %4568 = vmatpush1.bf16.msra.mxu0 %v4276
        %4569 = vmatprep.subr.bf16.mxu0 %v4281
        %4570 = vmatpush1.bf16.msra.mxu0 %v4280
        %4571 = vmatprep.mubr.bf16.mxu0 %v1723
        %4572 = vmatmul.mubr.bf16.gmra.mrb[0].mxu0 %v1722
        %v4573 = vpop.f32.mrb[0].mxu0
        %v4574 = vadd.f32 %v4531, %v4573
        %v4575 = vpop.f32.mrb[0].mxu0
        %v4576 = vadd.f32 %v4533, %v4575
        %v4577 = vpop.f32.mrb[0].mxu0
        %v4578 = vadd.f32 %v4535, %v4577
        %v4579 = vpop.f32.mrb[0].mxu0
        %v4580 = vadd.f32 %v4537, %v4579
        %4581 = vdwg.mxu0
        %v4582 = vadd.f32 %v3547, %v4488
        %v4583 = vadd.f32 %v3549, %v4490
        %v4584 = vadd.f32 %v3633, %v4574
        %v4585 = vadd.f32 %v3635, %v4576
        %v4586 = vadd.f32 %v3551, %v4492
        %v4587 = vadd.f32 %v3553, %v4494
        %v4588 = vadd.f32 %v3637, %v4578
        %v4589 = vadd.f32 %v3639, %v4580
        %v4590 = vld [vmem:[#allocation8] sm:$0xf]
        %v4592 = vlaneseq
        %v4593 = vshrl.u32 %v4592, 7
        %v4594 = vsub.s32 0, %v4593
        %v4595 = vrot.slane %v4590, %v4594
        %v4596 = vlaneseq
        %v4597 = vshrl.u32 %v4596, 7
        %v4598 = vsub.s32 1, %v4597
        %v4599 = vrot.slane %v4590, %v4598
        %v4600 = vlaneseq
        %v4601 = vshrl.u32 %v4600, 7
        %v4602 = vsub.s32 2, %v4601
        %v4603 = vrot.slane %v4590, %v4602
        %v4604 = vlaneseq
        %v4605 = vshrl.u32 %v4604, 7
        %v4606 = vsub.s32 3, %v4605
        %v4607 = vrot.slane %v4590, %v4606
        %v4612 = vadd.f32 %v4582, %v4595
        %v4613 = vadd.f32 %v4583, %v4599
        %v4614 = vadd.f32 %v4584, %v4603
        %v4615 = vadd.f32 %v4585, %v4607
        %v4616 = vadd.f32 %v4586, %v4595
        %v4617 = vadd.f32 %v4587, %v4599
        %v4618 = vadd.f32 %v4588, %v4603
        %v4619 = vadd.f32 %v4589, %v4607
        %v4620 = vmax.f32 %v4612, 0.0
        %v4621 = vmax.f32 %v4613, 0.0
        %v4622 = vmax.f32 %v4614, 0.0
        %v4623 = vmax.f32 %v4615, 0.0
        %v4624 = vmax.f32 %v4616, 0.0
        %v4625 = vmax.f32 %v4617, 0.0
        %v4626 = vmax.f32 %v4618, 0.0
        %v4627 = vmax.f32 %v4619, 0.0
        %v4628 = vpack.c.bf16 %v4624, %v4620
        %v4629 = vpack.c.bf16 %v4625, %v4621
        %v4630 = vpack.c.bf16 %v4626, %v4622
        %v4631 = vpack.c.bf16 %v4627, %v4623
        %v4636 = vunpack.c.l.b16 %v4628
        %v4637 = vunpack.c.l.b16 %v4629
        %v4638 = vunpack.c.l.b16 %v4630
        %v4639 = vunpack.c.l.b16 %v4631
        %v4640 = vunpack.c.h.b16 %v4628
        %v4641 = vunpack.c.h.b16 %v4629
        %v4642 = vunpack.c.h.b16 %v4630
        %v4643 = vunpack.c.h.b16 %v4631
        %v4644 = vpack.c.b16 %v4637, %v4636
        %v4645 = vpack.c.b16 %v4639, %v4638
        %v4646 = vpack.c.b16 %v4641, %v4640
        %v4647 = vpack.c.b16 %v4643, %v4642
        %4652 = vst [vmem:[%s640] sm:$0xff] %v4644
        %4653 = vst [vmem:[%s640 + $0x8] sm:$0xff] %v4645
        %4654 = vst [vmem:[%s640 + $0x10] sm:$0xff] %v4646
        %4655 = vst [vmem:[%s640 + $0x18] sm:$0xff] %v4647
        %v4656 = vadd.f32 %v4620, %v4624
        %v4657 = vrot.slane %v4656, 4
        %v4658 = vadd.f32 %v4656, %v4657
        %v4659 = vrot.slane %v4658, 2
        %v4660 = vadd.f32 %v4658, %v4659
        %v4661 = vrot.slane %v4660, 1
        %v4662 = vadd.f32 %v4660, %v4661
        %v4663 = vadd.f32 %v4621, %v4625
        %v4664 = vrot.slane %v4663, 4
        %v4665 = vadd.f32 %v4663, %v4664
        %v4666 = vrot.slane %v4665, 2
        %v4667 = vadd.f32 %v4665, %v4666
        %v4668 = vrot.slane %v4667, 1
        %v4669 = vadd.f32 %v4667, %v4668
        %v4670 = vadd.f32 %v4622, %v4626
        %v4671 = vrot.slane %v4670, 4
        %v4672 = vadd.f32 %v4670, %v4671
        %v4673 = vrot.slane %v4672, 2
        %v4674 = vadd.f32 %v4672, %v4673
        %v4675 = vrot.slane %v4674, 1
        %v4676 = vadd.f32 %v4674, %v4675
        %v4677 = vadd.f32 %v4623, %v4627
        %v4678 = vrot.slane %v4677, 4
        %v4679 = vadd.f32 %v4677, %v4678
        %v4680 = vrot.slane %v4679, 2
        %v4681 = vadd.f32 %v4679, %v4680
        %v4682 = vrot.slane %v4681, 1
        %v4683 = vadd.f32 %v4681, %v4682
        %v4684 = vpack.c.bf16 %v4662, %v4662
        %v4685 = vpack.c.bf16 %v4669, %v4669
        %v4686 = vpack.c.bf16 %v4676, %v4676
        %v4687 = vpack.c.bf16 %v4683, %v4683
        %v4688 = vld [vmem:[#allocation10] sm:$0xf]
        %v4689 = vld [vmem:[#allocation10 + $0x4] sm:$0xf]
        %v4690 = vld [vmem:[#allocation10 + $0x8] sm:$0xf]
        %v4691 = vld [vmem:[#allocation10 + $0xc] sm:$0xf]
        %v4692 = vld [vmem:[#allocation10 + $0x10] sm:$0xf]
        %v4693 = vld [vmem:[#allocation10 + $0x14] sm:$0xf]
        %v4694 = vld [vmem:[#allocation10 + $0x18] sm:$0xf]
        %v4695 = vld [vmem:[#allocation10 + $0x1c] sm:$0xf]
        %v4696 = vld [vmem:[#allocation10 + $0x20] sm:$0xf]
        %v4697 = vld [vmem:[#allocation10 + $0x24] sm:$0xf]
        %v4698 = vld [vmem:[#allocation10 + $0x28] sm:$0xf]
        %v4699 = vld [vmem:[#allocation10 + $0x2c] sm:$0xf]
        %v4700 = vld [vmem:[#allocation10 + $0x30] sm:$0xf]
        %v4701 = vld [vmem:[#allocation10 + $0x34] sm:$0xf]
        %v4702 = vld [vmem:[#allocation10 + $0x38] sm:$0xf]
        %v4703 = vld [vmem:[#allocation10 + $0x3c] sm:$0xf]
        %v4704 = vld [vmem:[#allocation10 + $0x40] sm:$0xf]
        %v4705 = vld [vmem:[#allocation10 + $0x44] sm:$0xf]
        %v4706 = vld [vmem:[#allocation10 + $0x48] sm:$0xf]
        %v4707 = vld [vmem:[#allocation10 + $0x4c] sm:$0xf]
        %v4708 = vld [vmem:[#allocation10 + $0x50] sm:$0xf]
        %v4709 = vld [vmem:[#allocation10 + $0x54] sm:$0xf]
        %v4710 = vld [vmem:[#allocation10 + $0x58] sm:$0xf]
        %v4711 = vld [vmem:[#allocation10 + $0x5c] sm:$0xf]
        %v4712 = vld [vmem:[#allocation10 + $0x60] sm:$0xf]
        %v4713 = vld [vmem:[#allocation10 + $0x64] sm:$0xf]
        %v4714 = vld [vmem:[#allocation10 + $0x68] sm:$0xf]
        %v4715 = vld [vmem:[#allocation10 + $0x6c] sm:$0xf]
        %v4716 = vld [vmem:[#allocation10 + $0x70] sm:$0xf]
        %v4717 = vld [vmem:[#allocation10 + $0x74] sm:$0xf]
        %v4718 = vld [vmem:[#allocation10 + $0x78] sm:$0xf]
        %v4719 = vld [vmem:[#allocation10 + $0x7c] sm:$0xf]
        %v4720 = vld [vmem:[#allocation10 + $0x80] sm:$0xf]
        %v4721 = vld [vmem:[#allocation10 + $0x84] sm:$0xf]
        %v4722 = vld [vmem:[#allocation10 + $0x88] sm:$0xf]
        %v4723 = vld [vmem:[#allocation10 + $0x8c] sm:$0xf]
        %v4724 = vld [vmem:[#allocation10 + $0x90] sm:$0xf]
        %v4725 = vld [vmem:[#allocation10 + $0x94] sm:$0xf]
        %v4726 = vld [vmem:[#allocation10 + $0x98] sm:$0xf]
        %v4727 = vld [vmem:[#allocation10 + $0x9c] sm:$0xf]
        %v4728 = vld [vmem:[#allocation10 + $0xa0] sm:$0xf]
        %v4729 = vld [vmem:[#allocation10 + $0xa4] sm:$0xf]
        %v4730 = vld [vmem:[#allocation10 + $0xa8] sm:$0xf]
        %v4731 = vld [vmem:[#allocation10 + $0xac] sm:$0xf]
        %v4732 = vld [vmem:[#allocation10 + $0xb0] sm:$0xf]
        %v4733 = vld [vmem:[#allocation10 + $0xb4] sm:$0xf]
        %v4734 = vld [vmem:[#allocation10 + $0xb8] sm:$0xf]
        %v4735 = vld [vmem:[#allocation10 + $0xbc] sm:$0xf]
        %v4736 = vld [vmem:[#allocation10 + $0xc0] sm:$0xf]
        %v4737 = vld [vmem:[#allocation10 + $0xc4] sm:$0xf]
        %v4738 = vld [vmem:[#allocation10 + $0xc8] sm:$0xf]
        %v4739 = vld [vmem:[#allocation10 + $0xcc] sm:$0xf]
        %v4740 = vld [vmem:[#allocation10 + $0xd0] sm:$0xf]
        %v4741 = vld [vmem:[#allocation10 + $0xd4] sm:$0xf]
        %v4742 = vld [vmem:[#allocation10 + $0xd8] sm:$0xf]
        %v4743 = vld [vmem:[#allocation10 + $0xdc] sm:$0xf]
        %v4744 = vld [vmem:[#allocation10 + $0xe0] sm:$0xf]
        %v4745 = vld [vmem:[#allocation10 + $0xe4] sm:$0xf]
        %v4746 = vld [vmem:[#allocation10 + $0xe8] sm:$0xf]
        %v4747 = vld [vmem:[#allocation10 + $0xec] sm:$0xf]
        %v4748 = vld [vmem:[#allocation10 + $0xf0] sm:$0xf]
        %v4749 = vld [vmem:[#allocation10 + $0xf4] sm:$0xf]
        %v4750 = vld [vmem:[#allocation10 + $0xf8] sm:$0xf]
        %v4751 = vld [vmem:[#allocation10 + $0xfc] sm:$0xf]
        %v4752 = vld [vmem:[#allocation11] sm:$0x1]
        %v4817 = vunpack.c.l.b16 %v4688
        %v4818 = vunpack.c.l.b16 %v4689
        %v4819 = vunpack.c.l.b16 %v4690
        %v4820 = vunpack.c.l.b16 %v4691
        %v4821 = vunpack.c.l.b16 %v4692
        %v4822 = vunpack.c.l.b16 %v4693
        %v4823 = vunpack.c.l.b16 %v4694
        %v4824 = vunpack.c.l.b16 %v4695
        %v4825 = vunpack.c.l.b16 %v4696
        %v4826 = vunpack.c.l.b16 %v4697
        %v4827 = vunpack.c.l.b16 %v4698
        %v4828 = vunpack.c.l.b16 %v4699
        %v4829 = vunpack.c.l.b16 %v4700
        %v4830 = vunpack.c.l.b16 %v4701
        %v4831 = vunpack.c.l.b16 %v4702
        %v4832 = vunpack.c.l.b16 %v4703
        %v4833 = vunpack.c.l.b16 %v4704
        %v4834 = vunpack.c.l.b16 %v4705
        %v4835 = vunpack.c.l.b16 %v4706
        %v4836 = vunpack.c.l.b16 %v4707
        %v4837 = vunpack.c.l.b16 %v4708
        %v4838 = vunpack.c.l.b16 %v4709
        %v4839 = vunpack.c.l.b16 %v4710
        %v4840 = vunpack.c.l.b16 %v4711
        %v4841 = vunpack.c.l.b16 %v4712
        %v4842 = vunpack.c.l.b16 %v4713
        %v4843 = vunpack.c.l.b16 %v4714
        %v4844 = vunpack.c.l.b16 %v4715
        %v4845 = vunpack.c.l.b16 %v4716
        %v4846 = vunpack.c.l.b16 %v4717
        %v4847 = vunpack.c.l.b16 %v4718
        %v4848 = vunpack.c.l.b16 %v4719
        %v4849 = vunpack.c.l.b16 %v4720
        %v4850 = vunpack.c.l.b16 %v4721
        %v4851 = vunpack.c.l.b16 %v4722
        %v4852 = vunpack.c.l.b16 %v4723
        %v4853 = vunpack.c.l.b16 %v4724
        %v4854 = vunpack.c.l.b16 %v4725
        %v4855 = vunpack.c.l.b16 %v4726
        %v4856 = vunpack.c.l.b16 %v4727
        %v4857 = vunpack.c.l.b16 %v4728
        %v4858 = vunpack.c.l.b16 %v4729
        %v4859 = vunpack.c.l.b16 %v4730
        %v4860 = vunpack.c.l.b16 %v4731
        %v4861 = vunpack.c.l.b16 %v4732
        %v4862 = vunpack.c.l.b16 %v4733
        %v4863 = vunpack.c.l.b16 %v4734
        %v4864 = vunpack.c.l.b16 %v4735
        %v4865 = vunpack.c.l.b16 %v4736
        %v4866 = vunpack.c.l.b16 %v4737
        %v4867 = vunpack.c.l.b16 %v4738
        %v4868 = vunpack.c.l.b16 %v4739
        %v4869 = vunpack.c.l.b16 %v4740
        %v4870 = vunpack.c.l.b16 %v4741
        %v4871 = vunpack.c.l.b16 %v4742
        %v4872 = vunpack.c.l.b16 %v4743
        %v4873 = vunpack.c.l.b16 %v4744
        %v4874 = vunpack.c.l.b16 %v4745
        %v4875 = vunpack.c.l.b16 %v4746
        %v4876 = vunpack.c.l.b16 %v4747
        %v4877 = vunpack.c.l.b16 %v4748
        %v4878 = vunpack.c.l.b16 %v4749
        %v4879 = vunpack.c.l.b16 %v4750
        %v4880 = vunpack.c.l.b16 %v4751
        %v4881 = vpack.c.b16 %v4818, %v4817
        %v4882 = vpack.c.b16 %v4820, %v4819
        %v4883 = vpack.c.b16 %v4822, %v4821
        %v4884 = vpack.c.b16 %v4824, %v4823
        %v4885 = vpack.c.b16 %v4826, %v4825
        %v4886 = vpack.c.b16 %v4828, %v4827
        %v4887 = vpack.c.b16 %v4830, %v4829
        %v4888 = vpack.c.b16 %v4832, %v4831
        %v4889 = vpack.c.b16 %v4834, %v4833
        %v4890 = vpack.c.b16 %v4836, %v4835
        %v4891 = vpack.c.b16 %v4838, %v4837
        %v4892 = vpack.c.b16 %v4840, %v4839
        %v4893 = vpack.c.b16 %v4842, %v4841
        %v4894 = vpack.c.b16 %v4844, %v4843
        %v4895 = vpack.c.b16 %v4846, %v4845
        %v4896 = vpack.c.b16 %v4848, %v4847
        %v4897 = vpack.c.b16 %v4850, %v4849
        %v4898 = vpack.c.b16 %v4852, %v4851
        %v4899 = vpack.c.b16 %v4854, %v4853
        %v4900 = vpack.c.b16 %v4856, %v4855
        %v4901 = vpack.c.b16 %v4858, %v4857
        %v4902 = vpack.c.b16 %v4860, %v4859
        %v4903 = vpack.c.b16 %v4862, %v4861
        %v4904 = vpack.c.b16 %v4864, %v4863
        %v4905 = vpack.c.b16 %v4866, %v4865
        %v4906 = vpack.c.b16 %v4868, %v4867
        %v4907 = vpack.c.b16 %v4870, %v4869
        %v4908 = vpack.c.b16 %v4872, %v4871
        %v4909 = vpack.c.b16 %v4874, %v4873
        %v4910 = vpack.c.b16 %v4876, %v4875
        %v4911 = vpack.c.b16 %v4878, %v4877
        %v4912 = vpack.c.b16 %v4880, %v4879
        %4945 = vmatprep.subr.bf16.mxu0 0
        %4946 = vmatpush1.bf16.msra.mxu0 %v4881
        %4947 = vmatprep.subr.bf16.mxu0 0
        %4948 = vmatpush1.bf16.msra.mxu0 %v4882
        %4949 = vmatprep.subr.bf16.mxu0 0
        %4950 = vmatpush1.bf16.msra.mxu0 %v4883
        %4951 = vmatprep.subr.bf16.mxu0 0
        %4952 = vmatpush1.bf16.msra.mxu0 %v4884
        %4953 = vmatprep.subr.bf16.mxu0 0
        %4954 = vmatpush1.bf16.msra.mxu0 %v4885
        %4955 = vmatprep.subr.bf16.mxu0 0
        %4956 = vmatpush1.bf16.msra.mxu0 %v4886
        %4957 = vmatprep.subr.bf16.mxu0 0
        %4958 = vmatpush1.bf16.msra.mxu0 %v4887
        %4959 = vmatprep.subr.bf16.mxu0 0
        %4960 = vmatpush1.bf16.msra.mxu0 %v4888
        %4961 = vmatprep.subr.bf16.mxu0 0
        %4962 = vmatpush1.bf16.msra.mxu0 %v4889
        %4963 = vmatprep.subr.bf16.mxu0 0
        %4964 = vmatpush1.bf16.msra.mxu0 %v4890
        %4965 = vmatprep.subr.bf16.mxu0 0
        %4966 = vmatpush1.bf16.msra.mxu0 %v4891
        %4967 = vmatprep.subr.bf16.mxu0 0
        %4968 = vmatpush1.bf16.msra.mxu0 %v4892
        %4969 = vmatprep.subr.bf16.mxu0 0
        %4970 = vmatpush1.bf16.msra.mxu0 %v4893
        %4971 = vmatprep.subr.bf16.mxu0 0
        %4972 = vmatpush1.bf16.msra.mxu0 %v4894
        %4973 = vmatprep.subr.bf16.mxu0 0
        %4974 = vmatpush1.bf16.msra.mxu0 %v4895
        %4975 = vmatprep.subr.bf16.mxu0 0
        %4976 = vmatpush1.bf16.msra.mxu0 %v4896
        %4977 = vmatprep.mubr.bf16.mxu0 %v4685
        %4978 = vmatmul.mubr.bf16.gmra.mrb[0].mxu0 %v4684
        %v4979 = vpop.f32.mrb[0].mxu0
        %v4980 = vadd.f32 %v4752, %v4979
        %v4981 = vpop.f32.mrb[0].mxu0
        %v4982 = vpop.f32.mrb[0].mxu0
        %v4983 = vpop.f32.mrb[0].mxu0
        %4984 = vdwg.mxu0
        %4985 = vmatprep.subr.bf16.mxu0 0
        %4986 = vmatpush1.bf16.msra.mxu0 %v4897
        %4987 = vmatprep.subr.bf16.mxu0 0
        %4988 = vmatpush1.bf16.msra.mxu0 %v4898
        %4989 = vmatprep.subr.bf16.mxu0 0
        %4990 = vmatpush1.bf16.msra.mxu0 %v4899
        %4991 = vmatprep.subr.bf16.mxu0 0
        %4992 = vmatpush1.bf16.msra.mxu0 %v4900
        %4993 = vmatprep.subr.bf16.mxu0 0
        %4994 = vmatpush1.bf16.msra.mxu0 %v4901
        %4995 = vmatprep.subr.bf16.mxu0 0
        %4996 = vmatpush1.bf16.msra.mxu0 %v4902
        %4997 = vmatprep.subr.bf16.mxu0 0
        %4998 = vmatpush1.bf16.msra.mxu0 %v4903
        %4999 = vmatprep.subr.bf16.mxu0 0
        %5000 = vmatpush1.bf16.msra.mxu0 %v4904
        %5001 = vmatprep.subr.bf16.mxu0 0
        %5002 = vmatpush1.bf16.msra.mxu0 %v4905
        %5003 = vmatprep.subr.bf16.mxu0 0
        %5004 = vmatpush1.bf16.msra.mxu0 %v4906
        %5005 = vmatprep.subr.bf16.mxu0 0
        %5006 = vmatpush1.bf16.msra.mxu0 %v4907
        %5007 = vmatprep.subr.bf16.mxu0 0
        %5008 = vmatpush1.bf16.msra.mxu0 %v4908
        %5009 = vmatprep.subr.bf16.mxu0 0
        %5010 = vmatpush1.bf16.msra.mxu0 %v4909
        %5011 = vmatprep.subr.bf16.mxu0 0
        %5012 = vmatpush1.bf16.msra.mxu0 %v4910
        %5013 = vmatprep.subr.bf16.mxu0 0
        %5014 = vmatpush1.bf16.msra.mxu0 %v4911
        %5015 = vmatprep.subr.bf16.mxu0 0
        %5016 = vmatpush1.bf16.msra.mxu0 %v4912
        %5017 = vmatprep.mubr.bf16.mxu0 %v4687
        %5018 = vmatmul.mubr.bf16.gmra.mrb[0].mxu0 %v4686
        %v5019 = vpop.f32.mrb[0].mxu0
        %v5020 = vadd.f32 %v4980, %v5019
        %v5021 = vpop.f32.mrb[0].mxu0
        %v5022 = vpop.f32.mrb[0].mxu0
        %v5023 = vpop.f32.mrb[0].mxu0
        %5024 = vdwg.mxu0
        %5025 = vst [vmem:[%s618] sm:$0x1] %v5020
        %v5027 = vshrl.u32 %v4628, 16
        %v5029 = vrot.slane %v5027, 7
        %v5030 = vshll.u32 %v4628, 16
        %v5032 = vor.u32 %v5029, %v5030
        %v5034 = vshrl.u32 %v4629, 16
        %v5036 = vrot.slane %v5034, 7
        %v5037 = vshll.u32 %v4629, 16
        %v5039 = vor.u32 %v5036, %v5037
        %v5041 = vshrl.u32 %v4630, 16
        %v5043 = vrot.slane %v5041, 7
        %v5044 = vshll.u32 %v4630, 16
        %v5046 = vor.u32 %v5043, %v5044
        %v5048 = vshrl.u32 %v4631, 16
        %v5050 = vrot.slane %v5048, 7
        %v5051 = vshll.u32 %v4631, 16
        %v5053 = vor.u32 %v5050, %v5051
        %v5058 = vsel %vm666, 0, %v5032
        %v5059 = vsel %vm666, 0, %v5039
        %v5060 = vsel %vm666, 0, %v5046
        %v5061 = vsel %vm666, 0, %v5053
        %v5062 = vrot.slane %v5030, 1
        %v5063 = vor.u32 %v5027, %v5062
        %v5064 = vrot.slane %v5037, 1
        %v5065 = vor.u32 %v5034, %v5064
        %v5066 = vrot.slane %v5044, 1
        %v5067 = vor.u32 %v5041, %v5066
        %v5068 = vrot.slane %v5051, 1
        %v5069 = vor.u32 %v5048, %v5068
        %v5074 = vsel %vm683, %v5063, 0
        %v5075 = vsel %vm683, %v5065, 0
        %v5076 = vsel %vm683, %v5067, 0
        %v5077 = vsel %vm683, %v5069, 0
        %v5078 = vld [vmem:[#allocation13] sm:$0xff]
        %v5079 = vld [vmem:[#allocation13 + $0x8] sm:$0xff]
        %v5080 = vld [vmem:[#allocation13 + $0x10] sm:$0xff]
        %v5081 = vld [vmem:[#allocation13 + $0x18] sm:$0xff]
        %v5082 = vld [vmem:[#allocation13 + $0x20] sm:$0xff]
        %v5083 = vld [vmem:[#allocation13 + $0x28] sm:$0xff]
        %v5084 = vld [vmem:[#allocation13 + $0x30] sm:$0xff]
        %v5085 = vld [vmem:[#allocation13 + $0x38] sm:$0xff]
        %v5086 = vld [vmem:[#allocation13 + $0x40] sm:$0xff]
        %v5087 = vld [vmem:[#allocation13 + $0x48] sm:$0xff]
        %v5088 = vld [vmem:[#allocation13 + $0x50] sm:$0xff]
        %v5089 = vld [vmem:[#allocation13 + $0x58] sm:$0xff]
        %v5090 = vld [vmem:[#allocation13 + $0x60] sm:$0xff]
        %v5091 = vld [vmem:[#allocation13 + $0x68] sm:$0xff]
        %v5092 = vld [vmem:[#allocation13 + $0x70] sm:$0xff]
        %v5093 = vld [vmem:[#allocation13 + $0x78] sm:$0xff]
        %v5094 = vld [vmem:[#allocation13 + $0x80] sm:$0xff]
        %v5095 = vld [vmem:[#allocation13 + $0x88] sm:$0xff]
        %v5096 = vld [vmem:[#allocation13 + $0x90] sm:$0xff]
        %v5097 = vld [vmem:[#allocation13 + $0x98] sm:$0xff]
        %v5098 = vld [vmem:[#allocation13 + $0xa0] sm:$0xff]
        %v5099 = vld [vmem:[#allocation13 + $0xa8] sm:$0xff]
        %v5100 = vld [vmem:[#allocation13 + $0xb0] sm:$0xff]
        %v5101 = vld [vmem:[#allocation13 + $0xb8] sm:$0xff]
        %v5102 = vld [vmem:[#allocation13 + $0xc0] sm:$0xff]
        %v5103 = vld [vmem:[#allocation13 + $0xc8] sm:$0xff]
        %v5104 = vld [vmem:[#allocation13 + $0xd0] sm:$0xff]
        %v5105 = vld [vmem:[#allocation13 + $0xd8] sm:$0xff]
        %v5106 = vld [vmem:[#allocation13 + $0xe0] sm:$0xff]
        %v5107 = vld [vmem:[#allocation13 + $0xe8] sm:$0xff]
        %v5108 = vld [vmem:[#allocation13 + $0xf0] sm:$0xff]
        %v5109 = vld [vmem:[#allocation13 + $0xf8] sm:$0xff]
        %v5110 = vld [vmem:[#allocation13 + $0x100] sm:$0xff]
        %v5111 = vld [vmem:[#allocation13 + $0x108] sm:$0xff]
        %v5112 = vld [vmem:[#allocation13 + $0x110] sm:$0xff]
        %v5113 = vld [vmem:[#allocation13 + $0x118] sm:$0xff]
        %v5114 = vld [vmem:[#allocation13 + $0x120] sm:$0xff]
        %v5115 = vld [vmem:[#allocation13 + $0x128] sm:$0xff]
        %v5116 = vld [vmem:[#allocation13 + $0x130] sm:$0xff]
        %v5117 = vld [vmem:[#allocation13 + $0x138] sm:$0xff]
        %v5118 = vld [vmem:[#allocation13 + $0x140] sm:$0xff]
        %v5119 = vld [vmem:[#allocation13 + $0x148] sm:$0xff]
        %v5120 = vld [vmem:[#allocation13 + $0x150] sm:$0xff]
        %v5121 = vld [vmem:[#allocation13 + $0x158] sm:$0xff]
        %v5122 = vld [vmem:[#allocation13 + $0x160] sm:$0xff]
        %v5123 = vld [vmem:[#allocation13 + $0x168] sm:$0xff]
        %v5124 = vld [vmem:[#allocation13 + $0x170] sm:$0xff]
        %v5125 = vld [vmem:[#allocation13 + $0x178] sm:$0xff]
        %v5126 = vld [vmem:[#allocation13 + $0x180] sm:$0xff]
        %v5127 = vld [vmem:[#allocation13 + $0x188] sm:$0xff]
        %v5128 = vld [vmem:[#allocation13 + $0x190] sm:$0xff]
        %v5129 = vld [vmem:[#allocation13 + $0x198] sm:$0xff]
        %v5130 = vld [vmem:[#allocation13 + $0x1a0] sm:$0xff]
        %v5131 = vld [vmem:[#allocation13 + $0x1a8] sm:$0xff]
        %v5132 = vld [vmem:[#allocation13 + $0x1b0] sm:$0xff]
        %v5133 = vld [vmem:[#allocation13 + $0x1b8] sm:$0xff]
        %v5134 = vld [vmem:[#allocation13 + $0x1c0] sm:$0xff]
        %v5135 = vld [vmem:[#allocation13 + $0x1c8] sm:$0xff]
        %v5136 = vld [vmem:[#allocation13 + $0x1d0] sm:$0xff]
        %v5137 = vld [vmem:[#allocation13 + $0x1d8] sm:$0xff]
        %v5138 = vld [vmem:[#allocation13 + $0x1e0] sm:$0xff]
        %v5139 = vld [vmem:[#allocation13 + $0x1e8] sm:$0xff]
        %v5140 = vld [vmem:[#allocation13 + $0x1f0] sm:$0xff]
        %v5141 = vld [vmem:[#allocation13 + $0x1f8] sm:$0xff]
        %v5142 = vld [vmem:[#allocation13 + $0x200] sm:$0xff]
        %v5143 = vld [vmem:[#allocation13 + $0x208] sm:$0xff]
        %v5144 = vld [vmem:[#allocation13 + $0x210] sm:$0xff]
        %v5145 = vld [vmem:[#allocation13 + $0x218] sm:$0xff]
        %v5146 = vld [vmem:[#allocation13 + $0x220] sm:$0xff]
        %v5147 = vld [vmem:[#allocation13 + $0x228] sm:$0xff]
        %v5148 = vld [vmem:[#allocation13 + $0x230] sm:$0xff]
        %v5149 = vld [vmem:[#allocation13 + $0x238] sm:$0xff]
        %v5150 = vld [vmem:[#allocation13 + $0x240] sm:$0xff]
        %v5151 = vld [vmem:[#allocation13 + $0x248] sm:$0xff]
        %v5152 = vld [vmem:[#allocation13 + $0x250] sm:$0xff]
        %v5153 = vld [vmem:[#allocation13 + $0x258] sm:$0xff]
        %v5154 = vld [vmem:[#allocation13 + $0x260] sm:$0xff]
        %v5155 = vld [vmem:[#allocation13 + $0x268] sm:$0xff]
        %v5156 = vld [vmem:[#allocation13 + $0x270] sm:$0xff]
        %v5157 = vld [vmem:[#allocation13 + $0x278] sm:$0xff]
        %v5158 = vld [vmem:[#allocation13 + $0x280] sm:$0xff]
        %v5159 = vld [vmem:[#allocation13 + $0x288] sm:$0xff]
        %v5160 = vld [vmem:[#allocation13 + $0x290] sm:$0xff]
        %v5161 = vld [vmem:[#allocation13 + $0x298] sm:$0xff]
        %v5162 = vld [vmem:[#allocation13 + $0x2a0] sm:$0xff]
        %v5163 = vld [vmem:[#allocation13 + $0x2a8] sm:$0xff]
        %v5164 = vld [vmem:[#allocation13 + $0x2b0] sm:$0xff]
        %v5165 = vld [vmem:[#allocation13 + $0x2b8] sm:$0xff]
        %v5166 = vld [vmem:[#allocation13 + $0x2c0] sm:$0xff]
        %v5167 = vld [vmem:[#allocation13 + $0x2c8] sm:$0xff]
        %v5168 = vld [vmem:[#allocation13 + $0x2d0] sm:$0xff]
        %v5169 = vld [vmem:[#allocation13 + $0x2d8] sm:$0xff]
        %v5170 = vld [vmem:[#allocation13 + $0x2e0] sm:$0xff]
        %v5171 = vld [vmem:[#allocation13 + $0x2e8] sm:$0xff]
        %v5172 = vld [vmem:[#allocation13 + $0x2f0] sm:$0xff]
        %v5173 = vld [vmem:[#allocation13 + $0x2f8] sm:$0xff]
        %v5174 = vld [vmem:[#allocation13 + $0x300] sm:$0xff]
        %v5175 = vld [vmem:[#allocation13 + $0x308] sm:$0xff]
        %v5176 = vld [vmem:[#allocation13 + $0x310] sm:$0xff]
        %v5177 = vld [vmem:[#allocation13 + $0x318] sm:$0xff]
        %v5178 = vld [vmem:[#allocation13 + $0x320] sm:$0xff]
        %v5179 = vld [vmem:[#allocation13 + $0x328] sm:$0xff]
        %v5180 = vld [vmem:[#allocation13 + $0x330] sm:$0xff]
        %v5181 = vld [vmem:[#allocation13 + $0x338] sm:$0xff]
        %v5182 = vld [vmem:[#allocation13 + $0x340] sm:$0xff]
        %v5183 = vld [vmem:[#allocation13 + $0x348] sm:$0xff]
        %v5184 = vld [vmem:[#allocation13 + $0x350] sm:$0xff]
        %v5185 = vld [vmem:[#allocation13 + $0x358] sm:$0xff]
        %v5186 = vld [vmem:[#allocation13 + $0x360] sm:$0xff]
        %v5187 = vld [vmem:[#allocation13 + $0x368] sm:$0xff]
        %v5188 = vld [vmem:[#allocation13 + $0x370] sm:$0xff]
        %v5189 = vld [vmem:[#allocation13 + $0x378] sm:$0xff]
        %v5190 = vld [vmem:[#allocation13 + $0x380] sm:$0xff]
        %v5191 = vld [vmem:[#allocation13 + $0x388] sm:$0xff]
        %v5192 = vld [vmem:[#allocation13 + $0x390] sm:$0xff]
        %v5193 = vld [vmem:[#allocation13 + $0x398] sm:$0xff]
        %v5194 = vld [vmem:[#allocation13 + $0x3a0] sm:$0xff]
        %v5195 = vld [vmem:[#allocation13 + $0x3a8] sm:$0xff]
        %v5196 = vld [vmem:[#allocation13 + $0x3b0] sm:$0xff]
        %v5197 = vld [vmem:[#allocation13 + $0x3b8] sm:$0xff]
        %v5198 = vld [vmem:[#allocation13 + $0x3c0] sm:$0xff]
        %v5199 = vld [vmem:[#allocation13 + $0x3c8] sm:$0xff]
        %v5200 = vld [vmem:[#allocation13 + $0x3d0] sm:$0xff]
        %v5201 = vld [vmem:[#allocation13 + $0x3d8] sm:$0xff]
        %v5202 = vld [vmem:[#allocation13 + $0x3e0] sm:$0xff]
        %v5203 = vld [vmem:[#allocation13 + $0x3e8] sm:$0xff]
        %v5204 = vld [vmem:[#allocation13 + $0x3f0] sm:$0xff]
        %v5205 = vld [vmem:[#allocation13 + $0x3f8] sm:$0xff]
        %s5206 = scalar_lea.vmem [#allocation13], 1024
        %v5207 = vld [vmem:[%s5206] sm:$0xff]
        %v5208 = vld [vmem:[%s5206 + $0x8] sm:$0xff]
        %v5209 = vld [vmem:[%s5206 + $0x10] sm:$0xff]
        %v5210 = vld [vmem:[%s5206 + $0x18] sm:$0xff]
        %v5211 = vld [vmem:[%s5206 + $0x20] sm:$0xff]
        %v5212 = vld [vmem:[%s5206 + $0x28] sm:$0xff]
        %v5213 = vld [vmem:[%s5206 + $0x30] sm:$0xff]
        %v5214 = vld [vmem:[%s5206 + $0x38] sm:$0xff]
        %v5215 = vld [vmem:[%s5206 + $0x40] sm:$0xff]
        %v5216 = vld [vmem:[%s5206 + $0x48] sm:$0xff]
        %v5217 = vld [vmem:[%s5206 + $0x50] sm:$0xff]
        %v5218 = vld [vmem:[%s5206 + $0x58] sm:$0xff]
        %v5219 = vld [vmem:[%s5206 + $0x60] sm:$0xff]
        %v5220 = vld [vmem:[%s5206 + $0x68] sm:$0xff]
        %v5221 = vld [vmem:[%s5206 + $0x70] sm:$0xff]
        %v5222 = vld [vmem:[%s5206 + $0x78] sm:$0xff]
        %v5223 = vld [vmem:[%s5206 + $0x80] sm:$0xff]
        %v5224 = vld [vmem:[%s5206 + $0x88] sm:$0xff]
        %v5225 = vld [vmem:[%s5206 + $0x90] sm:$0xff]
        %v5226 = vld [vmem:[%s5206 + $0x98] sm:$0xff]
        %v5227 = vld [vmem:[%s5206 + $0xa0] sm:$0xff]
        %v5228 = vld [vmem:[%s5206 + $0xa8] sm:$0xff]
        %v5229 = vld [vmem:[%s5206 + $0xb0] sm:$0xff]
        %v5230 = vld [vmem:[%s5206 + $0xb8] sm:$0xff]
        %v5231 = vld [vmem:[%s5206 + $0xc0] sm:$0xff]
        %v5232 = vld [vmem:[%s5206 + $0xc8] sm:$0xff]
        %v5233 = vld [vmem:[%s5206 + $0xd0] sm:$0xff]
        %v5234 = vld [vmem:[%s5206 + $0xd8] sm:$0xff]
        %v5235 = vld [vmem:[%s5206 + $0xe0] sm:$0xff]
        %v5236 = vld [vmem:[%s5206 + $0xe8] sm:$0xff]
        %v5237 = vld [vmem:[%s5206 + $0xf0] sm:$0xff]
        %v5238 = vld [vmem:[%s5206 + $0xf8] sm:$0xff]
        %v5239 = vld [vmem:[%s5206 + $0x100] sm:$0xff]
        %v5240 = vld [vmem:[%s5206 + $0x108] sm:$0xff]
        %v5241 = vld [vmem:[%s5206 + $0x110] sm:$0xff]
        %v5242 = vld [vmem:[%s5206 + $0x118] sm:$0xff]
        %v5243 = vld [vmem:[%s5206 + $0x120] sm:$0xff]
        %v5244 = vld [vmem:[%s5206 + $0x128] sm:$0xff]
        %v5245 = vld [vmem:[%s5206 + $0x130] sm:$0xff]
        %v5246 = vld [vmem:[%s5206 + $0x138] sm:$0xff]
        %v5247 = vld [vmem:[%s5206 + $0x140] sm:$0xff]
        %v5248 = vld [vmem:[%s5206 + $0x148] sm:$0xff]
        %v5249 = vld [vmem:[%s5206 + $0x150] sm:$0xff]
        %v5250 = vld [vmem:[%s5206 + $0x158] sm:$0xff]
        %v5251 = vld [vmem:[%s5206 + $0x160] sm:$0xff]
        %v5252 = vld [vmem:[%s5206 + $0x168] sm:$0xff]
        %v5253 = vld [vmem:[%s5206 + $0x170] sm:$0xff]
        %v5254 = vld [vmem:[%s5206 + $0x178] sm:$0xff]
        %v5255 = vld [vmem:[%s5206 + $0x180] sm:$0xff]
        %v5256 = vld [vmem:[%s5206 + $0x188] sm:$0xff]
        %v5257 = vld [vmem:[%s5206 + $0x190] sm:$0xff]
        %v5258 = vld [vmem:[%s5206 + $0x198] sm:$0xff]
        %v5259 = vld [vmem:[%s5206 + $0x1a0] sm:$0xff]
        %v5260 = vld [vmem:[%s5206 + $0x1a8] sm:$0xff]
        %v5261 = vld [vmem:[%s5206 + $0x1b0] sm:$0xff]
        %v5262 = vld [vmem:[%s5206 + $0x1b8] sm:$0xff]
        %v5263 = vld [vmem:[%s5206 + $0x1c0] sm:$0xff]
        %v5264 = vld [vmem:[%s5206 + $0x1c8] sm:$0xff]
        %v5265 = vld [vmem:[%s5206 + $0x1d0] sm:$0xff]
        %v5266 = vld [vmem:[%s5206 + $0x1d8] sm:$0xff]
        %v5267 = vld [vmem:[%s5206 + $0x1e0] sm:$0xff]
        %v5268 = vld [vmem:[%s5206 + $0x1e8] sm:$0xff]
        %v5269 = vld [vmem:[%s5206 + $0x1f0] sm:$0xff]
        %v5270 = vld [vmem:[%s5206 + $0x1f8] sm:$0xff]
        %v5271 = vld [vmem:[%s5206 + $0x200] sm:$0xff]
        %v5272 = vld [vmem:[%s5206 + $0x208] sm:$0xff]
        %v5273 = vld [vmem:[%s5206 + $0x210] sm:$0xff]
        %v5274 = vld [vmem:[%s5206 + $0x218] sm:$0xff]
        %v5275 = vld [vmem:[%s5206 + $0x220] sm:$0xff]
        %v5276 = vld [vmem:[%s5206 + $0x228] sm:$0xff]
        %v5277 = vld [vmem:[%s5206 + $0x230] sm:$0xff]
        %v5278 = vld [vmem:[%s5206 + $0x238] sm:$0xff]
        %v5279 = vld [vmem:[%s5206 + $0x240] sm:$0xff]
        %v5280 = vld [vmem:[%s5206 + $0x248] sm:$0xff]
        %v5281 = vld [vmem:[%s5206 + $0x250] sm:$0xff]
        %v5282 = vld [vmem:[%s5206 + $0x258] sm:$0xff]
        %v5283 = vld [vmem:[%s5206 + $0x260] sm:$0xff]
        %v5284 = vld [vmem:[%s5206 + $0x268] sm:$0xff]
        %v5285 = vld [vmem:[%s5206 + $0x270] sm:$0xff]
        %v5286 = vld [vmem:[%s5206 + $0x278] sm:$0xff]
        %v5287 = vld [vmem:[%s5206 + $0x280] sm:$0xff]
        %v5288 = vld [vmem:[%s5206 + $0x288] sm:$0xff]
        %v5289 = vld [vmem:[%s5206 + $0x290] sm:$0xff]
        %v5290 = vld [vmem:[%s5206 + $0x298] sm:$0xff]
        %v5291 = vld [vmem:[%s5206 + $0x2a0] sm:$0xff]
        %v5292 = vld [vmem:[%s5206 + $0x2a8] sm:$0xff]
        %v5293 = vld [vmem:[%s5206 + $0x2b0] sm:$0xff]
        %v5294 = vld [vmem:[%s5206 + $0x2b8] sm:$0xff]
        %v5295 = vld [vmem:[%s5206 + $0x2c0] sm:$0xff]
        %v5296 = vld [vmem:[%s5206 + $0x2c8] sm:$0xff]
        %v5297 = vld [vmem:[%s5206 + $0x2d0] sm:$0xff]
        %v5298 = vld [vmem:[%s5206 + $0x2d8] sm:$0xff]
        %v5299 = vld [vmem:[%s5206 + $0x2e0] sm:$0xff]
        %v5300 = vld [vmem:[%s5206 + $0x2e8] sm:$0xff]
        %v5301 = vld [vmem:[%s5206 + $0x2f0] sm:$0xff]
        %v5302 = vld [vmem:[%s5206 + $0x2f8] sm:$0xff]
        %v5303 = vld [vmem:[%s5206 + $0x300] sm:$0xff]
        %v5304 = vld [vmem:[%s5206 + $0x308] sm:$0xff]
        %v5305 = vld [vmem:[%s5206 + $0x310] sm:$0xff]
        %v5306 = vld [vmem:[%s5206 + $0x318] sm:$0xff]
        %v5307 = vld [vmem:[%s5206 + $0x320] sm:$0xff]
        %v5308 = vld [vmem:[%s5206 + $0x328] sm:$0xff]
        %v5309 = vld [vmem:[%s5206 + $0x330] sm:$0xff]
        %v5310 = vld [vmem:[%s5206 + $0x338] sm:$0xff]
        %v5311 = vld [vmem:[%s5206 + $0x340] sm:$0xff]
        %v5312 = vld [vmem:[%s5206 + $0x348] sm:$0xff]
        %v5313 = vld [vmem:[%s5206 + $0x350] sm:$0xff]
        %v5314 = vld [vmem:[%s5206 + $0x358] sm:$0xff]
        %v5315 = vld [vmem:[%s5206 + $0x360] sm:$0xff]
        %v5316 = vld [vmem:[%s5206 + $0x368] sm:$0xff]
        %v5317 = vld [vmem:[%s5206 + $0x370] sm:$0xff]
        %v5318 = vld [vmem:[%s5206 + $0x378] sm:$0xff]
        %v5319 = vld [vmem:[%s5206 + $0x380] sm:$0xff]
        %v5320 = vld [vmem:[%s5206 + $0x388] sm:$0xff]
        %v5321 = vld [vmem:[%s5206 + $0x390] sm:$0xff]
        %v5322 = vld [vmem:[%s5206 + $0x398] sm:$0xff]
        %v5323 = vld [vmem:[%s5206 + $0x3a0] sm:$0xff]
        %v5324 = vld [vmem:[%s5206 + $0x3a8] sm:$0xff]
        %v5325 = vld [vmem:[%s5206 + $0x3b0] sm:$0xff]
        %v5326 = vld [vmem:[%s5206 + $0x3b8] sm:$0xff]
        %v5327 = vld [vmem:[%s5206 + $0x3c0] sm:$0xff]
        %v5328 = vld [vmem:[%s5206 + $0x3c8] sm:$0xff]
        %v5329 = vld [vmem:[%s5206 + $0x3d0] sm:$0xff]
        %v5330 = vld [vmem:[%s5206 + $0x3d8] sm:$0xff]
        %v5331 = vld [vmem:[%s5206 + $0x3e0] sm:$0xff]
        %v5332 = vld [vmem:[%s5206 + $0x3e8] sm:$0xff]
        %v5333 = vld [vmem:[%s5206 + $0x3f0] sm:$0xff]
        %v5334 = vld [vmem:[%s5206 + $0x3f8] sm:$0xff]
        %v5463 = vunpack.c.l.b16 %v5207
        %v5464 = vunpack.c.h.b16 %v5207
        %v5465 = vunpack.c.l.b16 %v5208
        %v5466 = vunpack.c.h.b16 %v5208
        %v5467 = vunpack.c.l.b16 %v5209
        %v5468 = vunpack.c.h.b16 %v5209
        %v5469 = vunpack.c.l.b16 %v5210
        %v5470 = vunpack.c.h.b16 %v5210
        %v5471 = vunpack.c.l.b16 %v5211
        %v5472 = vunpack.c.h.b16 %v5211
        %v5473 = vunpack.c.l.b16 %v5212
        %v5474 = vunpack.c.h.b16 %v5212
        %v5475 = vunpack.c.l.b16 %v5213
        %v5476 = vunpack.c.h.b16 %v5213
        %v5477 = vunpack.c.l.b16 %v5214
        %v5478 = vunpack.c.h.b16 %v5214
        %v5479 = vunpack.c.l.b16 %v5215
        %v5480 = vunpack.c.h.b16 %v5215
        %v5481 = vunpack.c.l.b16 %v5216
        %v5482 = vunpack.c.h.b16 %v5216
        %v5483 = vunpack.c.l.b16 %v5217
        %v5484 = vunpack.c.h.b16 %v5217
        %v5485 = vunpack.c.l.b16 %v5218
        %v5486 = vunpack.c.h.b16 %v5218
        %v5487 = vunpack.c.l.b16 %v5219
        %v5488 = vunpack.c.h.b16 %v5219
        %v5489 = vunpack.c.l.b16 %v5220
        %v5490 = vunpack.c.h.b16 %v5220
        %v5491 = vunpack.c.l.b16 %v5221
        %v5492 = vunpack.c.h.b16 %v5221
        %v5493 = vunpack.c.l.b16 %v5222
        %v5494 = vunpack.c.h.b16 %v5222
        %v5495 = vunpack.c.l.b16 %v5223
        %v5496 = vunpack.c.h.b16 %v5223
        %v5497 = vunpack.c.l.b16 %v5224
        %v5498 = vunpack.c.h.b16 %v5224
        %v5499 = vunpack.c.l.b16 %v5225
        %v5500 = vunpack.c.h.b16 %v5225
        %v5501 = vunpack.c.l.b16 %v5226
        %v5502 = vunpack.c.h.b16 %v5226
        %v5503 = vunpack.c.l.b16 %v5227
        %v5504 = vunpack.c.h.b16 %v5227
        %v5505 = vunpack.c.l.b16 %v5228
        %v5506 = vunpack.c.h.b16 %v5228
        %v5507 = vunpack.c.l.b16 %v5229
        %v5508 = vunpack.c.h.b16 %v5229
        %v5509 = vunpack.c.l.b16 %v5230
        %v5510 = vunpack.c.h.b16 %v5230
        %v5511 = vunpack.c.l.b16 %v5231
        %v5512 = vunpack.c.h.b16 %v5231
        %v5513 = vunpack.c.l.b16 %v5232
        %v5514 = vunpack.c.h.b16 %v5232
        %v5515 = vunpack.c.l.b16 %v5233
        %v5516 = vunpack.c.h.b16 %v5233
        %v5517 = vunpack.c.l.b16 %v5234
        %v5518 = vunpack.c.h.b16 %v5234
        %v5519 = vunpack.c.l.b16 %v5235
        %v5520 = vunpack.c.h.b16 %v5235
        %v5521 = vunpack.c.l.b16 %v5236
        %v5522 = vunpack.c.h.b16 %v5236
        %v5523 = vunpack.c.l.b16 %v5237
        %v5524 = vunpack.c.h.b16 %v5237
        %v5525 = vunpack.c.l.b16 %v5238
        %v5526 = vunpack.c.h.b16 %v5238
        %v5527 = vunpack.c.l.b16 %v5239
        %v5528 = vunpack.c.h.b16 %v5239
        %v5529 = vunpack.c.l.b16 %v5240
        %v5530 = vunpack.c.h.b16 %v5240
        %v5531 = vunpack.c.l.b16 %v5241
        %v5532 = vunpack.c.h.b16 %v5241
        %v5533 = vunpack.c.l.b16 %v5242
        %v5534 = vunpack.c.h.b16 %v5242
        %v5535 = vunpack.c.l.b16 %v5243
        %v5536 = vunpack.c.h.b16 %v5243
        %v5537 = vunpack.c.l.b16 %v5244
        %v5538 = vunpack.c.h.b16 %v5244
        %v5539 = vunpack.c.l.b16 %v5245
        %v5540 = vunpack.c.h.b16 %v5245
        %v5541 = vunpack.c.l.b16 %v5246
        %v5542 = vunpack.c.h.b16 %v5246
        %v5543 = vunpack.c.l.b16 %v5247
        %v5544 = vunpack.c.h.b16 %v5247
        %v5545 = vunpack.c.l.b16 %v5248
        %v5546 = vunpack.c.h.b16 %v5248
        %v5547 = vunpack.c.l.b16 %v5249
        %v5548 = vunpack.c.h.b16 %v5249
        %v5549 = vunpack.c.l.b16 %v5250
        %v5550 = vunpack.c.h.b16 %v5250
        %v5551 = vunpack.c.l.b16 %v5251
        %v5552 = vunpack.c.h.b16 %v5251
        %v5553 = vunpack.c.l.b16 %v5252
        %v5554 = vunpack.c.h.b16 %v5252
        %v5555 = vunpack.c.l.b16 %v5253
        %v5556 = vunpack.c.h.b16 %v5253
        %v5557 = vunpack.c.l.b16 %v5254
        %v5558 = vunpack.c.h.b16 %v5254
        %v5559 = vunpack.c.l.b16 %v5255
        %v5560 = vunpack.c.h.b16 %v5255
        %v5561 = vunpack.c.l.b16 %v5256
        %v5562 = vunpack.c.h.b16 %v5256
        %v5563 = vunpack.c.l.b16 %v5257
        %v5564 = vunpack.c.h.b16 %v5257
        %v5565 = vunpack.c.l.b16 %v5258
        %v5566 = vunpack.c.h.b16 %v5258
        %v5567 = vunpack.c.l.b16 %v5259
        %v5568 = vunpack.c.h.b16 %v5259
        %v5569 = vunpack.c.l.b16 %v5260
        %v5570 = vunpack.c.h.b16 %v5260
        %v5571 = vunpack.c.l.b16 %v5261
        %v5572 = vunpack.c.h.b16 %v5261
        %v5573 = vunpack.c.l.b16 %v5262
        %v5574 = vunpack.c.h.b16 %v5262
        %v5575 = vunpack.c.l.b16 %v5263
        %v5576 = vunpack.c.h.b16 %v5263
        %v5577 = vunpack.c.l.b16 %v5264
        %v5578 = vunpack.c.h.b16 %v5264
        %v5579 = vunpack.c.l.b16 %v5265
        %v5580 = vunpack.c.h.b16 %v5265
        %v5581 = vunpack.c.l.b16 %v5266
        %v5582 = vunpack.c.h.b16 %v5266
        %v5583 = vunpack.c.l.b16 %v5267
        %v5584 = vunpack.c.h.b16 %v5267
        %v5585 = vunpack.c.l.b16 %v5268
        %v5586 = vunpack.c.h.b16 %v5268
        %v5587 = vunpack.c.l.b16 %v5269
        %v5588 = vunpack.c.h.b16 %v5269
        %v5589 = vunpack.c.l.b16 %v5270
        %v5590 = vunpack.c.h.b16 %v5270
        %v5591 = vunpack.c.l.b16 %v5271
        %v5592 = vunpack.c.h.b16 %v5271
        %v5593 = vunpack.c.l.b16 %v5272
        %v5594 = vunpack.c.h.b16 %v5272
        %v5595 = vunpack.c.l.b16 %v5273
        %v5596 = vunpack.c.h.b16 %v5273
        %v5597 = vunpack.c.l.b16 %v5274
        %v5598 = vunpack.c.h.b16 %v5274
        %v5599 = vunpack.c.l.b16 %v5275
        %v5600 = vunpack.c.h.b16 %v5275
        %v5601 = vunpack.c.l.b16 %v5276
        %v5602 = vunpack.c.h.b16 %v5276
        %v5603 = vunpack.c.l.b16 %v5277
        %v5604 = vunpack.c.h.b16 %v5277
        %v5605 = vunpack.c.l.b16 %v5278
        %v5606 = vunpack.c.h.b16 %v5278
        %v5607 = vunpack.c.l.b16 %v5279
        %v5608 = vunpack.c.h.b16 %v5279
        %v5609 = vunpack.c.l.b16 %v5280
        %v5610 = vunpack.c.h.b16 %v5280
        %v5611 = vunpack.c.l.b16 %v5281
        %v5612 = vunpack.c.h.b16 %v5281
        %v5613 = vunpack.c.l.b16 %v5282
        %v5614 = vunpack.c.h.b16 %v5282
        %v5615 = vunpack.c.l.b16 %v5283
        %v5616 = vunpack.c.h.b16 %v5283
        %v5617 = vunpack.c.l.b16 %v5284
        %v5618 = vunpack.c.h.b16 %v5284
        %v5619 = vunpack.c.l.b16 %v5285
        %v5620 = vunpack.c.h.b16 %v5285
        %v5621 = vunpack.c.l.b16 %v5286
        %v5622 = vunpack.c.h.b16 %v5286
        %v5623 = vunpack.c.l.b16 %v5287
        %v5624 = vunpack.c.h.b16 %v5287
        %v5625 = vunpack.c.l.b16 %v5288
        %v5626 = vunpack.c.h.b16 %v5288
        %v5627 = vunpack.c.l.b16 %v5289
        %v5628 = vunpack.c.h.b16 %v5289
        %v5629 = vunpack.c.l.b16 %v5290
        %v5630 = vunpack.c.h.b16 %v5290
        %v5631 = vunpack.c.l.b16 %v5291
        %v5632 = vunpack.c.h.b16 %v5291
        %v5633 = vunpack.c.l.b16 %v5292
        %v5634 = vunpack.c.h.b16 %v5292
        %v5635 = vunpack.c.l.b16 %v5293
        %v5636 = vunpack.c.h.b16 %v5293
        %v5637 = vunpack.c.l.b16 %v5294
        %v5638 = vunpack.c.h.b16 %v5294
        %v5639 = vunpack.c.l.b16 %v5295
        %v5640 = vunpack.c.h.b16 %v5295
        %v5641 = vunpack.c.l.b16 %v5296
        %v5642 = vunpack.c.h.b16 %v5296
        %v5643 = vunpack.c.l.b16 %v5297
        %v5644 = vunpack.c.h.b16 %v5297
        %v5645 = vunpack.c.l.b16 %v5298
        %v5646 = vunpack.c.h.b16 %v5298
        %v5647 = vunpack.c.l.b16 %v5299
        %v5648 = vunpack.c.h.b16 %v5299
        %v5649 = vunpack.c.l.b16 %v5300
        %v5650 = vunpack.c.h.b16 %v5300
        %v5651 = vunpack.c.l.b16 %v5301
        %v5652 = vunpack.c.h.b16 %v5301
        %v5653 = vunpack.c.l.b16 %v5302
        %v5654 = vunpack.c.h.b16 %v5302
        %v5655 = vunpack.c.l.b16 %v5303
        %v5656 = vunpack.c.h.b16 %v5303
        %v5657 = vunpack.c.l.b16 %v5304
        %v5658 = vunpack.c.h.b16 %v5304
        %v5659 = vunpack.c.l.b16 %v5305
        %v5660 = vunpack.c.h.b16 %v5305
        %v5661 = vunpack.c.l.b16 %v5306
        %v5662 = vunpack.c.h.b16 %v5306
        %v5663 = vunpack.c.l.b16 %v5307
        %v5664 = vunpack.c.h.b16 %v5307
        %v5665 = vunpack.c.l.b16 %v5308
        %v5666 = vunpack.c.h.b16 %v5308
        %v5667 = vunpack.c.l.b16 %v5309
        %v5668 = vunpack.c.h.b16 %v5309
        %v5669 = vunpack.c.l.b16 %v5310
        %v5670 = vunpack.c.h.b16 %v5310
        %v5671 = vunpack.c.l.b16 %v5311
        %v5672 = vunpack.c.h.b16 %v5311
        %v5673 = vunpack.c.l.b16 %v5312
        %v5674 = vunpack.c.h.b16 %v5312
        %v5675 = vunpack.c.l.b16 %v5313
        %v5676 = vunpack.c.h.b16 %v5313
        %v5677 = vunpack.c.l.b16 %v5314
        %v5678 = vunpack.c.h.b16 %v5314
        %v5679 = vunpack.c.l.b16 %v5315
        %v5680 = vunpack.c.h.b16 %v5315
        %v5681 = vunpack.c.l.b16 %v5316
        %v5682 = vunpack.c.h.b16 %v5316
        %v5683 = vunpack.c.l.b16 %v5317
        %v5684 = vunpack.c.h.b16 %v5317
        %v5685 = vunpack.c.l.b16 %v5318
        %v5686 = vunpack.c.h.b16 %v5318
        %v5687 = vunpack.c.l.b16 %v5319
        %v5688 = vunpack.c.h.b16 %v5319
        %v5689 = vunpack.c.l.b16 %v5320
        %v5690 = vunpack.c.h.b16 %v5320
        %v5691 = vunpack.c.l.b16 %v5321
        %v5692 = vunpack.c.h.b16 %v5321
        %v5693 = vunpack.c.l.b16 %v5322
        %v5694 = vunpack.c.h.b16 %v5322
        %v5695 = vunpack.c.l.b16 %v5323
        %v5696 = vunpack.c.h.b16 %v5323
        %v5697 = vunpack.c.l.b16 %v5324
        %v5698 = vunpack.c.h.b16 %v5324
        %v5699 = vunpack.c.l.b16 %v5325
        %v5700 = vunpack.c.h.b16 %v5325
        %v5701 = vunpack.c.l.b16 %v5326
        %v5702 = vunpack.c.h.b16 %v5326
        %v5703 = vunpack.c.l.b16 %v5327
        %v5704 = vunpack.c.h.b16 %v5327
        %v5705 = vunpack.c.l.b16 %v5328
        %v5706 = vunpack.c.h.b16 %v5328
        %v5707 = vunpack.c.l.b16 %v5329
        %v5708 = vunpack.c.h.b16 %v5329
        %v5709 = vunpack.c.l.b16 %v5330
        %v5710 = vunpack.c.h.b16 %v5330
        %v5711 = vunpack.c.l.b16 %v5331
        %v5712 = vunpack.c.h.b16 %v5331
        %v5713 = vunpack.c.l.b16 %v5332
        %v5714 = vunpack.c.h.b16 %v5332
        %v5715 = vunpack.c.l.b16 %v5333
        %v5716 = vunpack.c.h.b16 %v5333
        %v5717 = vunpack.c.l.b16 %v5334
        %v5718 = vunpack.c.h.b16 %v5334
        %v5719 = vpack.c.b16 %v5467, %v5463
        %v5720 = vpack.c.b16 %v5468, %v5464
        %v5721 = vpack.c.b16 %v5469, %v5465
        %v5722 = vpack.c.b16 %v5470, %v5466
        %v5723 = vpack.c.b16 %v5475, %v5471
        %v5724 = vpack.c.b16 %v5476, %v5472
        %v5725 = vpack.c.b16 %v5477, %v5473
        %v5726 = vpack.c.b16 %v5478, %v5474
        %v5727 = vpack.c.b16 %v5483, %v5479
        %v5728 = vpack.c.b16 %v5484, %v5480
        %v5729 = vpack.c.b16 %v5485, %v5481
        %v5730 = vpack.c.b16 %v5486, %v5482
        %v5731 = vpack.c.b16 %v5491, %v5487
        %v5732 = vpack.c.b16 %v5492, %v5488
        %v5733 = vpack.c.b16 %v5493, %v5489
        %v5734 = vpack.c.b16 %v5494, %v5490
        %v5735 = vpack.c.b16 %v5499, %v5495
        %v5736 = vpack.c.b16 %v5500, %v5496
        %v5737 = vpack.c.b16 %v5501, %v5497
        %v5738 = vpack.c.b16 %v5502, %v5498
        %v5739 = vpack.c.b16 %v5507, %v5503
        %v5740 = vpack.c.b16 %v5508, %v5504
        %v5741 = vpack.c.b16 %v5509, %v5505
        %v5742 = vpack.c.b16 %v5510, %v5506
        %v5743 = vpack.c.b16 %v5515, %v5511
        %v5744 = vpack.c.b16 %v5516, %v5512
        %v5745 = vpack.c.b16 %v5517, %v5513
        %v5746 = vpack.c.b16 %v5518, %v5514
        %v5747 = vpack.c.b16 %v5523, %v5519
        %v5748 = vpack.c.b16 %v5524, %v5520
        %v5749 = vpack.c.b16 %v5525, %v5521
        %v5750 = vpack.c.b16 %v5526, %v5522
        %v5751 = vpack.c.b16 %v5531, %v5527
        %v5752 = vpack.c.b16 %v5532, %v5528
        %v5753 = vpack.c.b16 %v5533, %v5529
        %v5754 = vpack.c.b16 %v5534, %v5530
        %v5755 = vpack.c.b16 %v5539, %v5535
        %v5756 = vpack.c.b16 %v5540, %v5536
        %v5757 = vpack.c.b16 %v5541, %v5537
        %v5758 = vpack.c.b16 %v5542, %v5538
        %v5759 = vpack.c.b16 %v5547, %v5543
        %v5760 = vpack.c.b16 %v5548, %v5544
        %v5761 = vpack.c.b16 %v5549, %v5545
        %v5762 = vpack.c.b16 %v5550, %v5546
        %v5763 = vpack.c.b16 %v5555, %v5551
        %v5764 = vpack.c.b16 %v5556, %v5552
        %v5765 = vpack.c.b16 %v5557, %v5553
        %v5766 = vpack.c.b16 %v5558, %v5554
        %v5767 = vpack.c.b16 %v5563, %v5559
        %v5768 = vpack.c.b16 %v5564, %v5560
        %v5769 = vpack.c.b16 %v5565, %v5561
        %v5770 = vpack.c.b16 %v5566, %v5562
        %v5771 = vpack.c.b16 %v5571, %v5567
        %v5772 = vpack.c.b16 %v5572, %v5568
        %v5773 = vpack.c.b16 %v5573, %v5569
        %v5774 = vpack.c.b16 %v5574, %v5570
        %v5775 = vpack.c.b16 %v5579, %v5575
        %v5776 = vpack.c.b16 %v5580, %v5576
        %v5777 = vpack.c.b16 %v5581, %v5577
        %v5778 = vpack.c.b16 %v5582, %v5578
        %v5779 = vpack.c.b16 %v5587, %v5583
        %v5780 = vpack.c.b16 %v5588, %v5584
        %v5781 = vpack.c.b16 %v5589, %v5585
        %v5782 = vpack.c.b16 %v5590, %v5586
        %v5783 = vpack.c.b16 %v5595, %v5591
        %v5784 = vpack.c.b16 %v5596, %v5592
        %v5785 = vpack.c.b16 %v5597, %v5593
        %v5786 = vpack.c.b16 %v5598, %v5594
        %v5787 = vpack.c.b16 %v5603, %v5599
        %v5788 = vpack.c.b16 %v5604, %v5600
        %v5789 = vpack.c.b16 %v5605, %v5601
        %v5790 = vpack.c.b16 %v5606, %v5602
        %v5791 = vpack.c.b16 %v5611, %v5607
        %v5792 = vpack.c.b16 %v5612, %v5608
        %v5793 = vpack.c.b16 %v5613, %v5609
        %v5794 = vpack.c.b16 %v5614, %v5610
        %v5795 = vpack.c.b16 %v5619, %v5615
        %v5796 = vpack.c.b16 %v5620, %v5616
        %v5797 = vpack.c.b16 %v5621, %v5617
        %v5798 = vpack.c.b16 %v5622, %v5618
        %v5799 = vpack.c.b16 %v5627, %v5623
        %v5800 = vpack.c.b16 %v5628, %v5624
        %v5801 = vpack.c.b16 %v5629, %v5625
        %v5802 = vpack.c.b16 %v5630, %v5626
        %v5803 = vpack.c.b16 %v5635, %v5631
        %v5804 = vpack.c.b16 %v5636, %v5632
        %v5805 = vpack.c.b16 %v5637, %v5633
        %v5806 = vpack.c.b16 %v5638, %v5634
        %v5807 = vpack.c.b16 %v5643, %v5639
        %v5808 = vpack.c.b16 %v5644, %v5640
        %v5809 = vpack.c.b16 %v5645, %v5641
        %v5810 = vpack.c.b16 %v5646, %v5642
        %v5811 = vpack.c.b16 %v5651, %v5647
        %v5812 = vpack.c.b16 %v5652, %v5648
        %v5813 = vpack.c.b16 %v5653, %v5649
        %v5814 = vpack.c.b16 %v5654, %v5650
        %v5815 = vpack.c.b16 %v5659, %v5655
        %v5816 = vpack.c.b16 %v5660, %v5656
        %v5817 = vpack.c.b16 %v5661, %v5657
        %v5818 = vpack.c.b16 %v5662, %v5658
        %v5819 = vpack.c.b16 %v5667, %v5663
        %v5820 = vpack.c.b16 %v5668, %v5664
        %v5821 = vpack.c.b16 %v5669, %v5665
        %v5822 = vpack.c.b16 %v5670, %v5666
        %v5823 = vpack.c.b16 %v5675, %v5671
        %v5824 = vpack.c.b16 %v5676, %v5672
        %v5825 = vpack.c.b16 %v5677, %v5673
        %v5826 = vpack.c.b16 %v5678, %v5674
        %v5827 = vpack.c.b16 %v5683, %v5679
        %v5828 = vpack.c.b16 %v5684, %v5680
        %v5829 = vpack.c.b16 %v5685, %v5681
        %v5830 = vpack.c.b16 %v5686, %v5682
        %v5831 = vpack.c.b16 %v5691, %v5687
        %v5832 = vpack.c.b16 %v5692, %v5688
        %v5833 = vpack.c.b16 %v5693, %v5689
        %v5834 = vpack.c.b16 %v5694, %v5690
        %v5835 = vpack.c.b16 %v5699, %v5695
        %v5836 = vpack.c.b16 %v5700, %v5696
        %v5837 = vpack.c.b16 %v5701, %v5697
        %v5838 = vpack.c.b16 %v5702, %v5698
        %v5839 = vpack.c.b16 %v5707, %v5703
        %v5840 = vpack.c.b16 %v5708, %v5704
        %v5841 = vpack.c.b16 %v5709, %v5705
        %v5842 = vpack.c.b16 %v5710, %v5706
        %v5843 = vpack.c.b16 %v5715, %v5711
        %v5844 = vpack.c.b16 %v5716, %v5712
        %v5845 = vpack.c.b16 %v5717, %v5713
        %v5846 = vpack.c.b16 %v5718, %v5714
        %5975 = vmatprep.subr.bf16.mxu0 %v5720
        %5976 = vmatpush1.bf16.msra.mxu0 %v5719
        %5977 = vmatprep.subr.bf16.mxu0 %v5724
        %5978 = vmatpush1.bf16.msra.mxu0 %v5723
        %5979 = vmatprep.subr.bf16.mxu0 %v5728
        %5980 = vmatpush1.bf16.msra.mxu0 %v5727
        %5981 = vmatprep.subr.bf16.mxu0 %v5732
        %5982 = vmatpush1.bf16.msra.mxu0 %v5731
        %5983 = vmatprep.subr.bf16.mxu0 %v5736
        %5984 = vmatpush1.bf16.msra.mxu0 %v5735
        %5985 = vmatprep.subr.bf16.mxu0 %v5740
        %5986 = vmatpush1.bf16.msra.mxu0 %v5739
        %5987 = vmatprep.subr.bf16.mxu0 %v5744
        %5988 = vmatpush1.bf16.msra.mxu0 %v5743
        %5989 = vmatprep.subr.bf16.mxu0 %v5748
        %5990 = vmatpush1.bf16.msra.mxu0 %v5747
        %5991 = vmatprep.subr.bf16.mxu0 %v5752
        %5992 = vmatpush1.bf16.msra.mxu0 %v5751
        %5993 = vmatprep.subr.bf16.mxu0 %v5756
        %5994 = vmatpush1.bf16.msra.mxu0 %v5755
        %5995 = vmatprep.subr.bf16.mxu0 %v5760
        %5996 = vmatpush1.bf16.msra.mxu0 %v5759
        %5997 = vmatprep.subr.bf16.mxu0 %v5764
        %5998 = vmatpush1.bf16.msra.mxu0 %v5763
        %5999 = vmatprep.subr.bf16.mxu0 %v5768
        %6000 = vmatpush1.bf16.msra.mxu0 %v5767
        %6001 = vmatprep.subr.bf16.mxu0 %v5772
        %6002 = vmatpush1.bf16.msra.mxu0 %v5771
        %6003 = vmatprep.subr.bf16.mxu0 %v5776
        %6004 = vmatpush1.bf16.msra.mxu0 %v5775
        %6005 = vmatprep.subr.bf16.mxu0 %v5780
        %6006 = vmatpush1.bf16.msra.mxu0 %v5779
        %6007 = vmatprep.mubr.bf16.mxu0 %v4629
        %6008 = vmatmul.mubr.bf16.gmra.mrb[0].mxu0 %v4628
        %v6009 = vpop.f32.mrb[0].mxu0
        %v6010 = vadd.f32 0.0, %v6009
        %v6011 = vpop.f32.mrb[0].mxu0
        %v6012 = vadd.f32 0.0, %v6011
        %v6013 = vpop.f32.mrb[0].mxu0
        %v6014 = vadd.f32 0.0, %v6013
        %v6015 = vpop.f32.mrb[0].mxu0
        %v6016 = vadd.f32 0.0, %v6015
        %6017 = vdwg.mxu0
        %6018 = vmatprep.subr.bf16.mxu0 %v5784
        %6019 = vmatpush1.bf16.msra.mxu0 %v5783
        %6020 = vmatprep.subr.bf16.mxu0 %v5788
        %6021 = vmatpush1.bf16.msra.mxu0 %v5787
        %6022 = vmatprep.subr.bf16.mxu0 %v5792
        %6023 = vmatpush1.bf16.msra.mxu0 %v5791
        %6024 = vmatprep.subr.bf16.mxu0 %v5796
        %6025 = vmatpush1.bf16.msra.mxu0 %v5795
        %6026 = vmatprep.subr.bf16.mxu0 %v5800
        %6027 = vmatpush1.bf16.msra.mxu0 %v5799
        %6028 = vmatprep.subr.bf16.mxu0 %v5804
        %6029 = vmatpush1.bf16.msra.mxu0 %v5803
        %6030 = vmatprep.subr.bf16.mxu0 %v5808
        %6031 = vmatpush1.bf16.msra.mxu0 %v5807
        %6032 = vmatprep.subr.bf16.mxu0 %v5812
        %6033 = vmatpush1.bf16.msra.mxu0 %v5811
        %6034 = vmatprep.subr.bf16.mxu0 %v5816
        %6035 = vmatpush1.bf16.msra.mxu0 %v5815
        %6036 = vmatprep.subr.bf16.mxu0 %v5820
        %6037 = vmatpush1.bf16.msra.mxu0 %v5819
        %6038 = vmatprep.subr.bf16.mxu0 %v5824
        %6039 = vmatpush1.bf16.msra.mxu0 %v5823
        %6040 = vmatprep.subr.bf16.mxu0 %v5828
        %6041 = vmatpush1.bf16.msra.mxu0 %v5827
        %6042 = vmatprep.subr.bf16.mxu0 %v5832
        %6043 = vmatpush1.bf16.msra.mxu0 %v5831
        %6044 = vmatprep.subr.bf16.mxu0 %v5836
        %6045 = vmatpush1.bf16.msra.mxu0 %v5835
        %6046 = vmatprep.subr.bf16.mxu0 %v5840
        %6047 = vmatpush1.bf16.msra.mxu0 %v5839
        %6048 = vmatprep.subr.bf16.mxu0 %v5844
        %6049 = vmatpush1.bf16.msra.mxu0 %v5843
        %6050 = vmatprep.mubr.bf16.mxu0 %v4631
        %6051 = vmatmul.mubr.bf16.gmra.mrb[0].mxu0 %v4630
        %v6052 = vpop.f32.mrb[0].mxu0
        %v6053 = vadd.f32 %v6010, %v6052
        %v6054 = vpop.f32.mrb[0].mxu0
        %v6055 = vadd.f32 %v6012, %v6054
        %v6056 = vpop.f32.mrb[0].mxu0
        %v6057 = vadd.f32 %v6014, %v6056
        %v6058 = vpop.f32.mrb[0].mxu0
        %v6059 = vadd.f32 %v6016, %v6058
        %6060 = vdwg.mxu0
        %6061 = vmatprep.subr.bf16.mxu0 %v5722
        %6062 = vmatpush1.bf16.msra.mxu0 %v5721
        %6063 = vmatprep.subr.bf16.mxu0 %v5726
        %6064 = vmatpush1.bf16.msra.mxu0 %v5725
        %6065 = vmatprep.subr.bf16.mxu0 %v5730
        %6066 = vmatpush1.bf16.msra.mxu0 %v5729
        %6067 = vmatprep.subr.bf16.mxu0 %v5734
        %6068 = vmatpush1.bf16.msra.mxu0 %v5733
        %6069 = vmatprep.subr.bf16.mxu0 %v5738
        %6070 = vmatpush1.bf16.msra.mxu0 %v5737
        %6071 = vmatprep.subr.bf16.mxu0 %v5742
        %6072 = vmatpush1.bf16.msra.mxu0 %v5741
        %6073 = vmatprep.subr.bf16.mxu0 %v5746
        %6074 = vmatpush1.bf16.msra.mxu0 %v5745
        %6075 = vmatprep.subr.bf16.mxu0 %v5750
        %6076 = vmatpush1.bf16.msra.mxu0 %v5749
        %6077 = vmatprep.subr.bf16.mxu0 %v5754
        %6078 = vmatpush1.bf16.msra.mxu0 %v5753
        %6079 = vmatprep.subr.bf16.mxu0 %v5758
        %6080 = vmatpush1.bf16.msra.mxu0 %v5757
        %6081 = vmatprep.subr.bf16.mxu0 %v5762
        %6082 = vmatpush1.bf16.msra.mxu0 %v5761
        %6083 = vmatprep.subr.bf16.mxu0 %v5766
        %6084 = vmatpush1.bf16.msra.mxu0 %v5765
        %6085 = vmatprep.subr.bf16.mxu0 %v5770
        %6086 = vmatpush1.bf16.msra.mxu0 %v5769
        %6087 = vmatprep.subr.bf16.mxu0 %v5774
        %6088 = vmatpush1.bf16.msra.mxu0 %v5773
        %6089 = vmatprep.subr.bf16.mxu0 %v5778
        %6090 = vmatpush1.bf16.msra.mxu0 %v5777
        %6091 = vmatprep.subr.bf16.mxu0 %v5782
        %6092 = vmatpush1.bf16.msra.mxu0 %v5781
        %6093 = vmatprep.mubr.bf16.mxu0 %v4629
        %6094 = vmatmul.mubr.bf16.gmra.mrb[0].mxu0 %v4628
        %v6095 = vpop.f32.mrb[0].mxu0
        %v6096 = vadd.f32 0.0, %v6095
        %v6097 = vpop.f32.mrb[0].mxu0
        %v6098 = vadd.f32 0.0, %v6097
        %v6099 = vpop.f32.mrb[0].mxu0
        %v6100 = vadd.f32 0.0, %v6099
        %v6101 = vpop.f32.mrb[0].mxu0
        %v6102 = vadd.f32 0.0, %v6101
        %6103 = vdwg.mxu0
        %6104 = vmatprep.subr.bf16.mxu0 %v5786
        %6105 = vmatpush1.bf16.msra.mxu0 %v5785
        %6106 = vmatprep.subr.bf16.mxu0 %v5790
        %6107 = vmatpush1.bf16.msra.mxu0 %v5789
        %6108 = vmatprep.subr.bf16.mxu0 %v5794
        %6109 = vmatpush1.bf16.msra.mxu0 %v5793
        %6110 = vmatprep.subr.bf16.mxu0 %v5798
        %6111 = vmatpush1.bf16.msra.mxu0 %v5797
        %6112 = vmatprep.subr.bf16.mxu0 %v5802
        %6113 = vmatpush1.bf16.msra.mxu0 %v5801
        %6114 = vmatprep.subr.bf16.mxu0 %v5806
        %6115 = vmatpush1.bf16.msra.mxu0 %v5805
        %6116 = vmatprep.subr.bf16.mxu0 %v5810
        %6117 = vmatpush1.bf16.msra.mxu0 %v5809
        %6118 = vmatprep.subr.bf16.mxu0 %v5814
        %6119 = vmatpush1.bf16.msra.mxu0 %v5813
        %6120 = vmatprep.subr.bf16.mxu0 %v5818
        %6121 = vmatpush1.bf16.msra.mxu0 %v5817
        %6122 = vmatprep.subr.bf16.mxu0 %v5822
        %6123 = vmatpush1.bf16.msra.mxu0 %v5821
        %6124 = vmatprep.subr.bf16.mxu0 %v5826
        %6125 = vmatpush1.bf16.msra.mxu0 %v5825
        %6126 = vmatprep.subr.bf16.mxu0 %v5830
        %6127 = vmatpush1.bf16.msra.mxu0 %v5829
        %6128 = vmatprep.subr.bf16.mxu0 %v5834
        %6129 = vmatpush1.bf16.msra.mxu0 %v5833
        %6130 = vmatprep.subr.bf16.mxu0 %v5838
        %6131 = vmatpush1.bf16.msra.mxu0 %v5837
        %6132 = vmatprep.subr.bf16.mxu0 %v5842
        %6133 = vmatpush1.bf16.msra.mxu0 %v5841
        %6134 = vmatprep.subr.bf16.mxu0 %v5846
        %6135 = vmatpush1.bf16.msra.mxu0 %v5845
        %6136 = vmatprep.mubr.bf16.mxu0 %v4631
        %6137 = vmatmul.mubr.bf16.gmra.mrb[0].mxu0 %v4630
        %v6138 = vpop.f32.mrb[0].mxu0
        %v6139 = vadd.f32 %v6096, %v6138
        %v6140 = vpop.f32.mrb[0].mxu0
        %v6141 = vadd.f32 %v6098, %v6140
        %v6142 = vpop.f32.mrb[0].mxu0
        %v6143 = vadd.f32 %v6100, %v6142
        %v6144 = vpop.f32.mrb[0].mxu0
        %v6145 = vadd.f32 %v6102, %v6144
        %6146 = vdwg.mxu0
        %v6275 = vunpack.c.l.b16 %v5078
        %v6276 = vunpack.c.h.b16 %v5078
        %v6277 = vunpack.c.l.b16 %v5079
        %v6278 = vunpack.c.h.b16 %v5079
        %v6279 = vunpack.c.l.b16 %v5080
        %v6280 = vunpack.c.h.b16 %v5080
        %v6281 = vunpack.c.l.b16 %v5081
        %v6282 = vunpack.c.h.b16 %v5081
        %v6283 = vunpack.c.l.b16 %v5082
        %v6284 = vunpack.c.h.b16 %v5082
        %v6285 = vunpack.c.l.b16 %v5083
        %v6286 = vunpack.c.h.b16 %v5083
        %v6287 = vunpack.c.l.b16 %v5084
        %v6288 = vunpack.c.h.b16 %v5084
        %v6289 = vunpack.c.l.b16 %v5085
        %v6290 = vunpack.c.h.b16 %v5085
        %v6291 = vunpack.c.l.b16 %v5086
        %v6292 = vunpack.c.h.b16 %v5086
        %v6293 = vunpack.c.l.b16 %v5087
        %v6294 = vunpack.c.h.b16 %v5087
        %v6295 = vunpack.c.l.b16 %v5088
        %v6296 = vunpack.c.h.b16 %v5088
        %v6297 = vunpack.c.l.b16 %v5089
        %v6298 = vunpack.c.h.b16 %v5089
        %v6299 = vunpack.c.l.b16 %v5090
        %v6300 = vunpack.c.h.b16 %v5090
        %v6301 = vunpack.c.l.b16 %v5091
        %v6302 = vunpack.c.h.b16 %v5091
        %v6303 = vunpack.c.l.b16 %v5092
        %v6304 = vunpack.c.h.b16 %v5092
        %v6305 = vunpack.c.l.b16 %v5093
        %v6306 = vunpack.c.h.b16 %v5093
        %v6307 = vunpack.c.l.b16 %v5094
        %v6308 = vunpack.c.h.b16 %v5094
        %v6309 = vunpack.c.l.b16 %v5095
        %v6310 = vunpack.c.h.b16 %v5095
        %v6311 = vunpack.c.l.b16 %v5096
        %v6312 = vunpack.c.h.b16 %v5096
        %v6313 = vunpack.c.l.b16 %v5097
        %v6314 = vunpack.c.h.b16 %v5097
        %v6315 = vunpack.c.l.b16 %v5098
        %v6316 = vunpack.c.h.b16 %v5098
        %v6317 = vunpack.c.l.b16 %v5099
        %v6318 = vunpack.c.h.b16 %v5099
        %v6319 = vunpack.c.l.b16 %v5100
        %v6320 = vunpack.c.h.b16 %v5100
        %v6321 = vunpack.c.l.b16 %v5101
        %v6322 = vunpack.c.h.b16 %v5101
        %v6323 = vunpack.c.l.b16 %v5102
        %v6324 = vunpack.c.h.b16 %v5102
        %v6325 = vunpack.c.l.b16 %v5103
        %v6326 = vunpack.c.h.b16 %v5103
        %v6327 = vunpack.c.l.b16 %v5104
        %v6328 = vunpack.c.h.b16 %v5104
        %v6329 = vunpack.c.l.b16 %v5105
        %v6330 = vunpack.c.h.b16 %v5105
        %v6331 = vunpack.c.l.b16 %v5106
        %v6332 = vunpack.c.h.b16 %v5106
        %v6333 = vunpack.c.l.b16 %v5107
        %v6334 = vunpack.c.h.b16 %v5107
        %v6335 = vunpack.c.l.b16 %v5108
        %v6336 = vunpack.c.h.b16 %v5108
        %v6337 = vunpack.c.l.b16 %v5109
        %v6338 = vunpack.c.h.b16 %v5109
        %v6339 = vunpack.c.l.b16 %v5110
        %v6340 = vunpack.c.h.b16 %v5110
        %v6341 = vunpack.c.l.b16 %v5111
        %v6342 = vunpack.c.h.b16 %v5111
        %v6343 = vunpack.c.l.b16 %v5112
        %v6344 = vunpack.c.h.b16 %v5112
        %v6345 = vunpack.c.l.b16 %v5113
        %v6346 = vunpack.c.h.b16 %v5113
        %v6347 = vunpack.c.l.b16 %v5114
        %v6348 = vunpack.c.h.b16 %v5114
        %v6349 = vunpack.c.l.b16 %v5115
        %v6350 = vunpack.c.h.b16 %v5115
        %v6351 = vunpack.c.l.b16 %v5116
        %v6352 = vunpack.c.h.b16 %v5116
        %v6353 = vunpack.c.l.b16 %v5117
        %v6354 = vunpack.c.h.b16 %v5117
        %v6355 = vunpack.c.l.b16 %v5118
        %v6356 = vunpack.c.h.b16 %v5118
        %v6357 = vunpack.c.l.b16 %v5119
        %v6358 = vunpack.c.h.b16 %v5119
        %v6359 = vunpack.c.l.b16 %v5120
        %v6360 = vunpack.c.h.b16 %v5120
        %v6361 = vunpack.c.l.b16 %v5121
        %v6362 = vunpack.c.h.b16 %v5121
        %v6363 = vunpack.c.l.b16 %v5122
        %v6364 = vunpack.c.h.b16 %v5122
        %v6365 = vunpack.c.l.b16 %v5123
        %v6366 = vunpack.c.h.b16 %v5123
        %v6367 = vunpack.c.l.b16 %v5124
        %v6368 = vunpack.c.h.b16 %v5124
        %v6369 = vunpack.c.l.b16 %v5125
        %v6370 = vunpack.c.h.b16 %v5125
        %v6371 = vunpack.c.l.b16 %v5126
        %v6372 = vunpack.c.h.b16 %v5126
        %v6373 = vunpack.c.l.b16 %v5127
        %v6374 = vunpack.c.h.b16 %v5127
        %v6375 = vunpack.c.l.b16 %v5128
        %v6376 = vunpack.c.h.b16 %v5128
        %v6377 = vunpack.c.l.b16 %v5129
        %v6378 = vunpack.c.h.b16 %v5129
        %v6379 = vunpack.c.l.b16 %v5130
        %v6380 = vunpack.c.h.b16 %v5130
        %v6381 = vunpack.c.l.b16 %v5131
        %v6382 = vunpack.c.h.b16 %v5131
        %v6383 = vunpack.c.l.b16 %v5132
        %v6384 = vunpack.c.h.b16 %v5132
        %v6385 = vunpack.c.l.b16 %v5133
        %v6386 = vunpack.c.h.b16 %v5133
        %v6387 = vunpack.c.l.b16 %v5134
        %v6388 = vunpack.c.h.b16 %v5134
        %v6389 = vunpack.c.l.b16 %v5135
        %v6390 = vunpack.c.h.b16 %v5135
        %v6391 = vunpack.c.l.b16 %v5136
        %v6392 = vunpack.c.h.b16 %v5136
        %v6393 = vunpack.c.l.b16 %v5137
        %v6394 = vunpack.c.h.b16 %v5137
        %v6395 = vunpack.c.l.b16 %v5138
        %v6396 = vunpack.c.h.b16 %v5138
        %v6397 = vunpack.c.l.b16 %v5139
        %v6398 = vunpack.c.h.b16 %v5139
        %v6399 = vunpack.c.l.b16 %v5140
        %v6400 = vunpack.c.h.b16 %v5140
        %v6401 = vunpack.c.l.b16 %v5141
        %v6402 = vunpack.c.h.b16 %v5141
        %v6403 = vunpack.c.l.b16 %v5142
        %v6404 = vunpack.c.h.b16 %v5142
        %v6405 = vunpack.c.l.b16 %v5143
        %v6406 = vunpack.c.h.b16 %v5143
        %v6407 = vunpack.c.l.b16 %v5144
        %v6408 = vunpack.c.h.b16 %v5144
        %v6409 = vunpack.c.l.b16 %v5145
        %v6410 = vunpack.c.h.b16 %v5145
        %v6411 = vunpack.c.l.b16 %v5146
        %v6412 = vunpack.c.h.b16 %v5146
        %v6413 = vunpack.c.l.b16 %v5147
        %v6414 = vunpack.c.h.b16 %v5147
        %v6415 = vunpack.c.l.b16 %v5148
        %v6416 = vunpack.c.h.b16 %v5148
        %v6417 = vunpack.c.l.b16 %v5149
        %v6418 = vunpack.c.h.b16 %v5149
        %v6419 = vunpack.c.l.b16 %v5150
        %v6420 = vunpack.c.h.b16 %v5150
        %v6421 = vunpack.c.l.b16 %v5151
        %v6422 = vunpack.c.h.b16 %v5151
        %v6423 = vunpack.c.l.b16 %v5152
        %v6424 = vunpack.c.h.b16 %v5152
        %v6425 = vunpack.c.l.b16 %v5153
        %v6426 = vunpack.c.h.b16 %v5153
        %v6427 = vunpack.c.l.b16 %v5154
        %v6428 = vunpack.c.h.b16 %v5154
        %v6429 = vunpack.c.l.b16 %v5155
        %v6430 = vunpack.c.h.b16 %v5155
        %v6431 = vunpack.c.l.b16 %v5156
        %v6432 = vunpack.c.h.b16 %v5156
        %v6433 = vunpack.c.l.b16 %v5157
        %v6434 = vunpack.c.h.b16 %v5157
        %v6435 = vunpack.c.l.b16 %v5158
        %v6436 = vunpack.c.h.b16 %v5158
        %v6437 = vunpack.c.l.b16 %v5159
        %v6438 = vunpack.c.h.b16 %v5159
        %v6439 = vunpack.c.l.b16 %v5160
        %v6440 = vunpack.c.h.b16 %v5160
        %v6441 = vunpack.c.l.b16 %v5161
        %v6442 = vunpack.c.h.b16 %v5161
        %v6443 = vunpack.c.l.b16 %v5162
        %v6444 = vunpack.c.h.b16 %v5162
        %v6445 = vunpack.c.l.b16 %v5163
        %v6446 = vunpack.c.h.b16 %v5163
        %v6447 = vunpack.c.l.b16 %v5164
        %v6448 = vunpack.c.h.b16 %v5164
        %v6449 = vunpack.c.l.b16 %v5165
        %v6450 = vunpack.c.h.b16 %v5165
        %v6451 = vunpack.c.l.b16 %v5166
        %v6452 = vunpack.c.h.b16 %v5166
        %v6453 = vunpack.c.l.b16 %v5167
        %v6454 = vunpack.c.h.b16 %v5167
        %v6455 = vunpack.c.l.b16 %v5168
        %v6456 = vunpack.c.h.b16 %v5168
        %v6457 = vunpack.c.l.b16 %v5169
        %v6458 = vunpack.c.h.b16 %v5169
        %v6459 = vunpack.c.l.b16 %v5170
        %v6460 = vunpack.c.h.b16 %v5170
        %v6461 = vunpack.c.l.b16 %v5171
        %v6462 = vunpack.c.h.b16 %v5171
        %v6463 = vunpack.c.l.b16 %v5172
        %v6464 = vunpack.c.h.b16 %v5172
        %v6465 = vunpack.c.l.b16 %v5173
        %v6466 = vunpack.c.h.b16 %v5173
        %v6467 = vunpack.c.l.b16 %v5174
        %v6468 = vunpack.c.h.b16 %v5174
        %v6469 = vunpack.c.l.b16 %v5175
        %v6470 = vunpack.c.h.b16 %v5175
        %v6471 = vunpack.c.l.b16 %v5176
        %v6472 = vunpack.c.h.b16 %v5176
        %v6473 = vunpack.c.l.b16 %v5177
        %v6474 = vunpack.c.h.b16 %v5177
        %v6475 = vunpack.c.l.b16 %v5178
        %v6476 = vunpack.c.h.b16 %v5178
        %v6477 = vunpack.c.l.b16 %v5179
        %v6478 = vunpack.c.h.b16 %v5179
        %v6479 = vunpack.c.l.b16 %v5180
        %v6480 = vunpack.c.h.b16 %v5180
        %v6481 = vunpack.c.l.b16 %v5181
        %v6482 = vunpack.c.h.b16 %v5181
        %v6483 = vunpack.c.l.b16 %v5182
        %v6484 = vunpack.c.h.b16 %v5182
        %v6485 = vunpack.c.l.b16 %v5183
        %v6486 = vunpack.c.h.b16 %v5183
        %v6487 = vunpack.c.l.b16 %v5184
        %v6488 = vunpack.c.h.b16 %v5184
        %v6489 = vunpack.c.l.b16 %v5185
        %v6490 = vunpack.c.h.b16 %v5185
        %v6491 = vunpack.c.l.b16 %v5186
        %v6492 = vunpack.c.h.b16 %v5186
        %v6493 = vunpack.c.l.b16 %v5187
        %v6494 = vunpack.c.h.b16 %v5187
        %v6495 = vunpack.c.l.b16 %v5188
        %v6496 = vunpack.c.h.b16 %v5188
        %v6497 = vunpack.c.l.b16 %v5189
        %v6498 = vunpack.c.h.b16 %v5189
        %v6499 = vunpack.c.l.b16 %v5190
        %v6500 = vunpack.c.h.b16 %v5190
        %v6501 = vunpack.c.l.b16 %v5191
        %v6502 = vunpack.c.h.b16 %v5191
        %v6503 = vunpack.c.l.b16 %v5192
        %v6504 = vunpack.c.h.b16 %v5192
        %v6505 = vunpack.c.l.b16 %v5193
        %v6506 = vunpack.c.h.b16 %v5193
        %v6507 = vunpack.c.l.b16 %v5194
        %v6508 = vunpack.c.h.b16 %v5194
        %v6509 = vunpack.c.l.b16 %v5195
        %v6510 = vunpack.c.h.b16 %v5195
        %v6511 = vunpack.c.l.b16 %v5196
        %v6512 = vunpack.c.h.b16 %v5196
        %v6513 = vunpack.c.l.b16 %v5197
        %v6514 = vunpack.c.h.b16 %v5197
        %v6515 = vunpack.c.l.b16 %v5198
        %v6516 = vunpack.c.h.b16 %v5198
        %v6517 = vunpack.c.l.b16 %v5199
        %v6518 = vunpack.c.h.b16 %v5199
        %v6519 = vunpack.c.l.b16 %v5200
        %v6520 = vunpack.c.h.b16 %v5200
        %v6521 = vunpack.c.l.b16 %v5201
        %v6522 = vunpack.c.h.b16 %v5201
        %v6523 = vunpack.c.l.b16 %v5202
        %v6524 = vunpack.c.h.b16 %v5202
        %v6525 = vunpack.c.l.b16 %v5203
        %v6526 = vunpack.c.h.b16 %v5203
        %v6527 = vunpack.c.l.b16 %v5204
        %v6528 = vunpack.c.h.b16 %v5204
        %v6529 = vunpack.c.l.b16 %v5205
        %v6530 = vunpack.c.h.b16 %v5205
        %v6531 = vpack.c.b16 %v6279, %v6275
        %v6532 = vpack.c.b16 %v6280, %v6276
        %v6533 = vpack.c.b16 %v6281, %v6277
        %v6534 = vpack.c.b16 %v6282, %v6278
        %v6535 = vpack.c.b16 %v6287, %v6283
        %v6536 = vpack.c.b16 %v6288, %v6284
        %v6537 = vpack.c.b16 %v6289, %v6285
        %v6538 = vpack.c.b16 %v6290, %v6286
        %v6539 = vpack.c.b16 %v6295, %v6291
        %v6540 = vpack.c.b16 %v6296, %v6292
        %v6541 = vpack.c.b16 %v6297, %v6293
        %v6542 = vpack.c.b16 %v6298, %v6294
        %v6543 = vpack.c.b16 %v6303, %v6299
        %v6544 = vpack.c.b16 %v6304, %v6300
        %v6545 = vpack.c.b16 %v6305, %v6301
        %v6546 = vpack.c.b16 %v6306, %v6302
        %v6547 = vpack.c.b16 %v6311, %v6307
        %v6548 = vpack.c.b16 %v6312, %v6308
        %v6549 = vpack.c.b16 %v6313, %v6309
        %v6550 = vpack.c.b16 %v6314, %v6310
        %v6551 = vpack.c.b16 %v6319, %v6315
        %v6552 = vpack.c.b16 %v6320, %v6316
        %v6553 = vpack.c.b16 %v6321, %v6317
        %v6554 = vpack.c.b16 %v6322, %v6318
        %v6555 = vpack.c.b16 %v6327, %v6323
        %v6556 = vpack.c.b16 %v6328, %v6324
        %v6557 = vpack.c.b16 %v6329, %v6325
        %v6558 = vpack.c.b16 %v6330, %v6326
        %v6559 = vpack.c.b16 %v6335, %v6331
        %v6560 = vpack.c.b16 %v6336, %v6332
        %v6561 = vpack.c.b16 %v6337, %v6333
        %v6562 = vpack.c.b16 %v6338, %v6334
        %v6563 = vpack.c.b16 %v6343, %v6339
        %v6564 = vpack.c.b16 %v6344, %v6340
        %v6565 = vpack.c.b16 %v6345, %v6341
        %v6566 = vpack.c.b16 %v6346, %v6342
        %v6567 = vpack.c.b16 %v6351, %v6347
        %v6568 = vpack.c.b16 %v6352, %v6348
        %v6569 = vpack.c.b16 %v6353, %v6349
        %v6570 = vpack.c.b16 %v6354, %v6350
        %v6571 = vpack.c.b16 %v6359, %v6355
        %v6572 = vpack.c.b16 %v6360, %v6356
        %v6573 = vpack.c.b16 %v6361, %v6357
        %v6574 = vpack.c.b16 %v6362, %v6358
        %v6575 = vpack.c.b16 %v6367, %v6363
        %v6576 = vpack.c.b16 %v6368, %v6364
        %v6577 = vpack.c.b16 %v6369, %v6365
        %v6578 = vpack.c.b16 %v6370, %v6366
        %v6579 = vpack.c.b16 %v6375, %v6371
        %v6580 = vpack.c.b16 %v6376, %v6372
        %v6581 = vpack.c.b16 %v6377, %v6373
        %v6582 = vpack.c.b16 %v6378, %v6374
        %v6583 = vpack.c.b16 %v6383, %v6379
        %v6584 = vpack.c.b16 %v6384, %v6380
        %v6585 = vpack.c.b16 %v6385, %v6381
        %v6586 = vpack.c.b16 %v6386, %v6382
        %v6587 = vpack.c.b16 %v6391, %v6387
        %v6588 = vpack.c.b16 %v6392, %v6388
        %v6589 = vpack.c.b16 %v6393, %v6389
        %v6590 = vpack.c.b16 %v6394, %v6390
        %v6591 = vpack.c.b16 %v6399, %v6395
        %v6592 = vpack.c.b16 %v6400, %v6396
        %v6593 = vpack.c.b16 %v6401, %v6397
        %v6594 = vpack.c.b16 %v6402, %v6398
        %v6595 = vpack.c.b16 %v6407, %v6403
        %v6596 = vpack.c.b16 %v6408, %v6404
        %v6597 = vpack.c.b16 %v6409, %v6405
        %v6598 = vpack.c.b16 %v6410, %v6406
        %v6599 = vpack.c.b16 %v6415, %v6411
        %v6600 = vpack.c.b16 %v6416, %v6412
        %v6601 = vpack.c.b16 %v6417, %v6413
        %v6602 = vpack.c.b16 %v6418, %v6414
        %v6603 = vpack.c.b16 %v6423, %v6419
        %v6604 = vpack.c.b16 %v6424, %v6420
        %v6605 = vpack.c.b16 %v6425, %v6421
        %v6606 = vpack.c.b16 %v6426, %v6422
        %v6607 = vpack.c.b16 %v6431, %v6427
        %v6608 = vpack.c.b16 %v6432, %v6428
        %v6609 = vpack.c.b16 %v6433, %v6429
        %v6610 = vpack.c.b16 %v6434, %v6430
        %v6611 = vpack.c.b16 %v6439, %v6435
        %v6612 = vpack.c.b16 %v6440, %v6436
        %v6613 = vpack.c.b16 %v6441, %v6437
        %v6614 = vpack.c.b16 %v6442, %v6438
        %v6615 = vpack.c.b16 %v6447, %v6443
        %v6616 = vpack.c.b16 %v6448, %v6444
        %v6617 = vpack.c.b16 %v6449, %v6445
        %v6618 = vpack.c.b16 %v6450, %v6446
        %v6619 = vpack.c.b16 %v6455, %v6451
        %v6620 = vpack.c.b16 %v6456, %v6452
        %v6621 = vpack.c.b16 %v6457, %v6453
        %v6622 = vpack.c.b16 %v6458, %v6454
        %v6623 = vpack.c.b16 %v6463, %v6459
        %v6624 = vpack.c.b16 %v6464, %v6460
        %v6625 = vpack.c.b16 %v6465, %v6461
        %v6626 = vpack.c.b16 %v6466, %v6462
        %v6627 = vpack.c.b16 %v6471, %v6467
        %v6628 = vpack.c.b16 %v6472, %v6468
        %v6629 = vpack.c.b16 %v6473, %v6469
        %v6630 = vpack.c.b16 %v6474, %v6470
        %v6631 = vpack.c.b16 %v6479, %v6475
        %v6632 = vpack.c.b16 %v6480, %v6476
        %v6633 = vpack.c.b16 %v6481, %v6477
        %v6634 = vpack.c.b16 %v6482, %v6478
        %v6635 = vpack.c.b16 %v6487, %v6483
        %v6636 = vpack.c.b16 %v6488, %v6484
        %v6637 = vpack.c.b16 %v6489, %v6485
        %v6638 = vpack.c.b16 %v6490, %v6486
        %v6639 = vpack.c.b16 %v6495, %v6491
        %v6640 = vpack.c.b16 %v6496, %v6492
        %v6641 = vpack.c.b16 %v6497, %v6493
        %v6642 = vpack.c.b16 %v6498, %v6494
        %v6643 = vpack.c.b16 %v6503, %v6499
        %v6644 = vpack.c.b16 %v6504, %v6500
        %v6645 = vpack.c.b16 %v6505, %v6501
        %v6646 = vpack.c.b16 %v6506, %v6502
        %v6647 = vpack.c.b16 %v6511, %v6507
        %v6648 = vpack.c.b16 %v6512, %v6508
        %v6649 = vpack.c.b16 %v6513, %v6509
        %v6650 = vpack.c.b16 %v6514, %v6510
        %v6651 = vpack.c.b16 %v6519, %v6515
        %v6652 = vpack.c.b16 %v6520, %v6516
        %v6653 = vpack.c.b16 %v6521, %v6517
        %v6654 = vpack.c.b16 %v6522, %v6518
        %v6655 = vpack.c.b16 %v6527, %v6523
        %v6656 = vpack.c.b16 %v6528, %v6524
        %v6657 = vpack.c.b16 %v6529, %v6525
        %v6658 = vpack.c.b16 %v6530, %v6526
        %6787 = vmatprep.subr.bf16.mxu0 %v6532
        %6788 = vmatpush1.bf16.msra.mxu0 %v6531
        %6789 = vmatprep.subr.bf16.mxu0 %v6536
        %6790 = vmatpush1.bf16.msra.mxu0 %v6535
        %6791 = vmatprep.subr.bf16.mxu0 %v6540
        %6792 = vmatpush1.bf16.msra.mxu0 %v6539
        %6793 = vmatprep.subr.bf16.mxu0 %v6544
        %6794 = vmatpush1.bf16.msra.mxu0 %v6543
        %6795 = vmatprep.subr.bf16.mxu0 %v6548
        %6796 = vmatpush1.bf16.msra.mxu0 %v6547
        %6797 = vmatprep.subr.bf16.mxu0 %v6552
        %6798 = vmatpush1.bf16.msra.mxu0 %v6551
        %6799 = vmatprep.subr.bf16.mxu0 %v6556
        %6800 = vmatpush1.bf16.msra.mxu0 %v6555
        %6801 = vmatprep.subr.bf16.mxu0 %v6560
        %6802 = vmatpush1.bf16.msra.mxu0 %v6559
        %6803 = vmatprep.subr.bf16.mxu0 %v6564
        %6804 = vmatpush1.bf16.msra.mxu0 %v6563
        %6805 = vmatprep.subr.bf16.mxu0 %v6568
        %6806 = vmatpush1.bf16.msra.mxu0 %v6567
        %6807 = vmatprep.subr.bf16.mxu0 %v6572
        %6808 = vmatpush1.bf16.msra.mxu0 %v6571
        %6809 = vmatprep.subr.bf16.mxu0 %v6576
        %6810 = vmatpush1.bf16.msra.mxu0 %v6575
        %6811 = vmatprep.subr.bf16.mxu0 %v6580
        %6812 = vmatpush1.bf16.msra.mxu0 %v6579
        %6813 = vmatprep.subr.bf16.mxu0 %v6584
        %6814 = vmatpush1.bf16.msra.mxu0 %v6583
        %6815 = vmatprep.subr.bf16.mxu0 %v6588
        %6816 = vmatpush1.bf16.msra.mxu0 %v6587
        %6817 = vmatprep.subr.bf16.mxu0 %v6592
        %6818 = vmatpush1.bf16.msra.mxu0 %v6591
        %6819 = vmatprep.mubr.bf16.mxu0 %v5059
        %6820 = vmatmul.mubr.bf16.gmra.mrb[0].mxu0 %v5058
        %v6821 = vpop.f32.mrb[0].mxu0
        %v6822 = vadd.f32 %v6053, %v6821
        %v6823 = vpop.f32.mrb[0].mxu0
        %v6824 = vadd.f32 %v6055, %v6823
        %v6825 = vpop.f32.mrb[0].mxu0
        %v6826 = vadd.f32 %v6057, %v6825
        %v6827 = vpop.f32.mrb[0].mxu0
        %v6828 = vadd.f32 %v6059, %v6827
        %6829 = vdwg.mxu0
        %6830 = vmatprep.subr.bf16.mxu0 %v6596
        %6831 = vmatpush1.bf16.msra.mxu0 %v6595
        %6832 = vmatprep.subr.bf16.mxu0 %v6600
        %6833 = vmatpush1.bf16.msra.mxu0 %v6599
        %6834 = vmatprep.subr.bf16.mxu0 %v6604
        %6835 = vmatpush1.bf16.msra.mxu0 %v6603
        %6836 = vmatprep.subr.bf16.mxu0 %v6608
        %6837 = vmatpush1.bf16.msra.mxu0 %v6607
        %6838 = vmatprep.subr.bf16.mxu0 %v6612
        %6839 = vmatpush1.bf16.msra.mxu0 %v6611
        %6840 = vmatprep.subr.bf16.mxu0 %v6616
        %6841 = vmatpush1.bf16.msra.mxu0 %v6615
        %6842 = vmatprep.subr.bf16.mxu0 %v6620
        %6843 = vmatpush1.bf16.msra.mxu0 %v6619
        %6844 = vmatprep.subr.bf16.mxu0 %v6624
        %6845 = vmatpush1.bf16.msra.mxu0 %v6623
        %6846 = vmatprep.subr.bf16.mxu0 %v6628
        %6847 = vmatpush1.bf16.msra.mxu0 %v6627
        %6848 = vmatprep.subr.bf16.mxu0 %v6632
        %6849 = vmatpush1.bf16.msra.mxu0 %v6631
        %6850 = vmatprep.subr.bf16.mxu0 %v6636
        %6851 = vmatpush1.bf16.msra.mxu0 %v6635
        %6852 = vmatprep.subr.bf16.mxu0 %v6640
        %6853 = vmatpush1.bf16.msra.mxu0 %v6639
        %6854 = vmatprep.subr.bf16.mxu0 %v6644
        %6855 = vmatpush1.bf16.msra.mxu0 %v6643
        %6856 = vmatprep.subr.bf16.mxu0 %v6648
        %6857 = vmatpush1.bf16.msra.mxu0 %v6647
        %6858 = vmatprep.subr.bf16.mxu0 %v6652
        %6859 = vmatpush1.bf16.msra.mxu0 %v6651
        %6860 = vmatprep.subr.bf16.mxu0 %v6656
        %6861 = vmatpush1.bf16.msra.mxu0 %v6655
        %6862 = vmatprep.mubr.bf16.mxu0 %v5061
        %6863 = vmatmul.mubr.bf16.gmra.mrb[0].mxu0 %v5060
        %v6864 = vpop.f32.mrb[0].mxu0
        %v6865 = vadd.f32 %v6822, %v6864
        %v6866 = vpop.f32.mrb[0].mxu0
        %v6867 = vadd.f32 %v6824, %v6866
        %v6868 = vpop.f32.mrb[0].mxu0
        %v6869 = vadd.f32 %v6826, %v6868
        %v6870 = vpop.f32.mrb[0].mxu0
        %v6871 = vadd.f32 %v6828, %v6870
        %6872 = vdwg.mxu0
        %6873 = vmatprep.subr.bf16.mxu0 %v6534
        %6874 = vmatpush1.bf16.msra.mxu0 %v6533
        %6875 = vmatprep.subr.bf16.mxu0 %v6538
        %6876 = vmatpush1.bf16.msra.mxu0 %v6537
        %6877 = vmatprep.subr.bf16.mxu0 %v6542
        %6878 = vmatpush1.bf16.msra.mxu0 %v6541
        %6879 = vmatprep.subr.bf16.mxu0 %v6546
        %6880 = vmatpush1.bf16.msra.mxu0 %v6545
        %6881 = vmatprep.subr.bf16.mxu0 %v6550
        %6882 = vmatpush1.bf16.msra.mxu0 %v6549
        %6883 = vmatprep.subr.bf16.mxu0 %v6554
        %6884 = vmatpush1.bf16.msra.mxu0 %v6553
        %6885 = vmatprep.subr.bf16.mxu0 %v6558
        %6886 = vmatpush1.bf16.msra.mxu0 %v6557
        %6887 = vmatprep.subr.bf16.mxu0 %v6562
        %6888 = vmatpush1.bf16.msra.mxu0 %v6561
        %6889 = vmatprep.subr.bf16.mxu0 %v6566
        %6890 = vmatpush1.bf16.msra.mxu0 %v6565
        %6891 = vmatprep.subr.bf16.mxu0 %v6570
        %6892 = vmatpush1.bf16.msra.mxu0 %v6569
        %6893 = vmatprep.subr.bf16.mxu0 %v6574
        %6894 = vmatpush1.bf16.msra.mxu0 %v6573
        %6895 = vmatprep.subr.bf16.mxu0 %v6578
        %6896 = vmatpush1.bf16.msra.mxu0 %v6577
        %6897 = vmatprep.subr.bf16.mxu0 %v6582
        %6898 = vmatpush1.bf16.msra.mxu0 %v6581
        %6899 = vmatprep.subr.bf16.mxu0 %v6586
        %6900 = vmatpush1.bf16.msra.mxu0 %v6585
        %6901 = vmatprep.subr.bf16.mxu0 %v6590
        %6902 = vmatpush1.bf16.msra.mxu0 %v6589
        %6903 = vmatprep.subr.bf16.mxu0 %v6594
        %6904 = vmatpush1.bf16.msra.mxu0 %v6593
        %6905 = vmatprep.mubr.bf16.mxu0 %v5059
        %6906 = vmatmul.mubr.bf16.gmra.mrb[0].mxu0 %v5058
        %v6907 = vpop.f32.mrb[0].mxu0
        %v6908 = vadd.f32 %v6139, %v6907
        %v6909 = vpop.f32.mrb[0].mxu0
        %v6910 = vadd.f32 %v6141, %v6909
        %v6911 = vpop.f32.mrb[0].mxu0
        %v6912 = vadd.f32 %v6143, %v6911
        %v6913 = vpop.f32.mrb[0].mxu0
        %v6914 = vadd.f32 %v6145, %v6913
        %6915 = vdwg.mxu0
        %6916 = vmatprep.subr.bf16.mxu0 %v6598
        %6917 = vmatpush1.bf16.msra.mxu0 %v6597
        %6918 = vmatprep.subr.bf16.mxu0 %v6602
        %6919 = vmatpush1.bf16.msra.mxu0 %v6601
        %6920 = vmatprep.subr.bf16.mxu0 %v6606
        %6921 = vmatpush1.bf16.msra.mxu0 %v6605
        %6922 = vmatprep.subr.bf16.mxu0 %v6610
        %6923 = vmatpush1.bf16.msra.mxu0 %v6609
        %6924 = vmatprep.subr.bf16.mxu0 %v6614
        %6925 = vmatpush1.bf16.msra.mxu0 %v6613
        %6926 = vmatprep.subr.bf16.mxu0 %v6618
        %6927 = vmatpush1.bf16.msra.mxu0 %v6617
        %6928 = vmatprep.subr.bf16.mxu0 %v6622
        %6929 = vmatpush1.bf16.msra.mxu0 %v6621
        %6930 = vmatprep.subr.bf16.mxu0 %v6626
        %6931 = vmatpush1.bf16.msra.mxu0 %v6625
        %6932 = vmatprep.subr.bf16.mxu0 %v6630
        %6933 = vmatpush1.bf16.msra.mxu0 %v6629
        %6934 = vmatprep.subr.bf16.mxu0 %v6634
        %6935 = vmatpush1.bf16.msra.mxu0 %v6633
        %6936 = vmatprep.subr.bf16.mxu0 %v6638
        %6937 = vmatpush1.bf16.msra.mxu0 %v6637
        %6938 = vmatprep.subr.bf16.mxu0 %v6642
        %6939 = vmatpush1.bf16.msra.mxu0 %v6641
        %6940 = vmatprep.subr.bf16.mxu0 %v6646
        %6941 = vmatpush1.bf16.msra.mxu0 %v6645
        %6942 = vmatprep.subr.bf16.mxu0 %v6650
        %6943 = vmatpush1.bf16.msra.mxu0 %v6649
        %6944 = vmatprep.subr.bf16.mxu0 %v6654
        %6945 = vmatpush1.bf16.msra.mxu0 %v6653
        %6946 = vmatprep.subr.bf16.mxu0 %v6658
        %6947 = vmatpush1.bf16.msra.mxu0 %v6657
        %6948 = vmatprep.mubr.bf16.mxu0 %v5061
        %6949 = vmatmul.mubr.bf16.gmra.mrb[0].mxu0 %v5060
        %v6950 = vpop.f32.mrb[0].mxu0
        %v6951 = vadd.f32 %v6908, %v6950
        %v6952 = vpop.f32.mrb[0].mxu0
        %v6953 = vadd.f32 %v6910, %v6952
        %v6954 = vpop.f32.mrb[0].mxu0
        %v6955 = vadd.f32 %v6912, %v6954
        %v6956 = vpop.f32.mrb[0].mxu0
        %v6957 = vadd.f32 %v6914, %v6956
        %6958 = vdwg.mxu0
        %s6959 = scalar_lea.vmem [#allocation13], 2048
        %v6960 = vld [vmem:[%s6959] sm:$0xff]
        %v6961 = vld [vmem:[%s6959 + $0x8] sm:$0xff]
        %v6962 = vld [vmem:[%s6959 + $0x10] sm:$0xff]
        %v6963 = vld [vmem:[%s6959 + $0x18] sm:$0xff]
        %v6964 = vld [vmem:[%s6959 + $0x20] sm:$0xff]
        %v6965 = vld [vmem:[%s6959 + $0x28] sm:$0xff]
        %v6966 = vld [vmem:[%s6959 + $0x30] sm:$0xff]
        %v6967 = vld [vmem:[%s6959 + $0x38] sm:$0xff]
        %v6968 = vld [vmem:[%s6959 + $0x40] sm:$0xff]
        %v6969 = vld [vmem:[%s6959 + $0x48] sm:$0xff]
        %v6970 = vld [vmem:[%s6959 + $0x50] sm:$0xff]
        %v6971 = vld [vmem:[%s6959 + $0x58] sm:$0xff]
        %v6972 = vld [vmem:[%s6959 + $0x60] sm:$0xff]
        %v6973 = vld [vmem:[%s6959 + $0x68] sm:$0xff]
        %v6974 = vld [vmem:[%s6959 + $0x70] sm:$0xff]
        %v6975 = vld [vmem:[%s6959 + $0x78] sm:$0xff]
        %v6976 = vld [vmem:[%s6959 + $0x80] sm:$0xff]
        %v6977 = vld [vmem:[%s6959 + $0x88] sm:$0xff]
        %v6978 = vld [vmem:[%s6959 + $0x90] sm:$0xff]
        %v6979 = vld [vmem:[%s6959 + $0x98] sm:$0xff]
        %v6980 = vld [vmem:[%s6959 + $0xa0] sm:$0xff]
        %v6981 = vld [vmem:[%s6959 + $0xa8] sm:$0xff]
        %v6982 = vld [vmem:[%s6959 + $0xb0] sm:$0xff]
        %v6983 = vld [vmem:[%s6959 + $0xb8] sm:$0xff]
        %v6984 = vld [vmem:[%s6959 + $0xc0] sm:$0xff]
        %v6985 = vld [vmem:[%s6959 + $0xc8] sm:$0xff]
        %v6986 = vld [vmem:[%s6959 + $0xd0] sm:$0xff]
        %v6987 = vld [vmem:[%s6959 + $0xd8] sm:$0xff]
        %v6988 = vld [vmem:[%s6959 + $0xe0] sm:$0xff]
        %v6989 = vld [vmem:[%s6959 + $0xe8] sm:$0xff]
        %v6990 = vld [vmem:[%s6959 + $0xf0] sm:$0xff]
        %v6991 = vld [vmem:[%s6959 + $0xf8] sm:$0xff]
        %v6992 = vld [vmem:[%s6959 + $0x100] sm:$0xff]
        %v6993 = vld [vmem:[%s6959 + $0x108] sm:$0xff]
        %v6994 = vld [vmem:[%s6959 + $0x110] sm:$0xff]
        %v6995 = vld [vmem:[%s6959 + $0x118] sm:$0xff]
        %v6996 = vld [vmem:[%s6959 + $0x120] sm:$0xff]
        %v6997 = vld [vmem:[%s6959 + $0x128] sm:$0xff]
        %v6998 = vld [vmem:[%s6959 + $0x130] sm:$0xff]
        %v6999 = vld [vmem:[%s6959 + $0x138] sm:$0xff]
        %v7000 = vld [vmem:[%s6959 + $0x140] sm:$0xff]
        %v7001 = vld [vmem:[%s6959 + $0x148] sm:$0xff]
        %v7002 = vld [vmem:[%s6959 + $0x150] sm:$0xff]
        %v7003 = vld [vmem:[%s6959 + $0x158] sm:$0xff]
        %v7004 = vld [vmem:[%s6959 + $0x160] sm:$0xff]
        %v7005 = vld [vmem:[%s6959 + $0x168] sm:$0xff]
        %v7006 = vld [vmem:[%s6959 + $0x170] sm:$0xff]
        %v7007 = vld [vmem:[%s6959 + $0x178] sm:$0xff]
        %v7008 = vld [vmem:[%s6959 + $0x180] sm:$0xff]
        %v7009 = vld [vmem:[%s6959 + $0x188] sm:$0xff]
        %v7010 = vld [vmem:[%s6959 + $0x190] sm:$0xff]
        %v7011 = vld [vmem:[%s6959 + $0x198] sm:$0xff]
        %v7012 = vld [vmem:[%s6959 + $0x1a0] sm:$0xff]
        %v7013 = vld [vmem:[%s6959 + $0x1a8] sm:$0xff]
        %v7014 = vld [vmem:[%s6959 + $0x1b0] sm:$0xff]
        %v7015 = vld [vmem:[%s6959 + $0x1b8] sm:$0xff]
        %v7016 = vld [vmem:[%s6959 + $0x1c0] sm:$0xff]
        %v7017 = vld [vmem:[%s6959 + $0x1c8] sm:$0xff]
        %v7018 = vld [vmem:[%s6959 + $0x1d0] sm:$0xff]
        %v7019 = vld [vmem:[%s6959 + $0x1d8] sm:$0xff]
        %v7020 = vld [vmem:[%s6959 + $0x1e0] sm:$0xff]
        %v7021 = vld [vmem:[%s6959 + $0x1e8] sm:$0xff]
        %v7022 = vld [vmem:[%s6959 + $0x1f0] sm:$0xff]
        %v7023 = vld [vmem:[%s6959 + $0x1f8] sm:$0xff]
        %v7024 = vld [vmem:[%s6959 + $0x200] sm:$0xff]
        %v7025 = vld [vmem:[%s6959 + $0x208] sm:$0xff]
        %v7026 = vld [vmem:[%s6959 + $0x210] sm:$0xff]
        %v7027 = vld [vmem:[%s6959 + $0x218] sm:$0xff]
        %v7028 = vld [vmem:[%s6959 + $0x220] sm:$0xff]
        %v7029 = vld [vmem:[%s6959 + $0x228] sm:$0xff]
        %v7030 = vld [vmem:[%s6959 + $0x230] sm:$0xff]
        %v7031 = vld [vmem:[%s6959 + $0x238] sm:$0xff]
        %v7032 = vld [vmem:[%s6959 + $0x240] sm:$0xff]
        %v7033 = vld [vmem:[%s6959 + $0x248] sm:$0xff]
        %v7034 = vld [vmem:[%s6959 + $0x250] sm:$0xff]
        %v7035 = vld [vmem:[%s6959 + $0x258] sm:$0xff]
        %v7036 = vld [vmem:[%s6959 + $0x260] sm:$0xff]
        %v7037 = vld [vmem:[%s6959 + $0x268] sm:$0xff]
        %v7038 = vld [vmem:[%s6959 + $0x270] sm:$0xff]
        %v7039 = vld [vmem:[%s6959 + $0x278] sm:$0xff]
        %v7040 = vld [vmem:[%s6959 + $0x280] sm:$0xff]
        %v7041 = vld [vmem:[%s6959 + $0x288] sm:$0xff]
        %v7042 = vld [vmem:[%s6959 + $0x290] sm:$0xff]
        %v7043 = vld [vmem:[%s6959 + $0x298] sm:$0xff]
        %v7044 = vld [vmem:[%s6959 + $0x2a0] sm:$0xff]
        %v7045 = vld [vmem:[%s6959 + $0x2a8] sm:$0xff]
        %v7046 = vld [vmem:[%s6959 + $0x2b0] sm:$0xff]
        %v7047 = vld [vmem:[%s6959 + $0x2b8] sm:$0xff]
        %v7048 = vld [vmem:[%s6959 + $0x2c0] sm:$0xff]
        %v7049 = vld [vmem:[%s6959 + $0x2c8] sm:$0xff]
        %v7050 = vld [vmem:[%s6959 + $0x2d0] sm:$0xff]
        %v7051 = vld [vmem:[%s6959 + $0x2d8] sm:$0xff]
        %v7052 = vld [vmem:[%s6959 + $0x2e0] sm:$0xff]
        %v7053 = vld [vmem:[%s6959 + $0x2e8] sm:$0xff]
        %v7054 = vld [vmem:[%s6959 + $0x2f0] sm:$0xff]
        %v7055 = vld [vmem:[%s6959 + $0x2f8] sm:$0xff]
        %v7056 = vld [vmem:[%s6959 + $0x300] sm:$0xff]
        %v7057 = vld [vmem:[%s6959 + $0x308] sm:$0xff]
        %v7058 = vld [vmem:[%s6959 + $0x310] sm:$0xff]
        %v7059 = vld [vmem:[%s6959 + $0x318] sm:$0xff]
        %v7060 = vld [vmem:[%s6959 + $0x320] sm:$0xff]
        %v7061 = vld [vmem:[%s6959 + $0x328] sm:$0xff]
        %v7062 = vld [vmem:[%s6959 + $0x330] sm:$0xff]
        %v7063 = vld [vmem:[%s6959 + $0x338] sm:$0xff]
        %v7064 = vld [vmem:[%s6959 + $0x340] sm:$0xff]
        %v7065 = vld [vmem:[%s6959 + $0x348] sm:$0xff]
        %v7066 = vld [vmem:[%s6959 + $0x350] sm:$0xff]
        %v7067 = vld [vmem:[%s6959 + $0x358] sm:$0xff]
        %v7068 = vld [vmem:[%s6959 + $0x360] sm:$0xff]
        %v7069 = vld [vmem:[%s6959 + $0x368] sm:$0xff]
        %v7070 = vld [vmem:[%s6959 + $0x370] sm:$0xff]
        %v7071 = vld [vmem:[%s6959 + $0x378] sm:$0xff]
        %v7072 = vld [vmem:[%s6959 + $0x380] sm:$0xff]
        %v7073 = vld [vmem:[%s6959 + $0x388] sm:$0xff]
        %v7074 = vld [vmem:[%s6959 + $0x390] sm:$0xff]
        %v7075 = vld [vmem:[%s6959 + $0x398] sm:$0xff]
        %v7076 = vld [vmem:[%s6959 + $0x3a0] sm:$0xff]
        %v7077 = vld [vmem:[%s6959 + $0x3a8] sm:$0xff]
        %v7078 = vld [vmem:[%s6959 + $0x3b0] sm:$0xff]
        %v7079 = vld [vmem:[%s6959 + $0x3b8] sm:$0xff]
        %v7080 = vld [vmem:[%s6959 + $0x3c0] sm:$0xff]
        %v7081 = vld [vmem:[%s6959 + $0x3c8] sm:$0xff]
        %v7082 = vld [vmem:[%s6959 + $0x3d0] sm:$0xff]
        %v7083 = vld [vmem:[%s6959 + $0x3d8] sm:$0xff]
        %v7084 = vld [vmem:[%s6959 + $0x3e0] sm:$0xff]
        %v7085 = vld [vmem:[%s6959 + $0x3e8] sm:$0xff]
        %v7086 = vld [vmem:[%s6959 + $0x3f0] sm:$0xff]
        %v7087 = vld [vmem:[%s6959 + $0x3f8] sm:$0xff]
        %v7216 = vunpack.c.l.b16 %v6960
        %v7217 = vunpack.c.h.b16 %v6960
        %v7218 = vunpack.c.l.b16 %v6961
        %v7219 = vunpack.c.h.b16 %v6961
        %v7220 = vunpack.c.l.b16 %v6962
        %v7221 = vunpack.c.h.b16 %v6962
        %v7222 = vunpack.c.l.b16 %v6963
        %v7223 = vunpack.c.h.b16 %v6963
        %v7224 = vunpack.c.l.b16 %v6964
        %v7225 = vunpack.c.h.b16 %v6964
        %v7226 = vunpack.c.l.b16 %v6965
        %v7227 = vunpack.c.h.b16 %v6965
        %v7228 = vunpack.c.l.b16 %v6966
        %v7229 = vunpack.c.h.b16 %v6966
        %v7230 = vunpack.c.l.b16 %v6967
        %v7231 = vunpack.c.h.b16 %v6967
        %v7232 = vunpack.c.l.b16 %v6968
        %v7233 = vunpack.c.h.b16 %v6968
        %v7234 = vunpack.c.l.b16 %v6969
        %v7235 = vunpack.c.h.b16 %v6969
        %v7236 = vunpack.c.l.b16 %v6970
        %v7237 = vunpack.c.h.b16 %v6970
        %v7238 = vunpack.c.l.b16 %v6971
        %v7239 = vunpack.c.h.b16 %v6971
        %v7240 = vunpack.c.l.b16 %v6972
        %v7241 = vunpack.c.h.b16 %v6972
        %v7242 = vunpack.c.l.b16 %v6973
        %v7243 = vunpack.c.h.b16 %v6973
        %v7244 = vunpack.c.l.b16 %v6974
        %v7245 = vunpack.c.h.b16 %v6974
        %v7246 = vunpack.c.l.b16 %v6975
        %v7247 = vunpack.c.h.b16 %v6975
        %v7248 = vunpack.c.l.b16 %v6976
        %v7249 = vunpack.c.h.b16 %v6976
        %v7250 = vunpack.c.l.b16 %v6977
        %v7251 = vunpack.c.h.b16 %v6977
        %v7252 = vunpack.c.l.b16 %v6978
        %v7253 = vunpack.c.h.b16 %v6978
        %v7254 = vunpack.c.l.b16 %v6979
        %v7255 = vunpack.c.h.b16 %v6979
        %v7256 = vunpack.c.l.b16 %v6980
        %v7257 = vunpack.c.h.b16 %v6980
        %v7258 = vunpack.c.l.b16 %v6981
        %v7259 = vunpack.c.h.b16 %v6981
        %v7260 = vunpack.c.l.b16 %v6982
        %v7261 = vunpack.c.h.b16 %v6982
        %v7262 = vunpack.c.l.b16 %v6983
        %v7263 = vunpack.c.h.b16 %v6983
        %v7264 = vunpack.c.l.b16 %v6984
        %v7265 = vunpack.c.h.b16 %v6984
        %v7266 = vunpack.c.l.b16 %v6985
        %v7267 = vunpack.c.h.b16 %v6985
        %v7268 = vunpack.c.l.b16 %v6986
        %v7269 = vunpack.c.h.b16 %v6986
        %v7270 = vunpack.c.l.b16 %v6987
        %v7271 = vunpack.c.h.b16 %v6987
        %v7272 = vunpack.c.l.b16 %v6988
        %v7273 = vunpack.c.h.b16 %v6988
        %v7274 = vunpack.c.l.b16 %v6989
        %v7275 = vunpack.c.h.b16 %v6989
        %v7276 = vunpack.c.l.b16 %v6990
        %v7277 = vunpack.c.h.b16 %v6990
        %v7278 = vunpack.c.l.b16 %v6991
        %v7279 = vunpack.c.h.b16 %v6991
        %v7280 = vunpack.c.l.b16 %v6992
        %v7281 = vunpack.c.h.b16 %v6992
        %v7282 = vunpack.c.l.b16 %v6993
        %v7283 = vunpack.c.h.b16 %v6993
        %v7284 = vunpack.c.l.b16 %v6994
        %v7285 = vunpack.c.h.b16 %v6994
        %v7286 = vunpack.c.l.b16 %v6995
        %v7287 = vunpack.c.h.b16 %v6995
        %v7288 = vunpack.c.l.b16 %v6996
        %v7289 = vunpack.c.h.b16 %v6996
        %v7290 = vunpack.c.l.b16 %v6997
        %v7291 = vunpack.c.h.b16 %v6997
        %v7292 = vunpack.c.l.b16 %v6998
        %v7293 = vunpack.c.h.b16 %v6998
        %v7294 = vunpack.c.l.b16 %v6999
        %v7295 = vunpack.c.h.b16 %v6999
        %v7296 = vunpack.c.l.b16 %v7000
        %v7297 = vunpack.c.h.b16 %v7000
        %v7298 = vunpack.c.l.b16 %v7001
        %v7299 = vunpack.c.h.b16 %v7001
        %v7300 = vunpack.c.l.b16 %v7002
        %v7301 = vunpack.c.h.b16 %v7002
        %v7302 = vunpack.c.l.b16 %v7003
        %v7303 = vunpack.c.h.b16 %v7003
        %v7304 = vunpack.c.l.b16 %v7004
        %v7305 = vunpack.c.h.b16 %v7004
        %v7306 = vunpack.c.l.b16 %v7005
        %v7307 = vunpack.c.h.b16 %v7005
        %v7308 = vunpack.c.l.b16 %v7006
        %v7309 = vunpack.c.h.b16 %v7006
        %v7310 = vunpack.c.l.b16 %v7007
        %v7311 = vunpack.c.h.b16 %v7007
        %v7312 = vunpack.c.l.b16 %v7008
        %v7313 = vunpack.c.h.b16 %v7008
        %v7314 = vunpack.c.l.b16 %v7009
        %v7315 = vunpack.c.h.b16 %v7009
        %v7316 = vunpack.c.l.b16 %v7010
        %v7317 = vunpack.c.h.b16 %v7010
        %v7318 = vunpack.c.l.b16 %v7011
        %v7319 = vunpack.c.h.b16 %v7011
        %v7320 = vunpack.c.l.b16 %v7012
        %v7321 = vunpack.c.h.b16 %v7012
        %v7322 = vunpack.c.l.b16 %v7013
        %v7323 = vunpack.c.h.b16 %v7013
        %v7324 = vunpack.c.l.b16 %v7014
        %v7325 = vunpack.c.h.b16 %v7014
        %v7326 = vunpack.c.l.b16 %v7015
        %v7327 = vunpack.c.h.b16 %v7015
        %v7328 = vunpack.c.l.b16 %v7016
        %v7329 = vunpack.c.h.b16 %v7016
        %v7330 = vunpack.c.l.b16 %v7017
        %v7331 = vunpack.c.h.b16 %v7017
        %v7332 = vunpack.c.l.b16 %v7018
        %v7333 = vunpack.c.h.b16 %v7018
        %v7334 = vunpack.c.l.b16 %v7019
        %v7335 = vunpack.c.h.b16 %v7019
        %v7336 = vunpack.c.l.b16 %v7020
        %v7337 = vunpack.c.h.b16 %v7020
        %v7338 = vunpack.c.l.b16 %v7021
        %v7339 = vunpack.c.h.b16 %v7021
        %v7340 = vunpack.c.l.b16 %v7022
        %v7341 = vunpack.c.h.b16 %v7022
        %v7342 = vunpack.c.l.b16 %v7023
        %v7343 = vunpack.c.h.b16 %v7023
        %v7344 = vunpack.c.l.b16 %v7024
        %v7345 = vunpack.c.h.b16 %v7024
        %v7346 = vunpack.c.l.b16 %v7025
        %v7347 = vunpack.c.h.b16 %v7025
        %v7348 = vunpack.c.l.b16 %v7026
        %v7349 = vunpack.c.h.b16 %v7026
        %v7350 = vunpack.c.l.b16 %v7027
        %v7351 = vunpack.c.h.b16 %v7027
        %v7352 = vunpack.c.l.b16 %v7028
        %v7353 = vunpack.c.h.b16 %v7028
        %v7354 = vunpack.c.l.b16 %v7029
        %v7355 = vunpack.c.h.b16 %v7029
        %v7356 = vunpack.c.l.b16 %v7030
        %v7357 = vunpack.c.h.b16 %v7030
        %v7358 = vunpack.c.l.b16 %v7031
        %v7359 = vunpack.c.h.b16 %v7031
        %v7360 = vunpack.c.l.b16 %v7032
        %v7361 = vunpack.c.h.b16 %v7032
        %v7362 = vunpack.c.l.b16 %v7033
        %v7363 = vunpack.c.h.b16 %v7033
        %v7364 = vunpack.c.l.b16 %v7034
        %v7365 = vunpack.c.h.b16 %v7034
        %v7366 = vunpack.c.l.b16 %v7035
        %v7367 = vunpack.c.h.b16 %v7035
        %v7368 = vunpack.c.l.b16 %v7036
        %v7369 = vunpack.c.h.b16 %v7036
        %v7370 = vunpack.c.l.b16 %v7037
        %v7371 = vunpack.c.h.b16 %v7037
        %v7372 = vunpack.c.l.b16 %v7038
        %v7373 = vunpack.c.h.b16 %v7038
        %v7374 = vunpack.c.l.b16 %v7039
        %v7375 = vunpack.c.h.b16 %v7039
        %v7376 = vunpack.c.l.b16 %v7040
        %v7377 = vunpack.c.h.b16 %v7040
        %v7378 = vunpack.c.l.b16 %v7041
        %v7379 = vunpack.c.h.b16 %v7041
        %v7380 = vunpack.c.l.b16 %v7042
        %v7381 = vunpack.c.h.b16 %v7042
        %v7382 = vunpack.c.l.b16 %v7043
        %v7383 = vunpack.c.h.b16 %v7043
        %v7384 = vunpack.c.l.b16 %v7044
        %v7385 = vunpack.c.h.b16 %v7044
        %v7386 = vunpack.c.l.b16 %v7045
        %v7387 = vunpack.c.h.b16 %v7045
        %v7388 = vunpack.c.l.b16 %v7046
        %v7389 = vunpack.c.h.b16 %v7046
        %v7390 = vunpack.c.l.b16 %v7047
        %v7391 = vunpack.c.h.b16 %v7047
        %v7392 = vunpack.c.l.b16 %v7048
        %v7393 = vunpack.c.h.b16 %v7048
        %v7394 = vunpack.c.l.b16 %v7049
        %v7395 = vunpack.c.h.b16 %v7049
        %v7396 = vunpack.c.l.b16 %v7050
        %v7397 = vunpack.c.h.b16 %v7050
        %v7398 = vunpack.c.l.b16 %v7051
        %v7399 = vunpack.c.h.b16 %v7051
        %v7400 = vunpack.c.l.b16 %v7052
        %v7401 = vunpack.c.h.b16 %v7052
        %v7402 = vunpack.c.l.b16 %v7053
        %v7403 = vunpack.c.h.b16 %v7053
        %v7404 = vunpack.c.l.b16 %v7054
        %v7405 = vunpack.c.h.b16 %v7054
        %v7406 = vunpack.c.l.b16 %v7055
        %v7407 = vunpack.c.h.b16 %v7055
        %v7408 = vunpack.c.l.b16 %v7056
        %v7409 = vunpack.c.h.b16 %v7056
        %v7410 = vunpack.c.l.b16 %v7057
        %v7411 = vunpack.c.h.b16 %v7057
        %v7412 = vunpack.c.l.b16 %v7058
        %v7413 = vunpack.c.h.b16 %v7058
        %v7414 = vunpack.c.l.b16 %v7059
        %v7415 = vunpack.c.h.b16 %v7059
        %v7416 = vunpack.c.l.b16 %v7060
        %v7417 = vunpack.c.h.b16 %v7060
        %v7418 = vunpack.c.l.b16 %v7061
        %v7419 = vunpack.c.h.b16 %v7061
        %v7420 = vunpack.c.l.b16 %v7062
        %v7421 = vunpack.c.h.b16 %v7062
        %v7422 = vunpack.c.l.b16 %v7063
        %v7423 = vunpack.c.h.b16 %v7063
        %v7424 = vunpack.c.l.b16 %v7064
        %v7425 = vunpack.c.h.b16 %v7064
        %v7426 = vunpack.c.l.b16 %v7065
        %v7427 = vunpack.c.h.b16 %v7065
        %v7428 = vunpack.c.l.b16 %v7066
        %v7429 = vunpack.c.h.b16 %v7066
        %v7430 = vunpack.c.l.b16 %v7067
        %v7431 = vunpack.c.h.b16 %v7067
        %v7432 = vunpack.c.l.b16 %v7068
        %v7433 = vunpack.c.h.b16 %v7068
        %v7434 = vunpack.c.l.b16 %v7069
        %v7435 = vunpack.c.h.b16 %v7069
        %v7436 = vunpack.c.l.b16 %v7070
        %v7437 = vunpack.c.h.b16 %v7070
        %v7438 = vunpack.c.l.b16 %v7071
        %v7439 = vunpack.c.h.b16 %v7071
        %v7440 = vunpack.c.l.b16 %v7072
        %v7441 = vunpack.c.h.b16 %v7072
        %v7442 = vunpack.c.l.b16 %v7073
        %v7443 = vunpack.c.h.b16 %v7073
        %v7444 = vunpack.c.l.b16 %v7074
        %v7445 = vunpack.c.h.b16 %v7074
        %v7446 = vunpack.c.l.b16 %v7075
        %v7447 = vunpack.c.h.b16 %v7075
        %v7448 = vunpack.c.l.b16 %v7076
        %v7449 = vunpack.c.h.b16 %v7076
        %v7450 = vunpack.c.l.b16 %v7077
        %v7451 = vunpack.c.h.b16 %v7077
        %v7452 = vunpack.c.l.b16 %v7078
        %v7453 = vunpack.c.h.b16 %v7078
        %v7454 = vunpack.c.l.b16 %v7079
        %v7455 = vunpack.c.h.b16 %v7079
        %v7456 = vunpack.c.l.b16 %v7080
        %v7457 = vunpack.c.h.b16 %v7080
        %v7458 = vunpack.c.l.b16 %v7081
        %v7459 = vunpack.c.h.b16 %v7081
        %v7460 = vunpack.c.l.b16 %v7082
        %v7461 = vunpack.c.h.b16 %v7082
        %v7462 = vunpack.c.l.b16 %v7083
        %v7463 = vunpack.c.h.b16 %v7083
        %v7464 = vunpack.c.l.b16 %v7084
        %v7465 = vunpack.c.h.b16 %v7084
        %v7466 = vunpack.c.l.b16 %v7085
        %v7467 = vunpack.c.h.b16 %v7085
        %v7468 = vunpack.c.l.b16 %v7086
        %v7469 = vunpack.c.h.b16 %v7086
        %v7470 = vunpack.c.l.b16 %v7087
        %v7471 = vunpack.c.h.b16 %v7087
        %v7472 = vpack.c.b16 %v7220, %v7216
        %v7473 = vpack.c.b16 %v7221, %v7217
        %v7474 = vpack.c.b16 %v7222, %v7218
        %v7475 = vpack.c.b16 %v7223, %v7219
        %v7476 = vpack.c.b16 %v7228, %v7224
        %v7477 = vpack.c.b16 %v7229, %v7225
        %v7478 = vpack.c.b16 %v7230, %v7226
        %v7479 = vpack.c.b16 %v7231, %v7227
        %v7480 = vpack.c.b16 %v7236, %v7232
        %v7481 = vpack.c.b16 %v7237, %v7233
        %v7482 = vpack.c.b16 %v7238, %v7234
        %v7483 = vpack.c.b16 %v7239, %v7235
        %v7484 = vpack.c.b16 %v7244, %v7240
        %v7485 = vpack.c.b16 %v7245, %v7241
        %v7486 = vpack.c.b16 %v7246, %v7242
        %v7487 = vpack.c.b16 %v7247, %v7243
        %v7488 = vpack.c.b16 %v7252, %v7248
        %v7489 = vpack.c.b16 %v7253, %v7249
        %v7490 = vpack.c.b16 %v7254, %v7250
        %v7491 = vpack.c.b16 %v7255, %v7251
        %v7492 = vpack.c.b16 %v7260, %v7256
        %v7493 = vpack.c.b16 %v7261, %v7257
        %v7494 = vpack.c.b16 %v7262, %v7258
        %v7495 = vpack.c.b16 %v7263, %v7259
        %v7496 = vpack.c.b16 %v7268, %v7264
        %v7497 = vpack.c.b16 %v7269, %v7265
        %v7498 = vpack.c.b16 %v7270, %v7266
        %v7499 = vpack.c.b16 %v7271, %v7267
        %v7500 = vpack.c.b16 %v7276, %v7272
        %v7501 = vpack.c.b16 %v7277, %v7273
        %v7502 = vpack.c.b16 %v7278, %v7274
        %v7503 = vpack.c.b16 %v7279, %v7275
        %v7504 = vpack.c.b16 %v7284, %v7280
        %v7505 = vpack.c.b16 %v7285, %v7281
        %v7506 = vpack.c.b16 %v7286, %v7282
        %v7507 = vpack.c.b16 %v7287, %v7283
        %v7508 = vpack.c.b16 %v7292, %v7288
        %v7509 = vpack.c.b16 %v7293, %v7289
        %v7510 = vpack.c.b16 %v7294, %v7290
        %v7511 = vpack.c.b16 %v7295, %v7291
        %v7512 = vpack.c.b16 %v7300, %v7296
        %v7513 = vpack.c.b16 %v7301, %v7297
        %v7514 = vpack.c.b16 %v7302, %v7298
        %v7515 = vpack.c.b16 %v7303, %v7299
        %v7516 = vpack.c.b16 %v7308, %v7304
        %v7517 = vpack.c.b16 %v7309, %v7305
        %v7518 = vpack.c.b16 %v7310, %v7306
        %v7519 = vpack.c.b16 %v7311, %v7307
        %v7520 = vpack.c.b16 %v7316, %v7312
        %v7521 = vpack.c.b16 %v7317, %v7313
        %v7522 = vpack.c.b16 %v7318, %v7314
        %v7523 = vpack.c.b16 %v7319, %v7315
        %v7524 = vpack.c.b16 %v7324, %v7320
        %v7525 = vpack.c.b16 %v7325, %v7321
        %v7526 = vpack.c.b16 %v7326, %v7322
        %v7527 = vpack.c.b16 %v7327, %v7323
        %v7528 = vpack.c.b16 %v7332, %v7328
        %v7529 = vpack.c.b16 %v7333, %v7329
        %v7530 = vpack.c.b16 %v7334, %v7330
        %v7531 = vpack.c.b16 %v7335, %v7331
        %v7532 = vpack.c.b16 %v7340, %v7336
        %v7533 = vpack.c.b16 %v7341, %v7337
        %v7534 = vpack.c.b16 %v7342, %v7338
        %v7535 = vpack.c.b16 %v7343, %v7339
        %v7536 = vpack.c.b16 %v7348, %v7344
        %v7537 = vpack.c.b16 %v7349, %v7345
        %v7538 = vpack.c.b16 %v7350, %v7346
        %v7539 = vpack.c.b16 %v7351, %v7347
        %v7540 = vpack.c.b16 %v7356, %v7352
        %v7541 = vpack.c.b16 %v7357, %v7353
        %v7542 = vpack.c.b16 %v7358, %v7354
        %v7543 = vpack.c.b16 %v7359, %v7355
        %v7544 = vpack.c.b16 %v7364, %v7360
        %v7545 = vpack.c.b16 %v7365, %v7361
        %v7546 = vpack.c.b16 %v7366, %v7362
        %v7547 = vpack.c.b16 %v7367, %v7363
        %v7548 = vpack.c.b16 %v7372, %v7368
        %v7549 = vpack.c.b16 %v7373, %v7369
        %v7550 = vpack.c.b16 %v7374, %v7370
        %v7551 = vpack.c.b16 %v7375, %v7371
        %v7552 = vpack.c.b16 %v7380, %v7376
        %v7553 = vpack.c.b16 %v7381, %v7377
        %v7554 = vpack.c.b16 %v7382, %v7378
        %v7555 = vpack.c.b16 %v7383, %v7379
        %v7556 = vpack.c.b16 %v7388, %v7384
        %v7557 = vpack.c.b16 %v7389, %v7385
        %v7558 = vpack.c.b16 %v7390, %v7386
        %v7559 = vpack.c.b16 %v7391, %v7387
        %v7560 = vpack.c.b16 %v7396, %v7392
        %v7561 = vpack.c.b16 %v7397, %v7393
        %v7562 = vpack.c.b16 %v7398, %v7394
        %v7563 = vpack.c.b16 %v7399, %v7395
        %v7564 = vpack.c.b16 %v7404, %v7400
        %v7565 = vpack.c.b16 %v7405, %v7401
        %v7566 = vpack.c.b16 %v7406, %v7402
        %v7567 = vpack.c.b16 %v7407, %v7403
        %v7568 = vpack.c.b16 %v7412, %v7408
        %v7569 = vpack.c.b16 %v7413, %v7409
        %v7570 = vpack.c.b16 %v7414, %v7410
        %v7571 = vpack.c.b16 %v7415, %v7411
        %v7572 = vpack.c.b16 %v7420, %v7416
        %v7573 = vpack.c.b16 %v7421, %v7417
        %v7574 = vpack.c.b16 %v7422, %v7418
        %v7575 = vpack.c.b16 %v7423, %v7419
        %v7576 = vpack.c.b16 %v7428, %v7424
        %v7577 = vpack.c.b16 %v7429, %v7425
        %v7578 = vpack.c.b16 %v7430, %v7426
        %v7579 = vpack.c.b16 %v7431, %v7427
        %v7580 = vpack.c.b16 %v7436, %v7432
        %v7581 = vpack.c.b16 %v7437, %v7433
        %v7582 = vpack.c.b16 %v7438, %v7434
        %v7583 = vpack.c.b16 %v7439, %v7435
        %v7584 = vpack.c.b16 %v7444, %v7440
        %v7585 = vpack.c.b16 %v7445, %v7441
        %v7586 = vpack.c.b16 %v7446, %v7442
        %v7587 = vpack.c.b16 %v7447, %v7443
        %v7588 = vpack.c.b16 %v7452, %v7448
        %v7589 = vpack.c.b16 %v7453, %v7449
        %v7590 = vpack.c.b16 %v7454, %v7450
        %v7591 = vpack.c.b16 %v7455, %v7451
        %v7592 = vpack.c.b16 %v7460, %v7456
        %v7593 = vpack.c.b16 %v7461, %v7457
        %v7594 = vpack.c.b16 %v7462, %v7458
        %v7595 = vpack.c.b16 %v7463, %v7459
        %v7596 = vpack.c.b16 %v7468, %v7464
        %v7597 = vpack.c.b16 %v7469, %v7465
        %v7598 = vpack.c.b16 %v7470, %v7466
        %v7599 = vpack.c.b16 %v7471, %v7467
        %7728 = vmatprep.subr.bf16.mxu0 %v7473
        %7729 = vmatpush1.bf16.msra.mxu0 %v7472
        %7730 = vmatprep.subr.bf16.mxu0 %v7477
        %7731 = vmatpush1.bf16.msra.mxu0 %v7476
        %7732 = vmatprep.subr.bf16.mxu0 %v7481
        %7733 = vmatpush1.bf16.msra.mxu0 %v7480
        %7734 = vmatprep.subr.bf16.mxu0 %v7485
        %7735 = vmatpush1.bf16.msra.mxu0 %v7484
        %7736 = vmatprep.subr.bf16.mxu0 %v7489
        %7737 = vmatpush1.bf16.msra.mxu0 %v7488
        %7738 = vmatprep.subr.bf16.mxu0 %v7493
        %7739 = vmatpush1.bf16.msra.mxu0 %v7492
        %7740 = vmatprep.subr.bf16.mxu0 %v7497
        %7741 = vmatpush1.bf16.msra.mxu0 %v7496
        %7742 = vmatprep.subr.bf16.mxu0 %v7501
        %7743 = vmatpush1.bf16.msra.mxu0 %v7500
        %7744 = vmatprep.subr.bf16.mxu0 %v7505
        %7745 = vmatpush1.bf16.msra.mxu0 %v7504
        %7746 = vmatprep.subr.bf16.mxu0 %v7509
        %7747 = vmatpush1.bf16.msra.mxu0 %v7508
        %7748 = vmatprep.subr.bf16.mxu0 %v7513
        %7749 = vmatpush1.bf16.msra.mxu0 %v7512
        %7750 = vmatprep.subr.bf16.mxu0 %v7517
        %7751 = vmatpush1.bf16.msra.mxu0 %v7516
        %7752 = vmatprep.subr.bf16.mxu0 %v7521
        %7753 = vmatpush1.bf16.msra.mxu0 %v7520
        %7754 = vmatprep.subr.bf16.mxu0 %v7525
        %7755 = vmatpush1.bf16.msra.mxu0 %v7524
        %7756 = vmatprep.subr.bf16.mxu0 %v7529
        %7757 = vmatpush1.bf16.msra.mxu0 %v7528
        %7758 = vmatprep.subr.bf16.mxu0 %v7533
        %7759 = vmatpush1.bf16.msra.mxu0 %v7532
        %7760 = vmatprep.mubr.bf16.mxu0 %v5075
        %7761 = vmatmul.mubr.bf16.gmra.mrb[0].mxu0 %v5074
        %v7762 = vpop.f32.mrb[0].mxu0
        %v7763 = vadd.f32 0.0, %v7762
        %v7764 = vpop.f32.mrb[0].mxu0
        %v7765 = vadd.f32 0.0, %v7764
        %v7766 = vpop.f32.mrb[0].mxu0
        %v7767 = vadd.f32 0.0, %v7766
        %v7768 = vpop.f32.mrb[0].mxu0
        %v7769 = vadd.f32 0.0, %v7768
        %7770 = vdwg.mxu0
        %7771 = vmatprep.subr.bf16.mxu0 %v7537
        %7772 = vmatpush1.bf16.msra.mxu0 %v7536
        %7773 = vmatprep.subr.bf16.mxu0 %v7541
        %7774 = vmatpush1.bf16.msra.mxu0 %v7540
        %7775 = vmatprep.subr.bf16.mxu0 %v7545
        %7776 = vmatpush1.bf16.msra.mxu0 %v7544
        %7777 = vmatprep.subr.bf16.mxu0 %v7549
        %7778 = vmatpush1.bf16.msra.mxu0 %v7548
        %7779 = vmatprep.subr.bf16.mxu0 %v7553
        %7780 = vmatpush1.bf16.msra.mxu0 %v7552
        %7781 = vmatprep.subr.bf16.mxu0 %v7557
        %7782 = vmatpush1.bf16.msra.mxu0 %v7556
        %7783 = vmatprep.subr.bf16.mxu0 %v7561
        %7784 = vmatpush1.bf16.msra.mxu0 %v7560
        %7785 = vmatprep.subr.bf16.mxu0 %v7565
        %7786 = vmatpush1.bf16.msra.mxu0 %v7564
        %7787 = vmatprep.subr.bf16.mxu0 %v7569
        %7788 = vmatpush1.bf16.msra.mxu0 %v7568
        %7789 = vmatprep.subr.bf16.mxu0 %v7573
        %7790 = vmatpush1.bf16.msra.mxu0 %v7572
        %7791 = vmatprep.subr.bf16.mxu0 %v7577
        %7792 = vmatpush1.bf16.msra.mxu0 %v7576
        %7793 = vmatprep.subr.bf16.mxu0 %v7581
        %7794 = vmatpush1.bf16.msra.mxu0 %v7580
        %7795 = vmatprep.subr.bf16.mxu0 %v7585
        %7796 = vmatpush1.bf16.msra.mxu0 %v7584
        %7797 = vmatprep.subr.bf16.mxu0 %v7589
        %7798 = vmatpush1.bf16.msra.mxu0 %v7588
        %7799 = vmatprep.subr.bf16.mxu0 %v7593
        %7800 = vmatpush1.bf16.msra.mxu0 %v7592
        %7801 = vmatprep.subr.bf16.mxu0 %v7597
        %7802 = vmatpush1.bf16.msra.mxu0 %v7596
        %7803 = vmatprep.mubr.bf16.mxu0 %v5077
        %7804 = vmatmul.mubr.bf16.gmra.mrb[0].mxu0 %v5076
        %v7805 = vpop.f32.mrb[0].mxu0
        %v7806 = vadd.f32 %v7763, %v7805
        %v7807 = vpop.f32.mrb[0].mxu0
        %v7808 = vadd.f32 %v7765, %v7807
        %v7809 = vpop.f32.mrb[0].mxu0
        %v7810 = vadd.f32 %v7767, %v7809
        %v7811 = vpop.f32.mrb[0].mxu0
        %v7812 = vadd.f32 %v7769, %v7811
        %7813 = vdwg.mxu0
        %7814 = vmatprep.subr.bf16.mxu0 %v7475
        %7815 = vmatpush1.bf16.msra.mxu0 %v7474
        %7816 = vmatprep.subr.bf16.mxu0 %v7479
        %7817 = vmatpush1.bf16.msra.mxu0 %v7478
        %7818 = vmatprep.subr.bf16.mxu0 %v7483
        %7819 = vmatpush1.bf16.msra.mxu0 %v7482
        %7820 = vmatprep.subr.bf16.mxu0 %v7487
        %7821 = vmatpush1.bf16.msra.mxu0 %v7486
        %7822 = vmatprep.subr.bf16.mxu0 %v7491
        %7823 = vmatpush1.bf16.msra.mxu0 %v7490
        %7824 = vmatprep.subr.bf16.mxu0 %v7495
        %7825 = vmatpush1.bf16.msra.mxu0 %v7494
        %7826 = vmatprep.subr.bf16.mxu0 %v7499
        %7827 = vmatpush1.bf16.msra.mxu0 %v7498
        %7828 = vmatprep.subr.bf16.mxu0 %v7503
        %7829 = vmatpush1.bf16.msra.mxu0 %v7502
        %7830 = vmatprep.subr.bf16.mxu0 %v7507
        %7831 = vmatpush1.bf16.msra.mxu0 %v7506
        %7832 = vmatprep.subr.bf16.mxu0 %v7511
        %7833 = vmatpush1.bf16.msra.mxu0 %v7510
        %7834 = vmatprep.subr.bf16.mxu0 %v7515
        %7835 = vmatpush1.bf16.msra.mxu0 %v7514
        %7836 = vmatprep.subr.bf16.mxu0 %v7519
        %7837 = vmatpush1.bf16.msra.mxu0 %v7518
        %7838 = vmatprep.subr.bf16.mxu0 %v7523
        %7839 = vmatpush1.bf16.msra.mxu0 %v7522
        %7840 = vmatprep.subr.bf16.mxu0 %v7527
        %7841 = vmatpush1.bf16.msra.mxu0 %v7526
        %7842 = vmatprep.subr.bf16.mxu0 %v7531
        %7843 = vmatpush1.bf16.msra.mxu0 %v7530
        %7844 = vmatprep.subr.bf16.mxu0 %v7535
        %7845 = vmatpush1.bf16.msra.mxu0 %v7534
        %7846 = vmatprep.mubr.bf16.mxu0 %v5075
        %7847 = vmatmul.mubr.bf16.gmra.mrb[0].mxu0 %v5074
        %v7848 = vpop.f32.mrb[0].mxu0
        %v7849 = vadd.f32 0.0, %v7848
        %v7850 = vpop.f32.mrb[0].mxu0
        %v7851 = vadd.f32 0.0, %v7850
        %v7852 = vpop.f32.mrb[0].mxu0
        %v7853 = vadd.f32 0.0, %v7852
        %v7854 = vpop.f32.mrb[0].mxu0
        %v7855 = vadd.f32 0.0, %v7854
        %7856 = vdwg.mxu0
        %7857 = vmatprep.subr.bf16.mxu0 %v7539
        %7858 = vmatpush1.bf16.msra.mxu0 %v7538
        %7859 = vmatprep.subr.bf16.mxu0 %v7543
        %7860 = vmatpush1.bf16.msra.mxu0 %v7542
        %7861 = vmatprep.subr.bf16.mxu0 %v7547
        %7862 = vmatpush1.bf16.msra.mxu0 %v7546
        %7863 = vmatprep.subr.bf16.mxu0 %v7551
        %7864 = vmatpush1.bf16.msra.mxu0 %v7550
        %7865 = vmatprep.subr.bf16.mxu0 %v7555
        %7866 = vmatpush1.bf16.msra.mxu0 %v7554
        %7867 = vmatprep.subr.bf16.mxu0 %v7559
        %7868 = vmatpush1.bf16.msra.mxu0 %v7558
        %7869 = vmatprep.subr.bf16.mxu0 %v7563
        %7870 = vmatpush1.bf16.msra.mxu0 %v7562
        %7871 = vmatprep.subr.bf16.mxu0 %v7567
        %7872 = vmatpush1.bf16.msra.mxu0 %v7566
        %7873 = vmatprep.subr.bf16.mxu0 %v7571
        %7874 = vmatpush1.bf16.msra.mxu0 %v7570
        %7875 = vmatprep.subr.bf16.mxu0 %v7575
        %7876 = vmatpush1.bf16.msra.mxu0 %v7574
        %7877 = vmatprep.subr.bf16.mxu0 %v7579
        %7878 = vmatpush1.bf16.msra.mxu0 %v7578
        %7879 = vmatprep.subr.bf16.mxu0 %v7583
        %7880 = vmatpush1.bf16.msra.mxu0 %v7582
        %7881 = vmatprep.subr.bf16.mxu0 %v7587
        %7882 = vmatpush1.bf16.msra.mxu0 %v7586
        %7883 = vmatprep.subr.bf16.mxu0 %v7591
        %7884 = vmatpush1.bf16.msra.mxu0 %v7590
        %7885 = vmatprep.subr.bf16.mxu0 %v7595
        %7886 = vmatpush1.bf16.msra.mxu0 %v7594
        %7887 = vmatprep.subr.bf16.mxu0 %v7599
        %7888 = vmatpush1.bf16.msra.mxu0 %v7598
        %7889 = vmatprep.mubr.bf16.mxu0 %v5077
        %7890 = vmatmul.mubr.bf16.gmra.mrb[0].mxu0 %v5076
        %v7891 = vpop.f32.mrb[0].mxu0
        %v7892 = vadd.f32 %v7849, %v7891
        %v7893 = vpop.f32.mrb[0].mxu0
        %v7894 = vadd.f32 %v7851, %v7893
        %v7895 = vpop.f32.mrb[0].mxu0
        %v7896 = vadd.f32 %v7853, %v7895
        %v7897 = vpop.f32.mrb[0].mxu0
        %v7898 = vadd.f32 %v7855, %v7897
        %7899 = vdwg.mxu0
        %v7900 = vadd.f32 %v6865, %v7806
        %v7901 = vadd.f32 %v6867, %v7808
        %v7902 = vadd.f32 %v6951, %v7892
        %v7903 = vadd.f32 %v6953, %v7894
        %v7904 = vadd.f32 %v6869, %v7810
        %v7905 = vadd.f32 %v6871, %v7812
        %v7906 = vadd.f32 %v6955, %v7896
        %v7907 = vadd.f32 %v6957, %v7898
        %v7908 = vld [vmem:[#allocation14] sm:$0xf]
        %v7910 = vlaneseq
        %v7911 = vshrl.u32 %v7910, 7
        %v7912 = vsub.s32 0, %v7911
        %v7913 = vrot.slane %v7908, %v7912
        %v7914 = vlaneseq
        %v7915 = vshrl.u32 %v7914, 7
        %v7916 = vsub.s32 1, %v7915
        %v7917 = vrot.slane %v7908, %v7916
        %v7918 = vlaneseq
        %v7919 = vshrl.u32 %v7918, 7
        %v7920 = vsub.s32 2, %v7919
        %v7921 = vrot.slane %v7908, %v7920
        %v7922 = vlaneseq
        %v7923 = vshrl.u32 %v7922, 7
        %v7924 = vsub.s32 3, %v7923
        %v7925 = vrot.slane %v7908, %v7924
        %v7930 = vadd.f32 %v7900, %v7913
        %v7931 = vadd.f32 %v7901, %v7917
        %v7932 = vadd.f32 %v7902, %v7921
        %v7933 = vadd.f32 %v7903, %v7925
        %v7934 = vadd.f32 %v7904, %v7913
        %v7935 = vadd.f32 %v7905, %v7917
        %v7936 = vadd.f32 %v7906, %v7921
        %v7937 = vadd.f32 %v7907, %v7925
        %v7938 = vmax.f32 %v7930, 0.0
        %v7939 = vmax.f32 %v7931, 0.0
        %v7940 = vmax.f32 %v7932, 0.0
        %v7941 = vmax.f32 %v7933, 0.0
        %v7942 = vmax.f32 %v7934, 0.0
        %v7943 = vmax.f32 %v7935, 0.0
        %v7944 = vmax.f32 %v7936, 0.0
        %v7945 = vmax.f32 %v7937, 0.0
        %v7946 = vpack.c.bf16 %v7942, %v7938
        %v7947 = vpack.c.bf16 %v7943, %v7939
        %v7948 = vpack.c.bf16 %v7944, %v7940
        %v7949 = vpack.c.bf16 %v7945, %v7941
        %v7950 = vld [vmem:[#allocation16] sm:$0xff]
        %v7951 = vld [vmem:[#allocation16 + $0x8] sm:$0xff]
        %v7952 = vld [vmem:[#allocation16 + $0x10] sm:$0xff]
        %v7953 = vld [vmem:[#allocation16 + $0x18] sm:$0xff]
        %v7954 = vld [vmem:[#allocation16 + $0x20] sm:$0xff]
        %v7955 = vld [vmem:[#allocation16 + $0x28] sm:$0xff]
        %v7956 = vld [vmem:[#allocation16 + $0x30] sm:$0xff]
        %v7957 = vld [vmem:[#allocation16 + $0x38] sm:$0xff]
        %v7958 = vld [vmem:[#allocation16 + $0x40] sm:$0xff]
        %v7959 = vld [vmem:[#allocation16 + $0x48] sm:$0xff]
        %v7960 = vld [vmem:[#allocation16 + $0x50] sm:$0xff]
        %v7961 = vld [vmem:[#allocation16 + $0x58] sm:$0xff]
        %v7962 = vld [vmem:[#allocation16 + $0x60] sm:$0xff]
        %v7963 = vld [vmem:[#allocation16 + $0x68] sm:$0xff]
        %v7964 = vld [vmem:[#allocation16 + $0x70] sm:$0xff]
        %v7965 = vld [vmem:[#allocation16 + $0x78] sm:$0xff]
        %v7966 = vld [vmem:[#allocation16 + $0x80] sm:$0xff]
        %v7967 = vld [vmem:[#allocation16 + $0x88] sm:$0xff]
        %v7968 = vld [vmem:[#allocation16 + $0x90] sm:$0xff]
        %v7969 = vld [vmem:[#allocation16 + $0x98] sm:$0xff]
        %v7970 = vld [vmem:[#allocation16 + $0xa0] sm:$0xff]
        %v7971 = vld [vmem:[#allocation16 + $0xa8] sm:$0xff]
        %v7972 = vld [vmem:[#allocation16 + $0xb0] sm:$0xff]
        %v7973 = vld [vmem:[#allocation16 + $0xb8] sm:$0xff]
        %v7974 = vld [vmem:[#allocation16 + $0xc0] sm:$0xff]
        %v7975 = vld [vmem:[#allocation16 + $0xc8] sm:$0xff]
        %v7976 = vld [vmem:[#allocation16 + $0xd0] sm:$0xff]
        %v7977 = vld [vmem:[#allocation16 + $0xd8] sm:$0xff]
        %v7978 = vld [vmem:[#allocation16 + $0xe0] sm:$0xff]
        %v7979 = vld [vmem:[#allocation16 + $0xe8] sm:$0xff]
        %v7980 = vld [vmem:[#allocation16 + $0xf0] sm:$0xff]
        %v7981 = vld [vmem:[#allocation16 + $0xf8] sm:$0xff]
        %v7982 = vld [vmem:[#allocation16 + $0x100] sm:$0xff]
        %v7983 = vld [vmem:[#allocation16 + $0x108] sm:$0xff]
        %v7984 = vld [vmem:[#allocation16 + $0x110] sm:$0xff]
        %v7985 = vld [vmem:[#allocation16 + $0x118] sm:$0xff]
        %v7986 = vld [vmem:[#allocation16 + $0x120] sm:$0xff]
        %v7987 = vld [vmem:[#allocation16 + $0x128] sm:$0xff]
        %v7988 = vld [vmem:[#allocation16 + $0x130] sm:$0xff]
        %v7989 = vld [vmem:[#allocation16 + $0x138] sm:$0xff]
        %v7990 = vld [vmem:[#allocation16 + $0x140] sm:$0xff]
        %v7991 = vld [vmem:[#allocation16 + $0x148] sm:$0xff]
        %v7992 = vld [vmem:[#allocation16 + $0x150] sm:$0xff]
        %v7993 = vld [vmem:[#allocation16 + $0x158] sm:$0xff]
        %v7994 = vld [vmem:[#allocation16 + $0x160] sm:$0xff]
        %v7995 = vld [vmem:[#allocation16 + $0x168] sm:$0xff]
        %v7996 = vld [vmem:[#allocation16 + $0x170] sm:$0xff]
        %v7997 = vld [vmem:[#allocation16 + $0x178] sm:$0xff]
        %v7998 = vld [vmem:[#allocation16 + $0x180] sm:$0xff]
        %v7999 = vld [vmem:[#allocation16 + $0x188] sm:$0xff]
        %v8000 = vld [vmem:[#allocation16 + $0x190] sm:$0xff]
        %v8001 = vld [vmem:[#allocation16 + $0x198] sm:$0xff]
        %v8002 = vld [vmem:[#allocation16 + $0x1a0] sm:$0xff]
        %v8003 = vld [vmem:[#allocation16 + $0x1a8] sm:$0xff]
        %v8004 = vld [vmem:[#allocation16 + $0x1b0] sm:$0xff]
        %v8005 = vld [vmem:[#allocation16 + $0x1b8] sm:$0xff]
        %v8006 = vld [vmem:[#allocation16 + $0x1c0] sm:$0xff]
        %v8007 = vld [vmem:[#allocation16 + $0x1c8] sm:$0xff]
        %v8008 = vld [vmem:[#allocation16 + $0x1d0] sm:$0xff]
        %v8009 = vld [vmem:[#allocation16 + $0x1d8] sm:$0xff]
        %v8010 = vld [vmem:[#allocation16 + $0x1e0] sm:$0xff]
        %v8011 = vld [vmem:[#allocation16 + $0x1e8] sm:$0xff]
        %v8012 = vld [vmem:[#allocation16 + $0x1f0] sm:$0xff]
        %v8013 = vld [vmem:[#allocation16 + $0x1f8] sm:$0xff]
        %v8014 = vld [vmem:[#allocation17] sm:$0x3]
        %v8016 = vlaneseq
        %v8017 = vshrl.u32 %v8016, 7
        %v8018 = vsub.s32 0, %v8017
        %v8019 = vrot.slane %v8014, %v8018
        %v8020 = vlaneseq
        %v8021 = vshrl.u32 %v8020, 7
        %v8022 = vsub.s32 1, %v8021
        %v8023 = vrot.slane %v8014, %v8022
        %v8090 = vunpack.c.l.b16 %v7950
        %v8091 = vunpack.c.h.b16 %v7950
        %v8092 = vunpack.c.l.b16 %v7951
        %v8093 = vunpack.c.h.b16 %v7951
        %v8094 = vunpack.c.l.b16 %v7952
        %v8095 = vunpack.c.h.b16 %v7952
        %v8096 = vunpack.c.l.b16 %v7953
        %v8097 = vunpack.c.h.b16 %v7953
        %v8098 = vunpack.c.l.b16 %v7954
        %v8099 = vunpack.c.h.b16 %v7954
        %v8100 = vunpack.c.l.b16 %v7955
        %v8101 = vunpack.c.h.b16 %v7955
        %v8102 = vunpack.c.l.b16 %v7956
        %v8103 = vunpack.c.h.b16 %v7956
        %v8104 = vunpack.c.l.b16 %v7957
        %v8105 = vunpack.c.h.b16 %v7957
        %v8106 = vunpack.c.l.b16 %v7958
        %v8107 = vunpack.c.h.b16 %v7958
        %v8108 = vunpack.c.l.b16 %v7959
        %v8109 = vunpack.c.h.b16 %v7959
        %v8110 = vunpack.c.l.b16 %v7960
        %v8111 = vunpack.c.h.b16 %v7960
        %v8112 = vunpack.c.l.b16 %v7961
        %v8113 = vunpack.c.h.b16 %v7961
        %v8114 = vunpack.c.l.b16 %v7962
        %v8115 = vunpack.c.h.b16 %v7962
        %v8116 = vunpack.c.l.b16 %v7963
        %v8117 = vunpack.c.h.b16 %v7963
        %v8118 = vunpack.c.l.b16 %v7964
        %v8119 = vunpack.c.h.b16 %v7964
        %v8120 = vunpack.c.l.b16 %v7965
        %v8121 = vunpack.c.h.b16 %v7965
        %v8122 = vunpack.c.l.b16 %v7966
        %v8123 = vunpack.c.h.b16 %v7966
        %v8124 = vunpack.c.l.b16 %v7967
        %v8125 = vunpack.c.h.b16 %v7967
        %v8126 = vunpack.c.l.b16 %v7968
        %v8127 = vunpack.c.h.b16 %v7968
        %v8128 = vunpack.c.l.b16 %v7969
        %v8129 = vunpack.c.h.b16 %v7969
        %v8130 = vunpack.c.l.b16 %v7970
        %v8131 = vunpack.c.h.b16 %v7970
        %v8132 = vunpack.c.l.b16 %v7971
        %v8133 = vunpack.c.h.b16 %v7971
        %v8134 = vunpack.c.l.b16 %v7972
        %v8135 = vunpack.c.h.b16 %v7972
        %v8136 = vunpack.c.l.b16 %v7973
        %v8137 = vunpack.c.h.b16 %v7973
        %v8138 = vunpack.c.l.b16 %v7974
        %v8139 = vunpack.c.h.b16 %v7974
        %v8140 = vunpack.c.l.b16 %v7975
        %v8141 = vunpack.c.h.b16 %v7975
        %v8142 = vunpack.c.l.b16 %v7976
        %v8143 = vunpack.c.h.b16 %v7976
        %v8144 = vunpack.c.l.b16 %v7977
        %v8145 = vunpack.c.h.b16 %v7977
        %v8146 = vunpack.c.l.b16 %v7978
        %v8147 = vunpack.c.h.b16 %v7978
        %v8148 = vunpack.c.l.b16 %v7979
        %v8149 = vunpack.c.h.b16 %v7979
        %v8150 = vunpack.c.l.b16 %v7980
        %v8151 = vunpack.c.h.b16 %v7980
        %v8152 = vunpack.c.l.b16 %v7981
        %v8153 = vunpack.c.h.b16 %v7981
        %v8154 = vunpack.c.l.b16 %v7982
        %v8155 = vunpack.c.h.b16 %v7982
        %v8156 = vunpack.c.l.b16 %v7983
        %v8157 = vunpack.c.h.b16 %v7983
        %v8158 = vunpack.c.l.b16 %v7984
        %v8159 = vunpack.c.h.b16 %v7984
        %v8160 = vunpack.c.l.b16 %v7985
        %v8161 = vunpack.c.h.b16 %v7985
        %v8162 = vunpack.c.l.b16 %v7986
        %v8163 = vunpack.c.h.b16 %v7986
        %v8164 = vunpack.c.l.b16 %v7987
        %v8165 = vunpack.c.h.b16 %v7987
        %v8166 = vunpack.c.l.b16 %v7988
        %v8167 = vunpack.c.h.b16 %v7988
        %v8168 = vunpack.c.l.b16 %v7989
        %v8169 = vunpack.c.h.b16 %v7989
        %v8170 = vunpack.c.l.b16 %v7990
        %v8171 = vunpack.c.h.b16 %v7990
        %v8172 = vunpack.c.l.b16 %v7991
        %v8173 = vunpack.c.h.b16 %v7991
        %v8174 = vunpack.c.l.b16 %v7992
        %v8175 = vunpack.c.h.b16 %v7992
        %v8176 = vunpack.c.l.b16 %v7993
        %v8177 = vunpack.c.h.b16 %v7993
        %v8178 = vunpack.c.l.b16 %v7994
        %v8179 = vunpack.c.h.b16 %v7994
        %v8180 = vunpack.c.l.b16 %v7995
        %v8181 = vunpack.c.h.b16 %v7995
        %v8182 = vunpack.c.l.b16 %v7996
        %v8183 = vunpack.c.h.b16 %v7996
        %v8184 = vunpack.c.l.b16 %v7997
        %v8185 = vunpack.c.h.b16 %v7997
        %v8186 = vunpack.c.l.b16 %v7998
        %v8187 = vunpack.c.h.b16 %v7998
        %v8188 = vunpack.c.l.b16 %v7999
        %v8189 = vunpack.c.h.b16 %v7999
        %v8190 = vunpack.c.l.b16 %v8000
        %v8191 = vunpack.c.h.b16 %v8000
        %v8192 = vunpack.c.l.b16 %v8001
        %v8193 = vunpack.c.h.b16 %v8001
        %v8194 = vunpack.c.l.b16 %v8002
        %v8195 = vunpack.c.h.b16 %v8002
        %v8196 = vunpack.c.l.b16 %v8003
        %v8197 = vunpack.c.h.b16 %v8003
        %v8198 = vunpack.c.l.b16 %v8004
        %v8199 = vunpack.c.h.b16 %v8004
        %v8200 = vunpack.c.l.b16 %v8005
        %v8201 = vunpack.c.h.b16 %v8005
        %v8202 = vunpack.c.l.b16 %v8006
        %v8203 = vunpack.c.h.b16 %v8006
        %v8204 = vunpack.c.l.b16 %v8007
        %v8205 = vunpack.c.h.b16 %v8007
        %v8206 = vunpack.c.l.b16 %v8008
        %v8207 = vunpack.c.h.b16 %v8008
        %v8208 = vunpack.c.l.b16 %v8009
        %v8209 = vunpack.c.h.b16 %v8009
        %v8210 = vunpack.c.l.b16 %v8010
        %v8211 = vunpack.c.h.b16 %v8010
        %v8212 = vunpack.c.l.b16 %v8011
        %v8213 = vunpack.c.h.b16 %v8011
        %v8214 = vunpack.c.l.b16 %v8012
        %v8215 = vunpack.c.h.b16 %v8012
        %v8216 = vunpack.c.l.b16 %v8013
        %v8217 = vunpack.c.h.b16 %v8013
        %v8218 = vpack.c.b16 %v8092, %v8090
        %v8219 = vpack.c.b16 %v8093, %v8091
        %v8220 = vpack.c.b16 %v8096, %v8094
        %v8221 = vpack.c.b16 %v8097, %v8095
        %v8222 = vpack.c.b16 %v8100, %v8098
        %v8223 = vpack.c.b16 %v8101, %v8099
        %v8224 = vpack.c.b16 %v8104, %v8102
        %v8225 = vpack.c.b16 %v8105, %v8103
        %v8226 = vpack.c.b16 %v8108, %v8106
        %v8227 = vpack.c.b16 %v8109, %v8107
        %v8228 = vpack.c.b16 %v8112, %v8110
        %v8229 = vpack.c.b16 %v8113, %v8111
        %v8230 = vpack.c.b16 %v8116, %v8114
        %v8231 = vpack.c.b16 %v8117, %v8115
        %v8232 = vpack.c.b16 %v8120, %v8118
        %v8233 = vpack.c.b16 %v8121, %v8119
        %v8234 = vpack.c.b16 %v8124, %v8122
        %v8235 = vpack.c.b16 %v8125, %v8123
        %v8236 = vpack.c.b16 %v8128, %v8126
        %v8237 = vpack.c.b16 %v8129, %v8127
        %v8238 = vpack.c.b16 %v8132, %v8130
        %v8239 = vpack.c.b16 %v8133, %v8131
        %v8240 = vpack.c.b16 %v8136, %v8134
        %v8241 = vpack.c.b16 %v8137, %v8135
        %v8242 = vpack.c.b16 %v8140, %v8138
        %v8243 = vpack.c.b16 %v8141, %v8139
        %v8244 = vpack.c.b16 %v8144, %v8142
        %v8245 = vpack.c.b16 %v8145, %v8143
        %v8246 = vpack.c.b16 %v8148, %v8146
        %v8247 = vpack.c.b16 %v8149, %v8147
        %v8248 = vpack.c.b16 %v8152, %v8150
        %v8249 = vpack.c.b16 %v8153, %v8151
        %v8250 = vpack.c.b16 %v8156, %v8154
        %v8251 = vpack.c.b16 %v8157, %v8155
        %v8252 = vpack.c.b16 %v8160, %v8158
        %v8253 = vpack.c.b16 %v8161, %v8159
        %v8254 = vpack.c.b16 %v8164, %v8162
        %v8255 = vpack.c.b16 %v8165, %v8163
        %v8256 = vpack.c.b16 %v8168, %v8166
        %v8257 = vpack.c.b16 %v8169, %v8167
        %v8258 = vpack.c.b16 %v8172, %v8170
        %v8259 = vpack.c.b16 %v8173, %v8171
        %v8260 = vpack.c.b16 %v8176, %v8174
        %v8261 = vpack.c.b16 %v8177, %v8175
        %v8262 = vpack.c.b16 %v8180, %v8178
        %v8263 = vpack.c.b16 %v8181, %v8179
        %v8264 = vpack.c.b16 %v8184, %v8182
        %v8265 = vpack.c.b16 %v8185, %v8183
        %v8266 = vpack.c.b16 %v8188, %v8186
        %v8267 = vpack.c.b16 %v8189, %v8187
        %v8268 = vpack.c.b16 %v8192, %v8190
        %v8269 = vpack.c.b16 %v8193, %v8191
        %v8270 = vpack.c.b16 %v8196, %v8194
        %v8271 = vpack.c.b16 %v8197, %v8195
        %v8272 = vpack.c.b16 %v8200, %v8198
        %v8273 = vpack.c.b16 %v8201, %v8199
        %v8274 = vpack.c.b16 %v8204, %v8202
        %v8275 = vpack.c.b16 %v8205, %v8203
        %v8276 = vpack.c.b16 %v8208, %v8206
        %v8277 = vpack.c.b16 %v8209, %v8207
        %v8278 = vpack.c.b16 %v8212, %v8210
        %v8279 = vpack.c.b16 %v8213, %v8211
        %v8280 = vpack.c.b16 %v8216, %v8214
        %v8281 = vpack.c.b16 %v8217, %v8215
        %8346 = vmatprep.subr.bf16.mxu0 %v8219
        %8347 = vmatpush1.bf16.msra.mxu0 %v8218
        %8348 = vmatprep.subr.bf16.mxu0 %v8221
        %8349 = vmatpush1.bf16.msra.mxu0 %v8220
        %8350 = vmatprep.subr.bf16.mxu0 %v8223
        %8351 = vmatpush1.bf16.msra.mxu0 %v8222
        %8352 = vmatprep.subr.bf16.mxu0 %v8225
        %8353 = vmatpush1.bf16.msra.mxu0 %v8224
        %8354 = vmatprep.subr.bf16.mxu0 %v8227
        %8355 = vmatpush1.bf16.msra.mxu0 %v8226
        %8356 = vmatprep.subr.bf16.mxu0 %v8229
        %8357 = vmatpush1.bf16.msra.mxu0 %v8228
        %8358 = vmatprep.subr.bf16.mxu0 %v8231
        %8359 = vmatpush1.bf16.msra.mxu0 %v8230
        %8360 = vmatprep.subr.bf16.mxu0 %v8233
        %8361 = vmatpush1.bf16.msra.mxu0 %v8232
        %8362 = vmatprep.subr.bf16.mxu0 %v8235
        %8363 = vmatpush1.bf16.msra.mxu0 %v8234
        %8364 = vmatprep.subr.bf16.mxu0 %v8237
        %8365 = vmatpush1.bf16.msra.mxu0 %v8236
        %8366 = vmatprep.subr.bf16.mxu0 %v8239
        %8367 = vmatpush1.bf16.msra.mxu0 %v8238
        %8368 = vmatprep.subr.bf16.mxu0 %v8241
        %8369 = vmatpush1.bf16.msra.mxu0 %v8240
        %8370 = vmatprep.subr.bf16.mxu0 %v8243
        %8371 = vmatpush1.bf16.msra.mxu0 %v8242
        %8372 = vmatprep.subr.bf16.mxu0 %v8245
        %8373 = vmatpush1.bf16.msra.mxu0 %v8244
        %8374 = vmatprep.subr.bf16.mxu0 %v8247
        %8375 = vmatpush1.bf16.msra.mxu0 %v8246
        %8376 = vmatprep.subr.bf16.mxu0 %v8249
        %8377 = vmatpush1.bf16.msra.mxu0 %v8248
        %8378 = vmatprep.mubr.bf16.mxu0 %v7947
        %8379 = vmatmul.mubr.bf16.gmra.mrb[0].mxu0 %v7946
        %v8380 = vpop.f32.mrb[0].mxu0
        %v8381 = vadd.f32 %v8019, %v8380
        %v8382 = vpop.f32.mrb[0].mxu0
        %v8383 = vadd.f32 %v8023, %v8382
        %v8384 = vpop.f32.mrb[0].mxu0
        %v8385 = vadd.f32 %v8019, %v8384
        %v8386 = vpop.f32.mrb[0].mxu0
        %v8387 = vadd.f32 %v8023, %v8386
        %8388 = vdwg.mxu0
        %8389 = vmatprep.subr.bf16.mxu0 %v8251
        %8390 = vmatpush1.bf16.msra.mxu0 %v8250
        %8391 = vmatprep.subr.bf16.mxu0 %v8253
        %8392 = vmatpush1.bf16.msra.mxu0 %v8252
        %8393 = vmatprep.subr.bf16.mxu0 %v8255
        %8394 = vmatpush1.bf16.msra.mxu0 %v8254
        %8395 = vmatprep.subr.bf16.mxu0 %v8257
        %8396 = vmatpush1.bf16.msra.mxu0 %v8256
        %8397 = vmatprep.subr.bf16.mxu0 %v8259
        %8398 = vmatpush1.bf16.msra.mxu0 %v8258
        %8399 = vmatprep.subr.bf16.mxu0 %v8261
        %8400 = vmatpush1.bf16.msra.mxu0 %v8260
        %8401 = vmatprep.subr.bf16.mxu0 %v8263
        %8402 = vmatpush1.bf16.msra.mxu0 %v8262
        %8403 = vmatprep.subr.bf16.mxu0 %v8265
        %8404 = vmatpush1.bf16.msra.mxu0 %v8264
        %8405 = vmatprep.subr.bf16.mxu0 %v8267
        %8406 = vmatpush1.bf16.msra.mxu0 %v8266
        %8407 = vmatprep.subr.bf16.mxu0 %v8269
        %8408 = vmatpush1.bf16.msra.mxu0 %v8268
        %8409 = vmatprep.subr.bf16.mxu0 %v8271
        %8410 = vmatpush1.bf16.msra.mxu0 %v8270
        %8411 = vmatprep.subr.bf16.mxu0 %v8273
        %8412 = vmatpush1.bf16.msra.mxu0 %v8272
        %8413 = vmatprep.subr.bf16.mxu0 %v8275
        %8414 = vmatpush1.bf16.msra.mxu0 %v8274
        %8415 = vmatprep.subr.bf16.mxu0 %v8277
        %8416 = vmatpush1.bf16.msra.mxu0 %v8276
        %8417 = vmatprep.subr.bf16.mxu0 %v8279
        %8418 = vmatpush1.bf16.msra.mxu0 %v8278
        %8419 = vmatprep.subr.bf16.mxu0 %v8281
        %8420 = vmatpush1.bf16.msra.mxu0 %v8280
        %8421 = vmatprep.mubr.bf16.mxu0 %v7949
        %8422 = vmatmul.mubr.bf16.gmra.mrb[0].mxu0 %v7948
        %v8423 = vpop.f32.mrb[0].mxu0
        %v8424 = vadd.f32 %v8381, %v8423
        %v8425 = vpop.f32.mrb[0].mxu0
        %v8426 = vadd.f32 %v8383, %v8425
        %v8427 = vpop.f32.mrb[0].mxu0
        %v8428 = vadd.f32 %v8385, %v8427
        %v8429 = vpop.f32.mrb[0].mxu0
        %v8430 = vadd.f32 %v8387, %v8429
        %8431 = vdwg.mxu0
        %v8432 = vpack.c.bf16 %v8428, %v8424
        %v8433 = vpack.c.bf16 %v8430, %v8426
        %v8436 = vunpack.c.l.b16 %v8432
        %v8437 = vunpack.c.l.b16 %v8433
        %v8438 = vunpack.c.h.b16 %v8432
        %v8439 = vunpack.c.h.b16 %v8433
        %v8440 = vpack.c.b16 %v8437, %v8436
        %v8441 = vpack.c.b16 %v8439, %v8438
        %8444 = vst [vmem:[%s645] sm:$0xff] %v8440
        %8445 = vst [vmem:[%s645 + $0x8] sm:$0xff] %v8441
        %p8446 = scmp.lt.s32.totalorder %s35, 1
        %s8447 = scalar_select %p8446, %s35, 1
        %s8448 = smul.addr %s8447, 8
        %s8449 = smul.addr %s8448, 4
        %s8450 = scalar_lea.vmem %s12, %s8449
        %s8451 = sand.u32 %s331, 1
        %s8452 = scalar_lea.sflag [#allocation4], %s8451
        %s8453 = sand.u32 %s331, 1
        %s8454 = scalar_lea.vmem [#allocation19], %s8453
        %p8455 = scmp.lt.s32.totalorder %s35, 1
        %s8456 = scalar_select %p8455, %s35, 1
        %s8457 = smul.addr %s8456, 4
        %s8458 = smul.addr %s8457, 4
        %s8459 = scalar_lea.vmem %s14, %s8458
        // Predicated region
        $region109: #{generalized_rcnn_forward.2} parent=67 // pred_check
          %p8460 = pneg %p315
        $region110: #{generalized_rcnn_forward.2} parent=67 // pred_check_branch
          %8462 = sbr.rel (%p8460) target = $region112
        $region111: #{generalized_rcnn_forward.2} parent=67 // pred_region
          _
        $region112: #{generalized_rcnn_forward.2} parent=67 // pred_fallthru
          _
        // Predicated region
        $region113: #{generalized_rcnn_forward.2} parent=67 // pred_check
          %p8463 = pneg %p341
        $region114: #{generalized_rcnn_forward.2} parent=67 // pred_check_branch
          %8465 = sbr.rel (%p8463) target = $region116
        $region115: #{generalized_rcnn_forward.2} parent=67 // pred_region
          %s8467 = ssub.s32 16, 16
          %8468 = vsyncadd %s8452, %s8467
          %s8469 = smul.addr %s35, 16
          %s8470 = scalar_lea.hbm %s13, %s8469
          %s8472 = sshll.u32 %s8454, 4
          %s8473 = int_to_ptr.vmem [resolvable:$true] %s8472
          %8475 = dma.vmem_to_hbm [thread:$0]  %s8473, 16, %s8470, %s8452
        $region116: #{generalized_rcnn_forward.2} parent=67 // pred_fallthru
          _
        // Predicated region
        $region117: #{generalized_rcnn_forward.2} parent=67 // pred_check
          %p8476 = pneg %p367
        $region118: #{generalized_rcnn_forward.2} parent=67 // pred_check_branch
          %8478 = sbr.rel (%p8476) target = $region120
        $region119: #{generalized_rcnn_forward.2} parent=67 // pred_region
          _
        $region120: #{generalized_rcnn_forward.2} parent=67 // pred_fallthru
          _
      $region68: #{generalized_rcnn_forward.2} parent=5 // pred_fallthru
        _
      %p8479 = scmp.le.s32.totalorder 2, %s30
      // Predicated region
      $region121: #{generalized_rcnn_forward.2} parent=5 // pred_check
        %p8480 = pneg %p8479
      $region122: #{generalized_rcnn_forward.2} parent=5 // pred_check_branch
        %8482 = sbr.rel (%p8480) target = $region124
      $region123: #{generalized_rcnn_forward.2} parent=5 // pred_region
        %s8483 = ssub.s32 %s30, 2
        // Predicated region
        $region125: #{generalized_rcnn_forward.2} parent=123 // pred_check
          %p8484 = pneg %p321
        $region126: #{generalized_rcnn_forward.2} parent=123 // pred_check_branch
          %8486 = sbr.rel (%p8484) target = $region128
        $region127: #{generalized_rcnn_forward.2} parent=123 // pred_region
          %p8487 = scmp.lt.s32.totalorder %s36, 1
          %s8488 = scalar_select %p8487, %s36, 1
          %s8489 = smul.addr %s8488, 8
          %s8490 = smul.addr %s8489, 4
          %s8491 = scalar_lea.vmem %s12, %s8490
        $region128: #{generalized_rcnn_forward.2} parent=123 // pred_fallthru
          _
        // Predicated region
        $region129: #{generalized_rcnn_forward.2} parent=123 // pred_check
          %p8492 = pneg %p347
        $region130: #{generalized_rcnn_forward.2} parent=123 // pred_check_branch
          %8494 = sbr.rel (%p8492) target = $region132
        $region131: #{generalized_rcnn_forward.2} parent=123 // pred_region
          %s8495 = sand.u32 %s332, 1
          %s8496 = scalar_lea.sflag [#allocation4], %s8495
          %s8497 = sand.u32 %s332, 1
          %s8498 = scalar_lea.vmem [#allocation19], %s8497
          %8499 = dma.done %s8496, 16
        $region132: #{generalized_rcnn_forward.2} parent=123 // pred_fallthru
          _
        // Predicated region
        $region133: #{generalized_rcnn_forward.2} parent=123 // pred_check
          %p8500 = pneg %p373
        $region134: #{generalized_rcnn_forward.2} parent=123 // pred_check_branch
          %8502 = sbr.rel (%p8500) target = $region136
        $region135: #{generalized_rcnn_forward.2} parent=123 // pred_region
          %p8503 = scmp.lt.s32.totalorder %s36, 1
          %s8504 = scalar_select %p8503, %s36, 1
          %s8505 = smul.addr %s8504, 4
          %s8506 = smul.addr %s8505, 4
          %s8507 = scalar_lea.vmem %s14, %s8506
        $region136: #{generalized_rcnn_forward.2} parent=123 // pred_fallthru
          _
      $region124: #{generalized_rcnn_forward.2} parent=5 // pred_fallthru
        _
    $region6: #{generalized_rcnn_forward.2} parent=1 // loop_footer
      %s34 = sadd.s32 1, %s30
    $region7: #{generalized_rcnn_forward.2} parent=1 // loop_footer_branch
      %29 = sbr.rel target = $region3
    $region8: #{generalized_rcnn_forward.2} parent=1 // loop_exit
      _
    %8508 = vsyncpa [#allocation3], 1
    %s8509 = scalar_lea.sflag [#allocation3], 1
    %8510 = vsyncpa %s8509, 1
    %8511 = vsyncpa [#allocation6], 1
    %8512 = vsyncpa [#allocation9], 1
    %8513 = vsyncpa [#allocation12], 1
    %8514 = vsyncpa [#allocation15], 1
    %8515 = vsyncpa [#allocation18], 1
    %8516 = vsyncpa [#allocation4], 1
    %s8517 = scalar_lea.sflag [#allocation4], 1
    %8518 = vsyncpa %s8517, 1

// kernel: generalized_rcnn_forward.3
$region0: #{generalized_rcnn_forward.3}
  #allocation0 [shape = 'u32[]', space=smem, size = 0x4, offset = 0x4, fixed_abs, tag = 'smem constant byte address 0x4 - core index']
  #allocation1 [shape = 'u32[144,128]{1,0:T(1,128)}', space=vmem, size = 0x12000, scoped, tag = 'internal scratch']
  %s0 = inlined_call_operand.vmem [shape: bf16[32,128], index: 0, kind: input, shape index: {}]
  %s1 = inlined_call_operand.vmem [shape: bf16[128,128], index: 1, kind: input, shape index: {}]
  %s2 = inlined_call_operand.vmem [shape: f32[1,128], index: 2, kind: input, shape index: {}]
  %s3 = inlined_call_operand.vmem [shape: bf16[128,128], index: 3, kind: input, shape index: {}]
  %s4 = inlined_call_operand.vmem [shape: f32[1,128], index: 4, kind: input, shape index: {}]
  %s5 = inlined_call_operand.vmem [shape: bf16[128,128], index: 5, kind: input, shape index: {}]
  %s6 = inlined_call_operand.vmem [shape: f32[1,128], index: 6, kind: input, shape index: {}]
  %s7 = inlined_call_operand.vmem [shape: f32[32,128], index: 7, kind: output, shape index: {}]
  %s8 = sld [smem:[#allocation0]]
  $region38: #{generalized_rcnn_forward.3} parent=0
    _
  %s10 = ssub.s32 1, %s8
  %s11 = scalar_select 0, %s10, %s8
  // Predicated region
  $region2: #{generalized_rcnn_forward.3} parent=0 // pred_check
    _
  $region3: #{generalized_rcnn_forward.3} parent=0 // pred_check_branch
    %13 = sbr.rel (0) target = $region5
  $region4: #{generalized_rcnn_forward.3} parent=0 // pred_region
    _
  $region5: #{generalized_rcnn_forward.3} parent=0 // pred_fallthru
    _
  // Predicated region
  $region6: #{generalized_rcnn_forward.3} parent=0 // pred_check
    _
  $region7: #{generalized_rcnn_forward.3} parent=0 // pred_check_branch
    %15 = sbr.rel (0) target = $region9
  $region8: #{generalized_rcnn_forward.3} parent=0 // pred_region
    _
  $region9: #{generalized_rcnn_forward.3} parent=0 // pred_fallthru
    _
  // Predicated region
  $region10: #{generalized_rcnn_forward.3} parent=0 // pred_check
    _
  $region11: #{generalized_rcnn_forward.3} parent=0 // pred_check_branch
    %17 = sbr.rel (0) target = $region13
  $region12: #{generalized_rcnn_forward.3} parent=0 // pred_region
    _
  $region13: #{generalized_rcnn_forward.3} parent=0 // pred_fallthru
    _
  // Predicated region
  $region14: #{generalized_rcnn_forward.3} parent=0 // pred_check
    _
  $region15: #{generalized_rcnn_forward.3} parent=0 // pred_check_branch
    %19 = sbr.rel (0) target = $region17
  $region16: #{generalized_rcnn_forward.3} parent=0 // pred_region
    _
  $region17: #{generalized_rcnn_forward.3} parent=0 // pred_fallthru
    _
  // Predicated region
  $region18: #{generalized_rcnn_forward.3} parent=0 // pred_check
    _
  $region19: #{generalized_rcnn_forward.3} parent=0 // pred_check_branch
    %21 = sbr.rel (0) target = $region21
  $region20: #{generalized_rcnn_forward.3} parent=0 // pred_region
    _
  $region21: #{generalized_rcnn_forward.3} parent=0 // pred_fallthru
    _
  // Predicated region
  $region22: #{generalized_rcnn_forward.3} parent=0 // pred_check
    _
  $region23: #{generalized_rcnn_forward.3} parent=0 // pred_check_branch
    %23 = sbr.rel (0) target = $region25
  $region24: #{generalized_rcnn_forward.3} parent=0 // pred_region
    _
  $region25: #{generalized_rcnn_forward.3} parent=0 // pred_fallthru
    _
  // Predicated region
  $region26: #{generalized_rcnn_forward.3} parent=0 // pred_check
    _
  $region27: #{generalized_rcnn_forward.3} parent=0 // pred_check_branch
    %25 = sbr.rel (0) target = $region29
  $region28: #{generalized_rcnn_forward.3} parent=0 // pred_region
    _
  $region29: #{generalized_rcnn_forward.3} parent=0 // pred_fallthru
    _
  %v27 = vld [vmem:[%s0] sm:$0xf]
  %v28 = vld [vmem:[%s0 + $0x4] sm:$0xf]
  %v29 = vld [vmem:[%s0 + $0x8] sm:$0xf]
  %v30 = vld [vmem:[%s0 + $0xc] sm:$0xf]
  %v31 = vld [vmem:[%s1] sm:$0xf]
  %v32 = vld [vmem:[%s1 + $0x4] sm:$0xf]
  %v33 = vld [vmem:[%s1 + $0x8] sm:$0xf]
  %v34 = vld [vmem:[%s1 + $0xc] sm:$0xf]
  %v35 = vld [vmem:[%s1 + $0x10] sm:$0xf]
  %v36 = vld [vmem:[%s1 + $0x14] sm:$0xf]
  %v37 = vld [vmem:[%s1 + $0x18] sm:$0xf]
  %v38 = vld [vmem:[%s1 + $0x1c] sm:$0xf]
  %v39 = vld [vmem:[%s1 + $0x20] sm:$0xf]
  %v40 = vld [vmem:[%s1 + $0x24] sm:$0xf]
  %v41 = vld [vmem:[%s1 + $0x28] sm:$0xf]
  %v42 = vld [vmem:[%s1 + $0x2c] sm:$0xf]
  %v43 = vld [vmem:[%s1 + $0x30] sm:$0xf]
  %v44 = vld [vmem:[%s1 + $0x34] sm:$0xf]
  %v45 = vld [vmem:[%s1 + $0x38] sm:$0xf]
  %v46 = vld [vmem:[%s1 + $0x3c] sm:$0xf]
  %v47 = vld [vmem:[%s2] sm:$0x1]
  %v49 = vlaneseq
  %v50 = vshrl.u32 %v49, 7
  %v51 = vsub.s32 0, %v50
  %v52 = vrot.slane %v47, %v51
  %v58 = vunpack.c.l.b16 %v27
  %v59 = vunpack.c.l.b16 %v28
  %v60 = vunpack.c.l.b16 %v29
  %v61 = vunpack.c.l.b16 %v30
  %v62 = vpack.c.b16 %v59, %v58
  %v63 = vpack.c.b16 %v61, %v60
  %v82 = vunpack.c.l.b16 %v31
  %v83 = vunpack.c.l.b16 %v32
  %v84 = vunpack.c.l.b16 %v33
  %v85 = vunpack.c.l.b16 %v34
  %v86 = vunpack.c.l.b16 %v35
  %v87 = vunpack.c.l.b16 %v36
  %v88 = vunpack.c.l.b16 %v37
  %v89 = vunpack.c.l.b16 %v38
  %v90 = vunpack.c.l.b16 %v39
  %v91 = vunpack.c.l.b16 %v40
  %v92 = vunpack.c.l.b16 %v41
  %v93 = vunpack.c.l.b16 %v42
  %v94 = vunpack.c.l.b16 %v43
  %v95 = vunpack.c.l.b16 %v44
  %v96 = vunpack.c.l.b16 %v45
  %v97 = vunpack.c.l.b16 %v46
  %v98 = vpack.c.b16 %v83, %v82
  %v99 = vpack.c.b16 %v85, %v84
  %v100 = vpack.c.b16 %v87, %v86
  %v101 = vpack.c.b16 %v89, %v88
  %v102 = vpack.c.b16 %v91, %v90
  %v103 = vpack.c.b16 %v93, %v92
  %v104 = vpack.c.b16 %v95, %v94
  %v105 = vpack.c.b16 %v97, %v96
  %114 = vmatprep.subr.bf16.mxu0 0
  %115 = vmatpush1.bf16.msra.mxu0 %v98
  %116 = vmatprep.subr.bf16.mxu0 0
  %117 = vmatpush1.bf16.msra.mxu0 %v99
  %118 = vmatprep.subr.bf16.mxu0 0
  %119 = vmatpush1.bf16.msra.mxu0 %v100
  %120 = vmatprep.subr.bf16.mxu0 0
  %121 = vmatpush1.bf16.msra.mxu0 %v101
  %122 = vmatprep.subr.bf16.mxu0 0
  %123 = vmatpush1.bf16.msra.mxu0 %v102
  %124 = vmatprep.subr.bf16.mxu0 0
  %125 = vmatpush1.bf16.msra.mxu0 %v103
  %126 = vmatprep.subr.bf16.mxu0 0
  %127 = vmatpush1.bf16.msra.mxu0 %v104
  %128 = vmatprep.subr.bf16.mxu0 0
  %129 = vmatpush1.bf16.msra.mxu0 %v105
  %130 = vmatprep.subr.bf16.mxu0 0
  %131 = vmatpush1.bf16.msra.mxu0 0
  %132 = vmatprep.subr.bf16.mxu0 0
  %133 = vmatpush1.bf16.msra.mxu0 0
  %134 = vmatprep.subr.bf16.mxu0 0
  %135 = vmatpush1.bf16.msra.mxu0 0
  %136 = vmatprep.subr.bf16.mxu0 0
  %137 = vmatpush1.bf16.msra.mxu0 0
  %138 = vmatprep.subr.bf16.mxu0 0
  %139 = vmatpush1.bf16.msra.mxu0 0
  %140 = vmatprep.subr.bf16.mxu0 0
  %141 = vmatpush1.bf16.msra.mxu0 0
  %142 = vmatprep.subr.bf16.mxu0 0
  %143 = vmatpush1.bf16.msra.mxu0 0
  %144 = vmatprep.subr.bf16.mxu0 0
  %145 = vmatpush1.bf16.msra.mxu0 0
  %146 = vmatprep.mubr.bf16.mxu0 0
  %147 = vmatmul.mubr.bf16.gmra.mrb[0].mxu0 %v62
  %v148 = vpop.f32.mrb[0].mxu0
  %v149 = vadd.f32 %v52, %v148
  %v150 = vpop.f32.mrb[0].mxu0
  %v151 = vpop.f32.mrb[0].mxu0
  %v152 = vadd.f32 %v52, %v151
  %v153 = vpop.f32.mrb[0].mxu0
  %154 = vmatprep.mubr.bf16.mxu0 0
  %155 = vmatmul.mubr.bf16.gmra.mrb[0].mxu0 %v63
  %v156 = vpop.f32.mrb[0].mxu0
  %v157 = vadd.f32 %v52, %v156
  %v158 = vpop.f32.mrb[0].mxu0
  %v159 = vpop.f32.mrb[0].mxu0
  %v160 = vadd.f32 %v52, %v159
  %v161 = vpop.f32.mrb[0].mxu0
  %162 = vdwg.mxu0
  %v163 = vmax.f32 %v149, 0.0
  %v164 = vmax.f32 %v152, 0.0
  %v165 = vmax.f32 %v157, 0.0
  %v166 = vmax.f32 %v160, 0.0
  %v167 = vpack.c.bf16 %v164, %v163
  %v168 = vpack.c.bf16 %v166, %v165
  %v169 = vld [vmem:[%s3] sm:$0xf]
  %v170 = vld [vmem:[%s3 + $0x4] sm:$0xf]
  %v171 = vld [vmem:[%s3 + $0x8] sm:$0xf]
  %v172 = vld [vmem:[%s3 + $0xc] sm:$0xf]
  %v173 = vld [vmem:[%s3 + $0x10] sm:$0xf]
  %v174 = vld [vmem:[%s3 + $0x14] sm:$0xf]
  %v175 = vld [vmem:[%s3 + $0x18] sm:$0xf]
  %v176 = vld [vmem:[%s3 + $0x1c] sm:$0xf]
  %v177 = vld [vmem:[%s3 + $0x20] sm:$0xf]
  %v178 = vld [vmem:[%s3 + $0x24] sm:$0xf]
  %v179 = vld [vmem:[%s3 + $0x28] sm:$0xf]
  %v180 = vld [vmem:[%s3 + $0x2c] sm:$0xf]
  %v181 = vld [vmem:[%s3 + $0x30] sm:$0xf]
  %v182 = vld [vmem:[%s3 + $0x34] sm:$0xf]
  %v183 = vld [vmem:[%s3 + $0x38] sm:$0xf]
  %v184 = vld [vmem:[%s3 + $0x3c] sm:$0xf]
  %v185 = vld [vmem:[%s4] sm:$0x1]
  %v187 = vlaneseq
  %v188 = vshrl.u32 %v187, 7
  %v189 = vsub.s32 0, %v188
  %v190 = vrot.slane %v185, %v189
  %v208 = vunpack.c.l.b16 %v169
  %v209 = vunpack.c.l.b16 %v170
  %v210 = vunpack.c.l.b16 %v171
  %v211 = vunpack.c.l.b16 %v172
  %v212 = vunpack.c.l.b16 %v173
  %v213 = vunpack.c.l.b16 %v174
  %v214 = vunpack.c.l.b16 %v175
  %v215 = vunpack.c.l.b16 %v176
  %v216 = vunpack.c.l.b16 %v177
  %v217 = vunpack.c.l.b16 %v178
  %v218 = vunpack.c.l.b16 %v179
  %v219 = vunpack.c.l.b16 %v180
  %v220 = vunpack.c.l.b16 %v181
  %v221 = vunpack.c.l.b16 %v182
  %v222 = vunpack.c.l.b16 %v183
  %v223 = vunpack.c.l.b16 %v184
  %v224 = vpack.c.b16 %v209, %v208
  %v225 = vpack.c.b16 %v211, %v210
  %v226 = vpack.c.b16 %v213, %v212
  %v227 = vpack.c.b16 %v215, %v214
  %v228 = vpack.c.b16 %v217, %v216
  %v229 = vpack.c.b16 %v219, %v218
  %v230 = vpack.c.b16 %v221, %v220
  %v231 = vpack.c.b16 %v223, %v222
  %240 = vmatprep.subr.bf16.mxu0 0
  %241 = vmatpush1.bf16.msra.mxu0 %v224
  %242 = vmatprep.subr.bf16.mxu0 0
  %243 = vmatpush1.bf16.msra.mxu0 %v225
  %244 = vmatprep.subr.bf16.mxu0 0
  %245 = vmatpush1.bf16.msra.mxu0 %v226
  %246 = vmatprep.subr.bf16.mxu0 0
  %247 = vmatpush1.bf16.msra.mxu0 %v227
  %248 = vmatprep.subr.bf16.mxu0 0
  %249 = vmatpush1.bf16.msra.mxu0 %v228
  %250 = vmatprep.subr.bf16.mxu0 0
  %251 = vmatpush1.bf16.msra.mxu0 %v229
  %252 = vmatprep.subr.bf16.mxu0 0
  %253 = vmatpush1.bf16.msra.mxu0 %v230
  %254 = vmatprep.subr.bf16.mxu0 0
  %255 = vmatpush1.bf16.msra.mxu0 %v231
  %256 = vmatprep.subr.bf16.mxu0 0
  %257 = vmatpush1.bf16.msra.mxu0 0
  %258 = vmatprep.subr.bf16.mxu0 0
  %259 = vmatpush1.bf16.msra.mxu0 0
  %260 = vmatprep.subr.bf16.mxu0 0
  %261 = vmatpush1.bf16.msra.mxu0 0
  %262 = vmatprep.subr.bf16.mxu0 0
  %263 = vmatpush1.bf16.msra.mxu0 0
  %264 = vmatprep.subr.bf16.mxu0 0
  %265 = vmatpush1.bf16.msra.mxu0 0
  %266 = vmatprep.subr.bf16.mxu0 0
  %267 = vmatpush1.bf16.msra.mxu0 0
  %268 = vmatprep.subr.bf16.mxu0 0
  %269 = vmatpush1.bf16.msra.mxu0 0
  %270 = vmatprep.subr.bf16.mxu0 0
  %271 = vmatpush1.bf16.msra.mxu0 0
  %272 = vmatprep.mubr.bf16.mxu0 0
  %273 = vmatmul.mubr.bf16.gmra.mrb[0].mxu0 %v167
  %v274 = vpop.f32.mrb[0].mxu0
  %v275 = vadd.f32 %v190, %v274
  %v276 = vpop.f32.mrb[0].mxu0
  %v277 = vpop.f32.mrb[0].mxu0
  %v278 = vadd.f32 %v190, %v277
  %v279 = vpop.f32.mrb[0].mxu0
  %280 = vmatprep.mubr.bf16.mxu0 0
  %281 = vmatmul.mubr.bf16.gmra.mrb[0].mxu0 %v168
  %v282 = vpop.f32.mrb[0].mxu0
  %v283 = vadd.f32 %v190, %v282
  %v284 = vpop.f32.mrb[0].mxu0
  %v285 = vpop.f32.mrb[0].mxu0
  %v286 = vadd.f32 %v190, %v285
  %v287 = vpop.f32.mrb[0].mxu0
  %288 = vdwg.mxu0
  %v289 = vmax.f32 %v275, 0.0
  %v290 = vmax.f32 %v278, 0.0
  %v291 = vmax.f32 %v283, 0.0
  %v292 = vmax.f32 %v286, 0.0
  %v293 = vpack.c.bf16 %v290, %v289
  %v294 = vpack.c.bf16 %v292, %v291
  %v295 = vld [vmem:[%s5] sm:$0xf]
  %v296 = vld [vmem:[%s5 + $0x4] sm:$0xf]
  %v297 = vld [vmem:[%s5 + $0x8] sm:$0xf]
  %v298 = vld [vmem:[%s5 + $0xc] sm:$0xf]
  %v299 = vld [vmem:[%s5 + $0x10] sm:$0xf]
  %v300 = vld [vmem:[%s5 + $0x14] sm:$0xf]
  %v301 = vld [vmem:[%s5 + $0x18] sm:$0xf]
  %v302 = vld [vmem:[%s5 + $0x1c] sm:$0xf]
  %v303 = vld [vmem:[%s5 + $0x20] sm:$0xf]
  %v304 = vld [vmem:[%s5 + $0x24] sm:$0xf]
  %v305 = vld [vmem:[%s5 + $0x28] sm:$0xf]
  %v306 = vld [vmem:[%s5 + $0x2c] sm:$0xf]
  %v307 = vld [vmem:[%s5 + $0x30] sm:$0xf]
  %v308 = vld [vmem:[%s5 + $0x34] sm:$0xf]
  %v309 = vld [vmem:[%s5 + $0x38] sm:$0xf]
  %v310 = vld [vmem:[%s5 + $0x3c] sm:$0xf]
  %v311 = vld [vmem:[%s6] sm:$0x1]
  %v313 = vlaneseq
  %v314 = vshrl.u32 %v313, 7
  %v315 = vsub.s32 0, %v314
  %v316 = vrot.slane %v311, %v315
  %v334 = vunpack.c.l.b16 %v295
  %v335 = vunpack.c.l.b16 %v296
  %v336 = vunpack.c.l.b16 %v297
  %v337 = vunpack.c.l.b16 %v298
  %v338 = vunpack.c.l.b16 %v299
  %v339 = vunpack.c.l.b16 %v300
  %v340 = vunpack.c.l.b16 %v301
  %v341 = vunpack.c.l.b16 %v302
  %v342 = vunpack.c.l.b16 %v303
  %v343 = vunpack.c.l.b16 %v304
  %v344 = vunpack.c.l.b16 %v305
  %v345 = vunpack.c.l.b16 %v306
  %v346 = vunpack.c.l.b16 %v307
  %v347 = vunpack.c.l.b16 %v308
  %v348 = vunpack.c.l.b16 %v309
  %v349 = vunpack.c.l.b16 %v310
  %v350 = vpack.c.b16 %v335, %v334
  %v351 = vpack.c.b16 %v337, %v336
  %v352 = vpack.c.b16 %v339, %v338
  %v353 = vpack.c.b16 %v341, %v340
  %v354 = vpack.c.b16 %v343, %v342
  %v355 = vpack.c.b16 %v345, %v344
  %v356 = vpack.c.b16 %v347, %v346
  %v357 = vpack.c.b16 %v349, %v348
  %366 = vmatprep.subr.bf16.mxu0 0
  %367 = vmatpush1.bf16.msra.mxu0 %v350
  %368 = vmatprep.subr.bf16.mxu0 0
  %369 = vmatpush1.bf16.msra.mxu0 %v351
  %370 = vmatprep.subr.bf16.mxu0 0
  %371 = vmatpush1.bf16.msra.mxu0 %v352
  %372 = vmatprep.subr.bf16.mxu0 0
  %373 = vmatpush1.bf16.msra.mxu0 %v353
  %374 = vmatprep.subr.bf16.mxu0 0
  %375 = vmatpush1.bf16.msra.mxu0 %v354
  %376 = vmatprep.subr.bf16.mxu0 0
  %377 = vmatpush1.bf16.msra.mxu0 %v355
  %378 = vmatprep.subr.bf16.mxu0 0
  %379 = vmatpush1.bf16.msra.mxu0 %v356
  %380 = vmatprep.subr.bf16.mxu0 0
  %381 = vmatpush1.bf16.msra.mxu0 %v357
  %382 = vmatprep.subr.bf16.mxu0 0
  %383 = vmatpush1.bf16.msra.mxu0 0
  %384 = vmatprep.subr.bf16.mxu0 0
  %385 = vmatpush1.bf16.msra.mxu0 0
  %386 = vmatprep.subr.bf16.mxu0 0
  %387 = vmatpush1.bf16.msra.mxu0 0
  %388 = vmatprep.subr.bf16.mxu0 0
  %389 = vmatpush1.bf16.msra.mxu0 0
  %390 = vmatprep.subr.bf16.mxu0 0
  %391 = vmatpush1.bf16.msra.mxu0 0
  %392 = vmatprep.subr.bf16.mxu0 0
  %393 = vmatpush1.bf16.msra.mxu0 0
  %394 = vmatprep.subr.bf16.mxu0 0
  %395 = vmatpush1.bf16.msra.mxu0 0
  %396 = vmatprep.subr.bf16.mxu0 0
  %397 = vmatpush1.bf16.msra.mxu0 0
  %398 = vmatprep.mubr.bf16.mxu0 0
  %399 = vmatmul.mubr.bf16.gmra.mrb[0].mxu0 %v293
  %v400 = vpop.f32.mrb[0].mxu0
  %v401 = vadd.f32 %v316, %v400
  %v402 = vpop.f32.mrb[0].mxu0
  %v403 = vpop.f32.mrb[0].mxu0
  %v404 = vadd.f32 %v316, %v403
  %v405 = vpop.f32.mrb[0].mxu0
  %406 = vmatprep.mubr.bf16.mxu0 0
  %407 = vmatmul.mubr.bf16.gmra.mrb[0].mxu0 %v294
  %v408 = vpop.f32.mrb[0].mxu0
  %v409 = vadd.f32 %v316, %v408
  %v410 = vpop.f32.mrb[0].mxu0
  %v411 = vpop.f32.mrb[0].mxu0
  %v412 = vadd.f32 %v316, %v411
  %v413 = vpop.f32.mrb[0].mxu0
  %414 = vdwg.mxu0
  %415 = vst [vmem:[%s7] sm:$0xff] %v401
  %416 = vst [vmem:[%s7 + $0x8] sm:$0xff] %v404
  %417 = vst [vmem:[%s7 + $0x10] sm:$0xff] %v409
  %418 = vst [vmem:[%s7 + $0x18] sm:$0xff] %v412
  // Predicated region
  $region30: #{generalized_rcnn_forward.3} parent=0 // pred_check
    _
  $region31: #{generalized_rcnn_forward.3} parent=0 // pred_check_branch
    %420 = sbr.rel (0) target = $region33
  $region32: #{generalized_rcnn_forward.3} parent=0 // pred_region
    _
  $region33: #{generalized_rcnn_forward.3} parent=0 // pred_fallthru
    _
  // Predicated region
  $region34: #{generalized_rcnn_forward.3} parent=0 // pred_check
    _
  $region35: #{generalized_rcnn_forward.3} parent=0 // pred_check_branch
    %422 = sbr.rel (0) target = $region37
  $region36: #{generalized_rcnn_forward.3} parent=0 // pred_region
    _
  $region37: #{generalized_rcnn_forward.3} parent=0 // pred_fallthru
    _

// kernel: sub.51
$region0: #{sub.51}
  %s0 = inlined_call_operand.vmem [shape: f32[32], index: 0, kind: input, shape index: {}]
  %s1 = inlined_call_operand.vmem [shape: f32[2,16], index: 1, kind: output, shape index: {}]
  $region1: #{sub.51} parent=0
    #allocation0 [shape = 'u8[4096]{0}', space=vmem, size = 0x1000, scoped, tag = 'scoped mem for output reshape']
    #allocation1 [shape = 'u8[4096]{0}', space=vmem, size = 0x1000, scoped, tag = 'scoped mem for input reshape']
    %s3 = sshllo.u32 0, 1
    %v4 = vld [vmem:[%s0] sm:%s3]
    %5 = vst [vmem:[#allocation1] sm:%s3] %v4
    %v6 = vld [vmem:[#allocation1] sm:$0x1]
    %vm7 = vcmask 130048
    %8 = vst.msk [vmem:[#allocation0] sm:$0x1] %vm7, %v6
    %v9 = vld [vmem:[#allocation1] sm:$0x1]
    %10 = vrot.lane.b32.xlu0 %v9, 112
    %v11 = vpop.permute.xlu0 %10
    %vm12 = vcmask 130048
    %s13 = scalar_lea.vmem [#allocation0], 1
    %14 = vst.msk [vmem:[%s13] sm:$0x1] %vm12, %v11
    %s16 = sshllo.u32 0, 2
    %v18 = vld [vmem:[#allocation0] sm:%s16]
    %s19 = sshllo.u32 0, 2
    %20 = vst [vmem:[%s1] sm:%s19] %v18

</llo_original>
